<compile_context>
chip_gen: v7x
topology: tpu7x:2x2x1
jax: 0.10.0
libtpu: 0.0.40
codegen_flags: <defaults>
</compile_context>

<pallas_src>
import jax
import jax.numpy as jnp
from jax.experimental import pallas as pl
from jax.experimental.pallas import tpu as pltpu


def _linear_kernel(x_ref, wt_ref, b_ref, o_ref):
    # x_ref:  (B, F)      bf16 activations (full array every step; tiny)
    # wt_ref: (1, F, TN)  bf16 tile-contiguous block of W^T (lane-dense on N)
    # b_ref:  (1, TN)     f32 bias tile
    # o_ref:  (B, TN)     f32 output tile
    acc = jnp.dot(x_ref[...], wt_ref[0], preferred_element_type=jnp.float32)
    o_ref[...] = acc + b_ref[...]


def _pick_tile_n(F, N, weight_itemsize, per_buffer_budget_bytes):
    """Largest tn (power-of-two divisor of N, multiple of 128) such that one
    W^T tile fits the per-buffer VMEM budget, capped at N//2 (>=2 grid steps)."""
    tn = N // 2
    while tn > 512 and F * tn * weight_itemsize > per_buffer_budget_bytes:
        tn //= 2
    assert N % tn == 0 and tn % 128 == 0
    return tn


def prepare_linear_probe_params(weight, bias, *,
                                per_buffer_budget_bytes=4 << 20):
    """One-time parameter packing (do at load time, NOT per forward).

    weight: (N, F) float32  -- PyTorch nn.Linear convention
    bias:   (N,)   float32
    returns (wt_packed, b2) with
      wt_packed: (n_tiles, F, tn) bfloat16  -- tile-contiguous W^T
      b2:        (1, N) float32
    """
    weight = jnp.asarray(weight)
    N, F = weight.shape
    tn = _pick_tile_n(F, N, jnp.dtype(jnp.bfloat16).itemsize,
                      per_buffer_budget_bytes)
    n_tiles = N // tn
    # wt_packed[j, f, t] == W^T[f, j*tn + t] == weight[j*tn + t, f]
    wt_packed = (weight.reshape(n_tiles, tn, F)
                       .transpose(0, 2, 1)
                       .astype(jnp.bfloat16))
    b2 = jnp.asarray(bias).reshape(1, -1).astype(jnp.float32)
    return wt_packed, b2


def linear_probe_forward(x_nchw, wt_packed, b2):
    """Forward pass of LinearProbe.

    x_nchw:    (B, feature_dim, 1, 1) float32 (pooled backbone features, NCHW)
    wt_packed: (n_tiles, feature_dim, tn) bfloat16 (pre-packed W^T tiles)
    b2:        (1, N) float32
    returns    (B, 1, 256, 256) float32
    """
    B = x_nchw.shape[0]
    x = x_nchw.reshape(B, -1).astype(jnp.bfloat16)   # torch: x.view(x.size(0), -1)
    F = x.shape[1]
    n_tiles, Fw, tn = wt_packed.shape
    assert Fw == F
    N = n_tiles * tn
    assert N == 256 * 256                            # hardcoded in module.forward
    assert n_tiles >= 2                              # >=2 parallel steps (v7x: 2 TCs)

    # Double-buffered working set (weights dominate); generous headroom.
    vmem_need = (2 * F * tn * 2            # W^T tiles, bf16
                 + 2 * tn * 4              # bias tiles, f32
                 + 2 * B * tn * 4          # output tiles, f32
                 + 2 * B * F * 2)          # x, bf16
    vmem_limit = int(min(max(2 * vmem_need, 16 << 20), 48 << 20))

    cost = pl.CostEstimate(
        flops=2 * B * F * N,
        transcendentals=0,
        bytes_accessed=(F * N * 2            # bf16 weight stream (dominant)
                        + N * 4              # f32 bias
                        + n_tiles * B * F * 2  # x re-read per step
                        + B * N * 4),        # f32 output
    )

    out = pl.pallas_call(
        _linear_kernel,
        out_shape=jax.ShapeDtypeStruct((B, N), jnp.float32),
        grid_spec=pltpu.PrefetchScalarGridSpec(
            num_scalar_prefetch=0,
            grid=(n_tiles,),
            in_specs=[
                pl.BlockSpec((B, F), lambda j: (0, 0)),       # x: whole array
                pl.BlockSpec((1, F, tn), lambda j: (j, 0, 0)),  # W^T tile (contiguous)
                pl.BlockSpec((1, tn), lambda j: (0, j)),        # bias tile
            ],
            out_specs=pl.BlockSpec((B, tn), lambda j: (0, j)),
        ),
        compiler_params=pltpu.CompilerParams(
            dimension_semantics=("parallel",),
            vmem_limit_bytes=vmem_limit,
        ),
        cost_estimate=cost,
    )(x, wt_packed, b2)

    return out.reshape(B, 1, 256, 256)    # torch: x.view(x.size(0), 1, 256, 256)


if __name__ == "__main__":
    # Small, deterministic synthetic setup.
    B = 2
    feature_dim = 32            # small stand-in for backbone.fc.in_features
    N = 256 * 256               # hardcoded output size in the module's forward

    key = jax.random.PRNGKey(0)
    kx, kw, kb = jax.random.split(key, 3)

    # Input: pooled backbone feature map, NCHW (B, feature_dim, 1, 1).
    x = jax.random.normal(kx, (B, feature_dim, 1, 1), dtype=jnp.float32)

    # nn.Linear default init: U(-1/sqrt(F), 1/sqrt(F)) for both weight and bias.
    bound = 1.0 / (feature_dim ** 0.5)
    weight = jax.random.uniform(kw, (N, feature_dim), jnp.float32, -bound, bound)
    bias = jax.random.uniform(kb, (N,), jnp.float32, -bound, bound)

    # Pack params once (transpose + tile-pack + bf16 cast hoisted out of hot path).
    wt_packed, b2 = prepare_linear_probe_params(weight, bias)
    wt_packed = jax.block_until_ready(wt_packed)
    assert wt_packed.shape == (2, feature_dim, 32768)   # F=32 -> tn=32768, 2 steps

    y = linear_probe_forward(x, wt_packed, b2)
    y = jax.block_until_ready(y)

    # Cross-check against plain-JAX f32 reference (bf16 weights => relaxed tol).
    ref = (x.reshape(B, -1) @ weight.T + bias).reshape(B, 1, 256, 256)
    assert y.shape == (B, 1, 256, 256)
    assert jnp.allclose(y, ref, atol=3e-2, rtol=3e-2), (
        float(jnp.max(jnp.abs(y - ref))))

    print("KERNEL_OK")
</pallas_src>

<mosaic_0001>
module attributes {stable_mosaic.version = 11 : i64} {
  func.func @_linear_kernel(%arg0: i32, %arg1: memref<2x32xbf16, #tpu.memory_space<vmem>>, %arg2: memref<1x32x32768xbf16, #tpu.memory_space<vmem>>, %arg3: memref<1x32768xf32, #tpu.memory_space<vmem>>, %arg4: memref<2x32768xf32, #tpu.memory_space<vmem>>) attributes {dimension_semantics = [#tpu.dimension_semantics<parallel>], iteration_bounds = array<i64: 2>, scalar_prefetch = 0 : i64, scratch_operands = 0 : i64, tpu.core_type = #tpu.core_type<tc>, window_params = [{pipeline_mode = #tpu.pipeline_mode<synchronous>, transform_indices = @transform_0, window_bounds = array<i64: 2, 32>}, {transform_indices = @transform_1, window_bounds = array<i64: 1, 32, 32768>}, {transform_indices = @transform_2, window_bounds = array<i64: 1, 32768>}, {transform_indices = @transform_3, window_bounds = array<i64: 2, 32768>}]} {
    %c0 = arith.constant 0 : index
    %c0_0 = arith.constant 0 : index
    %0 = vector.load %arg1[%c0, %c0_0] : memref<2x32xbf16, #tpu.memory_space<vmem>>, vector<2x32xbf16>
    %c0_1 = arith.constant 0 : index
    %c0_2 = arith.constant 0 : index
    %c0_3 = arith.constant 0 : index
    %1 = vector.load %arg2[%c0_1, %c0_2, %c0_3] : memref<1x32x32768xbf16, #tpu.memory_space<vmem>>, vector<1x32x32768xbf16>
    %2 = vector.shape_cast %1 : vector<1x32x32768xbf16> to vector<32x32768xbf16>
    %cst = arith.constant dense<0.000000e+00> : vector<2x32768xf32>
    %3 = tpu.matmul %0, %2, %cst {dimension_numbers = #tpu.dot_dimension_numbers<[1], [0], [0], [1], [0, 0, 1, 1], [], []>} : vector<2x32xbf16>, vector<32x32768xbf16>, vector<2x32768xf32> -> vector<2x32768xf32>
    %c0_4 = arith.constant 0 : index
    %c0_5 = arith.constant 0 : index
    %4 = vector.load %arg3[%c0_4, %c0_5] : memref<1x32768xf32, #tpu.memory_space<vmem>>, vector<1x32768xf32>
    %5 = vector.broadcast %4 : vector<1x32768xf32> to vector<2x32768xf32>
    %6 = arith.addf %3, %5 : vector<2x32768xf32>
    %c0_6 = arith.constant 0 : index
    %c0_7 = arith.constant 0 : index
    %7 = vector.load %arg4[%c0_6, %c0_7] : memref<2x32768xf32, #tpu.memory_space<vmem>>, vector<2x32768xf32>
    tpu.vector_store %arg4[%c0_6, %c0_7], %6 {strides = array<i32>} : memref<2x32768xf32, #tpu.memory_space<vmem>>, vector<2x32768xf32>,
    return
  }
  func.func @transform_0(%arg0: i32) -> (i32, i32) {
    %c0_i32 = arith.constant 0 : i32
    %c0_i32_0 = arith.constant 0 : i32
    %c0_i32_1 = arith.constant 0 : i32
    return %c0_i32, %c0_i32_0 : i32, i32
  }
  func.func @transform_1(%arg0: i32) -> (i32, i32, i32) {
    %c0_i32 = arith.constant 0 : i32
    %c0_i32_0 = arith.constant 0 : i32
    %c0_i32_1 = arith.constant 0 : i32
    return %arg0, %c0_i32, %c0_i32_0 : i32, i32, i32
  }
  func.func @transform_2(%arg0: i32) -> (i32, i32) {
    %c0_i32 = arith.constant 0 : i32
    %c0_i32_0 = arith.constant 0 : i32
    return %c0_i32, %arg0 : i32, i32
  }
  func.func @transform_3(%arg0: i32) -> (i32, i32) {
    %c0_i32 = arith.constant 0 : i32
    %c0_i32_0 = arith.constant 0 : i32
    return %c0_i32, %arg0 : i32, i32
  }
}

</mosaic_0001>

<llo_original>
// kernel: tpu_custom_call.1
$region0: #{tpu_custom_call.1}
  #allocation0 [shape = 'u32[]', space=smem, size = 0x4, offset = 0x4, fixed_abs, tag = 'smem constant byte address 0x4 - core index']
  #allocation1 [shape = 'u32[144,128]{1,0:T(1,128)}', space=vmem, size = 0x12000, scoped, tag = 'internal scratch']
  %s0 = inlined_call_operand.hbm [shape: bf16[2,32], index: 0, kind: input, shape index: {}]
  %s1 = inlined_call_operand.hbm [shape: bf16[2,32,32768], index: 1, kind: input, shape index: {}]
  %s2 = inlined_call_operand.hbm [shape: f32[1,65536], index: 2, kind: input, shape index: {}]
  %s3 = inlined_call_operand.hbm [shape: f32[2,65536], index: 3, kind: output, shape index: {}]
  %s4 = sld [smem:[#allocation0]]
  $region57: #{tpu_custom_call.1} parent=0
    _
  %s6 = ssub.s32 1, %s4
  %s7 = scalar_select 0, %s6, %s4
  $region1: #{tpu_custom_call.1} parent=0
    #allocation2 [shape = 'u8[512]{0}', space=vmem, size = 0x400, scoped, tag = 'input window, operand 0, single buffered']
    #allocation3 [shape = 's32[2]{0}', space=sflag, size = 0x8, scoped, tag = 'scoped memory for tpu_custom_call.1']
    #allocation4 [shape = 's32[2]{0}', space=sflag, size = 0x8, scoped, tag = 'scoped memory for tpu_custom_call.1']
    #allocation5 [shape = 'u8[4194304]{0}', space=vmem, size = 0x400000, scoped, tag = 'input window, operand 1']
    #allocation6 [shape = 's32[2]{0}', space=sflag, size = 0x8, scoped, tag = 'scoped memory for tpu_custom_call.1']
    #allocation7 [shape = 'u8[262144]{0}', space=vmem, size = 0x40000, scoped, tag = 'input window, operand 2']
    #allocation8 [shape = 'u8[524288]{0}', space=vmem, size = 0x80000, scoped, tag = 'output window, operand 0']
    %8 = vsyncpa [#allocation3], 0
    %9 = vsyncpa [#allocation6], 0
    %s10 = scalar_lea.sflag [#allocation6], 1
    %11 = vsyncpa %s10, 0
    %12 = vsyncpa [#allocation4], 0
    %s13 = scalar_lea.sflag [#allocation4], 1
    %14 = vsyncpa %s13, 0
    loop: start=0, step=1, limit=4
    $region2: #{tpu_custom_call.1} parent=1 // loop_pre_header
      _
    $region3: #{tpu_custom_call.1} parent=1 // loop_header
      %s16 = sphi 0, %s20
      %p17 = scmp.ge.s32.totalorder %s16, 4
      %s24 = sphi 0, %s24
      %s26 = sphi 0, %s24
      %s27 = sphi 0, %s26
      %s41 = sphi 0, %s27
      %s47 = sphi 0, %s49
      %s50 = sphi 0, %s47
      %s51 = sphi 0, %s50
      %s67 = sphi 0, %s51
      %s73 = sphi 0, %s75
      %s76 = sphi 0, %s73
      %s77 = sphi 0, %s76
      %s93 = sphi 0, %s77
      %s99 = sphi 0, %s101
      %s102 = sphi 0, %s99
      %s103 = sphi 0, %s102
      %s119 = sphi 0, %s103
    $region4: #{tpu_custom_call.1} parent=1 // loop_header_branch
      %19 = sbr.rel (%p17) target = $region8
    $region5: #{tpu_custom_call.1} parent=1 // loop_body
      %s21 = ssub.s32 %s16, 1
      %s22 = ssub.s32 %s16, 2
      %s23 = sadd.s32 %s16, 1
      %s25 = sadd.s32 %s24, 1
      %p28 = scmp.eq.s32.totalorder %s16, 1
      %p29 = scmp.ne.s32.totalorder %s24, %s26
      %p30 = scmp.eq.s32.totalorder %s16, 0
      %p31 = por %p29, %p30
      %p32 = scmp.ne.s32.totalorder %s24, %s26
      %p33 = scmp.eq.s32.totalorder %s21, 1
      %p34 = por %p32, %p33
      %p35 = scmp.ne.s32.totalorder %s26, %s27
      %p36 = scmp.eq.s32.totalorder %s21, 0
      %p37 = por %p35, %p36
      %p38 = scmp.ne.s32.totalorder %s26, %s27
      %p39 = scmp.eq.s32.totalorder %s22, 1
      %p40 = por %p38, %p39
      %p42 = scmp.ne.s32.totalorder %s27, %s41
      %p43 = scmp.eq.s32.totalorder %s22, 0
      %p44 = por %p42, %p43
      %s45 = ssub.s32 %s16, %s23
      %p46 = scmp.eq.s32.totalorder %s45, 0
      %s48 = sadd.s32 %s47, 1
      %s49 = scalar_select %p46, %s47, %s48
      %p52 = pneg %p46
      %p53 = scmp.eq.s32.totalorder %s16, 1
      %p54 = por %p52, %p53
      %p55 = scmp.ne.s32.totalorder %s47, %s50
      %p56 = scmp.eq.s32.totalorder %s16, 0
      %p57 = por %p55, %p56
      %p58 = scmp.ne.s32.totalorder %s47, %s50
      %p59 = scmp.eq.s32.totalorder %s21, 1
      %p60 = por %p58, %p59
      %p61 = scmp.ne.s32.totalorder %s50, %s51
      %p62 = scmp.eq.s32.totalorder %s21, 0
      %p63 = por %p61, %p62
      %p64 = scmp.ne.s32.totalorder %s50, %s51
      %p65 = scmp.eq.s32.totalorder %s22, 1
      %p66 = por %p64, %p65
      %p68 = scmp.ne.s32.totalorder %s51, %s67
      %p69 = scmp.eq.s32.totalorder %s22, 0
      %p70 = por %p68, %p69
      %s71 = ssub.s32 %s16, %s23
      %p72 = scmp.eq.s32.totalorder %s71, 0
      %s74 = sadd.s32 %s73, 1
      %s75 = scalar_select %p72, %s73, %s74
      %p78 = pneg %p72
      %p79 = scmp.eq.s32.totalorder %s16, 1
      %p80 = por %p78, %p79
      %p81 = scmp.ne.s32.totalorder %s73, %s76
      %p82 = scmp.eq.s32.totalorder %s16, 0
      %p83 = por %p81, %p82
      %p84 = scmp.ne.s32.totalorder %s73, %s76
      %p85 = scmp.eq.s32.totalorder %s21, 1
      %p86 = por %p84, %p85
      %p87 = scmp.ne.s32.totalorder %s76, %s77
      %p88 = scmp.eq.s32.totalorder %s21, 0
      %p89 = por %p87, %p88
      %p90 = scmp.ne.s32.totalorder %s76, %s77
      %p91 = scmp.eq.s32.totalorder %s22, 1
      %p92 = por %p90, %p91
      %p94 = scmp.ne.s32.totalorder %s77, %s93
      %p95 = scmp.eq.s32.totalorder %s22, 0
      %p96 = por %p94, %p95
      %s97 = ssub.s32 %s16, %s23
      %p98 = scmp.eq.s32.totalorder %s97, 0
      %s100 = sadd.s32 %s99, 1
      %s101 = scalar_select %p98, %s99, %s100
      %p104 = pneg %p98
      %p105 = scmp.eq.s32.totalorder %s16, 1
      %p106 = por %p104, %p105
      %p107 = scmp.ne.s32.totalorder %s99, %s102
      %p108 = scmp.eq.s32.totalorder %s16, 0
      %p109 = por %p107, %p108
      %p110 = scmp.ne.s32.totalorder %s99, %s102
      %p111 = scmp.eq.s32.totalorder %s21, 1
      %p112 = por %p110, %p111
      %p113 = scmp.ne.s32.totalorder %s102, %s103
      %p114 = scmp.eq.s32.totalorder %s21, 0
      %p115 = por %p113, %p114
      %p116 = scmp.ne.s32.totalorder %s102, %s103
      %p117 = scmp.eq.s32.totalorder %s22, 1
      %p118 = por %p116, %p117
      %p120 = scmp.ne.s32.totalorder %s103, %s119
      %p121 = scmp.eq.s32.totalorder %s22, 0
      %p122 = por %p120, %p121
      %p123 = scmp.le.s32.totalorder 1, %s16
      %p124 = scmp.lt.s32.totalorder %s16, 3
      %p125 = pnand %p123, %p124
      %p126 = pneg %p125
      // Predicated region
      $region9: #{tpu_custom_call.1} parent=5 // pred_check
        _
      $region10: #{tpu_custom_call.1} parent=5 // pred_check_branch
        %128 = sbr.rel (%p125) target = $region12
      $region11: #{tpu_custom_call.1} parent=5 // pred_region
        %s129 = ssub.s32 %s16, 1
        // Predicated region
        $region13: #{tpu_custom_call.1} parent=11 // pred_check
          %p130 = pneg %p37
        $region14: #{tpu_custom_call.1} parent=11 // pred_check_branch
          %132 = sbr.rel (%p130) target = $region16
        $region15: #{tpu_custom_call.1} parent=11 // pred_region
          %s134 = ssub.s32 16, 16
          %135 = vsyncadd [#allocation3], %s134
          %s137 = sshll.u32 [#allocation2], 4
          %s138 = int_to_ptr.vmem [resolvable:$true] %s137
          %140 = dma.hbm_to_vmem [thread:$0]  %s0, 16, %s138, [#allocation3]
        $region16: #{tpu_custom_call.1} parent=11 // pred_fallthru
          _
      $region12: #{tpu_custom_call.1} parent=5 // pred_fallthru
        _
      %p141 = scmp.lt.s32.totalorder %s16, 2
      // Predicated region
      $region17: #{tpu_custom_call.1} parent=5 // pred_check
        %p142 = pneg %p141
      $region18: #{tpu_custom_call.1} parent=5 // pred_check_branch
        %144 = sbr.rel (%p142) target = $region20
      $region19: #{tpu_custom_call.1} parent=5 // pred_region
        // Predicated region
        $region21: #{tpu_custom_call.1} parent=19 // pred_check
          %p145 = pneg %p57
        $region22: #{tpu_custom_call.1} parent=19 // pred_check_branch
          %147 = sbr.rel (%p145) target = $region24
        $region23: #{tpu_custom_call.1} parent=19 // pred_region
          %s148 = sand.u32 %s16, 1
          %s149 = scalar_lea.sflag [#allocation6], %s148
          %s150 = sand.u32 %s47, 1
          %s151 = smul.addr %s150, 4096
          %s152 = scalar_lea.vmem [#allocation5], %s151
          %s154 = ssub.s32 65536, 65536
          %155 = vsyncadd %s149, %s154
          %s156 = smul.addr %s16, 1024
          %s157 = smul.addr %s156, 64
          %s158 = scalar_lea.hbm %s1, %s157
          %s159 = sshll.u32 %s152, 4
          %s160 = int_to_ptr.vmem [resolvable:$true] %s159
          %165 = dma.hbm_to_vmem [thread:$0]  %s158, 65536, %s160, %s149, 16384, 16384, 1024
        $region24: #{tpu_custom_call.1} parent=19 // pred_fallthru
          _
        // Predicated region
        $region25: #{tpu_custom_call.1} parent=19 // pred_check
          %p166 = pneg %p83
        $region26: #{tpu_custom_call.1} parent=19 // pred_check_branch
          %168 = sbr.rel (%p166) target = $region28
        $region27: #{tpu_custom_call.1} parent=19 // pred_region
          %s169 = sand.u32 %s16, 1
          %s170 = scalar_lea.sflag [#allocation6], %s169
          %s171 = sand.u32 %s73, 1
          %s172 = smul.addr %s171, 256
          %s173 = scalar_lea.vmem [#allocation7], %s172
          %s174 = smul.u32 256, %s16
          %s176 = ssub.s32 4096, 4096
          %177 = vsyncadd %s170, %s176
          %s178 = smul.addr %s174, 16
          %s179 = scalar_lea.hbm %s2, %s178
          %s181 = sshll.u32 %s173, 4
          %s182 = int_to_ptr.vmem [resolvable:$true] %s181
          %184 = dma.hbm_to_vmem [thread:$0]  %s179, 4096, %s182, %s170
        $region28: #{tpu_custom_call.1} parent=19 // pred_fallthru
          _
      $region20: #{tpu_custom_call.1} parent=5 // pred_fallthru
        _
      %p185 = scmp.le.s32.totalorder 1, %s16
      %p186 = scmp.lt.s32.totalorder %s16, 3
      %p187 = pnand %p185, %p186
      %p188 = pneg %p187
      // Predicated region
      $region29: #{tpu_custom_call.1} parent=5 // pred_check
        _
      $region30: #{tpu_custom_call.1} parent=5 // pred_check_branch
        %190 = sbr.rel (%p187) target = $region32
      $region31: #{tpu_custom_call.1} parent=5 // pred_region
        %s191 = ssub.s32 %s16, 1
        // Predicated region
        $region33: #{tpu_custom_call.1} parent=31 // pred_check
          %p192 = pneg %p37
        $region34: #{tpu_custom_call.1} parent=31 // pred_check_branch
          %194 = sbr.rel (%p192) target = $region36
        $region35: #{tpu_custom_call.1} parent=31 // pred_region
          %195 = dma.done [#allocation3], 16
        $region36: #{tpu_custom_call.1} parent=31 // pred_fallthru
          _
        %s196 = sand.u32 %s21, 1
        %s197 = scalar_lea.sflag [#allocation6], %s196
        %s198 = sand.u32 %s50, 1
        %s199 = smul.addr %s198, 4096
        %s200 = scalar_lea.vmem [#allocation5], %s199
        // Predicated region
        $region37: #{tpu_custom_call.1} parent=31 // pred_check
          %p201 = pneg %p63
        $region38: #{tpu_custom_call.1} parent=31 // pred_check_branch
          %203 = sbr.rel (%p201) target = $region40
        $region39: #{tpu_custom_call.1} parent=31 // pred_region
          %204 = dma.done %s197, 65536
        $region40: #{tpu_custom_call.1} parent=31 // pred_fallthru
          _
        %s205 = sand.u32 %s21, 1
        %s206 = scalar_lea.sflag [#allocation6], %s205
        %s207 = sand.u32 %s76, 1
        %s208 = smul.addr %s207, 256
        %s209 = scalar_lea.vmem [#allocation7], %s208
        // Predicated region
        $region41: #{tpu_custom_call.1} parent=31 // pred_check
          %p210 = pneg %p89
        $region42: #{tpu_custom_call.1} parent=31 // pred_check_branch
          %212 = sbr.rel (%p210) target = $region44
        $region43: #{tpu_custom_call.1} parent=31 // pred_region
          %213 = dma.done %s206, 4096
        $region44: #{tpu_custom_call.1} parent=31 // pred_fallthru
          _
        %p214 = pneg %p37
        %p215 = pneg %p34
        %s216 = sand.u32 %s21, 1
        %s217 = scalar_lea.sflag [#allocation6], %s216
        %s218 = sand.u32 %s50, 1
        %s219 = smul.addr %s218, 4096
        %s220 = scalar_lea.vmem [#allocation5], %s219
        %p221 = pneg %p63
        %p222 = pneg %p60
        %s223 = sand.u32 %s21, 1
        %s224 = scalar_lea.sflag [#allocation6], %s223
        %s225 = sand.u32 %s76, 1
        %s226 = smul.addr %s225, 256
        %s227 = scalar_lea.vmem [#allocation7], %s226
        %p228 = pneg %p89
        %p229 = pneg %p86
        %p230 = pneg %p115
        %p231 = pneg %p112
        %s232 = sand.u32 %s102, 1
        %s233 = scalar_lea.sflag [#allocation4], %s232
        %s234 = sand.u32 %s102, 1
        %s235 = smul.addr %s234, 512
        %s236 = scalar_lea.vmem [#allocation8], %s235
        %s237 = smul.u32 256, %s21
        %s238 = smul.u32 256, %s21
        %v240 = vld [vmem:[#allocation2] sm:$0x1]
        %v241 = vld [vmem:[%s200] sm:$0xff]
        %v242 = vld [vmem:[%s200 + $0x8] sm:$0xff]
        %v243 = vld [vmem:[%s200 + $0x10] sm:$0xff]
        %v244 = vld [vmem:[%s200 + $0x18] sm:$0xff]
        %v245 = vld [vmem:[%s200 + $0x20] sm:$0xff]
        %v246 = vld [vmem:[%s200 + $0x28] sm:$0xff]
        %v247 = vld [vmem:[%s200 + $0x30] sm:$0xff]
        %v248 = vld [vmem:[%s200 + $0x38] sm:$0xff]
        %v249 = vld [vmem:[%s200 + $0x40] sm:$0xff]
        %v250 = vld [vmem:[%s200 + $0x48] sm:$0xff]
        %v251 = vld [vmem:[%s200 + $0x50] sm:$0xff]
        %v252 = vld [vmem:[%s200 + $0x58] sm:$0xff]
        %v253 = vld [vmem:[%s200 + $0x60] sm:$0xff]
        %v254 = vld [vmem:[%s200 + $0x68] sm:$0xff]
        %v255 = vld [vmem:[%s200 + $0x70] sm:$0xff]
        %v256 = vld [vmem:[%s200 + $0x78] sm:$0xff]
        %v257 = vld [vmem:[%s200 + $0x80] sm:$0xff]
        %v258 = vld [vmem:[%s200 + $0x88] sm:$0xff]
        %v259 = vld [vmem:[%s200 + $0x90] sm:$0xff]
        %v260 = vld [vmem:[%s200 + $0x98] sm:$0xff]
        %v261 = vld [vmem:[%s200 + $0xa0] sm:$0xff]
        %v262 = vld [vmem:[%s200 + $0xa8] sm:$0xff]
        %v263 = vld [vmem:[%s200 + $0xb0] sm:$0xff]
        %v264 = vld [vmem:[%s200 + $0xb8] sm:$0xff]
        %v265 = vld [vmem:[%s200 + $0xc0] sm:$0xff]
        %v266 = vld [vmem:[%s200 + $0xc8] sm:$0xff]
        %v267 = vld [vmem:[%s200 + $0xd0] sm:$0xff]
        %v268 = vld [vmem:[%s200 + $0xd8] sm:$0xff]
        %v269 = vld [vmem:[%s200 + $0xe0] sm:$0xff]
        %v270 = vld [vmem:[%s200 + $0xe8] sm:$0xff]
        %v271 = vld [vmem:[%s200 + $0xf0] sm:$0xff]
        %v272 = vld [vmem:[%s200 + $0xf8] sm:$0xff]
        %v273 = vld [vmem:[%s200 + $0x100] sm:$0xff]
        %v274 = vld [vmem:[%s200 + $0x108] sm:$0xff]
        %v275 = vld [vmem:[%s200 + $0x110] sm:$0xff]
        %v276 = vld [vmem:[%s200 + $0x118] sm:$0xff]
        %v277 = vld [vmem:[%s200 + $0x120] sm:$0xff]
        %v278 = vld [vmem:[%s200 + $0x128] sm:$0xff]
        %v279 = vld [vmem:[%s200 + $0x130] sm:$0xff]
        %v280 = vld [vmem:[%s200 + $0x138] sm:$0xff]
        %v281 = vld [vmem:[%s200 + $0x140] sm:$0xff]
        %v282 = vld [vmem:[%s200 + $0x148] sm:$0xff]
        %v283 = vld [vmem:[%s200 + $0x150] sm:$0xff]
        %v284 = vld [vmem:[%s200 + $0x158] sm:$0xff]
        %v285 = vld [vmem:[%s200 + $0x160] sm:$0xff]
        %v286 = vld [vmem:[%s200 + $0x168] sm:$0xff]
        %v287 = vld [vmem:[%s200 + $0x170] sm:$0xff]
        %v288 = vld [vmem:[%s200 + $0x178] sm:$0xff]
        %v289 = vld [vmem:[%s200 + $0x180] sm:$0xff]
        %v290 = vld [vmem:[%s200 + $0x188] sm:$0xff]
        %v291 = vld [vmem:[%s200 + $0x190] sm:$0xff]
        %v292 = vld [vmem:[%s200 + $0x198] sm:$0xff]
        %v293 = vld [vmem:[%s200 + $0x1a0] sm:$0xff]
        %v294 = vld [vmem:[%s200 + $0x1a8] sm:$0xff]
        %v295 = vld [vmem:[%s200 + $0x1b0] sm:$0xff]
        %v296 = vld [vmem:[%s200 + $0x1b8] sm:$0xff]
        %v297 = vld [vmem:[%s200 + $0x1c0] sm:$0xff]
        %v298 = vld [vmem:[%s200 + $0x1c8] sm:$0xff]
        %v299 = vld [vmem:[%s200 + $0x1d0] sm:$0xff]
        %v300 = vld [vmem:[%s200 + $0x1d8] sm:$0xff]
        %v301 = vld [vmem:[%s200 + $0x1e0] sm:$0xff]
        %v302 = vld [vmem:[%s200 + $0x1e8] sm:$0xff]
        %v303 = vld [vmem:[%s200 + $0x1f0] sm:$0xff]
        %v304 = vld [vmem:[%s200 + $0x1f8] sm:$0xff]
        %v305 = vld [vmem:[%s200 + $0x200] sm:$0xff]
        %v306 = vld [vmem:[%s200 + $0x208] sm:$0xff]
        %v307 = vld [vmem:[%s200 + $0x210] sm:$0xff]
        %v308 = vld [vmem:[%s200 + $0x218] sm:$0xff]
        %v309 = vld [vmem:[%s200 + $0x220] sm:$0xff]
        %v310 = vld [vmem:[%s200 + $0x228] sm:$0xff]
        %v311 = vld [vmem:[%s200 + $0x230] sm:$0xff]
        %v312 = vld [vmem:[%s200 + $0x238] sm:$0xff]
        %v313 = vld [vmem:[%s200 + $0x240] sm:$0xff]
        %v314 = vld [vmem:[%s200 + $0x248] sm:$0xff]
        %v315 = vld [vmem:[%s200 + $0x250] sm:$0xff]
        %v316 = vld [vmem:[%s200 + $0x258] sm:$0xff]
        %v317 = vld [vmem:[%s200 + $0x260] sm:$0xff]
        %v318 = vld [vmem:[%s200 + $0x268] sm:$0xff]
        %v319 = vld [vmem:[%s200 + $0x270] sm:$0xff]
        %v320 = vld [vmem:[%s200 + $0x278] sm:$0xff]
        %v321 = vld [vmem:[%s200 + $0x280] sm:$0xff]
        %v322 = vld [vmem:[%s200 + $0x288] sm:$0xff]
        %v323 = vld [vmem:[%s200 + $0x290] sm:$0xff]
        %v324 = vld [vmem:[%s200 + $0x298] sm:$0xff]
        %v325 = vld [vmem:[%s200 + $0x2a0] sm:$0xff]
        %v326 = vld [vmem:[%s200 + $0x2a8] sm:$0xff]
        %v327 = vld [vmem:[%s200 + $0x2b0] sm:$0xff]
        %v328 = vld [vmem:[%s200 + $0x2b8] sm:$0xff]
        %v329 = vld [vmem:[%s200 + $0x2c0] sm:$0xff]
        %v330 = vld [vmem:[%s200 + $0x2c8] sm:$0xff]
        %v331 = vld [vmem:[%s200 + $0x2d0] sm:$0xff]
        %v332 = vld [vmem:[%s200 + $0x2d8] sm:$0xff]
        %v333 = vld [vmem:[%s200 + $0x2e0] sm:$0xff]
        %v334 = vld [vmem:[%s200 + $0x2e8] sm:$0xff]
        %v335 = vld [vmem:[%s200 + $0x2f0] sm:$0xff]
        %v336 = vld [vmem:[%s200 + $0x2f8] sm:$0xff]
        %v337 = vld [vmem:[%s200 + $0x300] sm:$0xff]
        %v338 = vld [vmem:[%s200 + $0x308] sm:$0xff]
        %v339 = vld [vmem:[%s200 + $0x310] sm:$0xff]
        %v340 = vld [vmem:[%s200 + $0x318] sm:$0xff]
        %v341 = vld [vmem:[%s200 + $0x320] sm:$0xff]
        %v342 = vld [vmem:[%s200 + $0x328] sm:$0xff]
        %v343 = vld [vmem:[%s200 + $0x330] sm:$0xff]
        %v344 = vld [vmem:[%s200 + $0x338] sm:$0xff]
        %v345 = vld [vmem:[%s200 + $0x340] sm:$0xff]
        %v346 = vld [vmem:[%s200 + $0x348] sm:$0xff]
        %v347 = vld [vmem:[%s200 + $0x350] sm:$0xff]
        %v348 = vld [vmem:[%s200 + $0x358] sm:$0xff]
        %v349 = vld [vmem:[%s200 + $0x360] sm:$0xff]
        %v350 = vld [vmem:[%s200 + $0x368] sm:$0xff]
        %v351 = vld [vmem:[%s200 + $0x370] sm:$0xff]
        %v352 = vld [vmem:[%s200 + $0x378] sm:$0xff]
        %v353 = vld [vmem:[%s200 + $0x380] sm:$0xff]
        %v354 = vld [vmem:[%s200 + $0x388] sm:$0xff]
        %v355 = vld [vmem:[%s200 + $0x390] sm:$0xff]
        %v356 = vld [vmem:[%s200 + $0x398] sm:$0xff]
        %v357 = vld [vmem:[%s200 + $0x3a0] sm:$0xff]
        %v358 = vld [vmem:[%s200 + $0x3a8] sm:$0xff]
        %v359 = vld [vmem:[%s200 + $0x3b0] sm:$0xff]
        %v360 = vld [vmem:[%s200 + $0x3b8] sm:$0xff]
        %v361 = vld [vmem:[%s200 + $0x3c0] sm:$0xff]
        %v362 = vld [vmem:[%s200 + $0x3c8] sm:$0xff]
        %v363 = vld [vmem:[%s200 + $0x3d0] sm:$0xff]
        %v364 = vld [vmem:[%s200 + $0x3d8] sm:$0xff]
        %v365 = vld [vmem:[%s200 + $0x3e0] sm:$0xff]
        %v366 = vld [vmem:[%s200 + $0x3e8] sm:$0xff]
        %v367 = vld [vmem:[%s200 + $0x3f0] sm:$0xff]
        %v368 = vld [vmem:[%s200 + $0x3f8] sm:$0xff]
        %v369 = vld [vmem:[%s200 + $0x400] sm:$0xff]
        %v370 = vld [vmem:[%s200 + $0x408] sm:$0xff]
        %v371 = vld [vmem:[%s200 + $0x410] sm:$0xff]
        %v372 = vld [vmem:[%s200 + $0x418] sm:$0xff]
        %v373 = vld [vmem:[%s200 + $0x420] sm:$0xff]
        %v374 = vld [vmem:[%s200 + $0x428] sm:$0xff]
        %v375 = vld [vmem:[%s200 + $0x430] sm:$0xff]
        %v376 = vld [vmem:[%s200 + $0x438] sm:$0xff]
        %v377 = vld [vmem:[%s200 + $0x440] sm:$0xff]
        %v378 = vld [vmem:[%s200 + $0x448] sm:$0xff]
        %v379 = vld [vmem:[%s200 + $0x450] sm:$0xff]
        %v380 = vld [vmem:[%s200 + $0x458] sm:$0xff]
        %v381 = vld [vmem:[%s200 + $0x460] sm:$0xff]
        %v382 = vld [vmem:[%s200 + $0x468] sm:$0xff]
        %v383 = vld [vmem:[%s200 + $0x470] sm:$0xff]
        %v384 = vld [vmem:[%s200 + $0x478] sm:$0xff]
        %v385 = vld [vmem:[%s200 + $0x480] sm:$0xff]
        %v386 = vld [vmem:[%s200 + $0x488] sm:$0xff]
        %v387 = vld [vmem:[%s200 + $0x490] sm:$0xff]
        %v388 = vld [vmem:[%s200 + $0x498] sm:$0xff]
        %v389 = vld [vmem:[%s200 + $0x4a0] sm:$0xff]
        %v390 = vld [vmem:[%s200 + $0x4a8] sm:$0xff]
        %v391 = vld [vmem:[%s200 + $0x4b0] sm:$0xff]
        %v392 = vld [vmem:[%s200 + $0x4b8] sm:$0xff]
        %v393 = vld [vmem:[%s200 + $0x4c0] sm:$0xff]
        %v394 = vld [vmem:[%s200 + $0x4c8] sm:$0xff]
        %v395 = vld [vmem:[%s200 + $0x4d0] sm:$0xff]
        %v396 = vld [vmem:[%s200 + $0x4d8] sm:$0xff]
        %v397 = vld [vmem:[%s200 + $0x4e0] sm:$0xff]
        %v398 = vld [vmem:[%s200 + $0x4e8] sm:$0xff]
        %v399 = vld [vmem:[%s200 + $0x4f0] sm:$0xff]
        %v400 = vld [vmem:[%s200 + $0x4f8] sm:$0xff]
        %v401 = vld [vmem:[%s200 + $0x500] sm:$0xff]
        %v402 = vld [vmem:[%s200 + $0x508] sm:$0xff]
        %v403 = vld [vmem:[%s200 + $0x510] sm:$0xff]
        %v404 = vld [vmem:[%s200 + $0x518] sm:$0xff]
        %v405 = vld [vmem:[%s200 + $0x520] sm:$0xff]
        %v406 = vld [vmem:[%s200 + $0x528] sm:$0xff]
        %v407 = vld [vmem:[%s200 + $0x530] sm:$0xff]
        %v408 = vld [vmem:[%s200 + $0x538] sm:$0xff]
        %v409 = vld [vmem:[%s200 + $0x540] sm:$0xff]
        %v410 = vld [vmem:[%s200 + $0x548] sm:$0xff]
        %v411 = vld [vmem:[%s200 + $0x550] sm:$0xff]
        %v412 = vld [vmem:[%s200 + $0x558] sm:$0xff]
        %v413 = vld [vmem:[%s200 + $0x560] sm:$0xff]
        %v414 = vld [vmem:[%s200 + $0x568] sm:$0xff]
        %v415 = vld [vmem:[%s200 + $0x570] sm:$0xff]
        %v416 = vld [vmem:[%s200 + $0x578] sm:$0xff]
        %v417 = vld [vmem:[%s200 + $0x580] sm:$0xff]
        %v418 = vld [vmem:[%s200 + $0x588] sm:$0xff]
        %v419 = vld [vmem:[%s200 + $0x590] sm:$0xff]
        %v420 = vld [vmem:[%s200 + $0x598] sm:$0xff]
        %v421 = vld [vmem:[%s200 + $0x5a0] sm:$0xff]
        %v422 = vld [vmem:[%s200 + $0x5a8] sm:$0xff]
        %v423 = vld [vmem:[%s200 + $0x5b0] sm:$0xff]
        %v424 = vld [vmem:[%s200 + $0x5b8] sm:$0xff]
        %v425 = vld [vmem:[%s200 + $0x5c0] sm:$0xff]
        %v426 = vld [vmem:[%s200 + $0x5c8] sm:$0xff]
        %v427 = vld [vmem:[%s200 + $0x5d0] sm:$0xff]
        %v428 = vld [vmem:[%s200 + $0x5d8] sm:$0xff]
        %v429 = vld [vmem:[%s200 + $0x5e0] sm:$0xff]
        %v430 = vld [vmem:[%s200 + $0x5e8] sm:$0xff]
        %v431 = vld [vmem:[%s200 + $0x5f0] sm:$0xff]
        %v432 = vld [vmem:[%s200 + $0x5f8] sm:$0xff]
        %v433 = vld [vmem:[%s200 + $0x600] sm:$0xff]
        %v434 = vld [vmem:[%s200 + $0x608] sm:$0xff]
        %v435 = vld [vmem:[%s200 + $0x610] sm:$0xff]
        %v436 = vld [vmem:[%s200 + $0x618] sm:$0xff]
        %v437 = vld [vmem:[%s200 + $0x620] sm:$0xff]
        %v438 = vld [vmem:[%s200 + $0x628] sm:$0xff]
        %v439 = vld [vmem:[%s200 + $0x630] sm:$0xff]
        %v440 = vld [vmem:[%s200 + $0x638] sm:$0xff]
        %v441 = vld [vmem:[%s200 + $0x640] sm:$0xff]
        %v442 = vld [vmem:[%s200 + $0x648] sm:$0xff]
        %v443 = vld [vmem:[%s200 + $0x650] sm:$0xff]
        %v444 = vld [vmem:[%s200 + $0x658] sm:$0xff]
        %v445 = vld [vmem:[%s200 + $0x660] sm:$0xff]
        %v446 = vld [vmem:[%s200 + $0x668] sm:$0xff]
        %v447 = vld [vmem:[%s200 + $0x670] sm:$0xff]
        %v448 = vld [vmem:[%s200 + $0x678] sm:$0xff]
        %v449 = vld [vmem:[%s200 + $0x680] sm:$0xff]
        %v450 = vld [vmem:[%s200 + $0x688] sm:$0xff]
        %v451 = vld [vmem:[%s200 + $0x690] sm:$0xff]
        %v452 = vld [vmem:[%s200 + $0x698] sm:$0xff]
        %v453 = vld [vmem:[%s200 + $0x6a0] sm:$0xff]
        %v454 = vld [vmem:[%s200 + $0x6a8] sm:$0xff]
        %v455 = vld [vmem:[%s200 + $0x6b0] sm:$0xff]
        %v456 = vld [vmem:[%s200 + $0x6b8] sm:$0xff]
        %v457 = vld [vmem:[%s200 + $0x6c0] sm:$0xff]
        %v458 = vld [vmem:[%s200 + $0x6c8] sm:$0xff]
        %v459 = vld [vmem:[%s200 + $0x6d0] sm:$0xff]
        %v460 = vld [vmem:[%s200 + $0x6d8] sm:$0xff]
        %v461 = vld [vmem:[%s200 + $0x6e0] sm:$0xff]
        %v462 = vld [vmem:[%s200 + $0x6e8] sm:$0xff]
        %v463 = vld [vmem:[%s200 + $0x6f0] sm:$0xff]
        %v464 = vld [vmem:[%s200 + $0x6f8] sm:$0xff]
        %v465 = vld [vmem:[%s200 + $0x700] sm:$0xff]
        %v466 = vld [vmem:[%s200 + $0x708] sm:$0xff]
        %v467 = vld [vmem:[%s200 + $0x710] sm:$0xff]
        %v468 = vld [vmem:[%s200 + $0x718] sm:$0xff]
        %v469 = vld [vmem:[%s200 + $0x720] sm:$0xff]
        %v470 = vld [vmem:[%s200 + $0x728] sm:$0xff]
        %v471 = vld [vmem:[%s200 + $0x730] sm:$0xff]
        %v472 = vld [vmem:[%s200 + $0x738] sm:$0xff]
        %v473 = vld [vmem:[%s200 + $0x740] sm:$0xff]
        %v474 = vld [vmem:[%s200 + $0x748] sm:$0xff]
        %v475 = vld [vmem:[%s200 + $0x750] sm:$0xff]
        %v476 = vld [vmem:[%s200 + $0x758] sm:$0xff]
        %v477 = vld [vmem:[%s200 + $0x760] sm:$0xff]
        %v478 = vld [vmem:[%s200 + $0x768] sm:$0xff]
        %v479 = vld [vmem:[%s200 + $0x770] sm:$0xff]
        %v480 = vld [vmem:[%s200 + $0x778] sm:$0xff]
        %v481 = vld [vmem:[%s200 + $0x780] sm:$0xff]
        %v482 = vld [vmem:[%s200 + $0x788] sm:$0xff]
        %v483 = vld [vmem:[%s200 + $0x790] sm:$0xff]
        %v484 = vld [vmem:[%s200 + $0x798] sm:$0xff]
        %v485 = vld [vmem:[%s200 + $0x7a0] sm:$0xff]
        %v486 = vld [vmem:[%s200 + $0x7a8] sm:$0xff]
        %v487 = vld [vmem:[%s200 + $0x7b0] sm:$0xff]
        %v488 = vld [vmem:[%s200 + $0x7b8] sm:$0xff]
        %v489 = vld [vmem:[%s200 + $0x7c0] sm:$0xff]
        %v490 = vld [vmem:[%s200 + $0x7c8] sm:$0xff]
        %v491 = vld [vmem:[%s200 + $0x7d0] sm:$0xff]
        %v492 = vld [vmem:[%s200 + $0x7d8] sm:$0xff]
        %v493 = vld [vmem:[%s200 + $0x7e0] sm:$0xff]
        %v494 = vld [vmem:[%s200 + $0x7e8] sm:$0xff]
        %v495 = vld [vmem:[%s200 + $0x7f0] sm:$0xff]
        %v496 = vld [vmem:[%s200 + $0x7f8] sm:$0xff]
        %v497 = vld [vmem:[%s200 + $0x800] sm:$0xff]
        %v498 = vld [vmem:[%s200 + $0x808] sm:$0xff]
        %v499 = vld [vmem:[%s200 + $0x810] sm:$0xff]
        %v500 = vld [vmem:[%s200 + $0x818] sm:$0xff]
        %v501 = vld [vmem:[%s200 + $0x820] sm:$0xff]
        %v502 = vld [vmem:[%s200 + $0x828] sm:$0xff]
        %v503 = vld [vmem:[%s200 + $0x830] sm:$0xff]
        %v504 = vld [vmem:[%s200 + $0x838] sm:$0xff]
        %v505 = vld [vmem:[%s200 + $0x840] sm:$0xff]
        %v506 = vld [vmem:[%s200 + $0x848] sm:$0xff]
        %v507 = vld [vmem:[%s200 + $0x850] sm:$0xff]
        %v508 = vld [vmem:[%s200 + $0x858] sm:$0xff]
        %v509 = vld [vmem:[%s200 + $0x860] sm:$0xff]
        %v510 = vld [vmem:[%s200 + $0x868] sm:$0xff]
        %v511 = vld [vmem:[%s200 + $0x870] sm:$0xff]
        %v512 = vld [vmem:[%s200 + $0x878] sm:$0xff]
        %v513 = vld [vmem:[%s200 + $0x880] sm:$0xff]
        %v514 = vld [vmem:[%s200 + $0x888] sm:$0xff]
        %v515 = vld [vmem:[%s200 + $0x890] sm:$0xff]
        %v516 = vld [vmem:[%s200 + $0x898] sm:$0xff]
        %v517 = vld [vmem:[%s200 + $0x8a0] sm:$0xff]
        %v518 = vld [vmem:[%s200 + $0x8a8] sm:$0xff]
        %v519 = vld [vmem:[%s200 + $0x8b0] sm:$0xff]
        %v520 = vld [vmem:[%s200 + $0x8b8] sm:$0xff]
        %v521 = vld [vmem:[%s200 + $0x8c0] sm:$0xff]
        %v522 = vld [vmem:[%s200 + $0x8c8] sm:$0xff]
        %v523 = vld [vmem:[%s200 + $0x8d0] sm:$0xff]
        %v524 = vld [vmem:[%s200 + $0x8d8] sm:$0xff]
        %v525 = vld [vmem:[%s200 + $0x8e0] sm:$0xff]
        %v526 = vld [vmem:[%s200 + $0x8e8] sm:$0xff]
        %v527 = vld [vmem:[%s200 + $0x8f0] sm:$0xff]
        %v528 = vld [vmem:[%s200 + $0x8f8] sm:$0xff]
        %v529 = vld [vmem:[%s200 + $0x900] sm:$0xff]
        %v530 = vld [vmem:[%s200 + $0x908] sm:$0xff]
        %v531 = vld [vmem:[%s200 + $0x910] sm:$0xff]
        %v532 = vld [vmem:[%s200 + $0x918] sm:$0xff]
        %v533 = vld [vmem:[%s200 + $0x920] sm:$0xff]
        %v534 = vld [vmem:[%s200 + $0x928] sm:$0xff]
        %v535 = vld [vmem:[%s200 + $0x930] sm:$0xff]
        %v536 = vld [vmem:[%s200 + $0x938] sm:$0xff]
        %v537 = vld [vmem:[%s200 + $0x940] sm:$0xff]
        %v538 = vld [vmem:[%s200 + $0x948] sm:$0xff]
        %v539 = vld [vmem:[%s200 + $0x950] sm:$0xff]
        %v540 = vld [vmem:[%s200 + $0x958] sm:$0xff]
        %v541 = vld [vmem:[%s200 + $0x960] sm:$0xff]
        %v542 = vld [vmem:[%s200 + $0x968] sm:$0xff]
        %v543 = vld [vmem:[%s200 + $0x970] sm:$0xff]
        %v544 = vld [vmem:[%s200 + $0x978] sm:$0xff]
        %v545 = vld [vmem:[%s200 + $0x980] sm:$0xff]
        %v546 = vld [vmem:[%s200 + $0x988] sm:$0xff]
        %v547 = vld [vmem:[%s200 + $0x990] sm:$0xff]
        %v548 = vld [vmem:[%s200 + $0x998] sm:$0xff]
        %v549 = vld [vmem:[%s200 + $0x9a0] sm:$0xff]
        %v550 = vld [vmem:[%s200 + $0x9a8] sm:$0xff]
        %v551 = vld [vmem:[%s200 + $0x9b0] sm:$0xff]
        %v552 = vld [vmem:[%s200 + $0x9b8] sm:$0xff]
        %v553 = vld [vmem:[%s200 + $0x9c0] sm:$0xff]
        %v554 = vld [vmem:[%s200 + $0x9c8] sm:$0xff]
        %v555 = vld [vmem:[%s200 + $0x9d0] sm:$0xff]
        %v556 = vld [vmem:[%s200 + $0x9d8] sm:$0xff]
        %v557 = vld [vmem:[%s200 + $0x9e0] sm:$0xff]
        %v558 = vld [vmem:[%s200 + $0x9e8] sm:$0xff]
        %v559 = vld [vmem:[%s200 + $0x9f0] sm:$0xff]
        %v560 = vld [vmem:[%s200 + $0x9f8] sm:$0xff]
        %v561 = vld [vmem:[%s200 + $0xa00] sm:$0xff]
        %v562 = vld [vmem:[%s200 + $0xa08] sm:$0xff]
        %v563 = vld [vmem:[%s200 + $0xa10] sm:$0xff]
        %v564 = vld [vmem:[%s200 + $0xa18] sm:$0xff]
        %v565 = vld [vmem:[%s200 + $0xa20] sm:$0xff]
        %v566 = vld [vmem:[%s200 + $0xa28] sm:$0xff]
        %v567 = vld [vmem:[%s200 + $0xa30] sm:$0xff]
        %v568 = vld [vmem:[%s200 + $0xa38] sm:$0xff]
        %v569 = vld [vmem:[%s200 + $0xa40] sm:$0xff]
        %v570 = vld [vmem:[%s200 + $0xa48] sm:$0xff]
        %v571 = vld [vmem:[%s200 + $0xa50] sm:$0xff]
        %v572 = vld [vmem:[%s200 + $0xa58] sm:$0xff]
        %v573 = vld [vmem:[%s200 + $0xa60] sm:$0xff]
        %v574 = vld [vmem:[%s200 + $0xa68] sm:$0xff]
        %v575 = vld [vmem:[%s200 + $0xa70] sm:$0xff]
        %v576 = vld [vmem:[%s200 + $0xa78] sm:$0xff]
        %v577 = vld [vmem:[%s200 + $0xa80] sm:$0xff]
        %v578 = vld [vmem:[%s200 + $0xa88] sm:$0xff]
        %v579 = vld [vmem:[%s200 + $0xa90] sm:$0xff]
        %v580 = vld [vmem:[%s200 + $0xa98] sm:$0xff]
        %v581 = vld [vmem:[%s200 + $0xaa0] sm:$0xff]
        %v582 = vld [vmem:[%s200 + $0xaa8] sm:$0xff]
        %v583 = vld [vmem:[%s200 + $0xab0] sm:$0xff]
        %v584 = vld [vmem:[%s200 + $0xab8] sm:$0xff]
        %v585 = vld [vmem:[%s200 + $0xac0] sm:$0xff]
        %v586 = vld [vmem:[%s200 + $0xac8] sm:$0xff]
        %v587 = vld [vmem:[%s200 + $0xad0] sm:$0xff]
        %v588 = vld [vmem:[%s200 + $0xad8] sm:$0xff]
        %v589 = vld [vmem:[%s200 + $0xae0] sm:$0xff]
        %v590 = vld [vmem:[%s200 + $0xae8] sm:$0xff]
        %v591 = vld [vmem:[%s200 + $0xaf0] sm:$0xff]
        %v592 = vld [vmem:[%s200 + $0xaf8] sm:$0xff]
        %v593 = vld [vmem:[%s200 + $0xb00] sm:$0xff]
        %v594 = vld [vmem:[%s200 + $0xb08] sm:$0xff]
        %v595 = vld [vmem:[%s200 + $0xb10] sm:$0xff]
        %v596 = vld [vmem:[%s200 + $0xb18] sm:$0xff]
        %v597 = vld [vmem:[%s200 + $0xb20] sm:$0xff]
        %v598 = vld [vmem:[%s200 + $0xb28] sm:$0xff]
        %v599 = vld [vmem:[%s200 + $0xb30] sm:$0xff]
        %v600 = vld [vmem:[%s200 + $0xb38] sm:$0xff]
        %v601 = vld [vmem:[%s200 + $0xb40] sm:$0xff]
        %v602 = vld [vmem:[%s200 + $0xb48] sm:$0xff]
        %v603 = vld [vmem:[%s200 + $0xb50] sm:$0xff]
        %v604 = vld [vmem:[%s200 + $0xb58] sm:$0xff]
        %v605 = vld [vmem:[%s200 + $0xb60] sm:$0xff]
        %v606 = vld [vmem:[%s200 + $0xb68] sm:$0xff]
        %v607 = vld [vmem:[%s200 + $0xb70] sm:$0xff]
        %v608 = vld [vmem:[%s200 + $0xb78] sm:$0xff]
        %v609 = vld [vmem:[%s200 + $0xb80] sm:$0xff]
        %v610 = vld [vmem:[%s200 + $0xb88] sm:$0xff]
        %v611 = vld [vmem:[%s200 + $0xb90] sm:$0xff]
        %v612 = vld [vmem:[%s200 + $0xb98] sm:$0xff]
        %v613 = vld [vmem:[%s200 + $0xba0] sm:$0xff]
        %v614 = vld [vmem:[%s200 + $0xba8] sm:$0xff]
        %v615 = vld [vmem:[%s200 + $0xbb0] sm:$0xff]
        %v616 = vld [vmem:[%s200 + $0xbb8] sm:$0xff]
        %v617 = vld [vmem:[%s200 + $0xbc0] sm:$0xff]
        %v618 = vld [vmem:[%s200 + $0xbc8] sm:$0xff]
        %v619 = vld [vmem:[%s200 + $0xbd0] sm:$0xff]
        %v620 = vld [vmem:[%s200 + $0xbd8] sm:$0xff]
        %v621 = vld [vmem:[%s200 + $0xbe0] sm:$0xff]
        %v622 = vld [vmem:[%s200 + $0xbe8] sm:$0xff]
        %v623 = vld [vmem:[%s200 + $0xbf0] sm:$0xff]
        %v624 = vld [vmem:[%s200 + $0xbf8] sm:$0xff]
        %v625 = vld [vmem:[%s200 + $0xc00] sm:$0xff]
        %v626 = vld [vmem:[%s200 + $0xc08] sm:$0xff]
        %v627 = vld [vmem:[%s200 + $0xc10] sm:$0xff]
        %v628 = vld [vmem:[%s200 + $0xc18] sm:$0xff]
        %v629 = vld [vmem:[%s200 + $0xc20] sm:$0xff]
        %v630 = vld [vmem:[%s200 + $0xc28] sm:$0xff]
        %v631 = vld [vmem:[%s200 + $0xc30] sm:$0xff]
        %v632 = vld [vmem:[%s200 + $0xc38] sm:$0xff]
        %v633 = vld [vmem:[%s200 + $0xc40] sm:$0xff]
        %v634 = vld [vmem:[%s200 + $0xc48] sm:$0xff]
        %v635 = vld [vmem:[%s200 + $0xc50] sm:$0xff]
        %v636 = vld [vmem:[%s200 + $0xc58] sm:$0xff]
        %v637 = vld [vmem:[%s200 + $0xc60] sm:$0xff]
        %v638 = vld [vmem:[%s200 + $0xc68] sm:$0xff]
        %v639 = vld [vmem:[%s200 + $0xc70] sm:$0xff]
        %v640 = vld [vmem:[%s200 + $0xc78] sm:$0xff]
        %v641 = vld [vmem:[%s200 + $0xc80] sm:$0xff]
        %v642 = vld [vmem:[%s200 + $0xc88] sm:$0xff]
        %v643 = vld [vmem:[%s200 + $0xc90] sm:$0xff]
        %v644 = vld [vmem:[%s200 + $0xc98] sm:$0xff]
        %v645 = vld [vmem:[%s200 + $0xca0] sm:$0xff]
        %v646 = vld [vmem:[%s200 + $0xca8] sm:$0xff]
        %v647 = vld [vmem:[%s200 + $0xcb0] sm:$0xff]
        %v648 = vld [vmem:[%s200 + $0xcb8] sm:$0xff]
        %v649 = vld [vmem:[%s200 + $0xcc0] sm:$0xff]
        %v650 = vld [vmem:[%s200 + $0xcc8] sm:$0xff]
        %v651 = vld [vmem:[%s200 + $0xcd0] sm:$0xff]
        %v652 = vld [vmem:[%s200 + $0xcd8] sm:$0xff]
        %v653 = vld [vmem:[%s200 + $0xce0] sm:$0xff]
        %v654 = vld [vmem:[%s200 + $0xce8] sm:$0xff]
        %v655 = vld [vmem:[%s200 + $0xcf0] sm:$0xff]
        %v656 = vld [vmem:[%s200 + $0xcf8] sm:$0xff]
        %v657 = vld [vmem:[%s200 + $0xd00] sm:$0xff]
        %v658 = vld [vmem:[%s200 + $0xd08] sm:$0xff]
        %v659 = vld [vmem:[%s200 + $0xd10] sm:$0xff]
        %v660 = vld [vmem:[%s200 + $0xd18] sm:$0xff]
        %v661 = vld [vmem:[%s200 + $0xd20] sm:$0xff]
        %v662 = vld [vmem:[%s200 + $0xd28] sm:$0xff]
        %v663 = vld [vmem:[%s200 + $0xd30] sm:$0xff]
        %v664 = vld [vmem:[%s200 + $0xd38] sm:$0xff]
        %v665 = vld [vmem:[%s200 + $0xd40] sm:$0xff]
        %v666 = vld [vmem:[%s200 + $0xd48] sm:$0xff]
        %v667 = vld [vmem:[%s200 + $0xd50] sm:$0xff]
        %v668 = vld [vmem:[%s200 + $0xd58] sm:$0xff]
        %v669 = vld [vmem:[%s200 + $0xd60] sm:$0xff]
        %v670 = vld [vmem:[%s200 + $0xd68] sm:$0xff]
        %v671 = vld [vmem:[%s200 + $0xd70] sm:$0xff]
        %v672 = vld [vmem:[%s200 + $0xd78] sm:$0xff]
        %v673 = vld [vmem:[%s200 + $0xd80] sm:$0xff]
        %v674 = vld [vmem:[%s200 + $0xd88] sm:$0xff]
        %v675 = vld [vmem:[%s200 + $0xd90] sm:$0xff]
        %v676 = vld [vmem:[%s200 + $0xd98] sm:$0xff]
        %v677 = vld [vmem:[%s200 + $0xda0] sm:$0xff]
        %v678 = vld [vmem:[%s200 + $0xda8] sm:$0xff]
        %v679 = vld [vmem:[%s200 + $0xdb0] sm:$0xff]
        %v680 = vld [vmem:[%s200 + $0xdb8] sm:$0xff]
        %v681 = vld [vmem:[%s200 + $0xdc0] sm:$0xff]
        %v682 = vld [vmem:[%s200 + $0xdc8] sm:$0xff]
        %v683 = vld [vmem:[%s200 + $0xdd0] sm:$0xff]
        %v684 = vld [vmem:[%s200 + $0xdd8] sm:$0xff]
        %v685 = vld [vmem:[%s200 + $0xde0] sm:$0xff]
        %v686 = vld [vmem:[%s200 + $0xde8] sm:$0xff]
        %v687 = vld [vmem:[%s200 + $0xdf0] sm:$0xff]
        %v688 = vld [vmem:[%s200 + $0xdf8] sm:$0xff]
        %v689 = vld [vmem:[%s200 + $0xe00] sm:$0xff]
        %v690 = vld [vmem:[%s200 + $0xe08] sm:$0xff]
        %v691 = vld [vmem:[%s200 + $0xe10] sm:$0xff]
        %v692 = vld [vmem:[%s200 + $0xe18] sm:$0xff]
        %v693 = vld [vmem:[%s200 + $0xe20] sm:$0xff]
        %v694 = vld [vmem:[%s200 + $0xe28] sm:$0xff]
        %v695 = vld [vmem:[%s200 + $0xe30] sm:$0xff]
        %v696 = vld [vmem:[%s200 + $0xe38] sm:$0xff]
        %v697 = vld [vmem:[%s200 + $0xe40] sm:$0xff]
        %v698 = vld [vmem:[%s200 + $0xe48] sm:$0xff]
        %v699 = vld [vmem:[%s200 + $0xe50] sm:$0xff]
        %v700 = vld [vmem:[%s200 + $0xe58] sm:$0xff]
        %v701 = vld [vmem:[%s200 + $0xe60] sm:$0xff]
        %v702 = vld [vmem:[%s200 + $0xe68] sm:$0xff]
        %v703 = vld [vmem:[%s200 + $0xe70] sm:$0xff]
        %v704 = vld [vmem:[%s200 + $0xe78] sm:$0xff]
        %v705 = vld [vmem:[%s200 + $0xe80] sm:$0xff]
        %v706 = vld [vmem:[%s200 + $0xe88] sm:$0xff]
        %v707 = vld [vmem:[%s200 + $0xe90] sm:$0xff]
        %v708 = vld [vmem:[%s200 + $0xe98] sm:$0xff]
        %v709 = vld [vmem:[%s200 + $0xea0] sm:$0xff]
        %v710 = vld [vmem:[%s200 + $0xea8] sm:$0xff]
        %v711 = vld [vmem:[%s200 + $0xeb0] sm:$0xff]
        %v712 = vld [vmem:[%s200 + $0xeb8] sm:$0xff]
        %v713 = vld [vmem:[%s200 + $0xec0] sm:$0xff]
        %v714 = vld [vmem:[%s200 + $0xec8] sm:$0xff]
        %v715 = vld [vmem:[%s200 + $0xed0] sm:$0xff]
        %v716 = vld [vmem:[%s200 + $0xed8] sm:$0xff]
        %v717 = vld [vmem:[%s200 + $0xee0] sm:$0xff]
        %v718 = vld [vmem:[%s200 + $0xee8] sm:$0xff]
        %v719 = vld [vmem:[%s200 + $0xef0] sm:$0xff]
        %v720 = vld [vmem:[%s200 + $0xef8] sm:$0xff]
        %v721 = vld [vmem:[%s200 + $0xf00] sm:$0xff]
        %v722 = vld [vmem:[%s200 + $0xf08] sm:$0xff]
        %v723 = vld [vmem:[%s200 + $0xf10] sm:$0xff]
        %v724 = vld [vmem:[%s200 + $0xf18] sm:$0xff]
        %v725 = vld [vmem:[%s200 + $0xf20] sm:$0xff]
        %v726 = vld [vmem:[%s200 + $0xf28] sm:$0xff]
        %v727 = vld [vmem:[%s200 + $0xf30] sm:$0xff]
        %v728 = vld [vmem:[%s200 + $0xf38] sm:$0xff]
        %v729 = vld [vmem:[%s200 + $0xf40] sm:$0xff]
        %v730 = vld [vmem:[%s200 + $0xf48] sm:$0xff]
        %v731 = vld [vmem:[%s200 + $0xf50] sm:$0xff]
        %v732 = vld [vmem:[%s200 + $0xf58] sm:$0xff]
        %v733 = vld [vmem:[%s200 + $0xf60] sm:$0xff]
        %v734 = vld [vmem:[%s200 + $0xf68] sm:$0xff]
        %v735 = vld [vmem:[%s200 + $0xf70] sm:$0xff]
        %v736 = vld [vmem:[%s200 + $0xf78] sm:$0xff]
        %v737 = vld [vmem:[%s200 + $0xf80] sm:$0xff]
        %v738 = vld [vmem:[%s200 + $0xf88] sm:$0xff]
        %v739 = vld [vmem:[%s200 + $0xf90] sm:$0xff]
        %v740 = vld [vmem:[%s200 + $0xf98] sm:$0xff]
        %v741 = vld [vmem:[%s200 + $0xfa0] sm:$0xff]
        %v742 = vld [vmem:[%s200 + $0xfa8] sm:$0xff]
        %v743 = vld [vmem:[%s200 + $0xfb0] sm:$0xff]
        %v744 = vld [vmem:[%s200 + $0xfb8] sm:$0xff]
        %v745 = vld [vmem:[%s200 + $0xfc0] sm:$0xff]
        %v746 = vld [vmem:[%s200 + $0xfc8] sm:$0xff]
        %v747 = vld [vmem:[%s200 + $0xfd0] sm:$0xff]
        %v748 = vld [vmem:[%s200 + $0xfd8] sm:$0xff]
        %v749 = vld [vmem:[%s200 + $0xfe0] sm:$0xff]
        %v750 = vld [vmem:[%s200 + $0xfe8] sm:$0xff]
        %v751 = vld [vmem:[%s200 + $0xff0] sm:$0xff]
        %v752 = vld [vmem:[%s200 + $0xff8] sm:$0xff]
        %v753 = vld [vmem:[%s209] sm:$0xff]
        %v754 = vld [vmem:[%s209 + $0x8] sm:$0xff]
        %v755 = vld [vmem:[%s209 + $0x10] sm:$0xff]
        %v756 = vld [vmem:[%s209 + $0x18] sm:$0xff]
        %v757 = vld [vmem:[%s209 + $0x20] sm:$0xff]
        %v758 = vld [vmem:[%s209 + $0x28] sm:$0xff]
        %v759 = vld [vmem:[%s209 + $0x30] sm:$0xff]
        %v760 = vld [vmem:[%s209 + $0x38] sm:$0xff]
        %v761 = vld [vmem:[%s209 + $0x40] sm:$0xff]
        %v762 = vld [vmem:[%s209 + $0x48] sm:$0xff]
        %v763 = vld [vmem:[%s209 + $0x50] sm:$0xff]
        %v764 = vld [vmem:[%s209 + $0x58] sm:$0xff]
        %v765 = vld [vmem:[%s209 + $0x60] sm:$0xff]
        %v766 = vld [vmem:[%s209 + $0x68] sm:$0xff]
        %v767 = vld [vmem:[%s209 + $0x70] sm:$0xff]
        %v768 = vld [vmem:[%s209 + $0x78] sm:$0xff]
        %v769 = vld [vmem:[%s209 + $0x80] sm:$0xff]
        %v770 = vld [vmem:[%s209 + $0x88] sm:$0xff]
        %v771 = vld [vmem:[%s209 + $0x90] sm:$0xff]
        %v772 = vld [vmem:[%s209 + $0x98] sm:$0xff]
        %v773 = vld [vmem:[%s209 + $0xa0] sm:$0xff]
        %v774 = vld [vmem:[%s209 + $0xa8] sm:$0xff]
        %v775 = vld [vmem:[%s209 + $0xb0] sm:$0xff]
        %v776 = vld [vmem:[%s209 + $0xb8] sm:$0xff]
        %v777 = vld [vmem:[%s209 + $0xc0] sm:$0xff]
        %v778 = vld [vmem:[%s209 + $0xc8] sm:$0xff]
        %v779 = vld [vmem:[%s209 + $0xd0] sm:$0xff]
        %v780 = vld [vmem:[%s209 + $0xd8] sm:$0xff]
        %v781 = vld [vmem:[%s209 + $0xe0] sm:$0xff]
        %v782 = vld [vmem:[%s209 + $0xe8] sm:$0xff]
        %v783 = vld [vmem:[%s209 + $0xf0] sm:$0xff]
        %v784 = vld [vmem:[%s209 + $0xf8] sm:$0xff]
        %v817 = vlaneseq
        %v818 = vshrl.u32 %v817, 7
        %v819 = vsub.s32 0, %v818
        %v820 = vrot.slane %v753, %v819
        %v821 = vlaneseq
        %v822 = vshrl.u32 %v821, 7
        %v823 = vsub.s32 1, %v822
        %v824 = vrot.slane %v753, %v823
        %v825 = vlaneseq
        %v826 = vshrl.u32 %v825, 7
        %v827 = vsub.s32 2, %v826
        %v828 = vrot.slane %v753, %v827
        %v829 = vlaneseq
        %v830 = vshrl.u32 %v829, 7
        %v831 = vsub.s32 3, %v830
        %v832 = vrot.slane %v753, %v831
        %v833 = vlaneseq
        %v834 = vshrl.u32 %v833, 7
        %v835 = vsub.s32 4, %v834
        %v836 = vrot.slane %v753, %v835
        %v837 = vlaneseq
        %v838 = vshrl.u32 %v837, 7
        %v839 = vsub.s32 5, %v838
        %v840 = vrot.slane %v753, %v839
        %v841 = vlaneseq
        %v842 = vshrl.u32 %v841, 7
        %v843 = vsub.s32 6, %v842
        %v844 = vrot.slane %v753, %v843
        %v845 = vlaneseq
        %v846 = vshrl.u32 %v845, 7
        %v847 = vsub.s32 7, %v846
        %v848 = vrot.slane %v753, %v847
        %v849 = vlaneseq
        %v850 = vshrl.u32 %v849, 7
        %v851 = vsub.s32 0, %v850
        %v852 = vrot.slane %v754, %v851
        %v853 = vlaneseq
        %v854 = vshrl.u32 %v853, 7
        %v855 = vsub.s32 1, %v854
        %v856 = vrot.slane %v754, %v855
        %v857 = vlaneseq
        %v858 = vshrl.u32 %v857, 7
        %v859 = vsub.s32 2, %v858
        %v860 = vrot.slane %v754, %v859
        %v861 = vlaneseq
        %v862 = vshrl.u32 %v861, 7
        %v863 = vsub.s32 3, %v862
        %v864 = vrot.slane %v754, %v863
        %v865 = vlaneseq
        %v866 = vshrl.u32 %v865, 7
        %v867 = vsub.s32 4, %v866
        %v868 = vrot.slane %v754, %v867
        %v869 = vlaneseq
        %v870 = vshrl.u32 %v869, 7
        %v871 = vsub.s32 5, %v870
        %v872 = vrot.slane %v754, %v871
        %v873 = vlaneseq
        %v874 = vshrl.u32 %v873, 7
        %v875 = vsub.s32 6, %v874
        %v876 = vrot.slane %v754, %v875
        %v877 = vlaneseq
        %v878 = vshrl.u32 %v877, 7
        %v879 = vsub.s32 7, %v878
        %v880 = vrot.slane %v754, %v879
        %v881 = vlaneseq
        %v882 = vshrl.u32 %v881, 7
        %v883 = vsub.s32 0, %v882
        %v884 = vrot.slane %v755, %v883
        %v885 = vlaneseq
        %v886 = vshrl.u32 %v885, 7
        %v887 = vsub.s32 1, %v886
        %v888 = vrot.slane %v755, %v887
        %v889 = vlaneseq
        %v890 = vshrl.u32 %v889, 7
        %v891 = vsub.s32 2, %v890
        %v892 = vrot.slane %v755, %v891
        %v893 = vlaneseq
        %v894 = vshrl.u32 %v893, 7
        %v895 = vsub.s32 3, %v894
        %v896 = vrot.slane %v755, %v895
        %v897 = vlaneseq
        %v898 = vshrl.u32 %v897, 7
        %v899 = vsub.s32 4, %v898
        %v900 = vrot.slane %v755, %v899
        %v901 = vlaneseq
        %v902 = vshrl.u32 %v901, 7
        %v903 = vsub.s32 5, %v902
        %v904 = vrot.slane %v755, %v903
        %v905 = vlaneseq
        %v906 = vshrl.u32 %v905, 7
        %v907 = vsub.s32 6, %v906
        %v908 = vrot.slane %v755, %v907
        %v909 = vlaneseq
        %v910 = vshrl.u32 %v909, 7
        %v911 = vsub.s32 7, %v910
        %v912 = vrot.slane %v755, %v911
        %v913 = vlaneseq
        %v914 = vshrl.u32 %v913, 7
        %v915 = vsub.s32 0, %v914
        %v916 = vrot.slane %v756, %v915
        %v917 = vlaneseq
        %v918 = vshrl.u32 %v917, 7
        %v919 = vsub.s32 1, %v918
        %v920 = vrot.slane %v756, %v919
        %v921 = vlaneseq
        %v922 = vshrl.u32 %v921, 7
        %v923 = vsub.s32 2, %v922
        %v924 = vrot.slane %v756, %v923
        %v925 = vlaneseq
        %v926 = vshrl.u32 %v925, 7
        %v927 = vsub.s32 3, %v926
        %v928 = vrot.slane %v756, %v927
        %v929 = vlaneseq
        %v930 = vshrl.u32 %v929, 7
        %v931 = vsub.s32 4, %v930
        %v932 = vrot.slane %v756, %v931
        %v933 = vlaneseq
        %v934 = vshrl.u32 %v933, 7
        %v935 = vsub.s32 5, %v934
        %v936 = vrot.slane %v756, %v935
        %v937 = vlaneseq
        %v938 = vshrl.u32 %v937, 7
        %v939 = vsub.s32 6, %v938
        %v940 = vrot.slane %v756, %v939
        %v941 = vlaneseq
        %v942 = vshrl.u32 %v941, 7
        %v943 = vsub.s32 7, %v942
        %v944 = vrot.slane %v756, %v943
        %v945 = vlaneseq
        %v946 = vshrl.u32 %v945, 7
        %v947 = vsub.s32 0, %v946
        %v948 = vrot.slane %v757, %v947
        %v949 = vlaneseq
        %v950 = vshrl.u32 %v949, 7
        %v951 = vsub.s32 1, %v950
        %v952 = vrot.slane %v757, %v951
        %v953 = vlaneseq
        %v954 = vshrl.u32 %v953, 7
        %v955 = vsub.s32 2, %v954
        %v956 = vrot.slane %v757, %v955
        %v957 = vlaneseq
        %v958 = vshrl.u32 %v957, 7
        %v959 = vsub.s32 3, %v958
        %v960 = vrot.slane %v757, %v959
        %v961 = vlaneseq
        %v962 = vshrl.u32 %v961, 7
        %v963 = vsub.s32 4, %v962
        %v964 = vrot.slane %v757, %v963
        %v965 = vlaneseq
        %v966 = vshrl.u32 %v965, 7
        %v967 = vsub.s32 5, %v966
        %v968 = vrot.slane %v757, %v967
        %v969 = vlaneseq
        %v970 = vshrl.u32 %v969, 7
        %v971 = vsub.s32 6, %v970
        %v972 = vrot.slane %v757, %v971
        %v973 = vlaneseq
        %v974 = vshrl.u32 %v973, 7
        %v975 = vsub.s32 7, %v974
        %v976 = vrot.slane %v757, %v975
        %v977 = vlaneseq
        %v978 = vshrl.u32 %v977, 7
        %v979 = vsub.s32 0, %v978
        %v980 = vrot.slane %v758, %v979
        %v981 = vlaneseq
        %v982 = vshrl.u32 %v981, 7
        %v983 = vsub.s32 1, %v982
        %v984 = vrot.slane %v758, %v983
        %v985 = vlaneseq
        %v986 = vshrl.u32 %v985, 7
        %v987 = vsub.s32 2, %v986
        %v988 = vrot.slane %v758, %v987
        %v989 = vlaneseq
        %v990 = vshrl.u32 %v989, 7
        %v991 = vsub.s32 3, %v990
        %v992 = vrot.slane %v758, %v991
        %v993 = vlaneseq
        %v994 = vshrl.u32 %v993, 7
        %v995 = vsub.s32 4, %v994
        %v996 = vrot.slane %v758, %v995
        %v997 = vlaneseq
        %v998 = vshrl.u32 %v997, 7
        %v999 = vsub.s32 5, %v998
        %v1000 = vrot.slane %v758, %v999
        %v1001 = vlaneseq
        %v1002 = vshrl.u32 %v1001, 7
        %v1003 = vsub.s32 6, %v1002
        %v1004 = vrot.slane %v758, %v1003
        %v1005 = vlaneseq
        %v1006 = vshrl.u32 %v1005, 7
        %v1007 = vsub.s32 7, %v1006
        %v1008 = vrot.slane %v758, %v1007
        %v1009 = vlaneseq
        %v1010 = vshrl.u32 %v1009, 7
        %v1011 = vsub.s32 0, %v1010
        %v1012 = vrot.slane %v759, %v1011
        %v1013 = vlaneseq
        %v1014 = vshrl.u32 %v1013, 7
        %v1015 = vsub.s32 1, %v1014
        %v1016 = vrot.slane %v759, %v1015
        %v1017 = vlaneseq
        %v1018 = vshrl.u32 %v1017, 7
        %v1019 = vsub.s32 2, %v1018
        %v1020 = vrot.slane %v759, %v1019
        %v1021 = vlaneseq
        %v1022 = vshrl.u32 %v1021, 7
        %v1023 = vsub.s32 3, %v1022
        %v1024 = vrot.slane %v759, %v1023
        %v1025 = vlaneseq
        %v1026 = vshrl.u32 %v1025, 7
        %v1027 = vsub.s32 4, %v1026
        %v1028 = vrot.slane %v759, %v1027
        %v1029 = vlaneseq
        %v1030 = vshrl.u32 %v1029, 7
        %v1031 = vsub.s32 5, %v1030
        %v1032 = vrot.slane %v759, %v1031
        %v1033 = vlaneseq
        %v1034 = vshrl.u32 %v1033, 7
        %v1035 = vsub.s32 6, %v1034
        %v1036 = vrot.slane %v759, %v1035
        %v1037 = vlaneseq
        %v1038 = vshrl.u32 %v1037, 7
        %v1039 = vsub.s32 7, %v1038
        %v1040 = vrot.slane %v759, %v1039
        %v1041 = vlaneseq
        %v1042 = vshrl.u32 %v1041, 7
        %v1043 = vsub.s32 0, %v1042
        %v1044 = vrot.slane %v760, %v1043
        %v1045 = vlaneseq
        %v1046 = vshrl.u32 %v1045, 7
        %v1047 = vsub.s32 1, %v1046
        %v1048 = vrot.slane %v760, %v1047
        %v1049 = vlaneseq
        %v1050 = vshrl.u32 %v1049, 7
        %v1051 = vsub.s32 2, %v1050
        %v1052 = vrot.slane %v760, %v1051
        %v1053 = vlaneseq
        %v1054 = vshrl.u32 %v1053, 7
        %v1055 = vsub.s32 3, %v1054
        %v1056 = vrot.slane %v760, %v1055
        %v1057 = vlaneseq
        %v1058 = vshrl.u32 %v1057, 7
        %v1059 = vsub.s32 4, %v1058
        %v1060 = vrot.slane %v760, %v1059
        %v1061 = vlaneseq
        %v1062 = vshrl.u32 %v1061, 7
        %v1063 = vsub.s32 5, %v1062
        %v1064 = vrot.slane %v760, %v1063
        %v1065 = vlaneseq
        %v1066 = vshrl.u32 %v1065, 7
        %v1067 = vsub.s32 6, %v1066
        %v1068 = vrot.slane %v760, %v1067
        %v1069 = vlaneseq
        %v1070 = vshrl.u32 %v1069, 7
        %v1071 = vsub.s32 7, %v1070
        %v1072 = vrot.slane %v760, %v1071
        %v1073 = vlaneseq
        %v1074 = vshrl.u32 %v1073, 7
        %v1075 = vsub.s32 0, %v1074
        %v1076 = vrot.slane %v761, %v1075
        %v1077 = vlaneseq
        %v1078 = vshrl.u32 %v1077, 7
        %v1079 = vsub.s32 1, %v1078
        %v1080 = vrot.slane %v761, %v1079
        %v1081 = vlaneseq
        %v1082 = vshrl.u32 %v1081, 7
        %v1083 = vsub.s32 2, %v1082
        %v1084 = vrot.slane %v761, %v1083
        %v1085 = vlaneseq
        %v1086 = vshrl.u32 %v1085, 7
        %v1087 = vsub.s32 3, %v1086
        %v1088 = vrot.slane %v761, %v1087
        %v1089 = vlaneseq
        %v1090 = vshrl.u32 %v1089, 7
        %v1091 = vsub.s32 4, %v1090
        %v1092 = vrot.slane %v761, %v1091
        %v1093 = vlaneseq
        %v1094 = vshrl.u32 %v1093, 7
        %v1095 = vsub.s32 5, %v1094
        %v1096 = vrot.slane %v761, %v1095
        %v1097 = vlaneseq
        %v1098 = vshrl.u32 %v1097, 7
        %v1099 = vsub.s32 6, %v1098
        %v1100 = vrot.slane %v761, %v1099
        %v1101 = vlaneseq
        %v1102 = vshrl.u32 %v1101, 7
        %v1103 = vsub.s32 7, %v1102
        %v1104 = vrot.slane %v761, %v1103
        %v1105 = vlaneseq
        %v1106 = vshrl.u32 %v1105, 7
        %v1107 = vsub.s32 0, %v1106
        %v1108 = vrot.slane %v762, %v1107
        %v1109 = vlaneseq
        %v1110 = vshrl.u32 %v1109, 7
        %v1111 = vsub.s32 1, %v1110
        %v1112 = vrot.slane %v762, %v1111
        %v1113 = vlaneseq
        %v1114 = vshrl.u32 %v1113, 7
        %v1115 = vsub.s32 2, %v1114
        %v1116 = vrot.slane %v762, %v1115
        %v1117 = vlaneseq
        %v1118 = vshrl.u32 %v1117, 7
        %v1119 = vsub.s32 3, %v1118
        %v1120 = vrot.slane %v762, %v1119
        %v1121 = vlaneseq
        %v1122 = vshrl.u32 %v1121, 7
        %v1123 = vsub.s32 4, %v1122
        %v1124 = vrot.slane %v762, %v1123
        %v1125 = vlaneseq
        %v1126 = vshrl.u32 %v1125, 7
        %v1127 = vsub.s32 5, %v1126
        %v1128 = vrot.slane %v762, %v1127
        %v1129 = vlaneseq
        %v1130 = vshrl.u32 %v1129, 7
        %v1131 = vsub.s32 6, %v1130
        %v1132 = vrot.slane %v762, %v1131
        %v1133 = vlaneseq
        %v1134 = vshrl.u32 %v1133, 7
        %v1135 = vsub.s32 7, %v1134
        %v1136 = vrot.slane %v762, %v1135
        %v1137 = vlaneseq
        %v1138 = vshrl.u32 %v1137, 7
        %v1139 = vsub.s32 0, %v1138
        %v1140 = vrot.slane %v763, %v1139
        %v1141 = vlaneseq
        %v1142 = vshrl.u32 %v1141, 7
        %v1143 = vsub.s32 1, %v1142
        %v1144 = vrot.slane %v763, %v1143
        %v1145 = vlaneseq
        %v1146 = vshrl.u32 %v1145, 7
        %v1147 = vsub.s32 2, %v1146
        %v1148 = vrot.slane %v763, %v1147
        %v1149 = vlaneseq
        %v1150 = vshrl.u32 %v1149, 7
        %v1151 = vsub.s32 3, %v1150
        %v1152 = vrot.slane %v763, %v1151
        %v1153 = vlaneseq
        %v1154 = vshrl.u32 %v1153, 7
        %v1155 = vsub.s32 4, %v1154
        %v1156 = vrot.slane %v763, %v1155
        %v1157 = vlaneseq
        %v1158 = vshrl.u32 %v1157, 7
        %v1159 = vsub.s32 5, %v1158
        %v1160 = vrot.slane %v763, %v1159
        %v1161 = vlaneseq
        %v1162 = vshrl.u32 %v1161, 7
        %v1163 = vsub.s32 6, %v1162
        %v1164 = vrot.slane %v763, %v1163
        %v1165 = vlaneseq
        %v1166 = vshrl.u32 %v1165, 7
        %v1167 = vsub.s32 7, %v1166
        %v1168 = vrot.slane %v763, %v1167
        %v1169 = vlaneseq
        %v1170 = vshrl.u32 %v1169, 7
        %v1171 = vsub.s32 0, %v1170
        %v1172 = vrot.slane %v764, %v1171
        %v1173 = vlaneseq
        %v1174 = vshrl.u32 %v1173, 7
        %v1175 = vsub.s32 1, %v1174
        %v1176 = vrot.slane %v764, %v1175
        %v1177 = vlaneseq
        %v1178 = vshrl.u32 %v1177, 7
        %v1179 = vsub.s32 2, %v1178
        %v1180 = vrot.slane %v764, %v1179
        %v1181 = vlaneseq
        %v1182 = vshrl.u32 %v1181, 7
        %v1183 = vsub.s32 3, %v1182
        %v1184 = vrot.slane %v764, %v1183
        %v1185 = vlaneseq
        %v1186 = vshrl.u32 %v1185, 7
        %v1187 = vsub.s32 4, %v1186
        %v1188 = vrot.slane %v764, %v1187
        %v1189 = vlaneseq
        %v1190 = vshrl.u32 %v1189, 7
        %v1191 = vsub.s32 5, %v1190
        %v1192 = vrot.slane %v764, %v1191
        %v1193 = vlaneseq
        %v1194 = vshrl.u32 %v1193, 7
        %v1195 = vsub.s32 6, %v1194
        %v1196 = vrot.slane %v764, %v1195
        %v1197 = vlaneseq
        %v1198 = vshrl.u32 %v1197, 7
        %v1199 = vsub.s32 7, %v1198
        %v1200 = vrot.slane %v764, %v1199
        %v1201 = vlaneseq
        %v1202 = vshrl.u32 %v1201, 7
        %v1203 = vsub.s32 0, %v1202
        %v1204 = vrot.slane %v765, %v1203
        %v1205 = vlaneseq
        %v1206 = vshrl.u32 %v1205, 7
        %v1207 = vsub.s32 1, %v1206
        %v1208 = vrot.slane %v765, %v1207
        %v1209 = vlaneseq
        %v1210 = vshrl.u32 %v1209, 7
        %v1211 = vsub.s32 2, %v1210
        %v1212 = vrot.slane %v765, %v1211
        %v1213 = vlaneseq
        %v1214 = vshrl.u32 %v1213, 7
        %v1215 = vsub.s32 3, %v1214
        %v1216 = vrot.slane %v765, %v1215
        %v1217 = vlaneseq
        %v1218 = vshrl.u32 %v1217, 7
        %v1219 = vsub.s32 4, %v1218
        %v1220 = vrot.slane %v765, %v1219
        %v1221 = vlaneseq
        %v1222 = vshrl.u32 %v1221, 7
        %v1223 = vsub.s32 5, %v1222
        %v1224 = vrot.slane %v765, %v1223
        %v1225 = vlaneseq
        %v1226 = vshrl.u32 %v1225, 7
        %v1227 = vsub.s32 6, %v1226
        %v1228 = vrot.slane %v765, %v1227
        %v1229 = vlaneseq
        %v1230 = vshrl.u32 %v1229, 7
        %v1231 = vsub.s32 7, %v1230
        %v1232 = vrot.slane %v765, %v1231
        %v1233 = vlaneseq
        %v1234 = vshrl.u32 %v1233, 7
        %v1235 = vsub.s32 0, %v1234
        %v1236 = vrot.slane %v766, %v1235
        %v1237 = vlaneseq
        %v1238 = vshrl.u32 %v1237, 7
        %v1239 = vsub.s32 1, %v1238
        %v1240 = vrot.slane %v766, %v1239
        %v1241 = vlaneseq
        %v1242 = vshrl.u32 %v1241, 7
        %v1243 = vsub.s32 2, %v1242
        %v1244 = vrot.slane %v766, %v1243
        %v1245 = vlaneseq
        %v1246 = vshrl.u32 %v1245, 7
        %v1247 = vsub.s32 3, %v1246
        %v1248 = vrot.slane %v766, %v1247
        %v1249 = vlaneseq
        %v1250 = vshrl.u32 %v1249, 7
        %v1251 = vsub.s32 4, %v1250
        %v1252 = vrot.slane %v766, %v1251
        %v1253 = vlaneseq
        %v1254 = vshrl.u32 %v1253, 7
        %v1255 = vsub.s32 5, %v1254
        %v1256 = vrot.slane %v766, %v1255
        %v1257 = vlaneseq
        %v1258 = vshrl.u32 %v1257, 7
        %v1259 = vsub.s32 6, %v1258
        %v1260 = vrot.slane %v766, %v1259
        %v1261 = vlaneseq
        %v1262 = vshrl.u32 %v1261, 7
        %v1263 = vsub.s32 7, %v1262
        %v1264 = vrot.slane %v766, %v1263
        %v1265 = vlaneseq
        %v1266 = vshrl.u32 %v1265, 7
        %v1267 = vsub.s32 0, %v1266
        %v1268 = vrot.slane %v767, %v1267
        %v1269 = vlaneseq
        %v1270 = vshrl.u32 %v1269, 7
        %v1271 = vsub.s32 1, %v1270
        %v1272 = vrot.slane %v767, %v1271
        %v1273 = vlaneseq
        %v1274 = vshrl.u32 %v1273, 7
        %v1275 = vsub.s32 2, %v1274
        %v1276 = vrot.slane %v767, %v1275
        %v1277 = vlaneseq
        %v1278 = vshrl.u32 %v1277, 7
        %v1279 = vsub.s32 3, %v1278
        %v1280 = vrot.slane %v767, %v1279
        %v1281 = vlaneseq
        %v1282 = vshrl.u32 %v1281, 7
        %v1283 = vsub.s32 4, %v1282
        %v1284 = vrot.slane %v767, %v1283
        %v1285 = vlaneseq
        %v1286 = vshrl.u32 %v1285, 7
        %v1287 = vsub.s32 5, %v1286
        %v1288 = vrot.slane %v767, %v1287
        %v1289 = vlaneseq
        %v1290 = vshrl.u32 %v1289, 7
        %v1291 = vsub.s32 6, %v1290
        %v1292 = vrot.slane %v767, %v1291
        %v1293 = vlaneseq
        %v1294 = vshrl.u32 %v1293, 7
        %v1295 = vsub.s32 7, %v1294
        %v1296 = vrot.slane %v767, %v1295
        %v1297 = vlaneseq
        %v1298 = vshrl.u32 %v1297, 7
        %v1299 = vsub.s32 0, %v1298
        %v1300 = vrot.slane %v768, %v1299
        %v1301 = vlaneseq
        %v1302 = vshrl.u32 %v1301, 7
        %v1303 = vsub.s32 1, %v1302
        %v1304 = vrot.slane %v768, %v1303
        %v1305 = vlaneseq
        %v1306 = vshrl.u32 %v1305, 7
        %v1307 = vsub.s32 2, %v1306
        %v1308 = vrot.slane %v768, %v1307
        %v1309 = vlaneseq
        %v1310 = vshrl.u32 %v1309, 7
        %v1311 = vsub.s32 3, %v1310
        %v1312 = vrot.slane %v768, %v1311
        %v1313 = vlaneseq
        %v1314 = vshrl.u32 %v1313, 7
        %v1315 = vsub.s32 4, %v1314
        %v1316 = vrot.slane %v768, %v1315
        %v1317 = vlaneseq
        %v1318 = vshrl.u32 %v1317, 7
        %v1319 = vsub.s32 5, %v1318
        %v1320 = vrot.slane %v768, %v1319
        %v1321 = vlaneseq
        %v1322 = vshrl.u32 %v1321, 7
        %v1323 = vsub.s32 6, %v1322
        %v1324 = vrot.slane %v768, %v1323
        %v1325 = vlaneseq
        %v1326 = vshrl.u32 %v1325, 7
        %v1327 = vsub.s32 7, %v1326
        %v1328 = vrot.slane %v768, %v1327
        %v1329 = vlaneseq
        %v1330 = vshrl.u32 %v1329, 7
        %v1331 = vsub.s32 0, %v1330
        %v1332 = vrot.slane %v769, %v1331
        %v1333 = vlaneseq
        %v1334 = vshrl.u32 %v1333, 7
        %v1335 = vsub.s32 1, %v1334
        %v1336 = vrot.slane %v769, %v1335
        %v1337 = vlaneseq
        %v1338 = vshrl.u32 %v1337, 7
        %v1339 = vsub.s32 2, %v1338
        %v1340 = vrot.slane %v769, %v1339
        %v1341 = vlaneseq
        %v1342 = vshrl.u32 %v1341, 7
        %v1343 = vsub.s32 3, %v1342
        %v1344 = vrot.slane %v769, %v1343
        %v1345 = vlaneseq
        %v1346 = vshrl.u32 %v1345, 7
        %v1347 = vsub.s32 4, %v1346
        %v1348 = vrot.slane %v769, %v1347
        %v1349 = vlaneseq
        %v1350 = vshrl.u32 %v1349, 7
        %v1351 = vsub.s32 5, %v1350
        %v1352 = vrot.slane %v769, %v1351
        %v1353 = vlaneseq
        %v1354 = vshrl.u32 %v1353, 7
        %v1355 = vsub.s32 6, %v1354
        %v1356 = vrot.slane %v769, %v1355
        %v1357 = vlaneseq
        %v1358 = vshrl.u32 %v1357, 7
        %v1359 = vsub.s32 7, %v1358
        %v1360 = vrot.slane %v769, %v1359
        %v1361 = vlaneseq
        %v1362 = vshrl.u32 %v1361, 7
        %v1363 = vsub.s32 0, %v1362
        %v1364 = vrot.slane %v770, %v1363
        %v1365 = vlaneseq
        %v1366 = vshrl.u32 %v1365, 7
        %v1367 = vsub.s32 1, %v1366
        %v1368 = vrot.slane %v770, %v1367
        %v1369 = vlaneseq
        %v1370 = vshrl.u32 %v1369, 7
        %v1371 = vsub.s32 2, %v1370
        %v1372 = vrot.slane %v770, %v1371
        %v1373 = vlaneseq
        %v1374 = vshrl.u32 %v1373, 7
        %v1375 = vsub.s32 3, %v1374
        %v1376 = vrot.slane %v770, %v1375
        %v1377 = vlaneseq
        %v1378 = vshrl.u32 %v1377, 7
        %v1379 = vsub.s32 4, %v1378
        %v1380 = vrot.slane %v770, %v1379
        %v1381 = vlaneseq
        %v1382 = vshrl.u32 %v1381, 7
        %v1383 = vsub.s32 5, %v1382
        %v1384 = vrot.slane %v770, %v1383
        %v1385 = vlaneseq
        %v1386 = vshrl.u32 %v1385, 7
        %v1387 = vsub.s32 6, %v1386
        %v1388 = vrot.slane %v770, %v1387
        %v1389 = vlaneseq
        %v1390 = vshrl.u32 %v1389, 7
        %v1391 = vsub.s32 7, %v1390
        %v1392 = vrot.slane %v770, %v1391
        %v1393 = vlaneseq
        %v1394 = vshrl.u32 %v1393, 7
        %v1395 = vsub.s32 0, %v1394
        %v1396 = vrot.slane %v771, %v1395
        %v1397 = vlaneseq
        %v1398 = vshrl.u32 %v1397, 7
        %v1399 = vsub.s32 1, %v1398
        %v1400 = vrot.slane %v771, %v1399
        %v1401 = vlaneseq
        %v1402 = vshrl.u32 %v1401, 7
        %v1403 = vsub.s32 2, %v1402
        %v1404 = vrot.slane %v771, %v1403
        %v1405 = vlaneseq
        %v1406 = vshrl.u32 %v1405, 7
        %v1407 = vsub.s32 3, %v1406
        %v1408 = vrot.slane %v771, %v1407
        %v1409 = vlaneseq
        %v1410 = vshrl.u32 %v1409, 7
        %v1411 = vsub.s32 4, %v1410
        %v1412 = vrot.slane %v771, %v1411
        %v1413 = vlaneseq
        %v1414 = vshrl.u32 %v1413, 7
        %v1415 = vsub.s32 5, %v1414
        %v1416 = vrot.slane %v771, %v1415
        %v1417 = vlaneseq
        %v1418 = vshrl.u32 %v1417, 7
        %v1419 = vsub.s32 6, %v1418
        %v1420 = vrot.slane %v771, %v1419
        %v1421 = vlaneseq
        %v1422 = vshrl.u32 %v1421, 7
        %v1423 = vsub.s32 7, %v1422
        %v1424 = vrot.slane %v771, %v1423
        %v1425 = vlaneseq
        %v1426 = vshrl.u32 %v1425, 7
        %v1427 = vsub.s32 0, %v1426
        %v1428 = vrot.slane %v772, %v1427
        %v1429 = vlaneseq
        %v1430 = vshrl.u32 %v1429, 7
        %v1431 = vsub.s32 1, %v1430
        %v1432 = vrot.slane %v772, %v1431
        %v1433 = vlaneseq
        %v1434 = vshrl.u32 %v1433, 7
        %v1435 = vsub.s32 2, %v1434
        %v1436 = vrot.slane %v772, %v1435
        %v1437 = vlaneseq
        %v1438 = vshrl.u32 %v1437, 7
        %v1439 = vsub.s32 3, %v1438
        %v1440 = vrot.slane %v772, %v1439
        %v1441 = vlaneseq
        %v1442 = vshrl.u32 %v1441, 7
        %v1443 = vsub.s32 4, %v1442
        %v1444 = vrot.slane %v772, %v1443
        %v1445 = vlaneseq
        %v1446 = vshrl.u32 %v1445, 7
        %v1447 = vsub.s32 5, %v1446
        %v1448 = vrot.slane %v772, %v1447
        %v1449 = vlaneseq
        %v1450 = vshrl.u32 %v1449, 7
        %v1451 = vsub.s32 6, %v1450
        %v1452 = vrot.slane %v772, %v1451
        %v1453 = vlaneseq
        %v1454 = vshrl.u32 %v1453, 7
        %v1455 = vsub.s32 7, %v1454
        %v1456 = vrot.slane %v772, %v1455
        %v1457 = vlaneseq
        %v1458 = vshrl.u32 %v1457, 7
        %v1459 = vsub.s32 0, %v1458
        %v1460 = vrot.slane %v773, %v1459
        %v1461 = vlaneseq
        %v1462 = vshrl.u32 %v1461, 7
        %v1463 = vsub.s32 1, %v1462
        %v1464 = vrot.slane %v773, %v1463
        %v1465 = vlaneseq
        %v1466 = vshrl.u32 %v1465, 7
        %v1467 = vsub.s32 2, %v1466
        %v1468 = vrot.slane %v773, %v1467
        %v1469 = vlaneseq
        %v1470 = vshrl.u32 %v1469, 7
        %v1471 = vsub.s32 3, %v1470
        %v1472 = vrot.slane %v773, %v1471
        %v1473 = vlaneseq
        %v1474 = vshrl.u32 %v1473, 7
        %v1475 = vsub.s32 4, %v1474
        %v1476 = vrot.slane %v773, %v1475
        %v1477 = vlaneseq
        %v1478 = vshrl.u32 %v1477, 7
        %v1479 = vsub.s32 5, %v1478
        %v1480 = vrot.slane %v773, %v1479
        %v1481 = vlaneseq
        %v1482 = vshrl.u32 %v1481, 7
        %v1483 = vsub.s32 6, %v1482
        %v1484 = vrot.slane %v773, %v1483
        %v1485 = vlaneseq
        %v1486 = vshrl.u32 %v1485, 7
        %v1487 = vsub.s32 7, %v1486
        %v1488 = vrot.slane %v773, %v1487
        %v1489 = vlaneseq
        %v1490 = vshrl.u32 %v1489, 7
        %v1491 = vsub.s32 0, %v1490
        %v1492 = vrot.slane %v774, %v1491
        %v1493 = vlaneseq
        %v1494 = vshrl.u32 %v1493, 7
        %v1495 = vsub.s32 1, %v1494
        %v1496 = vrot.slane %v774, %v1495
        %v1497 = vlaneseq
        %v1498 = vshrl.u32 %v1497, 7
        %v1499 = vsub.s32 2, %v1498
        %v1500 = vrot.slane %v774, %v1499
        %v1501 = vlaneseq
        %v1502 = vshrl.u32 %v1501, 7
        %v1503 = vsub.s32 3, %v1502
        %v1504 = vrot.slane %v774, %v1503
        %v1505 = vlaneseq
        %v1506 = vshrl.u32 %v1505, 7
        %v1507 = vsub.s32 4, %v1506
        %v1508 = vrot.slane %v774, %v1507
        %v1509 = vlaneseq
        %v1510 = vshrl.u32 %v1509, 7
        %v1511 = vsub.s32 5, %v1510
        %v1512 = vrot.slane %v774, %v1511
        %v1513 = vlaneseq
        %v1514 = vshrl.u32 %v1513, 7
        %v1515 = vsub.s32 6, %v1514
        %v1516 = vrot.slane %v774, %v1515
        %v1517 = vlaneseq
        %v1518 = vshrl.u32 %v1517, 7
        %v1519 = vsub.s32 7, %v1518
        %v1520 = vrot.slane %v774, %v1519
        %v1521 = vlaneseq
        %v1522 = vshrl.u32 %v1521, 7
        %v1523 = vsub.s32 0, %v1522
        %v1524 = vrot.slane %v775, %v1523
        %v1525 = vlaneseq
        %v1526 = vshrl.u32 %v1525, 7
        %v1527 = vsub.s32 1, %v1526
        %v1528 = vrot.slane %v775, %v1527
        %v1529 = vlaneseq
        %v1530 = vshrl.u32 %v1529, 7
        %v1531 = vsub.s32 2, %v1530
        %v1532 = vrot.slane %v775, %v1531
        %v1533 = vlaneseq
        %v1534 = vshrl.u32 %v1533, 7
        %v1535 = vsub.s32 3, %v1534
        %v1536 = vrot.slane %v775, %v1535
        %v1537 = vlaneseq
        %v1538 = vshrl.u32 %v1537, 7
        %v1539 = vsub.s32 4, %v1538
        %v1540 = vrot.slane %v775, %v1539
        %v1541 = vlaneseq
        %v1542 = vshrl.u32 %v1541, 7
        %v1543 = vsub.s32 5, %v1542
        %v1544 = vrot.slane %v775, %v1543
        %v1545 = vlaneseq
        %v1546 = vshrl.u32 %v1545, 7
        %v1547 = vsub.s32 6, %v1546
        %v1548 = vrot.slane %v775, %v1547
        %v1549 = vlaneseq
        %v1550 = vshrl.u32 %v1549, 7
        %v1551 = vsub.s32 7, %v1550
        %v1552 = vrot.slane %v775, %v1551
        %v1553 = vlaneseq
        %v1554 = vshrl.u32 %v1553, 7
        %v1555 = vsub.s32 0, %v1554
        %v1556 = vrot.slane %v776, %v1555
        %v1557 = vlaneseq
        %v1558 = vshrl.u32 %v1557, 7
        %v1559 = vsub.s32 1, %v1558
        %v1560 = vrot.slane %v776, %v1559
        %v1561 = vlaneseq
        %v1562 = vshrl.u32 %v1561, 7
        %v1563 = vsub.s32 2, %v1562
        %v1564 = vrot.slane %v776, %v1563
        %v1565 = vlaneseq
        %v1566 = vshrl.u32 %v1565, 7
        %v1567 = vsub.s32 3, %v1566
        %v1568 = vrot.slane %v776, %v1567
        %v1569 = vlaneseq
        %v1570 = vshrl.u32 %v1569, 7
        %v1571 = vsub.s32 4, %v1570
        %v1572 = vrot.slane %v776, %v1571
        %v1573 = vlaneseq
        %v1574 = vshrl.u32 %v1573, 7
        %v1575 = vsub.s32 5, %v1574
        %v1576 = vrot.slane %v776, %v1575
        %v1577 = vlaneseq
        %v1578 = vshrl.u32 %v1577, 7
        %v1579 = vsub.s32 6, %v1578
        %v1580 = vrot.slane %v776, %v1579
        %v1581 = vlaneseq
        %v1582 = vshrl.u32 %v1581, 7
        %v1583 = vsub.s32 7, %v1582
        %v1584 = vrot.slane %v776, %v1583
        %v1585 = vlaneseq
        %v1586 = vshrl.u32 %v1585, 7
        %v1587 = vsub.s32 0, %v1586
        %v1588 = vrot.slane %v777, %v1587
        %v1589 = vlaneseq
        %v1590 = vshrl.u32 %v1589, 7
        %v1591 = vsub.s32 1, %v1590
        %v1592 = vrot.slane %v777, %v1591
        %v1593 = vlaneseq
        %v1594 = vshrl.u32 %v1593, 7
        %v1595 = vsub.s32 2, %v1594
        %v1596 = vrot.slane %v777, %v1595
        %v1597 = vlaneseq
        %v1598 = vshrl.u32 %v1597, 7
        %v1599 = vsub.s32 3, %v1598
        %v1600 = vrot.slane %v777, %v1599
        %v1601 = vlaneseq
        %v1602 = vshrl.u32 %v1601, 7
        %v1603 = vsub.s32 4, %v1602
        %v1604 = vrot.slane %v777, %v1603
        %v1605 = vlaneseq
        %v1606 = vshrl.u32 %v1605, 7
        %v1607 = vsub.s32 5, %v1606
        %v1608 = vrot.slane %v777, %v1607
        %v1609 = vlaneseq
        %v1610 = vshrl.u32 %v1609, 7
        %v1611 = vsub.s32 6, %v1610
        %v1612 = vrot.slane %v777, %v1611
        %v1613 = vlaneseq
        %v1614 = vshrl.u32 %v1613, 7
        %v1615 = vsub.s32 7, %v1614
        %v1616 = vrot.slane %v777, %v1615
        %v1617 = vlaneseq
        %v1618 = vshrl.u32 %v1617, 7
        %v1619 = vsub.s32 0, %v1618
        %v1620 = vrot.slane %v778, %v1619
        %v1621 = vlaneseq
        %v1622 = vshrl.u32 %v1621, 7
        %v1623 = vsub.s32 1, %v1622
        %v1624 = vrot.slane %v778, %v1623
        %v1625 = vlaneseq
        %v1626 = vshrl.u32 %v1625, 7
        %v1627 = vsub.s32 2, %v1626
        %v1628 = vrot.slane %v778, %v1627
        %v1629 = vlaneseq
        %v1630 = vshrl.u32 %v1629, 7
        %v1631 = vsub.s32 3, %v1630
        %v1632 = vrot.slane %v778, %v1631
        %v1633 = vlaneseq
        %v1634 = vshrl.u32 %v1633, 7
        %v1635 = vsub.s32 4, %v1634
        %v1636 = vrot.slane %v778, %v1635
        %v1637 = vlaneseq
        %v1638 = vshrl.u32 %v1637, 7
        %v1639 = vsub.s32 5, %v1638
        %v1640 = vrot.slane %v778, %v1639
        %v1641 = vlaneseq
        %v1642 = vshrl.u32 %v1641, 7
        %v1643 = vsub.s32 6, %v1642
        %v1644 = vrot.slane %v778, %v1643
        %v1645 = vlaneseq
        %v1646 = vshrl.u32 %v1645, 7
        %v1647 = vsub.s32 7, %v1646
        %v1648 = vrot.slane %v778, %v1647
        %v1649 = vlaneseq
        %v1650 = vshrl.u32 %v1649, 7
        %v1651 = vsub.s32 0, %v1650
        %v1652 = vrot.slane %v779, %v1651
        %v1653 = vlaneseq
        %v1654 = vshrl.u32 %v1653, 7
        %v1655 = vsub.s32 1, %v1654
        %v1656 = vrot.slane %v779, %v1655
        %v1657 = vlaneseq
        %v1658 = vshrl.u32 %v1657, 7
        %v1659 = vsub.s32 2, %v1658
        %v1660 = vrot.slane %v779, %v1659
        %v1661 = vlaneseq
        %v1662 = vshrl.u32 %v1661, 7
        %v1663 = vsub.s32 3, %v1662
        %v1664 = vrot.slane %v779, %v1663
        %v1665 = vlaneseq
        %v1666 = vshrl.u32 %v1665, 7
        %v1667 = vsub.s32 4, %v1666
        %v1668 = vrot.slane %v779, %v1667
        %v1669 = vlaneseq
        %v1670 = vshrl.u32 %v1669, 7
        %v1671 = vsub.s32 5, %v1670
        %v1672 = vrot.slane %v779, %v1671
        %v1673 = vlaneseq
        %v1674 = vshrl.u32 %v1673, 7
        %v1675 = vsub.s32 6, %v1674
        %v1676 = vrot.slane %v779, %v1675
        %v1677 = vlaneseq
        %v1678 = vshrl.u32 %v1677, 7
        %v1679 = vsub.s32 7, %v1678
        %v1680 = vrot.slane %v779, %v1679
        %v1681 = vlaneseq
        %v1682 = vshrl.u32 %v1681, 7
        %v1683 = vsub.s32 0, %v1682
        %v1684 = vrot.slane %v780, %v1683
        %v1685 = vlaneseq
        %v1686 = vshrl.u32 %v1685, 7
        %v1687 = vsub.s32 1, %v1686
        %v1688 = vrot.slane %v780, %v1687
        %v1689 = vlaneseq
        %v1690 = vshrl.u32 %v1689, 7
        %v1691 = vsub.s32 2, %v1690
        %v1692 = vrot.slane %v780, %v1691
        %v1693 = vlaneseq
        %v1694 = vshrl.u32 %v1693, 7
        %v1695 = vsub.s32 3, %v1694
        %v1696 = vrot.slane %v780, %v1695
        %v1697 = vlaneseq
        %v1698 = vshrl.u32 %v1697, 7
        %v1699 = vsub.s32 4, %v1698
        %v1700 = vrot.slane %v780, %v1699
        %v1701 = vlaneseq
        %v1702 = vshrl.u32 %v1701, 7
        %v1703 = vsub.s32 5, %v1702
        %v1704 = vrot.slane %v780, %v1703
        %v1705 = vlaneseq
        %v1706 = vshrl.u32 %v1705, 7
        %v1707 = vsub.s32 6, %v1706
        %v1708 = vrot.slane %v780, %v1707
        %v1709 = vlaneseq
        %v1710 = vshrl.u32 %v1709, 7
        %v1711 = vsub.s32 7, %v1710
        %v1712 = vrot.slane %v780, %v1711
        %v1713 = vlaneseq
        %v1714 = vshrl.u32 %v1713, 7
        %v1715 = vsub.s32 0, %v1714
        %v1716 = vrot.slane %v781, %v1715
        %v1717 = vlaneseq
        %v1718 = vshrl.u32 %v1717, 7
        %v1719 = vsub.s32 1, %v1718
        %v1720 = vrot.slane %v781, %v1719
        %v1721 = vlaneseq
        %v1722 = vshrl.u32 %v1721, 7
        %v1723 = vsub.s32 2, %v1722
        %v1724 = vrot.slane %v781, %v1723
        %v1725 = vlaneseq
        %v1726 = vshrl.u32 %v1725, 7
        %v1727 = vsub.s32 3, %v1726
        %v1728 = vrot.slane %v781, %v1727
        %v1729 = vlaneseq
        %v1730 = vshrl.u32 %v1729, 7
        %v1731 = vsub.s32 4, %v1730
        %v1732 = vrot.slane %v781, %v1731
        %v1733 = vlaneseq
        %v1734 = vshrl.u32 %v1733, 7
        %v1735 = vsub.s32 5, %v1734
        %v1736 = vrot.slane %v781, %v1735
        %v1737 = vlaneseq
        %v1738 = vshrl.u32 %v1737, 7
        %v1739 = vsub.s32 6, %v1738
        %v1740 = vrot.slane %v781, %v1739
        %v1741 = vlaneseq
        %v1742 = vshrl.u32 %v1741, 7
        %v1743 = vsub.s32 7, %v1742
        %v1744 = vrot.slane %v781, %v1743
        %v1745 = vlaneseq
        %v1746 = vshrl.u32 %v1745, 7
        %v1747 = vsub.s32 0, %v1746
        %v1748 = vrot.slane %v782, %v1747
        %v1749 = vlaneseq
        %v1750 = vshrl.u32 %v1749, 7
        %v1751 = vsub.s32 1, %v1750
        %v1752 = vrot.slane %v782, %v1751
        %v1753 = vlaneseq
        %v1754 = vshrl.u32 %v1753, 7
        %v1755 = vsub.s32 2, %v1754
        %v1756 = vrot.slane %v782, %v1755
        %v1757 = vlaneseq
        %v1758 = vshrl.u32 %v1757, 7
        %v1759 = vsub.s32 3, %v1758
        %v1760 = vrot.slane %v782, %v1759
        %v1761 = vlaneseq
        %v1762 = vshrl.u32 %v1761, 7
        %v1763 = vsub.s32 4, %v1762
        %v1764 = vrot.slane %v782, %v1763
        %v1765 = vlaneseq
        %v1766 = vshrl.u32 %v1765, 7
        %v1767 = vsub.s32 5, %v1766
        %v1768 = vrot.slane %v782, %v1767
        %v1769 = vlaneseq
        %v1770 = vshrl.u32 %v1769, 7
        %v1771 = vsub.s32 6, %v1770
        %v1772 = vrot.slane %v782, %v1771
        %v1773 = vlaneseq
        %v1774 = vshrl.u32 %v1773, 7
        %v1775 = vsub.s32 7, %v1774
        %v1776 = vrot.slane %v782, %v1775
        %v1777 = vlaneseq
        %v1778 = vshrl.u32 %v1777, 7
        %v1779 = vsub.s32 0, %v1778
        %v1780 = vrot.slane %v783, %v1779
        %v1781 = vlaneseq
        %v1782 = vshrl.u32 %v1781, 7
        %v1783 = vsub.s32 1, %v1782
        %v1784 = vrot.slane %v783, %v1783
        %v1785 = vlaneseq
        %v1786 = vshrl.u32 %v1785, 7
        %v1787 = vsub.s32 2, %v1786
        %v1788 = vrot.slane %v783, %v1787
        %v1789 = vlaneseq
        %v1790 = vshrl.u32 %v1789, 7
        %v1791 = vsub.s32 3, %v1790
        %v1792 = vrot.slane %v783, %v1791
        %v1793 = vlaneseq
        %v1794 = vshrl.u32 %v1793, 7
        %v1795 = vsub.s32 4, %v1794
        %v1796 = vrot.slane %v783, %v1795
        %v1797 = vlaneseq
        %v1798 = vshrl.u32 %v1797, 7
        %v1799 = vsub.s32 5, %v1798
        %v1800 = vrot.slane %v783, %v1799
        %v1801 = vlaneseq
        %v1802 = vshrl.u32 %v1801, 7
        %v1803 = vsub.s32 6, %v1802
        %v1804 = vrot.slane %v783, %v1803
        %v1805 = vlaneseq
        %v1806 = vshrl.u32 %v1805, 7
        %v1807 = vsub.s32 7, %v1806
        %v1808 = vrot.slane %v783, %v1807
        %v1809 = vlaneseq
        %v1810 = vshrl.u32 %v1809, 7
        %v1811 = vsub.s32 0, %v1810
        %v1812 = vrot.slane %v784, %v1811
        %v1813 = vlaneseq
        %v1814 = vshrl.u32 %v1813, 7
        %v1815 = vsub.s32 1, %v1814
        %v1816 = vrot.slane %v784, %v1815
        %v1817 = vlaneseq
        %v1818 = vshrl.u32 %v1817, 7
        %v1819 = vsub.s32 2, %v1818
        %v1820 = vrot.slane %v784, %v1819
        %v1821 = vlaneseq
        %v1822 = vshrl.u32 %v1821, 7
        %v1823 = vsub.s32 3, %v1822
        %v1824 = vrot.slane %v784, %v1823
        %v1825 = vlaneseq
        %v1826 = vshrl.u32 %v1825, 7
        %v1827 = vsub.s32 4, %v1826
        %v1828 = vrot.slane %v784, %v1827
        %v1829 = vlaneseq
        %v1830 = vshrl.u32 %v1829, 7
        %v1831 = vsub.s32 5, %v1830
        %v1832 = vrot.slane %v784, %v1831
        %v1833 = vlaneseq
        %v1834 = vshrl.u32 %v1833, 7
        %v1835 = vsub.s32 6, %v1834
        %v1836 = vrot.slane %v784, %v1835
        %v1837 = vlaneseq
        %v1838 = vshrl.u32 %v1837, 7
        %v1839 = vsub.s32 7, %v1838
        %v1840 = vrot.slane %v784, %v1839
        %v2609 = vunpack.c.l.b16 %v241
        %v2610 = vunpack.c.h.b16 %v241
        %v2611 = vunpack.c.l.b16 %v242
        %v2612 = vunpack.c.h.b16 %v242
        %v2613 = vunpack.c.l.b16 %v243
        %v2614 = vunpack.c.h.b16 %v243
        %v2615 = vunpack.c.l.b16 %v244
        %v2616 = vunpack.c.h.b16 %v244
        %v2617 = vunpack.c.l.b16 %v245
        %v2618 = vunpack.c.h.b16 %v245
        %v2619 = vunpack.c.l.b16 %v246
        %v2620 = vunpack.c.h.b16 %v246
        %v2621 = vunpack.c.l.b16 %v247
        %v2622 = vunpack.c.h.b16 %v247
        %v2623 = vunpack.c.l.b16 %v248
        %v2624 = vunpack.c.h.b16 %v248
        %v2625 = vunpack.c.l.b16 %v249
        %v2626 = vunpack.c.h.b16 %v249
        %v2627 = vunpack.c.l.b16 %v250
        %v2628 = vunpack.c.h.b16 %v250
        %v2629 = vunpack.c.l.b16 %v251
        %v2630 = vunpack.c.h.b16 %v251
        %v2631 = vunpack.c.l.b16 %v252
        %v2632 = vunpack.c.h.b16 %v252
        %v2633 = vunpack.c.l.b16 %v253
        %v2634 = vunpack.c.h.b16 %v253
        %v2635 = vunpack.c.l.b16 %v254
        %v2636 = vunpack.c.h.b16 %v254
        %v2637 = vunpack.c.l.b16 %v255
        %v2638 = vunpack.c.h.b16 %v255
        %v2639 = vunpack.c.l.b16 %v256
        %v2640 = vunpack.c.h.b16 %v256
        %v2641 = vunpack.c.l.b16 %v257
        %v2642 = vunpack.c.h.b16 %v257
        %v2643 = vunpack.c.l.b16 %v258
        %v2644 = vunpack.c.h.b16 %v258
        %v2645 = vunpack.c.l.b16 %v259
        %v2646 = vunpack.c.h.b16 %v259
        %v2647 = vunpack.c.l.b16 %v260
        %v2648 = vunpack.c.h.b16 %v260
        %v2649 = vunpack.c.l.b16 %v261
        %v2650 = vunpack.c.h.b16 %v261
        %v2651 = vunpack.c.l.b16 %v262
        %v2652 = vunpack.c.h.b16 %v262
        %v2653 = vunpack.c.l.b16 %v263
        %v2654 = vunpack.c.h.b16 %v263
        %v2655 = vunpack.c.l.b16 %v264
        %v2656 = vunpack.c.h.b16 %v264
        %v2657 = vunpack.c.l.b16 %v265
        %v2658 = vunpack.c.h.b16 %v265
        %v2659 = vunpack.c.l.b16 %v266
        %v2660 = vunpack.c.h.b16 %v266
        %v2661 = vunpack.c.l.b16 %v267
        %v2662 = vunpack.c.h.b16 %v267
        %v2663 = vunpack.c.l.b16 %v268
        %v2664 = vunpack.c.h.b16 %v268
        %v2665 = vunpack.c.l.b16 %v269
        %v2666 = vunpack.c.h.b16 %v269
        %v2667 = vunpack.c.l.b16 %v270
        %v2668 = vunpack.c.h.b16 %v270
        %v2669 = vunpack.c.l.b16 %v271
        %v2670 = vunpack.c.h.b16 %v271
        %v2671 = vunpack.c.l.b16 %v272
        %v2672 = vunpack.c.h.b16 %v272
        %v2673 = vunpack.c.l.b16 %v273
        %v2674 = vunpack.c.h.b16 %v273
        %v2675 = vunpack.c.l.b16 %v274
        %v2676 = vunpack.c.h.b16 %v274
        %v2677 = vunpack.c.l.b16 %v275
        %v2678 = vunpack.c.h.b16 %v275
        %v2679 = vunpack.c.l.b16 %v276
        %v2680 = vunpack.c.h.b16 %v276
        %v2681 = vunpack.c.l.b16 %v277
        %v2682 = vunpack.c.h.b16 %v277
        %v2683 = vunpack.c.l.b16 %v278
        %v2684 = vunpack.c.h.b16 %v278
        %v2685 = vunpack.c.l.b16 %v279
        %v2686 = vunpack.c.h.b16 %v279
        %v2687 = vunpack.c.l.b16 %v280
        %v2688 = vunpack.c.h.b16 %v280
        %v2689 = vunpack.c.l.b16 %v281
        %v2690 = vunpack.c.h.b16 %v281
        %v2691 = vunpack.c.l.b16 %v282
        %v2692 = vunpack.c.h.b16 %v282
        %v2693 = vunpack.c.l.b16 %v283
        %v2694 = vunpack.c.h.b16 %v283
        %v2695 = vunpack.c.l.b16 %v284
        %v2696 = vunpack.c.h.b16 %v284
        %v2697 = vunpack.c.l.b16 %v285
        %v2698 = vunpack.c.h.b16 %v285
        %v2699 = vunpack.c.l.b16 %v286
        %v2700 = vunpack.c.h.b16 %v286
        %v2701 = vunpack.c.l.b16 %v287
        %v2702 = vunpack.c.h.b16 %v287
        %v2703 = vunpack.c.l.b16 %v288
        %v2704 = vunpack.c.h.b16 %v288
        %v2705 = vunpack.c.l.b16 %v289
        %v2706 = vunpack.c.h.b16 %v289
        %v2707 = vunpack.c.l.b16 %v290
        %v2708 = vunpack.c.h.b16 %v290
        %v2709 = vunpack.c.l.b16 %v291
        %v2710 = vunpack.c.h.b16 %v291
        %v2711 = vunpack.c.l.b16 %v292
        %v2712 = vunpack.c.h.b16 %v292
        %v2713 = vunpack.c.l.b16 %v293
        %v2714 = vunpack.c.h.b16 %v293
        %v2715 = vunpack.c.l.b16 %v294
        %v2716 = vunpack.c.h.b16 %v294
        %v2717 = vunpack.c.l.b16 %v295
        %v2718 = vunpack.c.h.b16 %v295
        %v2719 = vunpack.c.l.b16 %v296
        %v2720 = vunpack.c.h.b16 %v296
        %v2721 = vunpack.c.l.b16 %v297
        %v2722 = vunpack.c.h.b16 %v297
        %v2723 = vunpack.c.l.b16 %v298
        %v2724 = vunpack.c.h.b16 %v298
        %v2725 = vunpack.c.l.b16 %v299
        %v2726 = vunpack.c.h.b16 %v299
        %v2727 = vunpack.c.l.b16 %v300
        %v2728 = vunpack.c.h.b16 %v300
        %v2729 = vunpack.c.l.b16 %v301
        %v2730 = vunpack.c.h.b16 %v301
        %v2731 = vunpack.c.l.b16 %v302
        %v2732 = vunpack.c.h.b16 %v302
        %v2733 = vunpack.c.l.b16 %v303
        %v2734 = vunpack.c.h.b16 %v303
        %v2735 = vunpack.c.l.b16 %v304
        %v2736 = vunpack.c.h.b16 %v304
        %v2737 = vunpack.c.l.b16 %v305
        %v2738 = vunpack.c.h.b16 %v305
        %v2739 = vunpack.c.l.b16 %v306
        %v2740 = vunpack.c.h.b16 %v306
        %v2741 = vunpack.c.l.b16 %v307
        %v2742 = vunpack.c.h.b16 %v307
        %v2743 = vunpack.c.l.b16 %v308
        %v2744 = vunpack.c.h.b16 %v308
        %v2745 = vunpack.c.l.b16 %v309
        %v2746 = vunpack.c.h.b16 %v309
        %v2747 = vunpack.c.l.b16 %v310
        %v2748 = vunpack.c.h.b16 %v310
        %v2749 = vunpack.c.l.b16 %v311
        %v2750 = vunpack.c.h.b16 %v311
        %v2751 = vunpack.c.l.b16 %v312
        %v2752 = vunpack.c.h.b16 %v312
        %v2753 = vunpack.c.l.b16 %v313
        %v2754 = vunpack.c.h.b16 %v313
        %v2755 = vunpack.c.l.b16 %v314
        %v2756 = vunpack.c.h.b16 %v314
        %v2757 = vunpack.c.l.b16 %v315
        %v2758 = vunpack.c.h.b16 %v315
        %v2759 = vunpack.c.l.b16 %v316
        %v2760 = vunpack.c.h.b16 %v316
        %v2761 = vunpack.c.l.b16 %v317
        %v2762 = vunpack.c.h.b16 %v317
        %v2763 = vunpack.c.l.b16 %v318
        %v2764 = vunpack.c.h.b16 %v318
        %v2765 = vunpack.c.l.b16 %v319
        %v2766 = vunpack.c.h.b16 %v319
        %v2767 = vunpack.c.l.b16 %v320
        %v2768 = vunpack.c.h.b16 %v320
        %v2769 = vunpack.c.l.b16 %v321
        %v2770 = vunpack.c.h.b16 %v321
        %v2771 = vunpack.c.l.b16 %v322
        %v2772 = vunpack.c.h.b16 %v322
        %v2773 = vunpack.c.l.b16 %v323
        %v2774 = vunpack.c.h.b16 %v323
        %v2775 = vunpack.c.l.b16 %v324
        %v2776 = vunpack.c.h.b16 %v324
        %v2777 = vunpack.c.l.b16 %v325
        %v2778 = vunpack.c.h.b16 %v325
        %v2779 = vunpack.c.l.b16 %v326
        %v2780 = vunpack.c.h.b16 %v326
        %v2781 = vunpack.c.l.b16 %v327
        %v2782 = vunpack.c.h.b16 %v327
        %v2783 = vunpack.c.l.b16 %v328
        %v2784 = vunpack.c.h.b16 %v328
        %v2785 = vunpack.c.l.b16 %v329
        %v2786 = vunpack.c.h.b16 %v329
        %v2787 = vunpack.c.l.b16 %v330
        %v2788 = vunpack.c.h.b16 %v330
        %v2789 = vunpack.c.l.b16 %v331
        %v2790 = vunpack.c.h.b16 %v331
        %v2791 = vunpack.c.l.b16 %v332
        %v2792 = vunpack.c.h.b16 %v332
        %v2793 = vunpack.c.l.b16 %v333
        %v2794 = vunpack.c.h.b16 %v333
        %v2795 = vunpack.c.l.b16 %v334
        %v2796 = vunpack.c.h.b16 %v334
        %v2797 = vunpack.c.l.b16 %v335
        %v2798 = vunpack.c.h.b16 %v335
        %v2799 = vunpack.c.l.b16 %v336
        %v2800 = vunpack.c.h.b16 %v336
        %v2801 = vunpack.c.l.b16 %v337
        %v2802 = vunpack.c.h.b16 %v337
        %v2803 = vunpack.c.l.b16 %v338
        %v2804 = vunpack.c.h.b16 %v338
        %v2805 = vunpack.c.l.b16 %v339
        %v2806 = vunpack.c.h.b16 %v339
        %v2807 = vunpack.c.l.b16 %v340
        %v2808 = vunpack.c.h.b16 %v340
        %v2809 = vunpack.c.l.b16 %v341
        %v2810 = vunpack.c.h.b16 %v341
        %v2811 = vunpack.c.l.b16 %v342
        %v2812 = vunpack.c.h.b16 %v342
        %v2813 = vunpack.c.l.b16 %v343
        %v2814 = vunpack.c.h.b16 %v343
        %v2815 = vunpack.c.l.b16 %v344
        %v2816 = vunpack.c.h.b16 %v344
        %v2817 = vunpack.c.l.b16 %v345
        %v2818 = vunpack.c.h.b16 %v345
        %v2819 = vunpack.c.l.b16 %v346
        %v2820 = vunpack.c.h.b16 %v346
        %v2821 = vunpack.c.l.b16 %v347
        %v2822 = vunpack.c.h.b16 %v347
        %v2823 = vunpack.c.l.b16 %v348
        %v2824 = vunpack.c.h.b16 %v348
        %v2825 = vunpack.c.l.b16 %v349
        %v2826 = vunpack.c.h.b16 %v349
        %v2827 = vunpack.c.l.b16 %v350
        %v2828 = vunpack.c.h.b16 %v350
        %v2829 = vunpack.c.l.b16 %v351
        %v2830 = vunpack.c.h.b16 %v351
        %v2831 = vunpack.c.l.b16 %v352
        %v2832 = vunpack.c.h.b16 %v352
        %v2833 = vunpack.c.l.b16 %v353
        %v2834 = vunpack.c.h.b16 %v353
        %v2835 = vunpack.c.l.b16 %v354
        %v2836 = vunpack.c.h.b16 %v354
        %v2837 = vunpack.c.l.b16 %v355
        %v2838 = vunpack.c.h.b16 %v355
        %v2839 = vunpack.c.l.b16 %v356
        %v2840 = vunpack.c.h.b16 %v356
        %v2841 = vunpack.c.l.b16 %v357
        %v2842 = vunpack.c.h.b16 %v357
        %v2843 = vunpack.c.l.b16 %v358
        %v2844 = vunpack.c.h.b16 %v358
        %v2845 = vunpack.c.l.b16 %v359
        %v2846 = vunpack.c.h.b16 %v359
        %v2847 = vunpack.c.l.b16 %v360
        %v2848 = vunpack.c.h.b16 %v360
        %v2849 = vunpack.c.l.b16 %v361
        %v2850 = vunpack.c.h.b16 %v361
        %v2851 = vunpack.c.l.b16 %v362
        %v2852 = vunpack.c.h.b16 %v362
        %v2853 = vunpack.c.l.b16 %v363
        %v2854 = vunpack.c.h.b16 %v363
        %v2855 = vunpack.c.l.b16 %v364
        %v2856 = vunpack.c.h.b16 %v364
        %v2857 = vunpack.c.l.b16 %v365
        %v2858 = vunpack.c.h.b16 %v365
        %v2859 = vunpack.c.l.b16 %v366
        %v2860 = vunpack.c.h.b16 %v366
        %v2861 = vunpack.c.l.b16 %v367
        %v2862 = vunpack.c.h.b16 %v367
        %v2863 = vunpack.c.l.b16 %v368
        %v2864 = vunpack.c.h.b16 %v368
        %v2865 = vunpack.c.l.b16 %v369
        %v2866 = vunpack.c.h.b16 %v369
        %v2867 = vunpack.c.l.b16 %v370
        %v2868 = vunpack.c.h.b16 %v370
        %v2869 = vunpack.c.l.b16 %v371
        %v2870 = vunpack.c.h.b16 %v371
        %v2871 = vunpack.c.l.b16 %v372
        %v2872 = vunpack.c.h.b16 %v372
        %v2873 = vunpack.c.l.b16 %v373
        %v2874 = vunpack.c.h.b16 %v373
        %v2875 = vunpack.c.l.b16 %v374
        %v2876 = vunpack.c.h.b16 %v374
        %v2877 = vunpack.c.l.b16 %v375
        %v2878 = vunpack.c.h.b16 %v375
        %v2879 = vunpack.c.l.b16 %v376
        %v2880 = vunpack.c.h.b16 %v376
        %v2881 = vunpack.c.l.b16 %v377
        %v2882 = vunpack.c.h.b16 %v377
        %v2883 = vunpack.c.l.b16 %v378
        %v2884 = vunpack.c.h.b16 %v378
        %v2885 = vunpack.c.l.b16 %v379
        %v2886 = vunpack.c.h.b16 %v379
        %v2887 = vunpack.c.l.b16 %v380
        %v2888 = vunpack.c.h.b16 %v380
        %v2889 = vunpack.c.l.b16 %v381
        %v2890 = vunpack.c.h.b16 %v381
        %v2891 = vunpack.c.l.b16 %v382
        %v2892 = vunpack.c.h.b16 %v382
        %v2893 = vunpack.c.l.b16 %v383
        %v2894 = vunpack.c.h.b16 %v383
        %v2895 = vunpack.c.l.b16 %v384
        %v2896 = vunpack.c.h.b16 %v384
        %v2897 = vunpack.c.l.b16 %v385
        %v2898 = vunpack.c.h.b16 %v385
        %v2899 = vunpack.c.l.b16 %v386
        %v2900 = vunpack.c.h.b16 %v386
        %v2901 = vunpack.c.l.b16 %v387
        %v2902 = vunpack.c.h.b16 %v387
        %v2903 = vunpack.c.l.b16 %v388
        %v2904 = vunpack.c.h.b16 %v388
        %v2905 = vunpack.c.l.b16 %v389
        %v2906 = vunpack.c.h.b16 %v389
        %v2907 = vunpack.c.l.b16 %v390
        %v2908 = vunpack.c.h.b16 %v390
        %v2909 = vunpack.c.l.b16 %v391
        %v2910 = vunpack.c.h.b16 %v391
        %v2911 = vunpack.c.l.b16 %v392
        %v2912 = vunpack.c.h.b16 %v392
        %v2913 = vunpack.c.l.b16 %v393
        %v2914 = vunpack.c.h.b16 %v393
        %v2915 = vunpack.c.l.b16 %v394
        %v2916 = vunpack.c.h.b16 %v394
        %v2917 = vunpack.c.l.b16 %v395
        %v2918 = vunpack.c.h.b16 %v395
        %v2919 = vunpack.c.l.b16 %v396
        %v2920 = vunpack.c.h.b16 %v396
        %v2921 = vunpack.c.l.b16 %v397
        %v2922 = vunpack.c.h.b16 %v397
        %v2923 = vunpack.c.l.b16 %v398
        %v2924 = vunpack.c.h.b16 %v398
        %v2925 = vunpack.c.l.b16 %v399
        %v2926 = vunpack.c.h.b16 %v399
        %v2927 = vunpack.c.l.b16 %v400
        %v2928 = vunpack.c.h.b16 %v400
        %v2929 = vunpack.c.l.b16 %v401
        %v2930 = vunpack.c.h.b16 %v401
        %v2931 = vunpack.c.l.b16 %v402
        %v2932 = vunpack.c.h.b16 %v402
        %v2933 = vunpack.c.l.b16 %v403
        %v2934 = vunpack.c.h.b16 %v403
        %v2935 = vunpack.c.l.b16 %v404
        %v2936 = vunpack.c.h.b16 %v404
        %v2937 = vunpack.c.l.b16 %v405
        %v2938 = vunpack.c.h.b16 %v405
        %v2939 = vunpack.c.l.b16 %v406
        %v2940 = vunpack.c.h.b16 %v406
        %v2941 = vunpack.c.l.b16 %v407
        %v2942 = vunpack.c.h.b16 %v407
        %v2943 = vunpack.c.l.b16 %v408
        %v2944 = vunpack.c.h.b16 %v408
        %v2945 = vunpack.c.l.b16 %v409
        %v2946 = vunpack.c.h.b16 %v409
        %v2947 = vunpack.c.l.b16 %v410
        %v2948 = vunpack.c.h.b16 %v410
        %v2949 = vunpack.c.l.b16 %v411
        %v2950 = vunpack.c.h.b16 %v411
        %v2951 = vunpack.c.l.b16 %v412
        %v2952 = vunpack.c.h.b16 %v412
        %v2953 = vunpack.c.l.b16 %v413
        %v2954 = vunpack.c.h.b16 %v413
        %v2955 = vunpack.c.l.b16 %v414
        %v2956 = vunpack.c.h.b16 %v414
        %v2957 = vunpack.c.l.b16 %v415
        %v2958 = vunpack.c.h.b16 %v415
        %v2959 = vunpack.c.l.b16 %v416
        %v2960 = vunpack.c.h.b16 %v416
        %v2961 = vunpack.c.l.b16 %v417
        %v2962 = vunpack.c.h.b16 %v417
        %v2963 = vunpack.c.l.b16 %v418
        %v2964 = vunpack.c.h.b16 %v418
        %v2965 = vunpack.c.l.b16 %v419
        %v2966 = vunpack.c.h.b16 %v419
        %v2967 = vunpack.c.l.b16 %v420
        %v2968 = vunpack.c.h.b16 %v420
        %v2969 = vunpack.c.l.b16 %v421
        %v2970 = vunpack.c.h.b16 %v421
        %v2971 = vunpack.c.l.b16 %v422
        %v2972 = vunpack.c.h.b16 %v422
        %v2973 = vunpack.c.l.b16 %v423
        %v2974 = vunpack.c.h.b16 %v423
        %v2975 = vunpack.c.l.b16 %v424
        %v2976 = vunpack.c.h.b16 %v424
        %v2977 = vunpack.c.l.b16 %v425
        %v2978 = vunpack.c.h.b16 %v425
        %v2979 = vunpack.c.l.b16 %v426
        %v2980 = vunpack.c.h.b16 %v426
        %v2981 = vunpack.c.l.b16 %v427
        %v2982 = vunpack.c.h.b16 %v427
        %v2983 = vunpack.c.l.b16 %v428
        %v2984 = vunpack.c.h.b16 %v428
        %v2985 = vunpack.c.l.b16 %v429
        %v2986 = vunpack.c.h.b16 %v429
        %v2987 = vunpack.c.l.b16 %v430
        %v2988 = vunpack.c.h.b16 %v430
        %v2989 = vunpack.c.l.b16 %v431
        %v2990 = vunpack.c.h.b16 %v431
        %v2991 = vunpack.c.l.b16 %v432
        %v2992 = vunpack.c.h.b16 %v432
        %v2993 = vunpack.c.l.b16 %v433
        %v2994 = vunpack.c.h.b16 %v433
        %v2995 = vunpack.c.l.b16 %v434
        %v2996 = vunpack.c.h.b16 %v434
        %v2997 = vunpack.c.l.b16 %v435
        %v2998 = vunpack.c.h.b16 %v435
        %v2999 = vunpack.c.l.b16 %v436
        %v3000 = vunpack.c.h.b16 %v436
        %v3001 = vunpack.c.l.b16 %v437
        %v3002 = vunpack.c.h.b16 %v437
        %v3003 = vunpack.c.l.b16 %v438
        %v3004 = vunpack.c.h.b16 %v438
        %v3005 = vunpack.c.l.b16 %v439
        %v3006 = vunpack.c.h.b16 %v439
        %v3007 = vunpack.c.l.b16 %v440
        %v3008 = vunpack.c.h.b16 %v440
        %v3009 = vunpack.c.l.b16 %v441
        %v3010 = vunpack.c.h.b16 %v441
        %v3011 = vunpack.c.l.b16 %v442
        %v3012 = vunpack.c.h.b16 %v442
        %v3013 = vunpack.c.l.b16 %v443
        %v3014 = vunpack.c.h.b16 %v443
        %v3015 = vunpack.c.l.b16 %v444
        %v3016 = vunpack.c.h.b16 %v444
        %v3017 = vunpack.c.l.b16 %v445
        %v3018 = vunpack.c.h.b16 %v445
        %v3019 = vunpack.c.l.b16 %v446
        %v3020 = vunpack.c.h.b16 %v446
        %v3021 = vunpack.c.l.b16 %v447
        %v3022 = vunpack.c.h.b16 %v447
        %v3023 = vunpack.c.l.b16 %v448
        %v3024 = vunpack.c.h.b16 %v448
        %v3025 = vunpack.c.l.b16 %v449
        %v3026 = vunpack.c.h.b16 %v449
        %v3027 = vunpack.c.l.b16 %v450
        %v3028 = vunpack.c.h.b16 %v450
        %v3029 = vunpack.c.l.b16 %v451
        %v3030 = vunpack.c.h.b16 %v451
        %v3031 = vunpack.c.l.b16 %v452
        %v3032 = vunpack.c.h.b16 %v452
        %v3033 = vunpack.c.l.b16 %v453
        %v3034 = vunpack.c.h.b16 %v453
        %v3035 = vunpack.c.l.b16 %v454
        %v3036 = vunpack.c.h.b16 %v454
        %v3037 = vunpack.c.l.b16 %v455
        %v3038 = vunpack.c.h.b16 %v455
        %v3039 = vunpack.c.l.b16 %v456
        %v3040 = vunpack.c.h.b16 %v456
        %v3041 = vunpack.c.l.b16 %v457
        %v3042 = vunpack.c.h.b16 %v457
        %v3043 = vunpack.c.l.b16 %v458
        %v3044 = vunpack.c.h.b16 %v458
        %v3045 = vunpack.c.l.b16 %v459
        %v3046 = vunpack.c.h.b16 %v459
        %v3047 = vunpack.c.l.b16 %v460
        %v3048 = vunpack.c.h.b16 %v460
        %v3049 = vunpack.c.l.b16 %v461
        %v3050 = vunpack.c.h.b16 %v461
        %v3051 = vunpack.c.l.b16 %v462
        %v3052 = vunpack.c.h.b16 %v462
        %v3053 = vunpack.c.l.b16 %v463
        %v3054 = vunpack.c.h.b16 %v463
        %v3055 = vunpack.c.l.b16 %v464
        %v3056 = vunpack.c.h.b16 %v464
        %v3057 = vunpack.c.l.b16 %v465
        %v3058 = vunpack.c.h.b16 %v465
        %v3059 = vunpack.c.l.b16 %v466
        %v3060 = vunpack.c.h.b16 %v466
        %v3061 = vunpack.c.l.b16 %v467
        %v3062 = vunpack.c.h.b16 %v467
        %v3063 = vunpack.c.l.b16 %v468
        %v3064 = vunpack.c.h.b16 %v468
        %v3065 = vunpack.c.l.b16 %v469
        %v3066 = vunpack.c.h.b16 %v469
        %v3067 = vunpack.c.l.b16 %v470
        %v3068 = vunpack.c.h.b16 %v470
        %v3069 = vunpack.c.l.b16 %v471
        %v3070 = vunpack.c.h.b16 %v471
        %v3071 = vunpack.c.l.b16 %v472
        %v3072 = vunpack.c.h.b16 %v472
        %v3073 = vunpack.c.l.b16 %v473
        %v3074 = vunpack.c.h.b16 %v473
        %v3075 = vunpack.c.l.b16 %v474
        %v3076 = vunpack.c.h.b16 %v474
        %v3077 = vunpack.c.l.b16 %v475
        %v3078 = vunpack.c.h.b16 %v475
        %v3079 = vunpack.c.l.b16 %v476
        %v3080 = vunpack.c.h.b16 %v476
        %v3081 = vunpack.c.l.b16 %v477
        %v3082 = vunpack.c.h.b16 %v477
        %v3083 = vunpack.c.l.b16 %v478
        %v3084 = vunpack.c.h.b16 %v478
        %v3085 = vunpack.c.l.b16 %v479
        %v3086 = vunpack.c.h.b16 %v479
        %v3087 = vunpack.c.l.b16 %v480
        %v3088 = vunpack.c.h.b16 %v480
        %v3089 = vunpack.c.l.b16 %v481
        %v3090 = vunpack.c.h.b16 %v481
        %v3091 = vunpack.c.l.b16 %v482
        %v3092 = vunpack.c.h.b16 %v482
        %v3093 = vunpack.c.l.b16 %v483
        %v3094 = vunpack.c.h.b16 %v483
        %v3095 = vunpack.c.l.b16 %v484
        %v3096 = vunpack.c.h.b16 %v484
        %v3097 = vunpack.c.l.b16 %v485
        %v3098 = vunpack.c.h.b16 %v485
        %v3099 = vunpack.c.l.b16 %v486
        %v3100 = vunpack.c.h.b16 %v486
        %v3101 = vunpack.c.l.b16 %v487
        %v3102 = vunpack.c.h.b16 %v487
        %v3103 = vunpack.c.l.b16 %v488
        %v3104 = vunpack.c.h.b16 %v488
        %v3105 = vunpack.c.l.b16 %v489
        %v3106 = vunpack.c.h.b16 %v489
        %v3107 = vunpack.c.l.b16 %v490
        %v3108 = vunpack.c.h.b16 %v490
        %v3109 = vunpack.c.l.b16 %v491
        %v3110 = vunpack.c.h.b16 %v491
        %v3111 = vunpack.c.l.b16 %v492
        %v3112 = vunpack.c.h.b16 %v492
        %v3113 = vunpack.c.l.b16 %v493
        %v3114 = vunpack.c.h.b16 %v493
        %v3115 = vunpack.c.l.b16 %v494
        %v3116 = vunpack.c.h.b16 %v494
        %v3117 = vunpack.c.l.b16 %v495
        %v3118 = vunpack.c.h.b16 %v495
        %v3119 = vunpack.c.l.b16 %v496
        %v3120 = vunpack.c.h.b16 %v496
        %v3121 = vunpack.c.l.b16 %v497
        %v3122 = vunpack.c.h.b16 %v497
        %v3123 = vunpack.c.l.b16 %v498
        %v3124 = vunpack.c.h.b16 %v498
        %v3125 = vunpack.c.l.b16 %v499
        %v3126 = vunpack.c.h.b16 %v499
        %v3127 = vunpack.c.l.b16 %v500
        %v3128 = vunpack.c.h.b16 %v500
        %v3129 = vunpack.c.l.b16 %v501
        %v3130 = vunpack.c.h.b16 %v501
        %v3131 = vunpack.c.l.b16 %v502
        %v3132 = vunpack.c.h.b16 %v502
        %v3133 = vunpack.c.l.b16 %v503
        %v3134 = vunpack.c.h.b16 %v503
        %v3135 = vunpack.c.l.b16 %v504
        %v3136 = vunpack.c.h.b16 %v504
        %v3137 = vunpack.c.l.b16 %v505
        %v3138 = vunpack.c.h.b16 %v505
        %v3139 = vunpack.c.l.b16 %v506
        %v3140 = vunpack.c.h.b16 %v506
        %v3141 = vunpack.c.l.b16 %v507
        %v3142 = vunpack.c.h.b16 %v507
        %v3143 = vunpack.c.l.b16 %v508
        %v3144 = vunpack.c.h.b16 %v508
        %v3145 = vunpack.c.l.b16 %v509
        %v3146 = vunpack.c.h.b16 %v509
        %v3147 = vunpack.c.l.b16 %v510
        %v3148 = vunpack.c.h.b16 %v510
        %v3149 = vunpack.c.l.b16 %v511
        %v3150 = vunpack.c.h.b16 %v511
        %v3151 = vunpack.c.l.b16 %v512
        %v3152 = vunpack.c.h.b16 %v512
        %v3153 = vunpack.c.l.b16 %v513
        %v3154 = vunpack.c.h.b16 %v513
        %v3155 = vunpack.c.l.b16 %v514
        %v3156 = vunpack.c.h.b16 %v514
        %v3157 = vunpack.c.l.b16 %v515
        %v3158 = vunpack.c.h.b16 %v515
        %v3159 = vunpack.c.l.b16 %v516
        %v3160 = vunpack.c.h.b16 %v516
        %v3161 = vunpack.c.l.b16 %v517
        %v3162 = vunpack.c.h.b16 %v517
        %v3163 = vunpack.c.l.b16 %v518
        %v3164 = vunpack.c.h.b16 %v518
        %v3165 = vunpack.c.l.b16 %v519
        %v3166 = vunpack.c.h.b16 %v519
        %v3167 = vunpack.c.l.b16 %v520
        %v3168 = vunpack.c.h.b16 %v520
        %v3169 = vunpack.c.l.b16 %v521
        %v3170 = vunpack.c.h.b16 %v521
        %v3171 = vunpack.c.l.b16 %v522
        %v3172 = vunpack.c.h.b16 %v522
        %v3173 = vunpack.c.l.b16 %v523
        %v3174 = vunpack.c.h.b16 %v523
        %v3175 = vunpack.c.l.b16 %v524
        %v3176 = vunpack.c.h.b16 %v524
        %v3177 = vunpack.c.l.b16 %v525
        %v3178 = vunpack.c.h.b16 %v525
        %v3179 = vunpack.c.l.b16 %v526
        %v3180 = vunpack.c.h.b16 %v526
        %v3181 = vunpack.c.l.b16 %v527
        %v3182 = vunpack.c.h.b16 %v527
        %v3183 = vunpack.c.l.b16 %v528
        %v3184 = vunpack.c.h.b16 %v528
        %v3185 = vunpack.c.l.b16 %v529
        %v3186 = vunpack.c.h.b16 %v529
        %v3187 = vunpack.c.l.b16 %v530
        %v3188 = vunpack.c.h.b16 %v530
        %v3189 = vunpack.c.l.b16 %v531
        %v3190 = vunpack.c.h.b16 %v531
        %v3191 = vunpack.c.l.b16 %v532
        %v3192 = vunpack.c.h.b16 %v532
        %v3193 = vunpack.c.l.b16 %v533
        %v3194 = vunpack.c.h.b16 %v533
        %v3195 = vunpack.c.l.b16 %v534
        %v3196 = vunpack.c.h.b16 %v534
        %v3197 = vunpack.c.l.b16 %v535
        %v3198 = vunpack.c.h.b16 %v535
        %v3199 = vunpack.c.l.b16 %v536
        %v3200 = vunpack.c.h.b16 %v536
        %v3201 = vunpack.c.l.b16 %v537
        %v3202 = vunpack.c.h.b16 %v537
        %v3203 = vunpack.c.l.b16 %v538
        %v3204 = vunpack.c.h.b16 %v538
        %v3205 = vunpack.c.l.b16 %v539
        %v3206 = vunpack.c.h.b16 %v539
        %v3207 = vunpack.c.l.b16 %v540
        %v3208 = vunpack.c.h.b16 %v540
        %v3209 = vunpack.c.l.b16 %v541
        %v3210 = vunpack.c.h.b16 %v541
        %v3211 = vunpack.c.l.b16 %v542
        %v3212 = vunpack.c.h.b16 %v542
        %v3213 = vunpack.c.l.b16 %v543
        %v3214 = vunpack.c.h.b16 %v543
        %v3215 = vunpack.c.l.b16 %v544
        %v3216 = vunpack.c.h.b16 %v544
        %v3217 = vunpack.c.l.b16 %v545
        %v3218 = vunpack.c.h.b16 %v545
        %v3219 = vunpack.c.l.b16 %v546
        %v3220 = vunpack.c.h.b16 %v546
        %v3221 = vunpack.c.l.b16 %v547
        %v3222 = vunpack.c.h.b16 %v547
        %v3223 = vunpack.c.l.b16 %v548
        %v3224 = vunpack.c.h.b16 %v548
        %v3225 = vunpack.c.l.b16 %v549
        %v3226 = vunpack.c.h.b16 %v549
        %v3227 = vunpack.c.l.b16 %v550
        %v3228 = vunpack.c.h.b16 %v550
        %v3229 = vunpack.c.l.b16 %v551
        %v3230 = vunpack.c.h.b16 %v551
        %v3231 = vunpack.c.l.b16 %v552
        %v3232 = vunpack.c.h.b16 %v552
        %v3233 = vunpack.c.l.b16 %v553
        %v3234 = vunpack.c.h.b16 %v553
        %v3235 = vunpack.c.l.b16 %v554
        %v3236 = vunpack.c.h.b16 %v554
        %v3237 = vunpack.c.l.b16 %v555
        %v3238 = vunpack.c.h.b16 %v555
        %v3239 = vunpack.c.l.b16 %v556
        %v3240 = vunpack.c.h.b16 %v556
        %v3241 = vunpack.c.l.b16 %v557
        %v3242 = vunpack.c.h.b16 %v557
        %v3243 = vunpack.c.l.b16 %v558
        %v3244 = vunpack.c.h.b16 %v558
        %v3245 = vunpack.c.l.b16 %v559
        %v3246 = vunpack.c.h.b16 %v559
        %v3247 = vunpack.c.l.b16 %v560
        %v3248 = vunpack.c.h.b16 %v560
        %v3249 = vunpack.c.l.b16 %v561
        %v3250 = vunpack.c.h.b16 %v561
        %v3251 = vunpack.c.l.b16 %v562
        %v3252 = vunpack.c.h.b16 %v562
        %v3253 = vunpack.c.l.b16 %v563
        %v3254 = vunpack.c.h.b16 %v563
        %v3255 = vunpack.c.l.b16 %v564
        %v3256 = vunpack.c.h.b16 %v564
        %v3257 = vunpack.c.l.b16 %v565
        %v3258 = vunpack.c.h.b16 %v565
        %v3259 = vunpack.c.l.b16 %v566
        %v3260 = vunpack.c.h.b16 %v566
        %v3261 = vunpack.c.l.b16 %v567
        %v3262 = vunpack.c.h.b16 %v567
        %v3263 = vunpack.c.l.b16 %v568
        %v3264 = vunpack.c.h.b16 %v568
        %v3265 = vunpack.c.l.b16 %v569
        %v3266 = vunpack.c.h.b16 %v569
        %v3267 = vunpack.c.l.b16 %v570
        %v3268 = vunpack.c.h.b16 %v570
        %v3269 = vunpack.c.l.b16 %v571
        %v3270 = vunpack.c.h.b16 %v571
        %v3271 = vunpack.c.l.b16 %v572
        %v3272 = vunpack.c.h.b16 %v572
        %v3273 = vunpack.c.l.b16 %v573
        %v3274 = vunpack.c.h.b16 %v573
        %v3275 = vunpack.c.l.b16 %v574
        %v3276 = vunpack.c.h.b16 %v574
        %v3277 = vunpack.c.l.b16 %v575
        %v3278 = vunpack.c.h.b16 %v575
        %v3279 = vunpack.c.l.b16 %v576
        %v3280 = vunpack.c.h.b16 %v576
        %v3281 = vunpack.c.l.b16 %v577
        %v3282 = vunpack.c.h.b16 %v577
        %v3283 = vunpack.c.l.b16 %v578
        %v3284 = vunpack.c.h.b16 %v578
        %v3285 = vunpack.c.l.b16 %v579
        %v3286 = vunpack.c.h.b16 %v579
        %v3287 = vunpack.c.l.b16 %v580
        %v3288 = vunpack.c.h.b16 %v580
        %v3289 = vunpack.c.l.b16 %v581
        %v3290 = vunpack.c.h.b16 %v581
        %v3291 = vunpack.c.l.b16 %v582
        %v3292 = vunpack.c.h.b16 %v582
        %v3293 = vunpack.c.l.b16 %v583
        %v3294 = vunpack.c.h.b16 %v583
        %v3295 = vunpack.c.l.b16 %v584
        %v3296 = vunpack.c.h.b16 %v584
        %v3297 = vunpack.c.l.b16 %v585
        %v3298 = vunpack.c.h.b16 %v585
        %v3299 = vunpack.c.l.b16 %v586
        %v3300 = vunpack.c.h.b16 %v586
        %v3301 = vunpack.c.l.b16 %v587
        %v3302 = vunpack.c.h.b16 %v587
        %v3303 = vunpack.c.l.b16 %v588
        %v3304 = vunpack.c.h.b16 %v588
        %v3305 = vunpack.c.l.b16 %v589
        %v3306 = vunpack.c.h.b16 %v589
        %v3307 = vunpack.c.l.b16 %v590
        %v3308 = vunpack.c.h.b16 %v590
        %v3309 = vunpack.c.l.b16 %v591
        %v3310 = vunpack.c.h.b16 %v591
        %v3311 = vunpack.c.l.b16 %v592
        %v3312 = vunpack.c.h.b16 %v592
        %v3313 = vunpack.c.l.b16 %v593
        %v3314 = vunpack.c.h.b16 %v593
        %v3315 = vunpack.c.l.b16 %v594
        %v3316 = vunpack.c.h.b16 %v594
        %v3317 = vunpack.c.l.b16 %v595
        %v3318 = vunpack.c.h.b16 %v595
        %v3319 = vunpack.c.l.b16 %v596
        %v3320 = vunpack.c.h.b16 %v596
        %v3321 = vunpack.c.l.b16 %v597
        %v3322 = vunpack.c.h.b16 %v597
        %v3323 = vunpack.c.l.b16 %v598
        %v3324 = vunpack.c.h.b16 %v598
        %v3325 = vunpack.c.l.b16 %v599
        %v3326 = vunpack.c.h.b16 %v599
        %v3327 = vunpack.c.l.b16 %v600
        %v3328 = vunpack.c.h.b16 %v600
        %v3329 = vunpack.c.l.b16 %v601
        %v3330 = vunpack.c.h.b16 %v601
        %v3331 = vunpack.c.l.b16 %v602
        %v3332 = vunpack.c.h.b16 %v602
        %v3333 = vunpack.c.l.b16 %v603
        %v3334 = vunpack.c.h.b16 %v603
        %v3335 = vunpack.c.l.b16 %v604
        %v3336 = vunpack.c.h.b16 %v604
        %v3337 = vunpack.c.l.b16 %v605
        %v3338 = vunpack.c.h.b16 %v605
        %v3339 = vunpack.c.l.b16 %v606
        %v3340 = vunpack.c.h.b16 %v606
        %v3341 = vunpack.c.l.b16 %v607
        %v3342 = vunpack.c.h.b16 %v607
        %v3343 = vunpack.c.l.b16 %v608
        %v3344 = vunpack.c.h.b16 %v608
        %v3345 = vunpack.c.l.b16 %v609
        %v3346 = vunpack.c.h.b16 %v609
        %v3347 = vunpack.c.l.b16 %v610
        %v3348 = vunpack.c.h.b16 %v610
        %v3349 = vunpack.c.l.b16 %v611
        %v3350 = vunpack.c.h.b16 %v611
        %v3351 = vunpack.c.l.b16 %v612
        %v3352 = vunpack.c.h.b16 %v612
        %v3353 = vunpack.c.l.b16 %v613
        %v3354 = vunpack.c.h.b16 %v613
        %v3355 = vunpack.c.l.b16 %v614
        %v3356 = vunpack.c.h.b16 %v614
        %v3357 = vunpack.c.l.b16 %v615
        %v3358 = vunpack.c.h.b16 %v615
        %v3359 = vunpack.c.l.b16 %v616
        %v3360 = vunpack.c.h.b16 %v616
        %v3361 = vunpack.c.l.b16 %v617
        %v3362 = vunpack.c.h.b16 %v617
        %v3363 = vunpack.c.l.b16 %v618
        %v3364 = vunpack.c.h.b16 %v618
        %v3365 = vunpack.c.l.b16 %v619
        %v3366 = vunpack.c.h.b16 %v619
        %v3367 = vunpack.c.l.b16 %v620
        %v3368 = vunpack.c.h.b16 %v620
        %v3369 = vunpack.c.l.b16 %v621
        %v3370 = vunpack.c.h.b16 %v621
        %v3371 = vunpack.c.l.b16 %v622
        %v3372 = vunpack.c.h.b16 %v622
        %v3373 = vunpack.c.l.b16 %v623
        %v3374 = vunpack.c.h.b16 %v623
        %v3375 = vunpack.c.l.b16 %v624
        %v3376 = vunpack.c.h.b16 %v624
        %v3377 = vunpack.c.l.b16 %v625
        %v3378 = vunpack.c.h.b16 %v625
        %v3379 = vunpack.c.l.b16 %v626
        %v3380 = vunpack.c.h.b16 %v626
        %v3381 = vunpack.c.l.b16 %v627
        %v3382 = vunpack.c.h.b16 %v627
        %v3383 = vunpack.c.l.b16 %v628
        %v3384 = vunpack.c.h.b16 %v628
        %v3385 = vunpack.c.l.b16 %v629
        %v3386 = vunpack.c.h.b16 %v629
        %v3387 = vunpack.c.l.b16 %v630
        %v3388 = vunpack.c.h.b16 %v630
        %v3389 = vunpack.c.l.b16 %v631
        %v3390 = vunpack.c.h.b16 %v631
        %v3391 = vunpack.c.l.b16 %v632
        %v3392 = vunpack.c.h.b16 %v632
        %v3393 = vunpack.c.l.b16 %v633
        %v3394 = vunpack.c.h.b16 %v633
        %v3395 = vunpack.c.l.b16 %v634
        %v3396 = vunpack.c.h.b16 %v634
        %v3397 = vunpack.c.l.b16 %v635
        %v3398 = vunpack.c.h.b16 %v635
        %v3399 = vunpack.c.l.b16 %v636
        %v3400 = vunpack.c.h.b16 %v636
        %v3401 = vunpack.c.l.b16 %v637
        %v3402 = vunpack.c.h.b16 %v637
        %v3403 = vunpack.c.l.b16 %v638
        %v3404 = vunpack.c.h.b16 %v638
        %v3405 = vunpack.c.l.b16 %v639
        %v3406 = vunpack.c.h.b16 %v639
        %v3407 = vunpack.c.l.b16 %v640
        %v3408 = vunpack.c.h.b16 %v640
        %v3409 = vunpack.c.l.b16 %v641
        %v3410 = vunpack.c.h.b16 %v641
        %v3411 = vunpack.c.l.b16 %v642
        %v3412 = vunpack.c.h.b16 %v642
        %v3413 = vunpack.c.l.b16 %v643
        %v3414 = vunpack.c.h.b16 %v643
        %v3415 = vunpack.c.l.b16 %v644
        %v3416 = vunpack.c.h.b16 %v644
        %v3417 = vunpack.c.l.b16 %v645
        %v3418 = vunpack.c.h.b16 %v645
        %v3419 = vunpack.c.l.b16 %v646
        %v3420 = vunpack.c.h.b16 %v646
        %v3421 = vunpack.c.l.b16 %v647
        %v3422 = vunpack.c.h.b16 %v647
        %v3423 = vunpack.c.l.b16 %v648
        %v3424 = vunpack.c.h.b16 %v648
        %v3425 = vunpack.c.l.b16 %v649
        %v3426 = vunpack.c.h.b16 %v649
        %v3427 = vunpack.c.l.b16 %v650
        %v3428 = vunpack.c.h.b16 %v650
        %v3429 = vunpack.c.l.b16 %v651
        %v3430 = vunpack.c.h.b16 %v651
        %v3431 = vunpack.c.l.b16 %v652
        %v3432 = vunpack.c.h.b16 %v652
        %v3433 = vunpack.c.l.b16 %v653
        %v3434 = vunpack.c.h.b16 %v653
        %v3435 = vunpack.c.l.b16 %v654
        %v3436 = vunpack.c.h.b16 %v654
        %v3437 = vunpack.c.l.b16 %v655
        %v3438 = vunpack.c.h.b16 %v655
        %v3439 = vunpack.c.l.b16 %v656
        %v3440 = vunpack.c.h.b16 %v656
        %v3441 = vunpack.c.l.b16 %v657
        %v3442 = vunpack.c.h.b16 %v657
        %v3443 = vunpack.c.l.b16 %v658
        %v3444 = vunpack.c.h.b16 %v658
        %v3445 = vunpack.c.l.b16 %v659
        %v3446 = vunpack.c.h.b16 %v659
        %v3447 = vunpack.c.l.b16 %v660
        %v3448 = vunpack.c.h.b16 %v660
        %v3449 = vunpack.c.l.b16 %v661
        %v3450 = vunpack.c.h.b16 %v661
        %v3451 = vunpack.c.l.b16 %v662
        %v3452 = vunpack.c.h.b16 %v662
        %v3453 = vunpack.c.l.b16 %v663
        %v3454 = vunpack.c.h.b16 %v663
        %v3455 = vunpack.c.l.b16 %v664
        %v3456 = vunpack.c.h.b16 %v664
        %v3457 = vunpack.c.l.b16 %v665
        %v3458 = vunpack.c.h.b16 %v665
        %v3459 = vunpack.c.l.b16 %v666
        %v3460 = vunpack.c.h.b16 %v666
        %v3461 = vunpack.c.l.b16 %v667
        %v3462 = vunpack.c.h.b16 %v667
        %v3463 = vunpack.c.l.b16 %v668
        %v3464 = vunpack.c.h.b16 %v668
        %v3465 = vunpack.c.l.b16 %v669
        %v3466 = vunpack.c.h.b16 %v669
        %v3467 = vunpack.c.l.b16 %v670
        %v3468 = vunpack.c.h.b16 %v670
        %v3469 = vunpack.c.l.b16 %v671
        %v3470 = vunpack.c.h.b16 %v671
        %v3471 = vunpack.c.l.b16 %v672
        %v3472 = vunpack.c.h.b16 %v672
        %v3473 = vunpack.c.l.b16 %v673
        %v3474 = vunpack.c.h.b16 %v673
        %v3475 = vunpack.c.l.b16 %v674
        %v3476 = vunpack.c.h.b16 %v674
        %v3477 = vunpack.c.l.b16 %v675
        %v3478 = vunpack.c.h.b16 %v675
        %v3479 = vunpack.c.l.b16 %v676
        %v3480 = vunpack.c.h.b16 %v676
        %v3481 = vunpack.c.l.b16 %v677
        %v3482 = vunpack.c.h.b16 %v677
        %v3483 = vunpack.c.l.b16 %v678
        %v3484 = vunpack.c.h.b16 %v678
        %v3485 = vunpack.c.l.b16 %v679
        %v3486 = vunpack.c.h.b16 %v679
        %v3487 = vunpack.c.l.b16 %v680
        %v3488 = vunpack.c.h.b16 %v680
        %v3489 = vunpack.c.l.b16 %v681
        %v3490 = vunpack.c.h.b16 %v681
        %v3491 = vunpack.c.l.b16 %v682
        %v3492 = vunpack.c.h.b16 %v682
        %v3493 = vunpack.c.l.b16 %v683
        %v3494 = vunpack.c.h.b16 %v683
        %v3495 = vunpack.c.l.b16 %v684
        %v3496 = vunpack.c.h.b16 %v684
        %v3497 = vunpack.c.l.b16 %v685
        %v3498 = vunpack.c.h.b16 %v685
        %v3499 = vunpack.c.l.b16 %v686
        %v3500 = vunpack.c.h.b16 %v686
        %v3501 = vunpack.c.l.b16 %v687
        %v3502 = vunpack.c.h.b16 %v687
        %v3503 = vunpack.c.l.b16 %v688
        %v3504 = vunpack.c.h.b16 %v688
        %v3505 = vunpack.c.l.b16 %v689
        %v3506 = vunpack.c.h.b16 %v689
        %v3507 = vunpack.c.l.b16 %v690
        %v3508 = vunpack.c.h.b16 %v690
        %v3509 = vunpack.c.l.b16 %v691
        %v3510 = vunpack.c.h.b16 %v691
        %v3511 = vunpack.c.l.b16 %v692
        %v3512 = vunpack.c.h.b16 %v692
        %v3513 = vunpack.c.l.b16 %v693
        %v3514 = vunpack.c.h.b16 %v693
        %v3515 = vunpack.c.l.b16 %v694
        %v3516 = vunpack.c.h.b16 %v694
        %v3517 = vunpack.c.l.b16 %v695
        %v3518 = vunpack.c.h.b16 %v695
        %v3519 = vunpack.c.l.b16 %v696
        %v3520 = vunpack.c.h.b16 %v696
        %v3521 = vunpack.c.l.b16 %v697
        %v3522 = vunpack.c.h.b16 %v697
        %v3523 = vunpack.c.l.b16 %v698
        %v3524 = vunpack.c.h.b16 %v698
        %v3525 = vunpack.c.l.b16 %v699
        %v3526 = vunpack.c.h.b16 %v699
        %v3527 = vunpack.c.l.b16 %v700
        %v3528 = vunpack.c.h.b16 %v700
        %v3529 = vunpack.c.l.b16 %v701
        %v3530 = vunpack.c.h.b16 %v701
        %v3531 = vunpack.c.l.b16 %v702
        %v3532 = vunpack.c.h.b16 %v702
        %v3533 = vunpack.c.l.b16 %v703
        %v3534 = vunpack.c.h.b16 %v703
        %v3535 = vunpack.c.l.b16 %v704
        %v3536 = vunpack.c.h.b16 %v704
        %v3537 = vunpack.c.l.b16 %v705
        %v3538 = vunpack.c.h.b16 %v705
        %v3539 = vunpack.c.l.b16 %v706
        %v3540 = vunpack.c.h.b16 %v706
        %v3541 = vunpack.c.l.b16 %v707
        %v3542 = vunpack.c.h.b16 %v707
        %v3543 = vunpack.c.l.b16 %v708
        %v3544 = vunpack.c.h.b16 %v708
        %v3545 = vunpack.c.l.b16 %v709
        %v3546 = vunpack.c.h.b16 %v709
        %v3547 = vunpack.c.l.b16 %v710
        %v3548 = vunpack.c.h.b16 %v710
        %v3549 = vunpack.c.l.b16 %v711
        %v3550 = vunpack.c.h.b16 %v711
        %v3551 = vunpack.c.l.b16 %v712
        %v3552 = vunpack.c.h.b16 %v712
        %v3553 = vunpack.c.l.b16 %v713
        %v3554 = vunpack.c.h.b16 %v713
        %v3555 = vunpack.c.l.b16 %v714
        %v3556 = vunpack.c.h.b16 %v714
        %v3557 = vunpack.c.l.b16 %v715
        %v3558 = vunpack.c.h.b16 %v715
        %v3559 = vunpack.c.l.b16 %v716
        %v3560 = vunpack.c.h.b16 %v716
        %v3561 = vunpack.c.l.b16 %v717
        %v3562 = vunpack.c.h.b16 %v717
        %v3563 = vunpack.c.l.b16 %v718
        %v3564 = vunpack.c.h.b16 %v718
        %v3565 = vunpack.c.l.b16 %v719
        %v3566 = vunpack.c.h.b16 %v719
        %v3567 = vunpack.c.l.b16 %v720
        %v3568 = vunpack.c.h.b16 %v720
        %v3569 = vunpack.c.l.b16 %v721
        %v3570 = vunpack.c.h.b16 %v721
        %v3571 = vunpack.c.l.b16 %v722
        %v3572 = vunpack.c.h.b16 %v722
        %v3573 = vunpack.c.l.b16 %v723
        %v3574 = vunpack.c.h.b16 %v723
        %v3575 = vunpack.c.l.b16 %v724
        %v3576 = vunpack.c.h.b16 %v724
        %v3577 = vunpack.c.l.b16 %v725
        %v3578 = vunpack.c.h.b16 %v725
        %v3579 = vunpack.c.l.b16 %v726
        %v3580 = vunpack.c.h.b16 %v726
        %v3581 = vunpack.c.l.b16 %v727
        %v3582 = vunpack.c.h.b16 %v727
        %v3583 = vunpack.c.l.b16 %v728
        %v3584 = vunpack.c.h.b16 %v728
        %v3585 = vunpack.c.l.b16 %v729
        %v3586 = vunpack.c.h.b16 %v729
        %v3587 = vunpack.c.l.b16 %v730
        %v3588 = vunpack.c.h.b16 %v730
        %v3589 = vunpack.c.l.b16 %v731
        %v3590 = vunpack.c.h.b16 %v731
        %v3591 = vunpack.c.l.b16 %v732
        %v3592 = vunpack.c.h.b16 %v732
        %v3593 = vunpack.c.l.b16 %v733
        %v3594 = vunpack.c.h.b16 %v733
        %v3595 = vunpack.c.l.b16 %v734
        %v3596 = vunpack.c.h.b16 %v734
        %v3597 = vunpack.c.l.b16 %v735
        %v3598 = vunpack.c.h.b16 %v735
        %v3599 = vunpack.c.l.b16 %v736
        %v3600 = vunpack.c.h.b16 %v736
        %v3601 = vunpack.c.l.b16 %v737
        %v3602 = vunpack.c.h.b16 %v737
        %v3603 = vunpack.c.l.b16 %v738
        %v3604 = vunpack.c.h.b16 %v738
        %v3605 = vunpack.c.l.b16 %v739
        %v3606 = vunpack.c.h.b16 %v739
        %v3607 = vunpack.c.l.b16 %v740
        %v3608 = vunpack.c.h.b16 %v740
        %v3609 = vunpack.c.l.b16 %v741
        %v3610 = vunpack.c.h.b16 %v741
        %v3611 = vunpack.c.l.b16 %v742
        %v3612 = vunpack.c.h.b16 %v742
        %v3613 = vunpack.c.l.b16 %v743
        %v3614 = vunpack.c.h.b16 %v743
        %v3615 = vunpack.c.l.b16 %v744
        %v3616 = vunpack.c.h.b16 %v744
        %v3617 = vunpack.c.l.b16 %v745
        %v3618 = vunpack.c.h.b16 %v745
        %v3619 = vunpack.c.l.b16 %v746
        %v3620 = vunpack.c.h.b16 %v746
        %v3621 = vunpack.c.l.b16 %v747
        %v3622 = vunpack.c.h.b16 %v747
        %v3623 = vunpack.c.l.b16 %v748
        %v3624 = vunpack.c.h.b16 %v748
        %v3625 = vunpack.c.l.b16 %v749
        %v3626 = vunpack.c.h.b16 %v749
        %v3627 = vunpack.c.l.b16 %v750
        %v3628 = vunpack.c.h.b16 %v750
        %v3629 = vunpack.c.l.b16 %v751
        %v3630 = vunpack.c.h.b16 %v751
        %v3631 = vunpack.c.l.b16 %v752
        %v3632 = vunpack.c.h.b16 %v752
        %v3633 = vpack.c.b16 %v2865, %v2609
        %v3634 = vpack.c.b16 %v2866, %v2610
        %v3635 = vpack.c.b16 %v2867, %v2611
        %v3636 = vpack.c.b16 %v2868, %v2612
        %v3637 = vpack.c.b16 %v2869, %v2613
        %v3638 = vpack.c.b16 %v2870, %v2614
        %v3639 = vpack.c.b16 %v2871, %v2615
        %v3640 = vpack.c.b16 %v2872, %v2616
        %v3641 = vpack.c.b16 %v2873, %v2617
        %v3642 = vpack.c.b16 %v2874, %v2618
        %v3643 = vpack.c.b16 %v2875, %v2619
        %v3644 = vpack.c.b16 %v2876, %v2620
        %v3645 = vpack.c.b16 %v2877, %v2621
        %v3646 = vpack.c.b16 %v2878, %v2622
        %v3647 = vpack.c.b16 %v2879, %v2623
        %v3648 = vpack.c.b16 %v2880, %v2624
        %v3649 = vpack.c.b16 %v2881, %v2625
        %v3650 = vpack.c.b16 %v2882, %v2626
        %v3651 = vpack.c.b16 %v2883, %v2627
        %v3652 = vpack.c.b16 %v2884, %v2628
        %v3653 = vpack.c.b16 %v2885, %v2629
        %v3654 = vpack.c.b16 %v2886, %v2630
        %v3655 = vpack.c.b16 %v2887, %v2631
        %v3656 = vpack.c.b16 %v2888, %v2632
        %v3657 = vpack.c.b16 %v2889, %v2633
        %v3658 = vpack.c.b16 %v2890, %v2634
        %v3659 = vpack.c.b16 %v2891, %v2635
        %v3660 = vpack.c.b16 %v2892, %v2636
        %v3661 = vpack.c.b16 %v2893, %v2637
        %v3662 = vpack.c.b16 %v2894, %v2638
        %v3663 = vpack.c.b16 %v2895, %v2639
        %v3664 = vpack.c.b16 %v2896, %v2640
        %v3665 = vpack.c.b16 %v2897, %v2641
        %v3666 = vpack.c.b16 %v2898, %v2642
        %v3667 = vpack.c.b16 %v2899, %v2643
        %v3668 = vpack.c.b16 %v2900, %v2644
        %v3669 = vpack.c.b16 %v2901, %v2645
        %v3670 = vpack.c.b16 %v2902, %v2646
        %v3671 = vpack.c.b16 %v2903, %v2647
        %v3672 = vpack.c.b16 %v2904, %v2648
        %v3673 = vpack.c.b16 %v2905, %v2649
        %v3674 = vpack.c.b16 %v2906, %v2650
        %v3675 = vpack.c.b16 %v2907, %v2651
        %v3676 = vpack.c.b16 %v2908, %v2652
        %v3677 = vpack.c.b16 %v2909, %v2653
        %v3678 = vpack.c.b16 %v2910, %v2654
        %v3679 = vpack.c.b16 %v2911, %v2655
        %v3680 = vpack.c.b16 %v2912, %v2656
        %v3681 = vpack.c.b16 %v2913, %v2657
        %v3682 = vpack.c.b16 %v2914, %v2658
        %v3683 = vpack.c.b16 %v2915, %v2659
        %v3684 = vpack.c.b16 %v2916, %v2660
        %v3685 = vpack.c.b16 %v2917, %v2661
        %v3686 = vpack.c.b16 %v2918, %v2662
        %v3687 = vpack.c.b16 %v2919, %v2663
        %v3688 = vpack.c.b16 %v2920, %v2664
        %v3689 = vpack.c.b16 %v2921, %v2665
        %v3690 = vpack.c.b16 %v2922, %v2666
        %v3691 = vpack.c.b16 %v2923, %v2667
        %v3692 = vpack.c.b16 %v2924, %v2668
        %v3693 = vpack.c.b16 %v2925, %v2669
        %v3694 = vpack.c.b16 %v2926, %v2670
        %v3695 = vpack.c.b16 %v2927, %v2671
        %v3696 = vpack.c.b16 %v2928, %v2672
        %v3697 = vpack.c.b16 %v2929, %v2673
        %v3698 = vpack.c.b16 %v2930, %v2674
        %v3699 = vpack.c.b16 %v2931, %v2675
        %v3700 = vpack.c.b16 %v2932, %v2676
        %v3701 = vpack.c.b16 %v2933, %v2677
        %v3702 = vpack.c.b16 %v2934, %v2678
        %v3703 = vpack.c.b16 %v2935, %v2679
        %v3704 = vpack.c.b16 %v2936, %v2680
        %v3705 = vpack.c.b16 %v2937, %v2681
        %v3706 = vpack.c.b16 %v2938, %v2682
        %v3707 = vpack.c.b16 %v2939, %v2683
        %v3708 = vpack.c.b16 %v2940, %v2684
        %v3709 = vpack.c.b16 %v2941, %v2685
        %v3710 = vpack.c.b16 %v2942, %v2686
        %v3711 = vpack.c.b16 %v2943, %v2687
        %v3712 = vpack.c.b16 %v2944, %v2688
        %v3713 = vpack.c.b16 %v2945, %v2689
        %v3714 = vpack.c.b16 %v2946, %v2690
        %v3715 = vpack.c.b16 %v2947, %v2691
        %v3716 = vpack.c.b16 %v2948, %v2692
        %v3717 = vpack.c.b16 %v2949, %v2693
        %v3718 = vpack.c.b16 %v2950, %v2694
        %v3719 = vpack.c.b16 %v2951, %v2695
        %v3720 = vpack.c.b16 %v2952, %v2696
        %v3721 = vpack.c.b16 %v2953, %v2697
        %v3722 = vpack.c.b16 %v2954, %v2698
        %v3723 = vpack.c.b16 %v2955, %v2699
        %v3724 = vpack.c.b16 %v2956, %v2700
        %v3725 = vpack.c.b16 %v2957, %v2701
        %v3726 = vpack.c.b16 %v2958, %v2702
        %v3727 = vpack.c.b16 %v2959, %v2703
        %v3728 = vpack.c.b16 %v2960, %v2704
        %v3729 = vpack.c.b16 %v2961, %v2705
        %v3730 = vpack.c.b16 %v2962, %v2706
        %v3731 = vpack.c.b16 %v2963, %v2707
        %v3732 = vpack.c.b16 %v2964, %v2708
        %v3733 = vpack.c.b16 %v2965, %v2709
        %v3734 = vpack.c.b16 %v2966, %v2710
        %v3735 = vpack.c.b16 %v2967, %v2711
        %v3736 = vpack.c.b16 %v2968, %v2712
        %v3737 = vpack.c.b16 %v2969, %v2713
        %v3738 = vpack.c.b16 %v2970, %v2714
        %v3739 = vpack.c.b16 %v2971, %v2715
        %v3740 = vpack.c.b16 %v2972, %v2716
        %v3741 = vpack.c.b16 %v2973, %v2717
        %v3742 = vpack.c.b16 %v2974, %v2718
        %v3743 = vpack.c.b16 %v2975, %v2719
        %v3744 = vpack.c.b16 %v2976, %v2720
        %v3745 = vpack.c.b16 %v2977, %v2721
        %v3746 = vpack.c.b16 %v2978, %v2722
        %v3747 = vpack.c.b16 %v2979, %v2723
        %v3748 = vpack.c.b16 %v2980, %v2724
        %v3749 = vpack.c.b16 %v2981, %v2725
        %v3750 = vpack.c.b16 %v2982, %v2726
        %v3751 = vpack.c.b16 %v2983, %v2727
        %v3752 = vpack.c.b16 %v2984, %v2728
        %v3753 = vpack.c.b16 %v2985, %v2729
        %v3754 = vpack.c.b16 %v2986, %v2730
        %v3755 = vpack.c.b16 %v2987, %v2731
        %v3756 = vpack.c.b16 %v2988, %v2732
        %v3757 = vpack.c.b16 %v2989, %v2733
        %v3758 = vpack.c.b16 %v2990, %v2734
        %v3759 = vpack.c.b16 %v2991, %v2735
        %v3760 = vpack.c.b16 %v2992, %v2736
        %v3761 = vpack.c.b16 %v2993, %v2737
        %v3762 = vpack.c.b16 %v2994, %v2738
        %v3763 = vpack.c.b16 %v2995, %v2739
        %v3764 = vpack.c.b16 %v2996, %v2740
        %v3765 = vpack.c.b16 %v2997, %v2741
        %v3766 = vpack.c.b16 %v2998, %v2742
        %v3767 = vpack.c.b16 %v2999, %v2743
        %v3768 = vpack.c.b16 %v3000, %v2744
        %v3769 = vpack.c.b16 %v3001, %v2745
        %v3770 = vpack.c.b16 %v3002, %v2746
        %v3771 = vpack.c.b16 %v3003, %v2747
        %v3772 = vpack.c.b16 %v3004, %v2748
        %v3773 = vpack.c.b16 %v3005, %v2749
        %v3774 = vpack.c.b16 %v3006, %v2750
        %v3775 = vpack.c.b16 %v3007, %v2751
        %v3776 = vpack.c.b16 %v3008, %v2752
        %v3777 = vpack.c.b16 %v3009, %v2753
        %v3778 = vpack.c.b16 %v3010, %v2754
        %v3779 = vpack.c.b16 %v3011, %v2755
        %v3780 = vpack.c.b16 %v3012, %v2756
        %v3781 = vpack.c.b16 %v3013, %v2757
        %v3782 = vpack.c.b16 %v3014, %v2758
        %v3783 = vpack.c.b16 %v3015, %v2759
        %v3784 = vpack.c.b16 %v3016, %v2760
        %v3785 = vpack.c.b16 %v3017, %v2761
        %v3786 = vpack.c.b16 %v3018, %v2762
        %v3787 = vpack.c.b16 %v3019, %v2763
        %v3788 = vpack.c.b16 %v3020, %v2764
        %v3789 = vpack.c.b16 %v3021, %v2765
        %v3790 = vpack.c.b16 %v3022, %v2766
        %v3791 = vpack.c.b16 %v3023, %v2767
        %v3792 = vpack.c.b16 %v3024, %v2768
        %v3793 = vpack.c.b16 %v3025, %v2769
        %v3794 = vpack.c.b16 %v3026, %v2770
        %v3795 = vpack.c.b16 %v3027, %v2771
        %v3796 = vpack.c.b16 %v3028, %v2772
        %v3797 = vpack.c.b16 %v3029, %v2773
        %v3798 = vpack.c.b16 %v3030, %v2774
        %v3799 = vpack.c.b16 %v3031, %v2775
        %v3800 = vpack.c.b16 %v3032, %v2776
        %v3801 = vpack.c.b16 %v3033, %v2777
        %v3802 = vpack.c.b16 %v3034, %v2778
        %v3803 = vpack.c.b16 %v3035, %v2779
        %v3804 = vpack.c.b16 %v3036, %v2780
        %v3805 = vpack.c.b16 %v3037, %v2781
        %v3806 = vpack.c.b16 %v3038, %v2782
        %v3807 = vpack.c.b16 %v3039, %v2783
        %v3808 = vpack.c.b16 %v3040, %v2784
        %v3809 = vpack.c.b16 %v3041, %v2785
        %v3810 = vpack.c.b16 %v3042, %v2786
        %v3811 = vpack.c.b16 %v3043, %v2787
        %v3812 = vpack.c.b16 %v3044, %v2788
        %v3813 = vpack.c.b16 %v3045, %v2789
        %v3814 = vpack.c.b16 %v3046, %v2790
        %v3815 = vpack.c.b16 %v3047, %v2791
        %v3816 = vpack.c.b16 %v3048, %v2792
        %v3817 = vpack.c.b16 %v3049, %v2793
        %v3818 = vpack.c.b16 %v3050, %v2794
        %v3819 = vpack.c.b16 %v3051, %v2795
        %v3820 = vpack.c.b16 %v3052, %v2796
        %v3821 = vpack.c.b16 %v3053, %v2797
        %v3822 = vpack.c.b16 %v3054, %v2798
        %v3823 = vpack.c.b16 %v3055, %v2799
        %v3824 = vpack.c.b16 %v3056, %v2800
        %v3825 = vpack.c.b16 %v3057, %v2801
        %v3826 = vpack.c.b16 %v3058, %v2802
        %v3827 = vpack.c.b16 %v3059, %v2803
        %v3828 = vpack.c.b16 %v3060, %v2804
        %v3829 = vpack.c.b16 %v3061, %v2805
        %v3830 = vpack.c.b16 %v3062, %v2806
        %v3831 = vpack.c.b16 %v3063, %v2807
        %v3832 = vpack.c.b16 %v3064, %v2808
        %v3833 = vpack.c.b16 %v3065, %v2809
        %v3834 = vpack.c.b16 %v3066, %v2810
        %v3835 = vpack.c.b16 %v3067, %v2811
        %v3836 = vpack.c.b16 %v3068, %v2812
        %v3837 = vpack.c.b16 %v3069, %v2813
        %v3838 = vpack.c.b16 %v3070, %v2814
        %v3839 = vpack.c.b16 %v3071, %v2815
        %v3840 = vpack.c.b16 %v3072, %v2816
        %v3841 = vpack.c.b16 %v3073, %v2817
        %v3842 = vpack.c.b16 %v3074, %v2818
        %v3843 = vpack.c.b16 %v3075, %v2819
        %v3844 = vpack.c.b16 %v3076, %v2820
        %v3845 = vpack.c.b16 %v3077, %v2821
        %v3846 = vpack.c.b16 %v3078, %v2822
        %v3847 = vpack.c.b16 %v3079, %v2823
        %v3848 = vpack.c.b16 %v3080, %v2824
        %v3849 = vpack.c.b16 %v3081, %v2825
        %v3850 = vpack.c.b16 %v3082, %v2826
        %v3851 = vpack.c.b16 %v3083, %v2827
        %v3852 = vpack.c.b16 %v3084, %v2828
        %v3853 = vpack.c.b16 %v3085, %v2829
        %v3854 = vpack.c.b16 %v3086, %v2830
        %v3855 = vpack.c.b16 %v3087, %v2831
        %v3856 = vpack.c.b16 %v3088, %v2832
        %v3857 = vpack.c.b16 %v3089, %v2833
        %v3858 = vpack.c.b16 %v3090, %v2834
        %v3859 = vpack.c.b16 %v3091, %v2835
        %v3860 = vpack.c.b16 %v3092, %v2836
        %v3861 = vpack.c.b16 %v3093, %v2837
        %v3862 = vpack.c.b16 %v3094, %v2838
        %v3863 = vpack.c.b16 %v3095, %v2839
        %v3864 = vpack.c.b16 %v3096, %v2840
        %v3865 = vpack.c.b16 %v3097, %v2841
        %v3866 = vpack.c.b16 %v3098, %v2842
        %v3867 = vpack.c.b16 %v3099, %v2843
        %v3868 = vpack.c.b16 %v3100, %v2844
        %v3869 = vpack.c.b16 %v3101, %v2845
        %v3870 = vpack.c.b16 %v3102, %v2846
        %v3871 = vpack.c.b16 %v3103, %v2847
        %v3872 = vpack.c.b16 %v3104, %v2848
        %v3873 = vpack.c.b16 %v3105, %v2849
        %v3874 = vpack.c.b16 %v3106, %v2850
        %v3875 = vpack.c.b16 %v3107, %v2851
        %v3876 = vpack.c.b16 %v3108, %v2852
        %v3877 = vpack.c.b16 %v3109, %v2853
        %v3878 = vpack.c.b16 %v3110, %v2854
        %v3879 = vpack.c.b16 %v3111, %v2855
        %v3880 = vpack.c.b16 %v3112, %v2856
        %v3881 = vpack.c.b16 %v3113, %v2857
        %v3882 = vpack.c.b16 %v3114, %v2858
        %v3883 = vpack.c.b16 %v3115, %v2859
        %v3884 = vpack.c.b16 %v3116, %v2860
        %v3885 = vpack.c.b16 %v3117, %v2861
        %v3886 = vpack.c.b16 %v3118, %v2862
        %v3887 = vpack.c.b16 %v3119, %v2863
        %v3888 = vpack.c.b16 %v3120, %v2864
        %v3889 = vpack.c.b16 %v3377, %v3121
        %v3890 = vpack.c.b16 %v3378, %v3122
        %v3891 = vpack.c.b16 %v3379, %v3123
        %v3892 = vpack.c.b16 %v3380, %v3124
        %v3893 = vpack.c.b16 %v3381, %v3125
        %v3894 = vpack.c.b16 %v3382, %v3126
        %v3895 = vpack.c.b16 %v3383, %v3127
        %v3896 = vpack.c.b16 %v3384, %v3128
        %v3897 = vpack.c.b16 %v3385, %v3129
        %v3898 = vpack.c.b16 %v3386, %v3130
        %v3899 = vpack.c.b16 %v3387, %v3131
        %v3900 = vpack.c.b16 %v3388, %v3132
        %v3901 = vpack.c.b16 %v3389, %v3133
        %v3902 = vpack.c.b16 %v3390, %v3134
        %v3903 = vpack.c.b16 %v3391, %v3135
        %v3904 = vpack.c.b16 %v3392, %v3136
        %v3905 = vpack.c.b16 %v3393, %v3137
        %v3906 = vpack.c.b16 %v3394, %v3138
        %v3907 = vpack.c.b16 %v3395, %v3139
        %v3908 = vpack.c.b16 %v3396, %v3140
        %v3909 = vpack.c.b16 %v3397, %v3141
        %v3910 = vpack.c.b16 %v3398, %v3142
        %v3911 = vpack.c.b16 %v3399, %v3143
        %v3912 = vpack.c.b16 %v3400, %v3144
        %v3913 = vpack.c.b16 %v3401, %v3145
        %v3914 = vpack.c.b16 %v3402, %v3146
        %v3915 = vpack.c.b16 %v3403, %v3147
        %v3916 = vpack.c.b16 %v3404, %v3148
        %v3917 = vpack.c.b16 %v3405, %v3149
        %v3918 = vpack.c.b16 %v3406, %v3150
        %v3919 = vpack.c.b16 %v3407, %v3151
        %v3920 = vpack.c.b16 %v3408, %v3152
        %v3921 = vpack.c.b16 %v3409, %v3153
        %v3922 = vpack.c.b16 %v3410, %v3154
        %v3923 = vpack.c.b16 %v3411, %v3155
        %v3924 = vpack.c.b16 %v3412, %v3156
        %v3925 = vpack.c.b16 %v3413, %v3157
        %v3926 = vpack.c.b16 %v3414, %v3158
        %v3927 = vpack.c.b16 %v3415, %v3159
        %v3928 = vpack.c.b16 %v3416, %v3160
        %v3929 = vpack.c.b16 %v3417, %v3161
        %v3930 = vpack.c.b16 %v3418, %v3162
        %v3931 = vpack.c.b16 %v3419, %v3163
        %v3932 = vpack.c.b16 %v3420, %v3164
        %v3933 = vpack.c.b16 %v3421, %v3165
        %v3934 = vpack.c.b16 %v3422, %v3166
        %v3935 = vpack.c.b16 %v3423, %v3167
        %v3936 = vpack.c.b16 %v3424, %v3168
        %v3937 = vpack.c.b16 %v3425, %v3169
        %v3938 = vpack.c.b16 %v3426, %v3170
        %v3939 = vpack.c.b16 %v3427, %v3171
        %v3940 = vpack.c.b16 %v3428, %v3172
        %v3941 = vpack.c.b16 %v3429, %v3173
        %v3942 = vpack.c.b16 %v3430, %v3174
        %v3943 = vpack.c.b16 %v3431, %v3175
        %v3944 = vpack.c.b16 %v3432, %v3176
        %v3945 = vpack.c.b16 %v3433, %v3177
        %v3946 = vpack.c.b16 %v3434, %v3178
        %v3947 = vpack.c.b16 %v3435, %v3179
        %v3948 = vpack.c.b16 %v3436, %v3180
        %v3949 = vpack.c.b16 %v3437, %v3181
        %v3950 = vpack.c.b16 %v3438, %v3182
        %v3951 = vpack.c.b16 %v3439, %v3183
        %v3952 = vpack.c.b16 %v3440, %v3184
        %v3953 = vpack.c.b16 %v3441, %v3185
        %v3954 = vpack.c.b16 %v3442, %v3186
        %v3955 = vpack.c.b16 %v3443, %v3187
        %v3956 = vpack.c.b16 %v3444, %v3188
        %v3957 = vpack.c.b16 %v3445, %v3189
        %v3958 = vpack.c.b16 %v3446, %v3190
        %v3959 = vpack.c.b16 %v3447, %v3191
        %v3960 = vpack.c.b16 %v3448, %v3192
        %v3961 = vpack.c.b16 %v3449, %v3193
        %v3962 = vpack.c.b16 %v3450, %v3194
        %v3963 = vpack.c.b16 %v3451, %v3195
        %v3964 = vpack.c.b16 %v3452, %v3196
        %v3965 = vpack.c.b16 %v3453, %v3197
        %v3966 = vpack.c.b16 %v3454, %v3198
        %v3967 = vpack.c.b16 %v3455, %v3199
        %v3968 = vpack.c.b16 %v3456, %v3200
        %v3969 = vpack.c.b16 %v3457, %v3201
        %v3970 = vpack.c.b16 %v3458, %v3202
        %v3971 = vpack.c.b16 %v3459, %v3203
        %v3972 = vpack.c.b16 %v3460, %v3204
        %v3973 = vpack.c.b16 %v3461, %v3205
        %v3974 = vpack.c.b16 %v3462, %v3206
        %v3975 = vpack.c.b16 %v3463, %v3207
        %v3976 = vpack.c.b16 %v3464, %v3208
        %v3977 = vpack.c.b16 %v3465, %v3209
        %v3978 = vpack.c.b16 %v3466, %v3210
        %v3979 = vpack.c.b16 %v3467, %v3211
        %v3980 = vpack.c.b16 %v3468, %v3212
        %v3981 = vpack.c.b16 %v3469, %v3213
        %v3982 = vpack.c.b16 %v3470, %v3214
        %v3983 = vpack.c.b16 %v3471, %v3215
        %v3984 = vpack.c.b16 %v3472, %v3216
        %v3985 = vpack.c.b16 %v3473, %v3217
        %v3986 = vpack.c.b16 %v3474, %v3218
        %v3987 = vpack.c.b16 %v3475, %v3219
        %v3988 = vpack.c.b16 %v3476, %v3220
        %v3989 = vpack.c.b16 %v3477, %v3221
        %v3990 = vpack.c.b16 %v3478, %v3222
        %v3991 = vpack.c.b16 %v3479, %v3223
        %v3992 = vpack.c.b16 %v3480, %v3224
        %v3993 = vpack.c.b16 %v3481, %v3225
        %v3994 = vpack.c.b16 %v3482, %v3226
        %v3995 = vpack.c.b16 %v3483, %v3227
        %v3996 = vpack.c.b16 %v3484, %v3228
        %v3997 = vpack.c.b16 %v3485, %v3229
        %v3998 = vpack.c.b16 %v3486, %v3230
        %v3999 = vpack.c.b16 %v3487, %v3231
        %v4000 = vpack.c.b16 %v3488, %v3232
        %v4001 = vpack.c.b16 %v3489, %v3233
        %v4002 = vpack.c.b16 %v3490, %v3234
        %v4003 = vpack.c.b16 %v3491, %v3235
        %v4004 = vpack.c.b16 %v3492, %v3236
        %v4005 = vpack.c.b16 %v3493, %v3237
        %v4006 = vpack.c.b16 %v3494, %v3238
        %v4007 = vpack.c.b16 %v3495, %v3239
        %v4008 = vpack.c.b16 %v3496, %v3240
        %v4009 = vpack.c.b16 %v3497, %v3241
        %v4010 = vpack.c.b16 %v3498, %v3242
        %v4011 = vpack.c.b16 %v3499, %v3243
        %v4012 = vpack.c.b16 %v3500, %v3244
        %v4013 = vpack.c.b16 %v3501, %v3245
        %v4014 = vpack.c.b16 %v3502, %v3246
        %v4015 = vpack.c.b16 %v3503, %v3247
        %v4016 = vpack.c.b16 %v3504, %v3248
        %v4017 = vpack.c.b16 %v3505, %v3249
        %v4018 = vpack.c.b16 %v3506, %v3250
        %v4019 = vpack.c.b16 %v3507, %v3251
        %v4020 = vpack.c.b16 %v3508, %v3252
        %v4021 = vpack.c.b16 %v3509, %v3253
        %v4022 = vpack.c.b16 %v3510, %v3254
        %v4023 = vpack.c.b16 %v3511, %v3255
        %v4024 = vpack.c.b16 %v3512, %v3256
        %v4025 = vpack.c.b16 %v3513, %v3257
        %v4026 = vpack.c.b16 %v3514, %v3258
        %v4027 = vpack.c.b16 %v3515, %v3259
        %v4028 = vpack.c.b16 %v3516, %v3260
        %v4029 = vpack.c.b16 %v3517, %v3261
        %v4030 = vpack.c.b16 %v3518, %v3262
        %v4031 = vpack.c.b16 %v3519, %v3263
        %v4032 = vpack.c.b16 %v3520, %v3264
        %v4033 = vpack.c.b16 %v3521, %v3265
        %v4034 = vpack.c.b16 %v3522, %v3266
        %v4035 = vpack.c.b16 %v3523, %v3267
        %v4036 = vpack.c.b16 %v3524, %v3268
        %v4037 = vpack.c.b16 %v3525, %v3269
        %v4038 = vpack.c.b16 %v3526, %v3270
        %v4039 = vpack.c.b16 %v3527, %v3271
        %v4040 = vpack.c.b16 %v3528, %v3272
        %v4041 = vpack.c.b16 %v3529, %v3273
        %v4042 = vpack.c.b16 %v3530, %v3274
        %v4043 = vpack.c.b16 %v3531, %v3275
        %v4044 = vpack.c.b16 %v3532, %v3276
        %v4045 = vpack.c.b16 %v3533, %v3277
        %v4046 = vpack.c.b16 %v3534, %v3278
        %v4047 = vpack.c.b16 %v3535, %v3279
        %v4048 = vpack.c.b16 %v3536, %v3280
        %v4049 = vpack.c.b16 %v3537, %v3281
        %v4050 = vpack.c.b16 %v3538, %v3282
        %v4051 = vpack.c.b16 %v3539, %v3283
        %v4052 = vpack.c.b16 %v3540, %v3284
        %v4053 = vpack.c.b16 %v3541, %v3285
        %v4054 = vpack.c.b16 %v3542, %v3286
        %v4055 = vpack.c.b16 %v3543, %v3287
        %v4056 = vpack.c.b16 %v3544, %v3288
        %v4057 = vpack.c.b16 %v3545, %v3289
        %v4058 = vpack.c.b16 %v3546, %v3290
        %v4059 = vpack.c.b16 %v3547, %v3291
        %v4060 = vpack.c.b16 %v3548, %v3292
        %v4061 = vpack.c.b16 %v3549, %v3293
        %v4062 = vpack.c.b16 %v3550, %v3294
        %v4063 = vpack.c.b16 %v3551, %v3295
        %v4064 = vpack.c.b16 %v3552, %v3296
        %v4065 = vpack.c.b16 %v3553, %v3297
        %v4066 = vpack.c.b16 %v3554, %v3298
        %v4067 = vpack.c.b16 %v3555, %v3299
        %v4068 = vpack.c.b16 %v3556, %v3300
        %v4069 = vpack.c.b16 %v3557, %v3301
        %v4070 = vpack.c.b16 %v3558, %v3302
        %v4071 = vpack.c.b16 %v3559, %v3303
        %v4072 = vpack.c.b16 %v3560, %v3304
        %v4073 = vpack.c.b16 %v3561, %v3305
        %v4074 = vpack.c.b16 %v3562, %v3306
        %v4075 = vpack.c.b16 %v3563, %v3307
        %v4076 = vpack.c.b16 %v3564, %v3308
        %v4077 = vpack.c.b16 %v3565, %v3309
        %v4078 = vpack.c.b16 %v3566, %v3310
        %v4079 = vpack.c.b16 %v3567, %v3311
        %v4080 = vpack.c.b16 %v3568, %v3312
        %v4081 = vpack.c.b16 %v3569, %v3313
        %v4082 = vpack.c.b16 %v3570, %v3314
        %v4083 = vpack.c.b16 %v3571, %v3315
        %v4084 = vpack.c.b16 %v3572, %v3316
        %v4085 = vpack.c.b16 %v3573, %v3317
        %v4086 = vpack.c.b16 %v3574, %v3318
        %v4087 = vpack.c.b16 %v3575, %v3319
        %v4088 = vpack.c.b16 %v3576, %v3320
        %v4089 = vpack.c.b16 %v3577, %v3321
        %v4090 = vpack.c.b16 %v3578, %v3322
        %v4091 = vpack.c.b16 %v3579, %v3323
        %v4092 = vpack.c.b16 %v3580, %v3324
        %v4093 = vpack.c.b16 %v3581, %v3325
        %v4094 = vpack.c.b16 %v3582, %v3326
        %v4095 = vpack.c.b16 %v3583, %v3327
        %v4096 = vpack.c.b16 %v3584, %v3328
        %v4097 = vpack.c.b16 %v3585, %v3329
        %v4098 = vpack.c.b16 %v3586, %v3330
        %v4099 = vpack.c.b16 %v3587, %v3331
        %v4100 = vpack.c.b16 %v3588, %v3332
        %v4101 = vpack.c.b16 %v3589, %v3333
        %v4102 = vpack.c.b16 %v3590, %v3334
        %v4103 = vpack.c.b16 %v3591, %v3335
        %v4104 = vpack.c.b16 %v3592, %v3336
        %v4105 = vpack.c.b16 %v3593, %v3337
        %v4106 = vpack.c.b16 %v3594, %v3338
        %v4107 = vpack.c.b16 %v3595, %v3339
        %v4108 = vpack.c.b16 %v3596, %v3340
        %v4109 = vpack.c.b16 %v3597, %v3341
        %v4110 = vpack.c.b16 %v3598, %v3342
        %v4111 = vpack.c.b16 %v3599, %v3343
        %v4112 = vpack.c.b16 %v3600, %v3344
        %v4113 = vpack.c.b16 %v3601, %v3345
        %v4114 = vpack.c.b16 %v3602, %v3346
        %v4115 = vpack.c.b16 %v3603, %v3347
        %v4116 = vpack.c.b16 %v3604, %v3348
        %v4117 = vpack.c.b16 %v3605, %v3349
        %v4118 = vpack.c.b16 %v3606, %v3350
        %v4119 = vpack.c.b16 %v3607, %v3351
        %v4120 = vpack.c.b16 %v3608, %v3352
        %v4121 = vpack.c.b16 %v3609, %v3353
        %v4122 = vpack.c.b16 %v3610, %v3354
        %v4123 = vpack.c.b16 %v3611, %v3355
        %v4124 = vpack.c.b16 %v3612, %v3356
        %v4125 = vpack.c.b16 %v3613, %v3357
        %v4126 = vpack.c.b16 %v3614, %v3358
        %v4127 = vpack.c.b16 %v3615, %v3359
        %v4128 = vpack.c.b16 %v3616, %v3360
        %v4129 = vpack.c.b16 %v3617, %v3361
        %v4130 = vpack.c.b16 %v3618, %v3362
        %v4131 = vpack.c.b16 %v3619, %v3363
        %v4132 = vpack.c.b16 %v3620, %v3364
        %v4133 = vpack.c.b16 %v3621, %v3365
        %v4134 = vpack.c.b16 %v3622, %v3366
        %v4135 = vpack.c.b16 %v3623, %v3367
        %v4136 = vpack.c.b16 %v3624, %v3368
        %v4137 = vpack.c.b16 %v3625, %v3369
        %v4138 = vpack.c.b16 %v3626, %v3370
        %v4139 = vpack.c.b16 %v3627, %v3371
        %v4140 = vpack.c.b16 %v3628, %v3372
        %v4141 = vpack.c.b16 %v3629, %v3373
        %v4142 = vpack.c.b16 %v3630, %v3374
        %v4143 = vpack.c.b16 %v3631, %v3375
        %v4144 = vpack.c.b16 %v3632, %v3376
        %vm4657 = vcmask 261120
        %v4659 = vsel %vm4657, %v240, 0
        %4661 = vmatprep.subr.bf16.mxu0 %v3634
        %4662 = vmatpush1.bf16.msra.mxu0 %v3633
        %4663 = vmatprep.subr.bf16.mxu0 %v3890
        %4664 = vmatpush1.bf16.msra.mxu0 %v3889
        %4665 = vmatprep.subr.bf16.mxu0 0
        %4666 = vmatpush1.bf16.msra.mxu0 0
        %4667 = vmatprep.subr.bf16.mxu0 0
        %4668 = vmatpush1.bf16.msra.mxu0 0
        %4669 = vmatprep.subr.bf16.mxu0 0
        %4670 = vmatpush1.bf16.msra.mxu0 0
        %4671 = vmatprep.subr.bf16.mxu0 0
        %4672 = vmatpush1.bf16.msra.mxu0 0
        %4673 = vmatprep.subr.bf16.mxu0 0
        %4674 = vmatpush1.bf16.msra.mxu0 0
        %4675 = vmatprep.subr.bf16.mxu0 0
        %4676 = vmatpush1.bf16.msra.mxu0 0
        %4677 = vmatprep.subr.bf16.mxu0 0
        %4678 = vmatpush1.bf16.msra.mxu0 0
        %4679 = vmatprep.subr.bf16.mxu0 0
        %4680 = vmatpush1.bf16.msra.mxu0 0
        %4681 = vmatprep.subr.bf16.mxu0 0
        %4682 = vmatpush1.bf16.msra.mxu0 0
        %4683 = vmatprep.subr.bf16.mxu0 0
        %4684 = vmatpush1.bf16.msra.mxu0 0
        %4685 = vmatprep.subr.bf16.mxu0 0
        %4686 = vmatpush1.bf16.msra.mxu0 0
        %4687 = vmatprep.subr.bf16.mxu0 0
        %4688 = vmatpush1.bf16.msra.mxu0 0
        %4689 = vmatprep.subr.bf16.mxu0 0
        %4690 = vmatpush1.bf16.msra.mxu0 0
        %4691 = vmatprep.subr.bf16.mxu0 0
        %4692 = vmatpush1.bf16.msra.mxu0 0
        %4693 = vmatprep.mubr.bf16.mxu0 0
        %4694 = vmatmul.mubr.bf16.gmra.mrb[0].mxu0 %v4659
        %v4695 = vpop.f32.mrb[0].mxu0
        %v4696 = vadd.f32 %v820, %v4695
        %v4697 = vpop.f32.mrb[0].mxu0
        %v4698 = vadd.f32 %v824, %v4697
        %v4699 = vpop.f32.mrb[0].mxu0
        %v4700 = vpop.f32.mrb[0].mxu0
        %4701 = vdwg.mxu0
        %4702 = vmatprep.subr.bf16.mxu0 %v3636
        %4703 = vmatpush1.bf16.msra.mxu0 %v3635
        %4704 = vmatprep.subr.bf16.mxu0 %v3892
        %4705 = vmatpush1.bf16.msra.mxu0 %v3891
        %4706 = vmatprep.subr.bf16.mxu0 0
        %4707 = vmatpush1.bf16.msra.mxu0 0
        %4708 = vmatprep.subr.bf16.mxu0 0
        %4709 = vmatpush1.bf16.msra.mxu0 0
        %4710 = vmatprep.subr.bf16.mxu0 0
        %4711 = vmatpush1.bf16.msra.mxu0 0
        %4712 = vmatprep.subr.bf16.mxu0 0
        %4713 = vmatpush1.bf16.msra.mxu0 0
        %4714 = vmatprep.subr.bf16.mxu0 0
        %4715 = vmatpush1.bf16.msra.mxu0 0
        %4716 = vmatprep.subr.bf16.mxu0 0
        %4717 = vmatpush1.bf16.msra.mxu0 0
        %4718 = vmatprep.subr.bf16.mxu0 0
        %4719 = vmatpush1.bf16.msra.mxu0 0
        %4720 = vmatprep.subr.bf16.mxu0 0
        %4721 = vmatpush1.bf16.msra.mxu0 0
        %4722 = vmatprep.subr.bf16.mxu0 0
        %4723 = vmatpush1.bf16.msra.mxu0 0
        %4724 = vmatprep.subr.bf16.mxu0 0
        %4725 = vmatpush1.bf16.msra.mxu0 0
        %4726 = vmatprep.subr.bf16.mxu0 0
        %4727 = vmatpush1.bf16.msra.mxu0 0
        %4728 = vmatprep.subr.bf16.mxu0 0
        %4729 = vmatpush1.bf16.msra.mxu0 0
        %4730 = vmatprep.subr.bf16.mxu0 0
        %4731 = vmatpush1.bf16.msra.mxu0 0
        %4732 = vmatprep.subr.bf16.mxu0 0
        %4733 = vmatpush1.bf16.msra.mxu0 0
        %4734 = vmatprep.mubr.bf16.mxu0 0
        %4735 = vmatmul.mubr.bf16.gmra.mrb[0].mxu0 %v4659
        %v4736 = vpop.f32.mrb[0].mxu0
        %v4737 = vadd.f32 %v828, %v4736
        %v4738 = vpop.f32.mrb[0].mxu0
        %v4739 = vadd.f32 %v832, %v4738
        %v4740 = vpop.f32.mrb[0].mxu0
        %v4741 = vpop.f32.mrb[0].mxu0
        %4742 = vdwg.mxu0
        %4743 = vmatprep.subr.bf16.mxu0 %v3638
        %4744 = vmatpush1.bf16.msra.mxu0 %v3637
        %4745 = vmatprep.subr.bf16.mxu0 %v3894
        %4746 = vmatpush1.bf16.msra.mxu0 %v3893
        %4747 = vmatprep.subr.bf16.mxu0 0
        %4748 = vmatpush1.bf16.msra.mxu0 0
        %4749 = vmatprep.subr.bf16.mxu0 0
        %4750 = vmatpush1.bf16.msra.mxu0 0
        %4751 = vmatprep.subr.bf16.mxu0 0
        %4752 = vmatpush1.bf16.msra.mxu0 0
        %4753 = vmatprep.subr.bf16.mxu0 0
        %4754 = vmatpush1.bf16.msra.mxu0 0
        %4755 = vmatprep.subr.bf16.mxu0 0
        %4756 = vmatpush1.bf16.msra.mxu0 0
        %4757 = vmatprep.subr.bf16.mxu0 0
        %4758 = vmatpush1.bf16.msra.mxu0 0
        %4759 = vmatprep.subr.bf16.mxu0 0
        %4760 = vmatpush1.bf16.msra.mxu0 0
        %4761 = vmatprep.subr.bf16.mxu0 0
        %4762 = vmatpush1.bf16.msra.mxu0 0
        %4763 = vmatprep.subr.bf16.mxu0 0
        %4764 = vmatpush1.bf16.msra.mxu0 0
        %4765 = vmatprep.subr.bf16.mxu0 0
        %4766 = vmatpush1.bf16.msra.mxu0 0
        %4767 = vmatprep.subr.bf16.mxu0 0
        %4768 = vmatpush1.bf16.msra.mxu0 0
        %4769 = vmatprep.subr.bf16.mxu0 0
        %4770 = vmatpush1.bf16.msra.mxu0 0
        %4771 = vmatprep.subr.bf16.mxu0 0
        %4772 = vmatpush1.bf16.msra.mxu0 0
        %4773 = vmatprep.subr.bf16.mxu0 0
        %4774 = vmatpush1.bf16.msra.mxu0 0
        %4775 = vmatprep.mubr.bf16.mxu0 0
        %4776 = vmatmul.mubr.bf16.gmra.mrb[0].mxu0 %v4659
        %v4777 = vpop.f32.mrb[0].mxu0
        %v4778 = vadd.f32 %v836, %v4777
        %v4779 = vpop.f32.mrb[0].mxu0
        %v4780 = vadd.f32 %v840, %v4779
        %v4781 = vpop.f32.mrb[0].mxu0
        %v4782 = vpop.f32.mrb[0].mxu0
        %4783 = vdwg.mxu0
        %4784 = vmatprep.subr.bf16.mxu0 %v3640
        %4785 = vmatpush1.bf16.msra.mxu0 %v3639
        %4786 = vmatprep.subr.bf16.mxu0 %v3896
        %4787 = vmatpush1.bf16.msra.mxu0 %v3895
        %4788 = vmatprep.subr.bf16.mxu0 0
        %4789 = vmatpush1.bf16.msra.mxu0 0
        %4790 = vmatprep.subr.bf16.mxu0 0
        %4791 = vmatpush1.bf16.msra.mxu0 0
        %4792 = vmatprep.subr.bf16.mxu0 0
        %4793 = vmatpush1.bf16.msra.mxu0 0
        %4794 = vmatprep.subr.bf16.mxu0 0
        %4795 = vmatpush1.bf16.msra.mxu0 0
        %4796 = vmatprep.subr.bf16.mxu0 0
        %4797 = vmatpush1.bf16.msra.mxu0 0
        %4798 = vmatprep.subr.bf16.mxu0 0
        %4799 = vmatpush1.bf16.msra.mxu0 0
        %4800 = vmatprep.subr.bf16.mxu0 0
        %4801 = vmatpush1.bf16.msra.mxu0 0
        %4802 = vmatprep.subr.bf16.mxu0 0
        %4803 = vmatpush1.bf16.msra.mxu0 0
        %4804 = vmatprep.subr.bf16.mxu0 0
        %4805 = vmatpush1.bf16.msra.mxu0 0
        %4806 = vmatprep.subr.bf16.mxu0 0
        %4807 = vmatpush1.bf16.msra.mxu0 0
        %4808 = vmatprep.subr.bf16.mxu0 0
        %4809 = vmatpush1.bf16.msra.mxu0 0
        %4810 = vmatprep.subr.bf16.mxu0 0
        %4811 = vmatpush1.bf16.msra.mxu0 0
        %4812 = vmatprep.subr.bf16.mxu0 0
        %4813 = vmatpush1.bf16.msra.mxu0 0
        %4814 = vmatprep.subr.bf16.mxu0 0
        %4815 = vmatpush1.bf16.msra.mxu0 0
        %4816 = vmatprep.mubr.bf16.mxu0 0
        %4817 = vmatmul.mubr.bf16.gmra.mrb[0].mxu0 %v4659
        %v4818 = vpop.f32.mrb[0].mxu0
        %v4819 = vadd.f32 %v844, %v4818
        %v4820 = vpop.f32.mrb[0].mxu0
        %v4821 = vadd.f32 %v848, %v4820
        %v4822 = vpop.f32.mrb[0].mxu0
        %v4823 = vpop.f32.mrb[0].mxu0
        %4824 = vdwg.mxu0
        %4825 = vmatprep.subr.bf16.mxu0 %v3642
        %4826 = vmatpush1.bf16.msra.mxu0 %v3641
        %4827 = vmatprep.subr.bf16.mxu0 %v3898
        %4828 = vmatpush1.bf16.msra.mxu0 %v3897
        %4829 = vmatprep.subr.bf16.mxu0 0
        %4830 = vmatpush1.bf16.msra.mxu0 0
        %4831 = vmatprep.subr.bf16.mxu0 0
        %4832 = vmatpush1.bf16.msra.mxu0 0
        %4833 = vmatprep.subr.bf16.mxu0 0
        %4834 = vmatpush1.bf16.msra.mxu0 0
        %4835 = vmatprep.subr.bf16.mxu0 0
        %4836 = vmatpush1.bf16.msra.mxu0 0
        %4837 = vmatprep.subr.bf16.mxu0 0
        %4838 = vmatpush1.bf16.msra.mxu0 0
        %4839 = vmatprep.subr.bf16.mxu0 0
        %4840 = vmatpush1.bf16.msra.mxu0 0
        %4841 = vmatprep.subr.bf16.mxu0 0
        %4842 = vmatpush1.bf16.msra.mxu0 0
        %4843 = vmatprep.subr.bf16.mxu0 0
        %4844 = vmatpush1.bf16.msra.mxu0 0
        %4845 = vmatprep.subr.bf16.mxu0 0
        %4846 = vmatpush1.bf16.msra.mxu0 0
        %4847 = vmatprep.subr.bf16.mxu0 0
        %4848 = vmatpush1.bf16.msra.mxu0 0
        %4849 = vmatprep.subr.bf16.mxu0 0
        %4850 = vmatpush1.bf16.msra.mxu0 0
        %4851 = vmatprep.subr.bf16.mxu0 0
        %4852 = vmatpush1.bf16.msra.mxu0 0
        %4853 = vmatprep.subr.bf16.mxu0 0
        %4854 = vmatpush1.bf16.msra.mxu0 0
        %4855 = vmatprep.subr.bf16.mxu0 0
        %4856 = vmatpush1.bf16.msra.mxu0 0
        %4857 = vmatprep.mubr.bf16.mxu0 0
        %4858 = vmatmul.mubr.bf16.gmra.mrb[0].mxu0 %v4659
        %v4859 = vpop.f32.mrb[0].mxu0
        %v4860 = vadd.f32 %v852, %v4859
        %v4861 = vpop.f32.mrb[0].mxu0
        %v4862 = vadd.f32 %v856, %v4861
        %v4863 = vpop.f32.mrb[0].mxu0
        %v4864 = vpop.f32.mrb[0].mxu0
        %4865 = vdwg.mxu0
        %4866 = vmatprep.subr.bf16.mxu0 %v3644
        %4867 = vmatpush1.bf16.msra.mxu0 %v3643
        %4868 = vmatprep.subr.bf16.mxu0 %v3900
        %4869 = vmatpush1.bf16.msra.mxu0 %v3899
        %4870 = vmatprep.subr.bf16.mxu0 0
        %4871 = vmatpush1.bf16.msra.mxu0 0
        %4872 = vmatprep.subr.bf16.mxu0 0
        %4873 = vmatpush1.bf16.msra.mxu0 0
        %4874 = vmatprep.subr.bf16.mxu0 0
        %4875 = vmatpush1.bf16.msra.mxu0 0
        %4876 = vmatprep.subr.bf16.mxu0 0
        %4877 = vmatpush1.bf16.msra.mxu0 0
        %4878 = vmatprep.subr.bf16.mxu0 0
        %4879 = vmatpush1.bf16.msra.mxu0 0
        %4880 = vmatprep.subr.bf16.mxu0 0
        %4881 = vmatpush1.bf16.msra.mxu0 0
        %4882 = vmatprep.subr.bf16.mxu0 0
        %4883 = vmatpush1.bf16.msra.mxu0 0
        %4884 = vmatprep.subr.bf16.mxu0 0
        %4885 = vmatpush1.bf16.msra.mxu0 0
        %4886 = vmatprep.subr.bf16.mxu0 0
        %4887 = vmatpush1.bf16.msra.mxu0 0
        %4888 = vmatprep.subr.bf16.mxu0 0
        %4889 = vmatpush1.bf16.msra.mxu0 0
        %4890 = vmatprep.subr.bf16.mxu0 0
        %4891 = vmatpush1.bf16.msra.mxu0 0
        %4892 = vmatprep.subr.bf16.mxu0 0
        %4893 = vmatpush1.bf16.msra.mxu0 0
        %4894 = vmatprep.subr.bf16.mxu0 0
        %4895 = vmatpush1.bf16.msra.mxu0 0
        %4896 = vmatprep.subr.bf16.mxu0 0
        %4897 = vmatpush1.bf16.msra.mxu0 0
        %4898 = vmatprep.mubr.bf16.mxu0 0
        %4899 = vmatmul.mubr.bf16.gmra.mrb[0].mxu0 %v4659
        %v4900 = vpop.f32.mrb[0].mxu0
        %v4901 = vadd.f32 %v860, %v4900
        %v4902 = vpop.f32.mrb[0].mxu0
        %v4903 = vadd.f32 %v864, %v4902
        %v4904 = vpop.f32.mrb[0].mxu0
        %v4905 = vpop.f32.mrb[0].mxu0
        %4906 = vdwg.mxu0
        %4907 = vmatprep.subr.bf16.mxu0 %v3646
        %4908 = vmatpush1.bf16.msra.mxu0 %v3645
        %4909 = vmatprep.subr.bf16.mxu0 %v3902
        %4910 = vmatpush1.bf16.msra.mxu0 %v3901
        %4911 = vmatprep.subr.bf16.mxu0 0
        %4912 = vmatpush1.bf16.msra.mxu0 0
        %4913 = vmatprep.subr.bf16.mxu0 0
        %4914 = vmatpush1.bf16.msra.mxu0 0
        %4915 = vmatprep.subr.bf16.mxu0 0
        %4916 = vmatpush1.bf16.msra.mxu0 0
        %4917 = vmatprep.subr.bf16.mxu0 0
        %4918 = vmatpush1.bf16.msra.mxu0 0
        %4919 = vmatprep.subr.bf16.mxu0 0
        %4920 = vmatpush1.bf16.msra.mxu0 0
        %4921 = vmatprep.subr.bf16.mxu0 0
        %4922 = vmatpush1.bf16.msra.mxu0 0
        %4923 = vmatprep.subr.bf16.mxu0 0
        %4924 = vmatpush1.bf16.msra.mxu0 0
        %4925 = vmatprep.subr.bf16.mxu0 0
        %4926 = vmatpush1.bf16.msra.mxu0 0
        %4927 = vmatprep.subr.bf16.mxu0 0
        %4928 = vmatpush1.bf16.msra.mxu0 0
        %4929 = vmatprep.subr.bf16.mxu0 0
        %4930 = vmatpush1.bf16.msra.mxu0 0
        %4931 = vmatprep.subr.bf16.mxu0 0
        %4932 = vmatpush1.bf16.msra.mxu0 0
        %4933 = vmatprep.subr.bf16.mxu0 0
        %4934 = vmatpush1.bf16.msra.mxu0 0
        %4935 = vmatprep.subr.bf16.mxu0 0
        %4936 = vmatpush1.bf16.msra.mxu0 0
        %4937 = vmatprep.subr.bf16.mxu0 0
        %4938 = vmatpush1.bf16.msra.mxu0 0
        %4939 = vmatprep.mubr.bf16.mxu0 0
        %4940 = vmatmul.mubr.bf16.gmra.mrb[0].mxu0 %v4659
        %v4941 = vpop.f32.mrb[0].mxu0
        %v4942 = vadd.f32 %v868, %v4941
        %v4943 = vpop.f32.mrb[0].mxu0
        %v4944 = vadd.f32 %v872, %v4943
        %v4945 = vpop.f32.mrb[0].mxu0
        %v4946 = vpop.f32.mrb[0].mxu0
        %4947 = vdwg.mxu0
        %4948 = vmatprep.subr.bf16.mxu0 %v3648
        %4949 = vmatpush1.bf16.msra.mxu0 %v3647
        %4950 = vmatprep.subr.bf16.mxu0 %v3904
        %4951 = vmatpush1.bf16.msra.mxu0 %v3903
        %4952 = vmatprep.subr.bf16.mxu0 0
        %4953 = vmatpush1.bf16.msra.mxu0 0
        %4954 = vmatprep.subr.bf16.mxu0 0
        %4955 = vmatpush1.bf16.msra.mxu0 0
        %4956 = vmatprep.subr.bf16.mxu0 0
        %4957 = vmatpush1.bf16.msra.mxu0 0
        %4958 = vmatprep.subr.bf16.mxu0 0
        %4959 = vmatpush1.bf16.msra.mxu0 0
        %4960 = vmatprep.subr.bf16.mxu0 0
        %4961 = vmatpush1.bf16.msra.mxu0 0
        %4962 = vmatprep.subr.bf16.mxu0 0
        %4963 = vmatpush1.bf16.msra.mxu0 0
        %4964 = vmatprep.subr.bf16.mxu0 0
        %4965 = vmatpush1.bf16.msra.mxu0 0
        %4966 = vmatprep.subr.bf16.mxu0 0
        %4967 = vmatpush1.bf16.msra.mxu0 0
        %4968 = vmatprep.subr.bf16.mxu0 0
        %4969 = vmatpush1.bf16.msra.mxu0 0
        %4970 = vmatprep.subr.bf16.mxu0 0
        %4971 = vmatpush1.bf16.msra.mxu0 0
        %4972 = vmatprep.subr.bf16.mxu0 0
        %4973 = vmatpush1.bf16.msra.mxu0 0
        %4974 = vmatprep.subr.bf16.mxu0 0
        %4975 = vmatpush1.bf16.msra.mxu0 0
        %4976 = vmatprep.subr.bf16.mxu0 0
        %4977 = vmatpush1.bf16.msra.mxu0 0
        %4978 = vmatprep.subr.bf16.mxu0 0
        %4979 = vmatpush1.bf16.msra.mxu0 0
        %4980 = vmatprep.mubr.bf16.mxu0 0
        %4981 = vmatmul.mubr.bf16.gmra.mrb[0].mxu0 %v4659
        %v4982 = vpop.f32.mrb[0].mxu0
        %v4983 = vadd.f32 %v876, %v4982
        %v4984 = vpop.f32.mrb[0].mxu0
        %v4985 = vadd.f32 %v880, %v4984
        %v4986 = vpop.f32.mrb[0].mxu0
        %v4987 = vpop.f32.mrb[0].mxu0
        %4988 = vdwg.mxu0
        %4989 = vmatprep.subr.bf16.mxu0 %v3650
        %4990 = vmatpush1.bf16.msra.mxu0 %v3649
        %4991 = vmatprep.subr.bf16.mxu0 %v3906
        %4992 = vmatpush1.bf16.msra.mxu0 %v3905
        %4993 = vmatprep.subr.bf16.mxu0 0
        %4994 = vmatpush1.bf16.msra.mxu0 0
        %4995 = vmatprep.subr.bf16.mxu0 0
        %4996 = vmatpush1.bf16.msra.mxu0 0
        %4997 = vmatprep.subr.bf16.mxu0 0
        %4998 = vmatpush1.bf16.msra.mxu0 0
        %4999 = vmatprep.subr.bf16.mxu0 0
        %5000 = vmatpush1.bf16.msra.mxu0 0
        %5001 = vmatprep.subr.bf16.mxu0 0
        %5002 = vmatpush1.bf16.msra.mxu0 0
        %5003 = vmatprep.subr.bf16.mxu0 0
        %5004 = vmatpush1.bf16.msra.mxu0 0
        %5005 = vmatprep.subr.bf16.mxu0 0
        %5006 = vmatpush1.bf16.msra.mxu0 0
        %5007 = vmatprep.subr.bf16.mxu0 0
        %5008 = vmatpush1.bf16.msra.mxu0 0
        %5009 = vmatprep.subr.bf16.mxu0 0
        %5010 = vmatpush1.bf16.msra.mxu0 0
        %5011 = vmatprep.subr.bf16.mxu0 0
        %5012 = vmatpush1.bf16.msra.mxu0 0
        %5013 = vmatprep.subr.bf16.mxu0 0
        %5014 = vmatpush1.bf16.msra.mxu0 0
        %5015 = vmatprep.subr.bf16.mxu0 0
        %5016 = vmatpush1.bf16.msra.mxu0 0
        %5017 = vmatprep.subr.bf16.mxu0 0
        %5018 = vmatpush1.bf16.msra.mxu0 0
        %5019 = vmatprep.subr.bf16.mxu0 0
        %5020 = vmatpush1.bf16.msra.mxu0 0
        %5021 = vmatprep.mubr.bf16.mxu0 0
        %5022 = vmatmul.mubr.bf16.gmra.mrb[0].mxu0 %v4659
        %v5023 = vpop.f32.mrb[0].mxu0
        %v5024 = vadd.f32 %v884, %v5023
        %v5025 = vpop.f32.mrb[0].mxu0
        %v5026 = vadd.f32 %v888, %v5025
        %v5027 = vpop.f32.mrb[0].mxu0
        %v5028 = vpop.f32.mrb[0].mxu0
        %5029 = vdwg.mxu0
        %5030 = vmatprep.subr.bf16.mxu0 %v3652
        %5031 = vmatpush1.bf16.msra.mxu0 %v3651
        %5032 = vmatprep.subr.bf16.mxu0 %v3908
        %5033 = vmatpush1.bf16.msra.mxu0 %v3907
        %5034 = vmatprep.subr.bf16.mxu0 0
        %5035 = vmatpush1.bf16.msra.mxu0 0
        %5036 = vmatprep.subr.bf16.mxu0 0
        %5037 = vmatpush1.bf16.msra.mxu0 0
        %5038 = vmatprep.subr.bf16.mxu0 0
        %5039 = vmatpush1.bf16.msra.mxu0 0
        %5040 = vmatprep.subr.bf16.mxu0 0
        %5041 = vmatpush1.bf16.msra.mxu0 0
        %5042 = vmatprep.subr.bf16.mxu0 0
        %5043 = vmatpush1.bf16.msra.mxu0 0
        %5044 = vmatprep.subr.bf16.mxu0 0
        %5045 = vmatpush1.bf16.msra.mxu0 0
        %5046 = vmatprep.subr.bf16.mxu0 0
        %5047 = vmatpush1.bf16.msra.mxu0 0
        %5048 = vmatprep.subr.bf16.mxu0 0
        %5049 = vmatpush1.bf16.msra.mxu0 0
        %5050 = vmatprep.subr.bf16.mxu0 0
        %5051 = vmatpush1.bf16.msra.mxu0 0
        %5052 = vmatprep.subr.bf16.mxu0 0
        %5053 = vmatpush1.bf16.msra.mxu0 0
        %5054 = vmatprep.subr.bf16.mxu0 0
        %5055 = vmatpush1.bf16.msra.mxu0 0
        %5056 = vmatprep.subr.bf16.mxu0 0
        %5057 = vmatpush1.bf16.msra.mxu0 0
        %5058 = vmatprep.subr.bf16.mxu0 0
        %5059 = vmatpush1.bf16.msra.mxu0 0
        %5060 = vmatprep.subr.bf16.mxu0 0
        %5061 = vmatpush1.bf16.msra.mxu0 0
        %5062 = vmatprep.mubr.bf16.mxu0 0
        %5063 = vmatmul.mubr.bf16.gmra.mrb[0].mxu0 %v4659
        %v5064 = vpop.f32.mrb[0].mxu0
        %v5065 = vadd.f32 %v892, %v5064
        %v5066 = vpop.f32.mrb[0].mxu0
        %v5067 = vadd.f32 %v896, %v5066
        %v5068 = vpop.f32.mrb[0].mxu0
        %v5069 = vpop.f32.mrb[0].mxu0
        %5070 = vdwg.mxu0
        %5071 = vmatprep.subr.bf16.mxu0 %v3654
        %5072 = vmatpush1.bf16.msra.mxu0 %v3653
        %5073 = vmatprep.subr.bf16.mxu0 %v3910
        %5074 = vmatpush1.bf16.msra.mxu0 %v3909
        %5075 = vmatprep.subr.bf16.mxu0 0
        %5076 = vmatpush1.bf16.msra.mxu0 0
        %5077 = vmatprep.subr.bf16.mxu0 0
        %5078 = vmatpush1.bf16.msra.mxu0 0
        %5079 = vmatprep.subr.bf16.mxu0 0
        %5080 = vmatpush1.bf16.msra.mxu0 0
        %5081 = vmatprep.subr.bf16.mxu0 0
        %5082 = vmatpush1.bf16.msra.mxu0 0
        %5083 = vmatprep.subr.bf16.mxu0 0
        %5084 = vmatpush1.bf16.msra.mxu0 0
        %5085 = vmatprep.subr.bf16.mxu0 0
        %5086 = vmatpush1.bf16.msra.mxu0 0
        %5087 = vmatprep.subr.bf16.mxu0 0
        %5088 = vmatpush1.bf16.msra.mxu0 0
        %5089 = vmatprep.subr.bf16.mxu0 0
        %5090 = vmatpush1.bf16.msra.mxu0 0
        %5091 = vmatprep.subr.bf16.mxu0 0
        %5092 = vmatpush1.bf16.msra.mxu0 0
        %5093 = vmatprep.subr.bf16.mxu0 0
        %5094 = vmatpush1.bf16.msra.mxu0 0
        %5095 = vmatprep.subr.bf16.mxu0 0
        %5096 = vmatpush1.bf16.msra.mxu0 0
        %5097 = vmatprep.subr.bf16.mxu0 0
        %5098 = vmatpush1.bf16.msra.mxu0 0
        %5099 = vmatprep.subr.bf16.mxu0 0
        %5100 = vmatpush1.bf16.msra.mxu0 0
        %5101 = vmatprep.subr.bf16.mxu0 0
        %5102 = vmatpush1.bf16.msra.mxu0 0
        %5103 = vmatprep.mubr.bf16.mxu0 0
        %5104 = vmatmul.mubr.bf16.gmra.mrb[0].mxu0 %v4659
        %v5105 = vpop.f32.mrb[0].mxu0
        %v5106 = vadd.f32 %v900, %v5105
        %v5107 = vpop.f32.mrb[0].mxu0
        %v5108 = vadd.f32 %v904, %v5107
        %v5109 = vpop.f32.mrb[0].mxu0
        %v5110 = vpop.f32.mrb[0].mxu0
        %5111 = vdwg.mxu0
        %5112 = vmatprep.subr.bf16.mxu0 %v3656
        %5113 = vmatpush1.bf16.msra.mxu0 %v3655
        %5114 = vmatprep.subr.bf16.mxu0 %v3912
        %5115 = vmatpush1.bf16.msra.mxu0 %v3911
        %5116 = vmatprep.subr.bf16.mxu0 0
        %5117 = vmatpush1.bf16.msra.mxu0 0
        %5118 = vmatprep.subr.bf16.mxu0 0
        %5119 = vmatpush1.bf16.msra.mxu0 0
        %5120 = vmatprep.subr.bf16.mxu0 0
        %5121 = vmatpush1.bf16.msra.mxu0 0
        %5122 = vmatprep.subr.bf16.mxu0 0
        %5123 = vmatpush1.bf16.msra.mxu0 0
        %5124 = vmatprep.subr.bf16.mxu0 0
        %5125 = vmatpush1.bf16.msra.mxu0 0
        %5126 = vmatprep.subr.bf16.mxu0 0
        %5127 = vmatpush1.bf16.msra.mxu0 0
        %5128 = vmatprep.subr.bf16.mxu0 0
        %5129 = vmatpush1.bf16.msra.mxu0 0
        %5130 = vmatprep.subr.bf16.mxu0 0
        %5131 = vmatpush1.bf16.msra.mxu0 0
        %5132 = vmatprep.subr.bf16.mxu0 0
        %5133 = vmatpush1.bf16.msra.mxu0 0
        %5134 = vmatprep.subr.bf16.mxu0 0
        %5135 = vmatpush1.bf16.msra.mxu0 0
        %5136 = vmatprep.subr.bf16.mxu0 0
        %5137 = vmatpush1.bf16.msra.mxu0 0
        %5138 = vmatprep.subr.bf16.mxu0 0
        %5139 = vmatpush1.bf16.msra.mxu0 0
        %5140 = vmatprep.subr.bf16.mxu0 0
        %5141 = vmatpush1.bf16.msra.mxu0 0
        %5142 = vmatprep.subr.bf16.mxu0 0
        %5143 = vmatpush1.bf16.msra.mxu0 0
        %5144 = vmatprep.mubr.bf16.mxu0 0
        %5145 = vmatmul.mubr.bf16.gmra.mrb[0].mxu0 %v4659
        %v5146 = vpop.f32.mrb[0].mxu0
        %v5147 = vadd.f32 %v908, %v5146
        %v5148 = vpop.f32.mrb[0].mxu0
        %v5149 = vadd.f32 %v912, %v5148
        %v5150 = vpop.f32.mrb[0].mxu0
        %v5151 = vpop.f32.mrb[0].mxu0
        %5152 = vdwg.mxu0
        %5153 = vmatprep.subr.bf16.mxu0 %v3658
        %5154 = vmatpush1.bf16.msra.mxu0 %v3657
        %5155 = vmatprep.subr.bf16.mxu0 %v3914
        %5156 = vmatpush1.bf16.msra.mxu0 %v3913
        %5157 = vmatprep.subr.bf16.mxu0 0
        %5158 = vmatpush1.bf16.msra.mxu0 0
        %5159 = vmatprep.subr.bf16.mxu0 0
        %5160 = vmatpush1.bf16.msra.mxu0 0
        %5161 = vmatprep.subr.bf16.mxu0 0
        %5162 = vmatpush1.bf16.msra.mxu0 0
        %5163 = vmatprep.subr.bf16.mxu0 0
        %5164 = vmatpush1.bf16.msra.mxu0 0
        %5165 = vmatprep.subr.bf16.mxu0 0
        %5166 = vmatpush1.bf16.msra.mxu0 0
        %5167 = vmatprep.subr.bf16.mxu0 0
        %5168 = vmatpush1.bf16.msra.mxu0 0
        %5169 = vmatprep.subr.bf16.mxu0 0
        %5170 = vmatpush1.bf16.msra.mxu0 0
        %5171 = vmatprep.subr.bf16.mxu0 0
        %5172 = vmatpush1.bf16.msra.mxu0 0
        %5173 = vmatprep.subr.bf16.mxu0 0
        %5174 = vmatpush1.bf16.msra.mxu0 0
        %5175 = vmatprep.subr.bf16.mxu0 0
        %5176 = vmatpush1.bf16.msra.mxu0 0
        %5177 = vmatprep.subr.bf16.mxu0 0
        %5178 = vmatpush1.bf16.msra.mxu0 0
        %5179 = vmatprep.subr.bf16.mxu0 0
        %5180 = vmatpush1.bf16.msra.mxu0 0
        %5181 = vmatprep.subr.bf16.mxu0 0
        %5182 = vmatpush1.bf16.msra.mxu0 0
        %5183 = vmatprep.subr.bf16.mxu0 0
        %5184 = vmatpush1.bf16.msra.mxu0 0
        %5185 = vmatprep.mubr.bf16.mxu0 0
        %5186 = vmatmul.mubr.bf16.gmra.mrb[0].mxu0 %v4659
        %v5187 = vpop.f32.mrb[0].mxu0
        %v5188 = vadd.f32 %v916, %v5187
        %v5189 = vpop.f32.mrb[0].mxu0
        %v5190 = vadd.f32 %v920, %v5189
        %v5191 = vpop.f32.mrb[0].mxu0
        %v5192 = vpop.f32.mrb[0].mxu0
        %5193 = vdwg.mxu0
        %5194 = vmatprep.subr.bf16.mxu0 %v3660
        %5195 = vmatpush1.bf16.msra.mxu0 %v3659
        %5196 = vmatprep.subr.bf16.mxu0 %v3916
        %5197 = vmatpush1.bf16.msra.mxu0 %v3915
        %5198 = vmatprep.subr.bf16.mxu0 0
        %5199 = vmatpush1.bf16.msra.mxu0 0
        %5200 = vmatprep.subr.bf16.mxu0 0
        %5201 = vmatpush1.bf16.msra.mxu0 0
        %5202 = vmatprep.subr.bf16.mxu0 0
        %5203 = vmatpush1.bf16.msra.mxu0 0
        %5204 = vmatprep.subr.bf16.mxu0 0
        %5205 = vmatpush1.bf16.msra.mxu0 0
        %5206 = vmatprep.subr.bf16.mxu0 0
        %5207 = vmatpush1.bf16.msra.mxu0 0
        %5208 = vmatprep.subr.bf16.mxu0 0
        %5209 = vmatpush1.bf16.msra.mxu0 0
        %5210 = vmatprep.subr.bf16.mxu0 0
        %5211 = vmatpush1.bf16.msra.mxu0 0
        %5212 = vmatprep.subr.bf16.mxu0 0
        %5213 = vmatpush1.bf16.msra.mxu0 0
        %5214 = vmatprep.subr.bf16.mxu0 0
        %5215 = vmatpush1.bf16.msra.mxu0 0
        %5216 = vmatprep.subr.bf16.mxu0 0
        %5217 = vmatpush1.bf16.msra.mxu0 0
        %5218 = vmatprep.subr.bf16.mxu0 0
        %5219 = vmatpush1.bf16.msra.mxu0 0
        %5220 = vmatprep.subr.bf16.mxu0 0
        %5221 = vmatpush1.bf16.msra.mxu0 0
        %5222 = vmatprep.subr.bf16.mxu0 0
        %5223 = vmatpush1.bf16.msra.mxu0 0
        %5224 = vmatprep.subr.bf16.mxu0 0
        %5225 = vmatpush1.bf16.msra.mxu0 0
        %5226 = vmatprep.mubr.bf16.mxu0 0
        %5227 = vmatmul.mubr.bf16.gmra.mrb[0].mxu0 %v4659
        %v5228 = vpop.f32.mrb[0].mxu0
        %v5229 = vadd.f32 %v924, %v5228
        %v5230 = vpop.f32.mrb[0].mxu0
        %v5231 = vadd.f32 %v928, %v5230
        %v5232 = vpop.f32.mrb[0].mxu0
        %v5233 = vpop.f32.mrb[0].mxu0
        %5234 = vdwg.mxu0
        %5235 = vmatprep.subr.bf16.mxu0 %v3662
        %5236 = vmatpush1.bf16.msra.mxu0 %v3661
        %5237 = vmatprep.subr.bf16.mxu0 %v3918
        %5238 = vmatpush1.bf16.msra.mxu0 %v3917
        %5239 = vmatprep.subr.bf16.mxu0 0
        %5240 = vmatpush1.bf16.msra.mxu0 0
        %5241 = vmatprep.subr.bf16.mxu0 0
        %5242 = vmatpush1.bf16.msra.mxu0 0
        %5243 = vmatprep.subr.bf16.mxu0 0
        %5244 = vmatpush1.bf16.msra.mxu0 0
        %5245 = vmatprep.subr.bf16.mxu0 0
        %5246 = vmatpush1.bf16.msra.mxu0 0
        %5247 = vmatprep.subr.bf16.mxu0 0
        %5248 = vmatpush1.bf16.msra.mxu0 0
        %5249 = vmatprep.subr.bf16.mxu0 0
        %5250 = vmatpush1.bf16.msra.mxu0 0
        %5251 = vmatprep.subr.bf16.mxu0 0
        %5252 = vmatpush1.bf16.msra.mxu0 0
        %5253 = vmatprep.subr.bf16.mxu0 0
        %5254 = vmatpush1.bf16.msra.mxu0 0
        %5255 = vmatprep.subr.bf16.mxu0 0
        %5256 = vmatpush1.bf16.msra.mxu0 0
        %5257 = vmatprep.subr.bf16.mxu0 0
        %5258 = vmatpush1.bf16.msra.mxu0 0
        %5259 = vmatprep.subr.bf16.mxu0 0
        %5260 = vmatpush1.bf16.msra.mxu0 0
        %5261 = vmatprep.subr.bf16.mxu0 0
        %5262 = vmatpush1.bf16.msra.mxu0 0
        %5263 = vmatprep.subr.bf16.mxu0 0
        %5264 = vmatpush1.bf16.msra.mxu0 0
        %5265 = vmatprep.subr.bf16.mxu0 0
        %5266 = vmatpush1.bf16.msra.mxu0 0
        %5267 = vmatprep.mubr.bf16.mxu0 0
        %5268 = vmatmul.mubr.bf16.gmra.mrb[0].mxu0 %v4659
        %v5269 = vpop.f32.mrb[0].mxu0
        %v5270 = vadd.f32 %v932, %v5269
        %v5271 = vpop.f32.mrb[0].mxu0
        %v5272 = vadd.f32 %v936, %v5271
        %v5273 = vpop.f32.mrb[0].mxu0
        %v5274 = vpop.f32.mrb[0].mxu0
        %5275 = vdwg.mxu0
        %5276 = vmatprep.subr.bf16.mxu0 %v3664
        %5277 = vmatpush1.bf16.msra.mxu0 %v3663
        %5278 = vmatprep.subr.bf16.mxu0 %v3920
        %5279 = vmatpush1.bf16.msra.mxu0 %v3919
        %5280 = vmatprep.subr.bf16.mxu0 0
        %5281 = vmatpush1.bf16.msra.mxu0 0
        %5282 = vmatprep.subr.bf16.mxu0 0
        %5283 = vmatpush1.bf16.msra.mxu0 0
        %5284 = vmatprep.subr.bf16.mxu0 0
        %5285 = vmatpush1.bf16.msra.mxu0 0
        %5286 = vmatprep.subr.bf16.mxu0 0
        %5287 = vmatpush1.bf16.msra.mxu0 0
        %5288 = vmatprep.subr.bf16.mxu0 0
        %5289 = vmatpush1.bf16.msra.mxu0 0
        %5290 = vmatprep.subr.bf16.mxu0 0
        %5291 = vmatpush1.bf16.msra.mxu0 0
        %5292 = vmatprep.subr.bf16.mxu0 0
        %5293 = vmatpush1.bf16.msra.mxu0 0
        %5294 = vmatprep.subr.bf16.mxu0 0
        %5295 = vmatpush1.bf16.msra.mxu0 0
        %5296 = vmatprep.subr.bf16.mxu0 0
        %5297 = vmatpush1.bf16.msra.mxu0 0
        %5298 = vmatprep.subr.bf16.mxu0 0
        %5299 = vmatpush1.bf16.msra.mxu0 0
        %5300 = vmatprep.subr.bf16.mxu0 0
        %5301 = vmatpush1.bf16.msra.mxu0 0
        %5302 = vmatprep.subr.bf16.mxu0 0
        %5303 = vmatpush1.bf16.msra.mxu0 0
        %5304 = vmatprep.subr.bf16.mxu0 0
        %5305 = vmatpush1.bf16.msra.mxu0 0
        %5306 = vmatprep.subr.bf16.mxu0 0
        %5307 = vmatpush1.bf16.msra.mxu0 0
        %5308 = vmatprep.mubr.bf16.mxu0 0
        %5309 = vmatmul.mubr.bf16.gmra.mrb[0].mxu0 %v4659
        %v5310 = vpop.f32.mrb[0].mxu0
        %v5311 = vadd.f32 %v940, %v5310
        %v5312 = vpop.f32.mrb[0].mxu0
        %v5313 = vadd.f32 %v944, %v5312
        %v5314 = vpop.f32.mrb[0].mxu0
        %v5315 = vpop.f32.mrb[0].mxu0
        %5316 = vdwg.mxu0
        %5317 = vmatprep.subr.bf16.mxu0 %v3666
        %5318 = vmatpush1.bf16.msra.mxu0 %v3665
        %5319 = vmatprep.subr.bf16.mxu0 %v3922
        %5320 = vmatpush1.bf16.msra.mxu0 %v3921
        %5321 = vmatprep.subr.bf16.mxu0 0
        %5322 = vmatpush1.bf16.msra.mxu0 0
        %5323 = vmatprep.subr.bf16.mxu0 0
        %5324 = vmatpush1.bf16.msra.mxu0 0
        %5325 = vmatprep.subr.bf16.mxu0 0
        %5326 = vmatpush1.bf16.msra.mxu0 0
        %5327 = vmatprep.subr.bf16.mxu0 0
        %5328 = vmatpush1.bf16.msra.mxu0 0
        %5329 = vmatprep.subr.bf16.mxu0 0
        %5330 = vmatpush1.bf16.msra.mxu0 0
        %5331 = vmatprep.subr.bf16.mxu0 0
        %5332 = vmatpush1.bf16.msra.mxu0 0
        %5333 = vmatprep.subr.bf16.mxu0 0
        %5334 = vmatpush1.bf16.msra.mxu0 0
        %5335 = vmatprep.subr.bf16.mxu0 0
        %5336 = vmatpush1.bf16.msra.mxu0 0
        %5337 = vmatprep.subr.bf16.mxu0 0
        %5338 = vmatpush1.bf16.msra.mxu0 0
        %5339 = vmatprep.subr.bf16.mxu0 0
        %5340 = vmatpush1.bf16.msra.mxu0 0
        %5341 = vmatprep.subr.bf16.mxu0 0
        %5342 = vmatpush1.bf16.msra.mxu0 0
        %5343 = vmatprep.subr.bf16.mxu0 0
        %5344 = vmatpush1.bf16.msra.mxu0 0
        %5345 = vmatprep.subr.bf16.mxu0 0
        %5346 = vmatpush1.bf16.msra.mxu0 0
        %5347 = vmatprep.subr.bf16.mxu0 0
        %5348 = vmatpush1.bf16.msra.mxu0 0
        %5349 = vmatprep.mubr.bf16.mxu0 0
        %5350 = vmatmul.mubr.bf16.gmra.mrb[0].mxu0 %v4659
        %v5351 = vpop.f32.mrb[0].mxu0
        %v5352 = vadd.f32 %v948, %v5351
        %v5353 = vpop.f32.mrb[0].mxu0
        %v5354 = vadd.f32 %v952, %v5353
        %v5355 = vpop.f32.mrb[0].mxu0
        %v5356 = vpop.f32.mrb[0].mxu0
        %5357 = vdwg.mxu0
        %5358 = vmatprep.subr.bf16.mxu0 %v3668
        %5359 = vmatpush1.bf16.msra.mxu0 %v3667
        %5360 = vmatprep.subr.bf16.mxu0 %v3924
        %5361 = vmatpush1.bf16.msra.mxu0 %v3923
        %5362 = vmatprep.subr.bf16.mxu0 0
        %5363 = vmatpush1.bf16.msra.mxu0 0
        %5364 = vmatprep.subr.bf16.mxu0 0
        %5365 = vmatpush1.bf16.msra.mxu0 0
        %5366 = vmatprep.subr.bf16.mxu0 0
        %5367 = vmatpush1.bf16.msra.mxu0 0
        %5368 = vmatprep.subr.bf16.mxu0 0
        %5369 = vmatpush1.bf16.msra.mxu0 0
        %5370 = vmatprep.subr.bf16.mxu0 0
        %5371 = vmatpush1.bf16.msra.mxu0 0
        %5372 = vmatprep.subr.bf16.mxu0 0
        %5373 = vmatpush1.bf16.msra.mxu0 0
        %5374 = vmatprep.subr.bf16.mxu0 0
        %5375 = vmatpush1.bf16.msra.mxu0 0
        %5376 = vmatprep.subr.bf16.mxu0 0
        %5377 = vmatpush1.bf16.msra.mxu0 0
        %5378 = vmatprep.subr.bf16.mxu0 0
        %5379 = vmatpush1.bf16.msra.mxu0 0
        %5380 = vmatprep.subr.bf16.mxu0 0
        %5381 = vmatpush1.bf16.msra.mxu0 0
        %5382 = vmatprep.subr.bf16.mxu0 0
        %5383 = vmatpush1.bf16.msra.mxu0 0
        %5384 = vmatprep.subr.bf16.mxu0 0
        %5385 = vmatpush1.bf16.msra.mxu0 0
        %5386 = vmatprep.subr.bf16.mxu0 0
        %5387 = vmatpush1.bf16.msra.mxu0 0
        %5388 = vmatprep.subr.bf16.mxu0 0
        %5389 = vmatpush1.bf16.msra.mxu0 0
        %5390 = vmatprep.mubr.bf16.mxu0 0
        %5391 = vmatmul.mubr.bf16.gmra.mrb[0].mxu0 %v4659
        %v5392 = vpop.f32.mrb[0].mxu0
        %v5393 = vadd.f32 %v956, %v5392
        %v5394 = vpop.f32.mrb[0].mxu0
        %v5395 = vadd.f32 %v960, %v5394
        %v5396 = vpop.f32.mrb[0].mxu0
        %v5397 = vpop.f32.mrb[0].mxu0
        %5398 = vdwg.mxu0
        %5399 = vmatprep.subr.bf16.mxu0 %v3670
        %5400 = vmatpush1.bf16.msra.mxu0 %v3669
        %5401 = vmatprep.subr.bf16.mxu0 %v3926
        %5402 = vmatpush1.bf16.msra.mxu0 %v3925
        %5403 = vmatprep.subr.bf16.mxu0 0
        %5404 = vmatpush1.bf16.msra.mxu0 0
        %5405 = vmatprep.subr.bf16.mxu0 0
        %5406 = vmatpush1.bf16.msra.mxu0 0
        %5407 = vmatprep.subr.bf16.mxu0 0
        %5408 = vmatpush1.bf16.msra.mxu0 0
        %5409 = vmatprep.subr.bf16.mxu0 0
        %5410 = vmatpush1.bf16.msra.mxu0 0
        %5411 = vmatprep.subr.bf16.mxu0 0
        %5412 = vmatpush1.bf16.msra.mxu0 0
        %5413 = vmatprep.subr.bf16.mxu0 0
        %5414 = vmatpush1.bf16.msra.mxu0 0
        %5415 = vmatprep.subr.bf16.mxu0 0
        %5416 = vmatpush1.bf16.msra.mxu0 0
        %5417 = vmatprep.subr.bf16.mxu0 0
        %5418 = vmatpush1.bf16.msra.mxu0 0
        %5419 = vmatprep.subr.bf16.mxu0 0
        %5420 = vmatpush1.bf16.msra.mxu0 0
        %5421 = vmatprep.subr.bf16.mxu0 0
        %5422 = vmatpush1.bf16.msra.mxu0 0
        %5423 = vmatprep.subr.bf16.mxu0 0
        %5424 = vmatpush1.bf16.msra.mxu0 0
        %5425 = vmatprep.subr.bf16.mxu0 0
        %5426 = vmatpush1.bf16.msra.mxu0 0
        %5427 = vmatprep.subr.bf16.mxu0 0
        %5428 = vmatpush1.bf16.msra.mxu0 0
        %5429 = vmatprep.subr.bf16.mxu0 0
        %5430 = vmatpush1.bf16.msra.mxu0 0
        %5431 = vmatprep.mubr.bf16.mxu0 0
        %5432 = vmatmul.mubr.bf16.gmra.mrb[0].mxu0 %v4659
        %v5433 = vpop.f32.mrb[0].mxu0
        %v5434 = vadd.f32 %v964, %v5433
        %v5435 = vpop.f32.mrb[0].mxu0
        %v5436 = vadd.f32 %v968, %v5435
        %v5437 = vpop.f32.mrb[0].mxu0
        %v5438 = vpop.f32.mrb[0].mxu0
        %5439 = vdwg.mxu0
        %5440 = vmatprep.subr.bf16.mxu0 %v3672
        %5441 = vmatpush1.bf16.msra.mxu0 %v3671
        %5442 = vmatprep.subr.bf16.mxu0 %v3928
        %5443 = vmatpush1.bf16.msra.mxu0 %v3927
        %5444 = vmatprep.subr.bf16.mxu0 0
        %5445 = vmatpush1.bf16.msra.mxu0 0
        %5446 = vmatprep.subr.bf16.mxu0 0
        %5447 = vmatpush1.bf16.msra.mxu0 0
        %5448 = vmatprep.subr.bf16.mxu0 0
        %5449 = vmatpush1.bf16.msra.mxu0 0
        %5450 = vmatprep.subr.bf16.mxu0 0
        %5451 = vmatpush1.bf16.msra.mxu0 0
        %5452 = vmatprep.subr.bf16.mxu0 0
        %5453 = vmatpush1.bf16.msra.mxu0 0
        %5454 = vmatprep.subr.bf16.mxu0 0
        %5455 = vmatpush1.bf16.msra.mxu0 0
        %5456 = vmatprep.subr.bf16.mxu0 0
        %5457 = vmatpush1.bf16.msra.mxu0 0
        %5458 = vmatprep.subr.bf16.mxu0 0
        %5459 = vmatpush1.bf16.msra.mxu0 0
        %5460 = vmatprep.subr.bf16.mxu0 0
        %5461 = vmatpush1.bf16.msra.mxu0 0
        %5462 = vmatprep.subr.bf16.mxu0 0
        %5463 = vmatpush1.bf16.msra.mxu0 0
        %5464 = vmatprep.subr.bf16.mxu0 0
        %5465 = vmatpush1.bf16.msra.mxu0 0
        %5466 = vmatprep.subr.bf16.mxu0 0
        %5467 = vmatpush1.bf16.msra.mxu0 0
        %5468 = vmatprep.subr.bf16.mxu0 0
        %5469 = vmatpush1.bf16.msra.mxu0 0
        %5470 = vmatprep.subr.bf16.mxu0 0
        %5471 = vmatpush1.bf16.msra.mxu0 0
        %5472 = vmatprep.mubr.bf16.mxu0 0
        %5473 = vmatmul.mubr.bf16.gmra.mrb[0].mxu0 %v4659
        %v5474 = vpop.f32.mrb[0].mxu0
        %v5475 = vadd.f32 %v972, %v5474
        %v5476 = vpop.f32.mrb[0].mxu0
        %v5477 = vadd.f32 %v976, %v5476
        %v5478 = vpop.f32.mrb[0].mxu0
        %v5479 = vpop.f32.mrb[0].mxu0
        %5480 = vdwg.mxu0
        %5481 = vmatprep.subr.bf16.mxu0 %v3674
        %5482 = vmatpush1.bf16.msra.mxu0 %v3673
        %5483 = vmatprep.subr.bf16.mxu0 %v3930
        %5484 = vmatpush1.bf16.msra.mxu0 %v3929
        %5485 = vmatprep.subr.bf16.mxu0 0
        %5486 = vmatpush1.bf16.msra.mxu0 0
        %5487 = vmatprep.subr.bf16.mxu0 0
        %5488 = vmatpush1.bf16.msra.mxu0 0
        %5489 = vmatprep.subr.bf16.mxu0 0
        %5490 = vmatpush1.bf16.msra.mxu0 0
        %5491 = vmatprep.subr.bf16.mxu0 0
        %5492 = vmatpush1.bf16.msra.mxu0 0
        %5493 = vmatprep.subr.bf16.mxu0 0
        %5494 = vmatpush1.bf16.msra.mxu0 0
        %5495 = vmatprep.subr.bf16.mxu0 0
        %5496 = vmatpush1.bf16.msra.mxu0 0
        %5497 = vmatprep.subr.bf16.mxu0 0
        %5498 = vmatpush1.bf16.msra.mxu0 0
        %5499 = vmatprep.subr.bf16.mxu0 0
        %5500 = vmatpush1.bf16.msra.mxu0 0
        %5501 = vmatprep.subr.bf16.mxu0 0
        %5502 = vmatpush1.bf16.msra.mxu0 0
        %5503 = vmatprep.subr.bf16.mxu0 0
        %5504 = vmatpush1.bf16.msra.mxu0 0
        %5505 = vmatprep.subr.bf16.mxu0 0
        %5506 = vmatpush1.bf16.msra.mxu0 0
        %5507 = vmatprep.subr.bf16.mxu0 0
        %5508 = vmatpush1.bf16.msra.mxu0 0
        %5509 = vmatprep.subr.bf16.mxu0 0
        %5510 = vmatpush1.bf16.msra.mxu0 0
        %5511 = vmatprep.subr.bf16.mxu0 0
        %5512 = vmatpush1.bf16.msra.mxu0 0
        %5513 = vmatprep.mubr.bf16.mxu0 0
        %5514 = vmatmul.mubr.bf16.gmra.mrb[0].mxu0 %v4659
        %v5515 = vpop.f32.mrb[0].mxu0
        %v5516 = vadd.f32 %v980, %v5515
        %v5517 = vpop.f32.mrb[0].mxu0
        %v5518 = vadd.f32 %v984, %v5517
        %v5519 = vpop.f32.mrb[0].mxu0
        %v5520 = vpop.f32.mrb[0].mxu0
        %5521 = vdwg.mxu0
        %5522 = vmatprep.subr.bf16.mxu0 %v3676
        %5523 = vmatpush1.bf16.msra.mxu0 %v3675
        %5524 = vmatprep.subr.bf16.mxu0 %v3932
        %5525 = vmatpush1.bf16.msra.mxu0 %v3931
        %5526 = vmatprep.subr.bf16.mxu0 0
        %5527 = vmatpush1.bf16.msra.mxu0 0
        %5528 = vmatprep.subr.bf16.mxu0 0
        %5529 = vmatpush1.bf16.msra.mxu0 0
        %5530 = vmatprep.subr.bf16.mxu0 0
        %5531 = vmatpush1.bf16.msra.mxu0 0
        %5532 = vmatprep.subr.bf16.mxu0 0
        %5533 = vmatpush1.bf16.msra.mxu0 0
        %5534 = vmatprep.subr.bf16.mxu0 0
        %5535 = vmatpush1.bf16.msra.mxu0 0
        %5536 = vmatprep.subr.bf16.mxu0 0
        %5537 = vmatpush1.bf16.msra.mxu0 0
        %5538 = vmatprep.subr.bf16.mxu0 0
        %5539 = vmatpush1.bf16.msra.mxu0 0
        %5540 = vmatprep.subr.bf16.mxu0 0
        %5541 = vmatpush1.bf16.msra.mxu0 0
        %5542 = vmatprep.subr.bf16.mxu0 0
        %5543 = vmatpush1.bf16.msra.mxu0 0
        %5544 = vmatprep.subr.bf16.mxu0 0
        %5545 = vmatpush1.bf16.msra.mxu0 0
        %5546 = vmatprep.subr.bf16.mxu0 0
        %5547 = vmatpush1.bf16.msra.mxu0 0
        %5548 = vmatprep.subr.bf16.mxu0 0
        %5549 = vmatpush1.bf16.msra.mxu0 0
        %5550 = vmatprep.subr.bf16.mxu0 0
        %5551 = vmatpush1.bf16.msra.mxu0 0
        %5552 = vmatprep.subr.bf16.mxu0 0
        %5553 = vmatpush1.bf16.msra.mxu0 0
        %5554 = vmatprep.mubr.bf16.mxu0 0
        %5555 = vmatmul.mubr.bf16.gmra.mrb[0].mxu0 %v4659
        %v5556 = vpop.f32.mrb[0].mxu0
        %v5557 = vadd.f32 %v988, %v5556
        %v5558 = vpop.f32.mrb[0].mxu0
        %v5559 = vadd.f32 %v992, %v5558
        %v5560 = vpop.f32.mrb[0].mxu0
        %v5561 = vpop.f32.mrb[0].mxu0
        %5562 = vdwg.mxu0
        %5563 = vmatprep.subr.bf16.mxu0 %v3678
        %5564 = vmatpush1.bf16.msra.mxu0 %v3677
        %5565 = vmatprep.subr.bf16.mxu0 %v3934
        %5566 = vmatpush1.bf16.msra.mxu0 %v3933
        %5567 = vmatprep.subr.bf16.mxu0 0
        %5568 = vmatpush1.bf16.msra.mxu0 0
        %5569 = vmatprep.subr.bf16.mxu0 0
        %5570 = vmatpush1.bf16.msra.mxu0 0
        %5571 = vmatprep.subr.bf16.mxu0 0
        %5572 = vmatpush1.bf16.msra.mxu0 0
        %5573 = vmatprep.subr.bf16.mxu0 0
        %5574 = vmatpush1.bf16.msra.mxu0 0
        %5575 = vmatprep.subr.bf16.mxu0 0
        %5576 = vmatpush1.bf16.msra.mxu0 0
        %5577 = vmatprep.subr.bf16.mxu0 0
        %5578 = vmatpush1.bf16.msra.mxu0 0
        %5579 = vmatprep.subr.bf16.mxu0 0
        %5580 = vmatpush1.bf16.msra.mxu0 0
        %5581 = vmatprep.subr.bf16.mxu0 0
        %5582 = vmatpush1.bf16.msra.mxu0 0
        %5583 = vmatprep.subr.bf16.mxu0 0
        %5584 = vmatpush1.bf16.msra.mxu0 0
        %5585 = vmatprep.subr.bf16.mxu0 0
        %5586 = vmatpush1.bf16.msra.mxu0 0
        %5587 = vmatprep.subr.bf16.mxu0 0
        %5588 = vmatpush1.bf16.msra.mxu0 0
        %5589 = vmatprep.subr.bf16.mxu0 0
        %5590 = vmatpush1.bf16.msra.mxu0 0
        %5591 = vmatprep.subr.bf16.mxu0 0
        %5592 = vmatpush1.bf16.msra.mxu0 0
        %5593 = vmatprep.subr.bf16.mxu0 0
        %5594 = vmatpush1.bf16.msra.mxu0 0
        %5595 = vmatprep.mubr.bf16.mxu0 0
        %5596 = vmatmul.mubr.bf16.gmra.mrb[0].mxu0 %v4659
        %v5597 = vpop.f32.mrb[0].mxu0
        %v5598 = vadd.f32 %v996, %v5597
        %v5599 = vpop.f32.mrb[0].mxu0
        %v5600 = vadd.f32 %v1000, %v5599
        %v5601 = vpop.f32.mrb[0].mxu0
        %v5602 = vpop.f32.mrb[0].mxu0
        %5603 = vdwg.mxu0
        %5604 = vmatprep.subr.bf16.mxu0 %v3680
        %5605 = vmatpush1.bf16.msra.mxu0 %v3679
        %5606 = vmatprep.subr.bf16.mxu0 %v3936
        %5607 = vmatpush1.bf16.msra.mxu0 %v3935
        %5608 = vmatprep.subr.bf16.mxu0 0
        %5609 = vmatpush1.bf16.msra.mxu0 0
        %5610 = vmatprep.subr.bf16.mxu0 0
        %5611 = vmatpush1.bf16.msra.mxu0 0
        %5612 = vmatprep.subr.bf16.mxu0 0
        %5613 = vmatpush1.bf16.msra.mxu0 0
        %5614 = vmatprep.subr.bf16.mxu0 0
        %5615 = vmatpush1.bf16.msra.mxu0 0
        %5616 = vmatprep.subr.bf16.mxu0 0
        %5617 = vmatpush1.bf16.msra.mxu0 0
        %5618 = vmatprep.subr.bf16.mxu0 0
        %5619 = vmatpush1.bf16.msra.mxu0 0
        %5620 = vmatprep.subr.bf16.mxu0 0
        %5621 = vmatpush1.bf16.msra.mxu0 0
        %5622 = vmatprep.subr.bf16.mxu0 0
        %5623 = vmatpush1.bf16.msra.mxu0 0
        %5624 = vmatprep.subr.bf16.mxu0 0
        %5625 = vmatpush1.bf16.msra.mxu0 0
        %5626 = vmatprep.subr.bf16.mxu0 0
        %5627 = vmatpush1.bf16.msra.mxu0 0
        %5628 = vmatprep.subr.bf16.mxu0 0
        %5629 = vmatpush1.bf16.msra.mxu0 0
        %5630 = vmatprep.subr.bf16.mxu0 0
        %5631 = vmatpush1.bf16.msra.mxu0 0
        %5632 = vmatprep.subr.bf16.mxu0 0
        %5633 = vmatpush1.bf16.msra.mxu0 0
        %5634 = vmatprep.subr.bf16.mxu0 0
        %5635 = vmatpush1.bf16.msra.mxu0 0
        %5636 = vmatprep.mubr.bf16.mxu0 0
        %5637 = vmatmul.mubr.bf16.gmra.mrb[0].mxu0 %v4659
        %v5638 = vpop.f32.mrb[0].mxu0
        %v5639 = vadd.f32 %v1004, %v5638
        %v5640 = vpop.f32.mrb[0].mxu0
        %v5641 = vadd.f32 %v1008, %v5640
        %v5642 = vpop.f32.mrb[0].mxu0
        %v5643 = vpop.f32.mrb[0].mxu0
        %5644 = vdwg.mxu0
        %5645 = vmatprep.subr.bf16.mxu0 %v3682
        %5646 = vmatpush1.bf16.msra.mxu0 %v3681
        %5647 = vmatprep.subr.bf16.mxu0 %v3938
        %5648 = vmatpush1.bf16.msra.mxu0 %v3937
        %5649 = vmatprep.subr.bf16.mxu0 0
        %5650 = vmatpush1.bf16.msra.mxu0 0
        %5651 = vmatprep.subr.bf16.mxu0 0
        %5652 = vmatpush1.bf16.msra.mxu0 0
        %5653 = vmatprep.subr.bf16.mxu0 0
        %5654 = vmatpush1.bf16.msra.mxu0 0
        %5655 = vmatprep.subr.bf16.mxu0 0
        %5656 = vmatpush1.bf16.msra.mxu0 0
        %5657 = vmatprep.subr.bf16.mxu0 0
        %5658 = vmatpush1.bf16.msra.mxu0 0
        %5659 = vmatprep.subr.bf16.mxu0 0
        %5660 = vmatpush1.bf16.msra.mxu0 0
        %5661 = vmatprep.subr.bf16.mxu0 0
        %5662 = vmatpush1.bf16.msra.mxu0 0
        %5663 = vmatprep.subr.bf16.mxu0 0
        %5664 = vmatpush1.bf16.msra.mxu0 0
        %5665 = vmatprep.subr.bf16.mxu0 0
        %5666 = vmatpush1.bf16.msra.mxu0 0
        %5667 = vmatprep.subr.bf16.mxu0 0
        %5668 = vmatpush1.bf16.msra.mxu0 0
        %5669 = vmatprep.subr.bf16.mxu0 0
        %5670 = vmatpush1.bf16.msra.mxu0 0
        %5671 = vmatprep.subr.bf16.mxu0 0
        %5672 = vmatpush1.bf16.msra.mxu0 0
        %5673 = vmatprep.subr.bf16.mxu0 0
        %5674 = vmatpush1.bf16.msra.mxu0 0
        %5675 = vmatprep.subr.bf16.mxu0 0
        %5676 = vmatpush1.bf16.msra.mxu0 0
        %5677 = vmatprep.mubr.bf16.mxu0 0
        %5678 = vmatmul.mubr.bf16.gmra.mrb[0].mxu0 %v4659
        %v5679 = vpop.f32.mrb[0].mxu0
        %v5680 = vadd.f32 %v1012, %v5679
        %v5681 = vpop.f32.mrb[0].mxu0
        %v5682 = vadd.f32 %v1016, %v5681
        %v5683 = vpop.f32.mrb[0].mxu0
        %v5684 = vpop.f32.mrb[0].mxu0
        %5685 = vdwg.mxu0
        %5686 = vmatprep.subr.bf16.mxu0 %v3684
        %5687 = vmatpush1.bf16.msra.mxu0 %v3683
        %5688 = vmatprep.subr.bf16.mxu0 %v3940
        %5689 = vmatpush1.bf16.msra.mxu0 %v3939
        %5690 = vmatprep.subr.bf16.mxu0 0
        %5691 = vmatpush1.bf16.msra.mxu0 0
        %5692 = vmatprep.subr.bf16.mxu0 0
        %5693 = vmatpush1.bf16.msra.mxu0 0
        %5694 = vmatprep.subr.bf16.mxu0 0
        %5695 = vmatpush1.bf16.msra.mxu0 0
        %5696 = vmatprep.subr.bf16.mxu0 0
        %5697 = vmatpush1.bf16.msra.mxu0 0
        %5698 = vmatprep.subr.bf16.mxu0 0
        %5699 = vmatpush1.bf16.msra.mxu0 0
        %5700 = vmatprep.subr.bf16.mxu0 0
        %5701 = vmatpush1.bf16.msra.mxu0 0
        %5702 = vmatprep.subr.bf16.mxu0 0
        %5703 = vmatpush1.bf16.msra.mxu0 0
        %5704 = vmatprep.subr.bf16.mxu0 0
        %5705 = vmatpush1.bf16.msra.mxu0 0
        %5706 = vmatprep.subr.bf16.mxu0 0
        %5707 = vmatpush1.bf16.msra.mxu0 0
        %5708 = vmatprep.subr.bf16.mxu0 0
        %5709 = vmatpush1.bf16.msra.mxu0 0
        %5710 = vmatprep.subr.bf16.mxu0 0
        %5711 = vmatpush1.bf16.msra.mxu0 0
        %5712 = vmatprep.subr.bf16.mxu0 0
        %5713 = vmatpush1.bf16.msra.mxu0 0
        %5714 = vmatprep.subr.bf16.mxu0 0
        %5715 = vmatpush1.bf16.msra.mxu0 0
        %5716 = vmatprep.subr.bf16.mxu0 0
        %5717 = vmatpush1.bf16.msra.mxu0 0
        %5718 = vmatprep.mubr.bf16.mxu0 0
        %5719 = vmatmul.mubr.bf16.gmra.mrb[0].mxu0 %v4659
        %v5720 = vpop.f32.mrb[0].mxu0
        %v5721 = vadd.f32 %v1020, %v5720
        %v5722 = vpop.f32.mrb[0].mxu0
        %v5723 = vadd.f32 %v1024, %v5722
        %v5724 = vpop.f32.mrb[0].mxu0
        %v5725 = vpop.f32.mrb[0].mxu0
        %5726 = vdwg.mxu0
        %5727 = vmatprep.subr.bf16.mxu0 %v3686
        %5728 = vmatpush1.bf16.msra.mxu0 %v3685
        %5729 = vmatprep.subr.bf16.mxu0 %v3942
        %5730 = vmatpush1.bf16.msra.mxu0 %v3941
        %5731 = vmatprep.subr.bf16.mxu0 0
        %5732 = vmatpush1.bf16.msra.mxu0 0
        %5733 = vmatprep.subr.bf16.mxu0 0
        %5734 = vmatpush1.bf16.msra.mxu0 0
        %5735 = vmatprep.subr.bf16.mxu0 0
        %5736 = vmatpush1.bf16.msra.mxu0 0
        %5737 = vmatprep.subr.bf16.mxu0 0
        %5738 = vmatpush1.bf16.msra.mxu0 0
        %5739 = vmatprep.subr.bf16.mxu0 0
        %5740 = vmatpush1.bf16.msra.mxu0 0
        %5741 = vmatprep.subr.bf16.mxu0 0
        %5742 = vmatpush1.bf16.msra.mxu0 0
        %5743 = vmatprep.subr.bf16.mxu0 0
        %5744 = vmatpush1.bf16.msra.mxu0 0
        %5745 = vmatprep.subr.bf16.mxu0 0
        %5746 = vmatpush1.bf16.msra.mxu0 0
        %5747 = vmatprep.subr.bf16.mxu0 0
        %5748 = vmatpush1.bf16.msra.mxu0 0
        %5749 = vmatprep.subr.bf16.mxu0 0
        %5750 = vmatpush1.bf16.msra.mxu0 0
        %5751 = vmatprep.subr.bf16.mxu0 0
        %5752 = vmatpush1.bf16.msra.mxu0 0
        %5753 = vmatprep.subr.bf16.mxu0 0
        %5754 = vmatpush1.bf16.msra.mxu0 0
        %5755 = vmatprep.subr.bf16.mxu0 0
        %5756 = vmatpush1.bf16.msra.mxu0 0
        %5757 = vmatprep.subr.bf16.mxu0 0
        %5758 = vmatpush1.bf16.msra.mxu0 0
        %5759 = vmatprep.mubr.bf16.mxu0 0
        %5760 = vmatmul.mubr.bf16.gmra.mrb[0].mxu0 %v4659
        %v5761 = vpop.f32.mrb[0].mxu0
        %v5762 = vadd.f32 %v1028, %v5761
        %v5763 = vpop.f32.mrb[0].mxu0
        %v5764 = vadd.f32 %v1032, %v5763
        %v5765 = vpop.f32.mrb[0].mxu0
        %v5766 = vpop.f32.mrb[0].mxu0
        %5767 = vdwg.mxu0
        %5768 = vmatprep.subr.bf16.mxu0 %v3688
        %5769 = vmatpush1.bf16.msra.mxu0 %v3687
        %5770 = vmatprep.subr.bf16.mxu0 %v3944
        %5771 = vmatpush1.bf16.msra.mxu0 %v3943
        %5772 = vmatprep.subr.bf16.mxu0 0
        %5773 = vmatpush1.bf16.msra.mxu0 0
        %5774 = vmatprep.subr.bf16.mxu0 0
        %5775 = vmatpush1.bf16.msra.mxu0 0
        %5776 = vmatprep.subr.bf16.mxu0 0
        %5777 = vmatpush1.bf16.msra.mxu0 0
        %5778 = vmatprep.subr.bf16.mxu0 0
        %5779 = vmatpush1.bf16.msra.mxu0 0
        %5780 = vmatprep.subr.bf16.mxu0 0
        %5781 = vmatpush1.bf16.msra.mxu0 0
        %5782 = vmatprep.subr.bf16.mxu0 0
        %5783 = vmatpush1.bf16.msra.mxu0 0
        %5784 = vmatprep.subr.bf16.mxu0 0
        %5785 = vmatpush1.bf16.msra.mxu0 0
        %5786 = vmatprep.subr.bf16.mxu0 0
        %5787 = vmatpush1.bf16.msra.mxu0 0
        %5788 = vmatprep.subr.bf16.mxu0 0
        %5789 = vmatpush1.bf16.msra.mxu0 0
        %5790 = vmatprep.subr.bf16.mxu0 0
        %5791 = vmatpush1.bf16.msra.mxu0 0
        %5792 = vmatprep.subr.bf16.mxu0 0
        %5793 = vmatpush1.bf16.msra.mxu0 0
        %5794 = vmatprep.subr.bf16.mxu0 0
        %5795 = vmatpush1.bf16.msra.mxu0 0
        %5796 = vmatprep.subr.bf16.mxu0 0
        %5797 = vmatpush1.bf16.msra.mxu0 0
        %5798 = vmatprep.subr.bf16.mxu0 0
        %5799 = vmatpush1.bf16.msra.mxu0 0
        %5800 = vmatprep.mubr.bf16.mxu0 0
        %5801 = vmatmul.mubr.bf16.gmra.mrb[0].mxu0 %v4659
        %v5802 = vpop.f32.mrb[0].mxu0
        %v5803 = vadd.f32 %v1036, %v5802
        %v5804 = vpop.f32.mrb[0].mxu0
        %v5805 = vadd.f32 %v1040, %v5804
        %v5806 = vpop.f32.mrb[0].mxu0
        %v5807 = vpop.f32.mrb[0].mxu0
        %5808 = vdwg.mxu0
        %5809 = vmatprep.subr.bf16.mxu0 %v3690
        %5810 = vmatpush1.bf16.msra.mxu0 %v3689
        %5811 = vmatprep.subr.bf16.mxu0 %v3946
        %5812 = vmatpush1.bf16.msra.mxu0 %v3945
        %5813 = vmatprep.subr.bf16.mxu0 0
        %5814 = vmatpush1.bf16.msra.mxu0 0
        %5815 = vmatprep.subr.bf16.mxu0 0
        %5816 = vmatpush1.bf16.msra.mxu0 0
        %5817 = vmatprep.subr.bf16.mxu0 0
        %5818 = vmatpush1.bf16.msra.mxu0 0
        %5819 = vmatprep.subr.bf16.mxu0 0
        %5820 = vmatpush1.bf16.msra.mxu0 0
        %5821 = vmatprep.subr.bf16.mxu0 0
        %5822 = vmatpush1.bf16.msra.mxu0 0
        %5823 = vmatprep.subr.bf16.mxu0 0
        %5824 = vmatpush1.bf16.msra.mxu0 0
        %5825 = vmatprep.subr.bf16.mxu0 0
        %5826 = vmatpush1.bf16.msra.mxu0 0
        %5827 = vmatprep.subr.bf16.mxu0 0
        %5828 = vmatpush1.bf16.msra.mxu0 0
        %5829 = vmatprep.subr.bf16.mxu0 0
        %5830 = vmatpush1.bf16.msra.mxu0 0
        %5831 = vmatprep.subr.bf16.mxu0 0
        %5832 = vmatpush1.bf16.msra.mxu0 0
        %5833 = vmatprep.subr.bf16.mxu0 0
        %5834 = vmatpush1.bf16.msra.mxu0 0
        %5835 = vmatprep.subr.bf16.mxu0 0
        %5836 = vmatpush1.bf16.msra.mxu0 0
        %5837 = vmatprep.subr.bf16.mxu0 0
        %5838 = vmatpush1.bf16.msra.mxu0 0
        %5839 = vmatprep.subr.bf16.mxu0 0
        %5840 = vmatpush1.bf16.msra.mxu0 0
        %5841 = vmatprep.mubr.bf16.mxu0 0
        %5842 = vmatmul.mubr.bf16.gmra.mrb[0].mxu0 %v4659
        %v5843 = vpop.f32.mrb[0].mxu0
        %v5844 = vadd.f32 %v1044, %v5843
        %v5845 = vpop.f32.mrb[0].mxu0
        %v5846 = vadd.f32 %v1048, %v5845
        %v5847 = vpop.f32.mrb[0].mxu0
        %v5848 = vpop.f32.mrb[0].mxu0
        %5849 = vdwg.mxu0
        %5850 = vmatprep.subr.bf16.mxu0 %v3692
        %5851 = vmatpush1.bf16.msra.mxu0 %v3691
        %5852 = vmatprep.subr.bf16.mxu0 %v3948
        %5853 = vmatpush1.bf16.msra.mxu0 %v3947
        %5854 = vmatprep.subr.bf16.mxu0 0
        %5855 = vmatpush1.bf16.msra.mxu0 0
        %5856 = vmatprep.subr.bf16.mxu0 0
        %5857 = vmatpush1.bf16.msra.mxu0 0
        %5858 = vmatprep.subr.bf16.mxu0 0
        %5859 = vmatpush1.bf16.msra.mxu0 0
        %5860 = vmatprep.subr.bf16.mxu0 0
        %5861 = vmatpush1.bf16.msra.mxu0 0
        %5862 = vmatprep.subr.bf16.mxu0 0
        %5863 = vmatpush1.bf16.msra.mxu0 0
        %5864 = vmatprep.subr.bf16.mxu0 0
        %5865 = vmatpush1.bf16.msra.mxu0 0
        %5866 = vmatprep.subr.bf16.mxu0 0
        %5867 = vmatpush1.bf16.msra.mxu0 0
        %5868 = vmatprep.subr.bf16.mxu0 0
        %5869 = vmatpush1.bf16.msra.mxu0 0
        %5870 = vmatprep.subr.bf16.mxu0 0
        %5871 = vmatpush1.bf16.msra.mxu0 0
        %5872 = vmatprep.subr.bf16.mxu0 0
        %5873 = vmatpush1.bf16.msra.mxu0 0
        %5874 = vmatprep.subr.bf16.mxu0 0
        %5875 = vmatpush1.bf16.msra.mxu0 0
        %5876 = vmatprep.subr.bf16.mxu0 0
        %5877 = vmatpush1.bf16.msra.mxu0 0
        %5878 = vmatprep.subr.bf16.mxu0 0
        %5879 = vmatpush1.bf16.msra.mxu0 0
        %5880 = vmatprep.subr.bf16.mxu0 0
        %5881 = vmatpush1.bf16.msra.mxu0 0
        %5882 = vmatprep.mubr.bf16.mxu0 0
        %5883 = vmatmul.mubr.bf16.gmra.mrb[0].mxu0 %v4659
        %v5884 = vpop.f32.mrb[0].mxu0
        %v5885 = vadd.f32 %v1052, %v5884
        %v5886 = vpop.f32.mrb[0].mxu0
        %v5887 = vadd.f32 %v1056, %v5886
        %v5888 = vpop.f32.mrb[0].mxu0
        %v5889 = vpop.f32.mrb[0].mxu0
        %5890 = vdwg.mxu0
        %5891 = vmatprep.subr.bf16.mxu0 %v3694
        %5892 = vmatpush1.bf16.msra.mxu0 %v3693
        %5893 = vmatprep.subr.bf16.mxu0 %v3950
        %5894 = vmatpush1.bf16.msra.mxu0 %v3949
        %5895 = vmatprep.subr.bf16.mxu0 0
        %5896 = vmatpush1.bf16.msra.mxu0 0
        %5897 = vmatprep.subr.bf16.mxu0 0
        %5898 = vmatpush1.bf16.msra.mxu0 0
        %5899 = vmatprep.subr.bf16.mxu0 0
        %5900 = vmatpush1.bf16.msra.mxu0 0
        %5901 = vmatprep.subr.bf16.mxu0 0
        %5902 = vmatpush1.bf16.msra.mxu0 0
        %5903 = vmatprep.subr.bf16.mxu0 0
        %5904 = vmatpush1.bf16.msra.mxu0 0
        %5905 = vmatprep.subr.bf16.mxu0 0
        %5906 = vmatpush1.bf16.msra.mxu0 0
        %5907 = vmatprep.subr.bf16.mxu0 0
        %5908 = vmatpush1.bf16.msra.mxu0 0
        %5909 = vmatprep.subr.bf16.mxu0 0
        %5910 = vmatpush1.bf16.msra.mxu0 0
        %5911 = vmatprep.subr.bf16.mxu0 0
        %5912 = vmatpush1.bf16.msra.mxu0 0
        %5913 = vmatprep.subr.bf16.mxu0 0
        %5914 = vmatpush1.bf16.msra.mxu0 0
        %5915 = vmatprep.subr.bf16.mxu0 0
        %5916 = vmatpush1.bf16.msra.mxu0 0
        %5917 = vmatprep.subr.bf16.mxu0 0
        %5918 = vmatpush1.bf16.msra.mxu0 0
        %5919 = vmatprep.subr.bf16.mxu0 0
        %5920 = vmatpush1.bf16.msra.mxu0 0
        %5921 = vmatprep.subr.bf16.mxu0 0
        %5922 = vmatpush1.bf16.msra.mxu0 0
        %5923 = vmatprep.mubr.bf16.mxu0 0
        %5924 = vmatmul.mubr.bf16.gmra.mrb[0].mxu0 %v4659
        %v5925 = vpop.f32.mrb[0].mxu0
        %v5926 = vadd.f32 %v1060, %v5925
        %v5927 = vpop.f32.mrb[0].mxu0
        %v5928 = vadd.f32 %v1064, %v5927
        %v5929 = vpop.f32.mrb[0].mxu0
        %v5930 = vpop.f32.mrb[0].mxu0
        %5931 = vdwg.mxu0
        %5932 = vmatprep.subr.bf16.mxu0 %v3696
        %5933 = vmatpush1.bf16.msra.mxu0 %v3695
        %5934 = vmatprep.subr.bf16.mxu0 %v3952
        %5935 = vmatpush1.bf16.msra.mxu0 %v3951
        %5936 = vmatprep.subr.bf16.mxu0 0
        %5937 = vmatpush1.bf16.msra.mxu0 0
        %5938 = vmatprep.subr.bf16.mxu0 0
        %5939 = vmatpush1.bf16.msra.mxu0 0
        %5940 = vmatprep.subr.bf16.mxu0 0
        %5941 = vmatpush1.bf16.msra.mxu0 0
        %5942 = vmatprep.subr.bf16.mxu0 0
        %5943 = vmatpush1.bf16.msra.mxu0 0
        %5944 = vmatprep.subr.bf16.mxu0 0
        %5945 = vmatpush1.bf16.msra.mxu0 0
        %5946 = vmatprep.subr.bf16.mxu0 0
        %5947 = vmatpush1.bf16.msra.mxu0 0
        %5948 = vmatprep.subr.bf16.mxu0 0
        %5949 = vmatpush1.bf16.msra.mxu0 0
        %5950 = vmatprep.subr.bf16.mxu0 0
        %5951 = vmatpush1.bf16.msra.mxu0 0
        %5952 = vmatprep.subr.bf16.mxu0 0
        %5953 = vmatpush1.bf16.msra.mxu0 0
        %5954 = vmatprep.subr.bf16.mxu0 0
        %5955 = vmatpush1.bf16.msra.mxu0 0
        %5956 = vmatprep.subr.bf16.mxu0 0
        %5957 = vmatpush1.bf16.msra.mxu0 0
        %5958 = vmatprep.subr.bf16.mxu0 0
        %5959 = vmatpush1.bf16.msra.mxu0 0
        %5960 = vmatprep.subr.bf16.mxu0 0
        %5961 = vmatpush1.bf16.msra.mxu0 0
        %5962 = vmatprep.subr.bf16.mxu0 0
        %5963 = vmatpush1.bf16.msra.mxu0 0
        %5964 = vmatprep.mubr.bf16.mxu0 0
        %5965 = vmatmul.mubr.bf16.gmra.mrb[0].mxu0 %v4659
        %v5966 = vpop.f32.mrb[0].mxu0
        %v5967 = vadd.f32 %v1068, %v5966
        %v5968 = vpop.f32.mrb[0].mxu0
        %v5969 = vadd.f32 %v1072, %v5968
        %v5970 = vpop.f32.mrb[0].mxu0
        %v5971 = vpop.f32.mrb[0].mxu0
        %5972 = vdwg.mxu0
        %5973 = vmatprep.subr.bf16.mxu0 %v3698
        %5974 = vmatpush1.bf16.msra.mxu0 %v3697
        %5975 = vmatprep.subr.bf16.mxu0 %v3954
        %5976 = vmatpush1.bf16.msra.mxu0 %v3953
        %5977 = vmatprep.subr.bf16.mxu0 0
        %5978 = vmatpush1.bf16.msra.mxu0 0
        %5979 = vmatprep.subr.bf16.mxu0 0
        %5980 = vmatpush1.bf16.msra.mxu0 0
        %5981 = vmatprep.subr.bf16.mxu0 0
        %5982 = vmatpush1.bf16.msra.mxu0 0
        %5983 = vmatprep.subr.bf16.mxu0 0
        %5984 = vmatpush1.bf16.msra.mxu0 0
        %5985 = vmatprep.subr.bf16.mxu0 0
        %5986 = vmatpush1.bf16.msra.mxu0 0
        %5987 = vmatprep.subr.bf16.mxu0 0
        %5988 = vmatpush1.bf16.msra.mxu0 0
        %5989 = vmatprep.subr.bf16.mxu0 0
        %5990 = vmatpush1.bf16.msra.mxu0 0
        %5991 = vmatprep.subr.bf16.mxu0 0
        %5992 = vmatpush1.bf16.msra.mxu0 0
        %5993 = vmatprep.subr.bf16.mxu0 0
        %5994 = vmatpush1.bf16.msra.mxu0 0
        %5995 = vmatprep.subr.bf16.mxu0 0
        %5996 = vmatpush1.bf16.msra.mxu0 0
        %5997 = vmatprep.subr.bf16.mxu0 0
        %5998 = vmatpush1.bf16.msra.mxu0 0
        %5999 = vmatprep.subr.bf16.mxu0 0
        %6000 = vmatpush1.bf16.msra.mxu0 0
        %6001 = vmatprep.subr.bf16.mxu0 0
        %6002 = vmatpush1.bf16.msra.mxu0 0
        %6003 = vmatprep.subr.bf16.mxu0 0
        %6004 = vmatpush1.bf16.msra.mxu0 0
        %6005 = vmatprep.mubr.bf16.mxu0 0
        %6006 = vmatmul.mubr.bf16.gmra.mrb[0].mxu0 %v4659
        %v6007 = vpop.f32.mrb[0].mxu0
        %v6008 = vadd.f32 %v1076, %v6007
        %v6009 = vpop.f32.mrb[0].mxu0
        %v6010 = vadd.f32 %v1080, %v6009
        %v6011 = vpop.f32.mrb[0].mxu0
        %v6012 = vpop.f32.mrb[0].mxu0
        %6013 = vdwg.mxu0
        %6014 = vmatprep.subr.bf16.mxu0 %v3700
        %6015 = vmatpush1.bf16.msra.mxu0 %v3699
        %6016 = vmatprep.subr.bf16.mxu0 %v3956
        %6017 = vmatpush1.bf16.msra.mxu0 %v3955
        %6018 = vmatprep.subr.bf16.mxu0 0
        %6019 = vmatpush1.bf16.msra.mxu0 0
        %6020 = vmatprep.subr.bf16.mxu0 0
        %6021 = vmatpush1.bf16.msra.mxu0 0
        %6022 = vmatprep.subr.bf16.mxu0 0
        %6023 = vmatpush1.bf16.msra.mxu0 0
        %6024 = vmatprep.subr.bf16.mxu0 0
        %6025 = vmatpush1.bf16.msra.mxu0 0
        %6026 = vmatprep.subr.bf16.mxu0 0
        %6027 = vmatpush1.bf16.msra.mxu0 0
        %6028 = vmatprep.subr.bf16.mxu0 0
        %6029 = vmatpush1.bf16.msra.mxu0 0
        %6030 = vmatprep.subr.bf16.mxu0 0
        %6031 = vmatpush1.bf16.msra.mxu0 0
        %6032 = vmatprep.subr.bf16.mxu0 0
        %6033 = vmatpush1.bf16.msra.mxu0 0
        %6034 = vmatprep.subr.bf16.mxu0 0
        %6035 = vmatpush1.bf16.msra.mxu0 0
        %6036 = vmatprep.subr.bf16.mxu0 0
        %6037 = vmatpush1.bf16.msra.mxu0 0
        %6038 = vmatprep.subr.bf16.mxu0 0
        %6039 = vmatpush1.bf16.msra.mxu0 0
        %6040 = vmatprep.subr.bf16.mxu0 0
        %6041 = vmatpush1.bf16.msra.mxu0 0
        %6042 = vmatprep.subr.bf16.mxu0 0
        %6043 = vmatpush1.bf16.msra.mxu0 0
        %6044 = vmatprep.subr.bf16.mxu0 0
        %6045 = vmatpush1.bf16.msra.mxu0 0
        %6046 = vmatprep.mubr.bf16.mxu0 0
        %6047 = vmatmul.mubr.bf16.gmra.mrb[0].mxu0 %v4659
        %v6048 = vpop.f32.mrb[0].mxu0
        %v6049 = vadd.f32 %v1084, %v6048
        %v6050 = vpop.f32.mrb[0].mxu0
        %v6051 = vadd.f32 %v1088, %v6050
        %v6052 = vpop.f32.mrb[0].mxu0
        %v6053 = vpop.f32.mrb[0].mxu0
        %6054 = vdwg.mxu0
        %6055 = vmatprep.subr.bf16.mxu0 %v3702
        %6056 = vmatpush1.bf16.msra.mxu0 %v3701
        %6057 = vmatprep.subr.bf16.mxu0 %v3958
        %6058 = vmatpush1.bf16.msra.mxu0 %v3957
        %6059 = vmatprep.subr.bf16.mxu0 0
        %6060 = vmatpush1.bf16.msra.mxu0 0
        %6061 = vmatprep.subr.bf16.mxu0 0
        %6062 = vmatpush1.bf16.msra.mxu0 0
        %6063 = vmatprep.subr.bf16.mxu0 0
        %6064 = vmatpush1.bf16.msra.mxu0 0
        %6065 = vmatprep.subr.bf16.mxu0 0
        %6066 = vmatpush1.bf16.msra.mxu0 0
        %6067 = vmatprep.subr.bf16.mxu0 0
        %6068 = vmatpush1.bf16.msra.mxu0 0
        %6069 = vmatprep.subr.bf16.mxu0 0
        %6070 = vmatpush1.bf16.msra.mxu0 0
        %6071 = vmatprep.subr.bf16.mxu0 0
        %6072 = vmatpush1.bf16.msra.mxu0 0
        %6073 = vmatprep.subr.bf16.mxu0 0
        %6074 = vmatpush1.bf16.msra.mxu0 0
        %6075 = vmatprep.subr.bf16.mxu0 0
        %6076 = vmatpush1.bf16.msra.mxu0 0
        %6077 = vmatprep.subr.bf16.mxu0 0
        %6078 = vmatpush1.bf16.msra.mxu0 0
        %6079 = vmatprep.subr.bf16.mxu0 0
        %6080 = vmatpush1.bf16.msra.mxu0 0
        %6081 = vmatprep.subr.bf16.mxu0 0
        %6082 = vmatpush1.bf16.msra.mxu0 0
        %6083 = vmatprep.subr.bf16.mxu0 0
        %6084 = vmatpush1.bf16.msra.mxu0 0
        %6085 = vmatprep.subr.bf16.mxu0 0
        %6086 = vmatpush1.bf16.msra.mxu0 0
        %6087 = vmatprep.mubr.bf16.mxu0 0
        %6088 = vmatmul.mubr.bf16.gmra.mrb[0].mxu0 %v4659
        %v6089 = vpop.f32.mrb[0].mxu0
        %v6090 = vadd.f32 %v1092, %v6089
        %v6091 = vpop.f32.mrb[0].mxu0
        %v6092 = vadd.f32 %v1096, %v6091
        %v6093 = vpop.f32.mrb[0].mxu0
        %v6094 = vpop.f32.mrb[0].mxu0
        %6095 = vdwg.mxu0
        %6096 = vmatprep.subr.bf16.mxu0 %v3704
        %6097 = vmatpush1.bf16.msra.mxu0 %v3703
        %6098 = vmatprep.subr.bf16.mxu0 %v3960
        %6099 = vmatpush1.bf16.msra.mxu0 %v3959
        %6100 = vmatprep.subr.bf16.mxu0 0
        %6101 = vmatpush1.bf16.msra.mxu0 0
        %6102 = vmatprep.subr.bf16.mxu0 0
        %6103 = vmatpush1.bf16.msra.mxu0 0
        %6104 = vmatprep.subr.bf16.mxu0 0
        %6105 = vmatpush1.bf16.msra.mxu0 0
        %6106 = vmatprep.subr.bf16.mxu0 0
        %6107 = vmatpush1.bf16.msra.mxu0 0
        %6108 = vmatprep.subr.bf16.mxu0 0
        %6109 = vmatpush1.bf16.msra.mxu0 0
        %6110 = vmatprep.subr.bf16.mxu0 0
        %6111 = vmatpush1.bf16.msra.mxu0 0
        %6112 = vmatprep.subr.bf16.mxu0 0
        %6113 = vmatpush1.bf16.msra.mxu0 0
        %6114 = vmatprep.subr.bf16.mxu0 0
        %6115 = vmatpush1.bf16.msra.mxu0 0
        %6116 = vmatprep.subr.bf16.mxu0 0
        %6117 = vmatpush1.bf16.msra.mxu0 0
        %6118 = vmatprep.subr.bf16.mxu0 0
        %6119 = vmatpush1.bf16.msra.mxu0 0
        %6120 = vmatprep.subr.bf16.mxu0 0
        %6121 = vmatpush1.bf16.msra.mxu0 0
        %6122 = vmatprep.subr.bf16.mxu0 0
        %6123 = vmatpush1.bf16.msra.mxu0 0
        %6124 = vmatprep.subr.bf16.mxu0 0
        %6125 = vmatpush1.bf16.msra.mxu0 0
        %6126 = vmatprep.subr.bf16.mxu0 0
        %6127 = vmatpush1.bf16.msra.mxu0 0
        %6128 = vmatprep.mubr.bf16.mxu0 0
        %6129 = vmatmul.mubr.bf16.gmra.mrb[0].mxu0 %v4659
        %v6130 = vpop.f32.mrb[0].mxu0
        %v6131 = vadd.f32 %v1100, %v6130
        %v6132 = vpop.f32.mrb[0].mxu0
        %v6133 = vadd.f32 %v1104, %v6132
        %v6134 = vpop.f32.mrb[0].mxu0
        %v6135 = vpop.f32.mrb[0].mxu0
        %6136 = vdwg.mxu0
        %6137 = vmatprep.subr.bf16.mxu0 %v3706
        %6138 = vmatpush1.bf16.msra.mxu0 %v3705
        %6139 = vmatprep.subr.bf16.mxu0 %v3962
        %6140 = vmatpush1.bf16.msra.mxu0 %v3961
        %6141 = vmatprep.subr.bf16.mxu0 0
        %6142 = vmatpush1.bf16.msra.mxu0 0
        %6143 = vmatprep.subr.bf16.mxu0 0
        %6144 = vmatpush1.bf16.msra.mxu0 0
        %6145 = vmatprep.subr.bf16.mxu0 0
        %6146 = vmatpush1.bf16.msra.mxu0 0
        %6147 = vmatprep.subr.bf16.mxu0 0
        %6148 = vmatpush1.bf16.msra.mxu0 0
        %6149 = vmatprep.subr.bf16.mxu0 0
        %6150 = vmatpush1.bf16.msra.mxu0 0
        %6151 = vmatprep.subr.bf16.mxu0 0
        %6152 = vmatpush1.bf16.msra.mxu0 0
        %6153 = vmatprep.subr.bf16.mxu0 0
        %6154 = vmatpush1.bf16.msra.mxu0 0
        %6155 = vmatprep.subr.bf16.mxu0 0
        %6156 = vmatpush1.bf16.msra.mxu0 0
        %6157 = vmatprep.subr.bf16.mxu0 0
        %6158 = vmatpush1.bf16.msra.mxu0 0
        %6159 = vmatprep.subr.bf16.mxu0 0
        %6160 = vmatpush1.bf16.msra.mxu0 0
        %6161 = vmatprep.subr.bf16.mxu0 0
        %6162 = vmatpush1.bf16.msra.mxu0 0
        %6163 = vmatprep.subr.bf16.mxu0 0
        %6164 = vmatpush1.bf16.msra.mxu0 0
        %6165 = vmatprep.subr.bf16.mxu0 0
        %6166 = vmatpush1.bf16.msra.mxu0 0
        %6167 = vmatprep.subr.bf16.mxu0 0
        %6168 = vmatpush1.bf16.msra.mxu0 0
        %6169 = vmatprep.mubr.bf16.mxu0 0
        %6170 = vmatmul.mubr.bf16.gmra.mrb[0].mxu0 %v4659
        %v6171 = vpop.f32.mrb[0].mxu0
        %v6172 = vadd.f32 %v1108, %v6171
        %v6173 = vpop.f32.mrb[0].mxu0
        %v6174 = vadd.f32 %v1112, %v6173
        %v6175 = vpop.f32.mrb[0].mxu0
        %v6176 = vpop.f32.mrb[0].mxu0
        %6177 = vdwg.mxu0
        %6178 = vmatprep.subr.bf16.mxu0 %v3708
        %6179 = vmatpush1.bf16.msra.mxu0 %v3707
        %6180 = vmatprep.subr.bf16.mxu0 %v3964
        %6181 = vmatpush1.bf16.msra.mxu0 %v3963
        %6182 = vmatprep.subr.bf16.mxu0 0
        %6183 = vmatpush1.bf16.msra.mxu0 0
        %6184 = vmatprep.subr.bf16.mxu0 0
        %6185 = vmatpush1.bf16.msra.mxu0 0
        %6186 = vmatprep.subr.bf16.mxu0 0
        %6187 = vmatpush1.bf16.msra.mxu0 0
        %6188 = vmatprep.subr.bf16.mxu0 0
        %6189 = vmatpush1.bf16.msra.mxu0 0
        %6190 = vmatprep.subr.bf16.mxu0 0
        %6191 = vmatpush1.bf16.msra.mxu0 0
        %6192 = vmatprep.subr.bf16.mxu0 0
        %6193 = vmatpush1.bf16.msra.mxu0 0
        %6194 = vmatprep.subr.bf16.mxu0 0
        %6195 = vmatpush1.bf16.msra.mxu0 0
        %6196 = vmatprep.subr.bf16.mxu0 0
        %6197 = vmatpush1.bf16.msra.mxu0 0
        %6198 = vmatprep.subr.bf16.mxu0 0
        %6199 = vmatpush1.bf16.msra.mxu0 0
        %6200 = vmatprep.subr.bf16.mxu0 0
        %6201 = vmatpush1.bf16.msra.mxu0 0
        %6202 = vmatprep.subr.bf16.mxu0 0
        %6203 = vmatpush1.bf16.msra.mxu0 0
        %6204 = vmatprep.subr.bf16.mxu0 0
        %6205 = vmatpush1.bf16.msra.mxu0 0
        %6206 = vmatprep.subr.bf16.mxu0 0
        %6207 = vmatpush1.bf16.msra.mxu0 0
        %6208 = vmatprep.subr.bf16.mxu0 0
        %6209 = vmatpush1.bf16.msra.mxu0 0
        %6210 = vmatprep.mubr.bf16.mxu0 0
        %6211 = vmatmul.mubr.bf16.gmra.mrb[0].mxu0 %v4659
        %v6212 = vpop.f32.mrb[0].mxu0
        %v6213 = vadd.f32 %v1116, %v6212
        %v6214 = vpop.f32.mrb[0].mxu0
        %v6215 = vadd.f32 %v1120, %v6214
        %v6216 = vpop.f32.mrb[0].mxu0
        %v6217 = vpop.f32.mrb[0].mxu0
        %6218 = vdwg.mxu0
        %6219 = vmatprep.subr.bf16.mxu0 %v3710
        %6220 = vmatpush1.bf16.msra.mxu0 %v3709
        %6221 = vmatprep.subr.bf16.mxu0 %v3966
        %6222 = vmatpush1.bf16.msra.mxu0 %v3965
        %6223 = vmatprep.subr.bf16.mxu0 0
        %6224 = vmatpush1.bf16.msra.mxu0 0
        %6225 = vmatprep.subr.bf16.mxu0 0
        %6226 = vmatpush1.bf16.msra.mxu0 0
        %6227 = vmatprep.subr.bf16.mxu0 0
        %6228 = vmatpush1.bf16.msra.mxu0 0
        %6229 = vmatprep.subr.bf16.mxu0 0
        %6230 = vmatpush1.bf16.msra.mxu0 0
        %6231 = vmatprep.subr.bf16.mxu0 0
        %6232 = vmatpush1.bf16.msra.mxu0 0
        %6233 = vmatprep.subr.bf16.mxu0 0
        %6234 = vmatpush1.bf16.msra.mxu0 0
        %6235 = vmatprep.subr.bf16.mxu0 0
        %6236 = vmatpush1.bf16.msra.mxu0 0
        %6237 = vmatprep.subr.bf16.mxu0 0
        %6238 = vmatpush1.bf16.msra.mxu0 0
        %6239 = vmatprep.subr.bf16.mxu0 0
        %6240 = vmatpush1.bf16.msra.mxu0 0
        %6241 = vmatprep.subr.bf16.mxu0 0
        %6242 = vmatpush1.bf16.msra.mxu0 0
        %6243 = vmatprep.subr.bf16.mxu0 0
        %6244 = vmatpush1.bf16.msra.mxu0 0
        %6245 = vmatprep.subr.bf16.mxu0 0
        %6246 = vmatpush1.bf16.msra.mxu0 0
        %6247 = vmatprep.subr.bf16.mxu0 0
        %6248 = vmatpush1.bf16.msra.mxu0 0
        %6249 = vmatprep.subr.bf16.mxu0 0
        %6250 = vmatpush1.bf16.msra.mxu0 0
        %6251 = vmatprep.mubr.bf16.mxu0 0
        %6252 = vmatmul.mubr.bf16.gmra.mrb[0].mxu0 %v4659
        %v6253 = vpop.f32.mrb[0].mxu0
        %v6254 = vadd.f32 %v1124, %v6253
        %v6255 = vpop.f32.mrb[0].mxu0
        %v6256 = vadd.f32 %v1128, %v6255
        %v6257 = vpop.f32.mrb[0].mxu0
        %v6258 = vpop.f32.mrb[0].mxu0
        %6259 = vdwg.mxu0
        %6260 = vmatprep.subr.bf16.mxu0 %v3712
        %6261 = vmatpush1.bf16.msra.mxu0 %v3711
        %6262 = vmatprep.subr.bf16.mxu0 %v3968
        %6263 = vmatpush1.bf16.msra.mxu0 %v3967
        %6264 = vmatprep.subr.bf16.mxu0 0
        %6265 = vmatpush1.bf16.msra.mxu0 0
        %6266 = vmatprep.subr.bf16.mxu0 0
        %6267 = vmatpush1.bf16.msra.mxu0 0
        %6268 = vmatprep.subr.bf16.mxu0 0
        %6269 = vmatpush1.bf16.msra.mxu0 0
        %6270 = vmatprep.subr.bf16.mxu0 0
        %6271 = vmatpush1.bf16.msra.mxu0 0
        %6272 = vmatprep.subr.bf16.mxu0 0
        %6273 = vmatpush1.bf16.msra.mxu0 0
        %6274 = vmatprep.subr.bf16.mxu0 0
        %6275 = vmatpush1.bf16.msra.mxu0 0
        %6276 = vmatprep.subr.bf16.mxu0 0
        %6277 = vmatpush1.bf16.msra.mxu0 0
        %6278 = vmatprep.subr.bf16.mxu0 0
        %6279 = vmatpush1.bf16.msra.mxu0 0
        %6280 = vmatprep.subr.bf16.mxu0 0
        %6281 = vmatpush1.bf16.msra.mxu0 0
        %6282 = vmatprep.subr.bf16.mxu0 0
        %6283 = vmatpush1.bf16.msra.mxu0 0
        %6284 = vmatprep.subr.bf16.mxu0 0
        %6285 = vmatpush1.bf16.msra.mxu0 0
        %6286 = vmatprep.subr.bf16.mxu0 0
        %6287 = vmatpush1.bf16.msra.mxu0 0
        %6288 = vmatprep.subr.bf16.mxu0 0
        %6289 = vmatpush1.bf16.msra.mxu0 0
        %6290 = vmatprep.subr.bf16.mxu0 0
        %6291 = vmatpush1.bf16.msra.mxu0 0
        %6292 = vmatprep.mubr.bf16.mxu0 0
        %6293 = vmatmul.mubr.bf16.gmra.mrb[0].mxu0 %v4659
        %v6294 = vpop.f32.mrb[0].mxu0
        %v6295 = vadd.f32 %v1132, %v6294
        %v6296 = vpop.f32.mrb[0].mxu0
        %v6297 = vadd.f32 %v1136, %v6296
        %v6298 = vpop.f32.mrb[0].mxu0
        %v6299 = vpop.f32.mrb[0].mxu0
        %6300 = vdwg.mxu0
        %6301 = vmatprep.subr.bf16.mxu0 %v3714
        %6302 = vmatpush1.bf16.msra.mxu0 %v3713
        %6303 = vmatprep.subr.bf16.mxu0 %v3970
        %6304 = vmatpush1.bf16.msra.mxu0 %v3969
        %6305 = vmatprep.subr.bf16.mxu0 0
        %6306 = vmatpush1.bf16.msra.mxu0 0
        %6307 = vmatprep.subr.bf16.mxu0 0
        %6308 = vmatpush1.bf16.msra.mxu0 0
        %6309 = vmatprep.subr.bf16.mxu0 0
        %6310 = vmatpush1.bf16.msra.mxu0 0
        %6311 = vmatprep.subr.bf16.mxu0 0
        %6312 = vmatpush1.bf16.msra.mxu0 0
        %6313 = vmatprep.subr.bf16.mxu0 0
        %6314 = vmatpush1.bf16.msra.mxu0 0
        %6315 = vmatprep.subr.bf16.mxu0 0
        %6316 = vmatpush1.bf16.msra.mxu0 0
        %6317 = vmatprep.subr.bf16.mxu0 0
        %6318 = vmatpush1.bf16.msra.mxu0 0
        %6319 = vmatprep.subr.bf16.mxu0 0
        %6320 = vmatpush1.bf16.msra.mxu0 0
        %6321 = vmatprep.subr.bf16.mxu0 0
        %6322 = vmatpush1.bf16.msra.mxu0 0
        %6323 = vmatprep.subr.bf16.mxu0 0
        %6324 = vmatpush1.bf16.msra.mxu0 0
        %6325 = vmatprep.subr.bf16.mxu0 0
        %6326 = vmatpush1.bf16.msra.mxu0 0
        %6327 = vmatprep.subr.bf16.mxu0 0
        %6328 = vmatpush1.bf16.msra.mxu0 0
        %6329 = vmatprep.subr.bf16.mxu0 0
        %6330 = vmatpush1.bf16.msra.mxu0 0
        %6331 = vmatprep.subr.bf16.mxu0 0
        %6332 = vmatpush1.bf16.msra.mxu0 0
        %6333 = vmatprep.mubr.bf16.mxu0 0
        %6334 = vmatmul.mubr.bf16.gmra.mrb[0].mxu0 %v4659
        %v6335 = vpop.f32.mrb[0].mxu0
        %v6336 = vadd.f32 %v1140, %v6335
        %v6337 = vpop.f32.mrb[0].mxu0
        %v6338 = vadd.f32 %v1144, %v6337
        %v6339 = vpop.f32.mrb[0].mxu0
        %v6340 = vpop.f32.mrb[0].mxu0
        %6341 = vdwg.mxu0
        %6342 = vmatprep.subr.bf16.mxu0 %v3716
        %6343 = vmatpush1.bf16.msra.mxu0 %v3715
        %6344 = vmatprep.subr.bf16.mxu0 %v3972
        %6345 = vmatpush1.bf16.msra.mxu0 %v3971
        %6346 = vmatprep.subr.bf16.mxu0 0
        %6347 = vmatpush1.bf16.msra.mxu0 0
        %6348 = vmatprep.subr.bf16.mxu0 0
        %6349 = vmatpush1.bf16.msra.mxu0 0
        %6350 = vmatprep.subr.bf16.mxu0 0
        %6351 = vmatpush1.bf16.msra.mxu0 0
        %6352 = vmatprep.subr.bf16.mxu0 0
        %6353 = vmatpush1.bf16.msra.mxu0 0
        %6354 = vmatprep.subr.bf16.mxu0 0
        %6355 = vmatpush1.bf16.msra.mxu0 0
        %6356 = vmatprep.subr.bf16.mxu0 0
        %6357 = vmatpush1.bf16.msra.mxu0 0
        %6358 = vmatprep.subr.bf16.mxu0 0
        %6359 = vmatpush1.bf16.msra.mxu0 0
        %6360 = vmatprep.subr.bf16.mxu0 0
        %6361 = vmatpush1.bf16.msra.mxu0 0
        %6362 = vmatprep.subr.bf16.mxu0 0
        %6363 = vmatpush1.bf16.msra.mxu0 0
        %6364 = vmatprep.subr.bf16.mxu0 0
        %6365 = vmatpush1.bf16.msra.mxu0 0
        %6366 = vmatprep.subr.bf16.mxu0 0
        %6367 = vmatpush1.bf16.msra.mxu0 0
        %6368 = vmatprep.subr.bf16.mxu0 0
        %6369 = vmatpush1.bf16.msra.mxu0 0
        %6370 = vmatprep.subr.bf16.mxu0 0
        %6371 = vmatpush1.bf16.msra.mxu0 0
        %6372 = vmatprep.subr.bf16.mxu0 0
        %6373 = vmatpush1.bf16.msra.mxu0 0
        %6374 = vmatprep.mubr.bf16.mxu0 0
        %6375 = vmatmul.mubr.bf16.gmra.mrb[0].mxu0 %v4659
        %v6376 = vpop.f32.mrb[0].mxu0
        %v6377 = vadd.f32 %v1148, %v6376
        %v6378 = vpop.f32.mrb[0].mxu0
        %v6379 = vadd.f32 %v1152, %v6378
        %v6380 = vpop.f32.mrb[0].mxu0
        %v6381 = vpop.f32.mrb[0].mxu0
        %6382 = vdwg.mxu0
        %6383 = vmatprep.subr.bf16.mxu0 %v3718
        %6384 = vmatpush1.bf16.msra.mxu0 %v3717
        %6385 = vmatprep.subr.bf16.mxu0 %v3974
        %6386 = vmatpush1.bf16.msra.mxu0 %v3973
        %6387 = vmatprep.subr.bf16.mxu0 0
        %6388 = vmatpush1.bf16.msra.mxu0 0
        %6389 = vmatprep.subr.bf16.mxu0 0
        %6390 = vmatpush1.bf16.msra.mxu0 0
        %6391 = vmatprep.subr.bf16.mxu0 0
        %6392 = vmatpush1.bf16.msra.mxu0 0
        %6393 = vmatprep.subr.bf16.mxu0 0
        %6394 = vmatpush1.bf16.msra.mxu0 0
        %6395 = vmatprep.subr.bf16.mxu0 0
        %6396 = vmatpush1.bf16.msra.mxu0 0
        %6397 = vmatprep.subr.bf16.mxu0 0
        %6398 = vmatpush1.bf16.msra.mxu0 0
        %6399 = vmatprep.subr.bf16.mxu0 0
        %6400 = vmatpush1.bf16.msra.mxu0 0
        %6401 = vmatprep.subr.bf16.mxu0 0
        %6402 = vmatpush1.bf16.msra.mxu0 0
        %6403 = vmatprep.subr.bf16.mxu0 0
        %6404 = vmatpush1.bf16.msra.mxu0 0
        %6405 = vmatprep.subr.bf16.mxu0 0
        %6406 = vmatpush1.bf16.msra.mxu0 0
        %6407 = vmatprep.subr.bf16.mxu0 0
        %6408 = vmatpush1.bf16.msra.mxu0 0
        %6409 = vmatprep.subr.bf16.mxu0 0
        %6410 = vmatpush1.bf16.msra.mxu0 0
        %6411 = vmatprep.subr.bf16.mxu0 0
        %6412 = vmatpush1.bf16.msra.mxu0 0
        %6413 = vmatprep.subr.bf16.mxu0 0
        %6414 = vmatpush1.bf16.msra.mxu0 0
        %6415 = vmatprep.mubr.bf16.mxu0 0
        %6416 = vmatmul.mubr.bf16.gmra.mrb[0].mxu0 %v4659
        %v6417 = vpop.f32.mrb[0].mxu0
        %v6418 = vadd.f32 %v1156, %v6417
        %v6419 = vpop.f32.mrb[0].mxu0
        %v6420 = vadd.f32 %v1160, %v6419
        %v6421 = vpop.f32.mrb[0].mxu0
        %v6422 = vpop.f32.mrb[0].mxu0
        %6423 = vdwg.mxu0
        %6424 = vmatprep.subr.bf16.mxu0 %v3720
        %6425 = vmatpush1.bf16.msra.mxu0 %v3719
        %6426 = vmatprep.subr.bf16.mxu0 %v3976
        %6427 = vmatpush1.bf16.msra.mxu0 %v3975
        %6428 = vmatprep.subr.bf16.mxu0 0
        %6429 = vmatpush1.bf16.msra.mxu0 0
        %6430 = vmatprep.subr.bf16.mxu0 0
        %6431 = vmatpush1.bf16.msra.mxu0 0
        %6432 = vmatprep.subr.bf16.mxu0 0
        %6433 = vmatpush1.bf16.msra.mxu0 0
        %6434 = vmatprep.subr.bf16.mxu0 0
        %6435 = vmatpush1.bf16.msra.mxu0 0
        %6436 = vmatprep.subr.bf16.mxu0 0
        %6437 = vmatpush1.bf16.msra.mxu0 0
        %6438 = vmatprep.subr.bf16.mxu0 0
        %6439 = vmatpush1.bf16.msra.mxu0 0
        %6440 = vmatprep.subr.bf16.mxu0 0
        %6441 = vmatpush1.bf16.msra.mxu0 0
        %6442 = vmatprep.subr.bf16.mxu0 0
        %6443 = vmatpush1.bf16.msra.mxu0 0
        %6444 = vmatprep.subr.bf16.mxu0 0
        %6445 = vmatpush1.bf16.msra.mxu0 0
        %6446 = vmatprep.subr.bf16.mxu0 0
        %6447 = vmatpush1.bf16.msra.mxu0 0
        %6448 = vmatprep.subr.bf16.mxu0 0
        %6449 = vmatpush1.bf16.msra.mxu0 0
        %6450 = vmatprep.subr.bf16.mxu0 0
        %6451 = vmatpush1.bf16.msra.mxu0 0
        %6452 = vmatprep.subr.bf16.mxu0 0
        %6453 = vmatpush1.bf16.msra.mxu0 0
        %6454 = vmatprep.subr.bf16.mxu0 0
        %6455 = vmatpush1.bf16.msra.mxu0 0
        %6456 = vmatprep.mubr.bf16.mxu0 0
        %6457 = vmatmul.mubr.bf16.gmra.mrb[0].mxu0 %v4659
        %v6458 = vpop.f32.mrb[0].mxu0
        %v6459 = vadd.f32 %v1164, %v6458
        %v6460 = vpop.f32.mrb[0].mxu0
        %v6461 = vadd.f32 %v1168, %v6460
        %v6462 = vpop.f32.mrb[0].mxu0
        %v6463 = vpop.f32.mrb[0].mxu0
        %6464 = vdwg.mxu0
        %6465 = vmatprep.subr.bf16.mxu0 %v3722
        %6466 = vmatpush1.bf16.msra.mxu0 %v3721
        %6467 = vmatprep.subr.bf16.mxu0 %v3978
        %6468 = vmatpush1.bf16.msra.mxu0 %v3977
        %6469 = vmatprep.subr.bf16.mxu0 0
        %6470 = vmatpush1.bf16.msra.mxu0 0
        %6471 = vmatprep.subr.bf16.mxu0 0
        %6472 = vmatpush1.bf16.msra.mxu0 0
        %6473 = vmatprep.subr.bf16.mxu0 0
        %6474 = vmatpush1.bf16.msra.mxu0 0
        %6475 = vmatprep.subr.bf16.mxu0 0
        %6476 = vmatpush1.bf16.msra.mxu0 0
        %6477 = vmatprep.subr.bf16.mxu0 0
        %6478 = vmatpush1.bf16.msra.mxu0 0
        %6479 = vmatprep.subr.bf16.mxu0 0
        %6480 = vmatpush1.bf16.msra.mxu0 0
        %6481 = vmatprep.subr.bf16.mxu0 0
        %6482 = vmatpush1.bf16.msra.mxu0 0
        %6483 = vmatprep.subr.bf16.mxu0 0
        %6484 = vmatpush1.bf16.msra.mxu0 0
        %6485 = vmatprep.subr.bf16.mxu0 0
        %6486 = vmatpush1.bf16.msra.mxu0 0
        %6487 = vmatprep.subr.bf16.mxu0 0
        %6488 = vmatpush1.bf16.msra.mxu0 0
        %6489 = vmatprep.subr.bf16.mxu0 0
        %6490 = vmatpush1.bf16.msra.mxu0 0
        %6491 = vmatprep.subr.bf16.mxu0 0
        %6492 = vmatpush1.bf16.msra.mxu0 0
        %6493 = vmatprep.subr.bf16.mxu0 0
        %6494 = vmatpush1.bf16.msra.mxu0 0
        %6495 = vmatprep.subr.bf16.mxu0 0
        %6496 = vmatpush1.bf16.msra.mxu0 0
        %6497 = vmatprep.mubr.bf16.mxu0 0
        %6498 = vmatmul.mubr.bf16.gmra.mrb[0].mxu0 %v4659
        %v6499 = vpop.f32.mrb[0].mxu0
        %v6500 = vadd.f32 %v1172, %v6499
        %v6501 = vpop.f32.mrb[0].mxu0
        %v6502 = vadd.f32 %v1176, %v6501
        %v6503 = vpop.f32.mrb[0].mxu0
        %v6504 = vpop.f32.mrb[0].mxu0
        %6505 = vdwg.mxu0
        %6506 = vmatprep.subr.bf16.mxu0 %v3724
        %6507 = vmatpush1.bf16.msra.mxu0 %v3723
        %6508 = vmatprep.subr.bf16.mxu0 %v3980
        %6509 = vmatpush1.bf16.msra.mxu0 %v3979
        %6510 = vmatprep.subr.bf16.mxu0 0
        %6511 = vmatpush1.bf16.msra.mxu0 0
        %6512 = vmatprep.subr.bf16.mxu0 0
        %6513 = vmatpush1.bf16.msra.mxu0 0
        %6514 = vmatprep.subr.bf16.mxu0 0
        %6515 = vmatpush1.bf16.msra.mxu0 0
        %6516 = vmatprep.subr.bf16.mxu0 0
        %6517 = vmatpush1.bf16.msra.mxu0 0
        %6518 = vmatprep.subr.bf16.mxu0 0
        %6519 = vmatpush1.bf16.msra.mxu0 0
        %6520 = vmatprep.subr.bf16.mxu0 0
        %6521 = vmatpush1.bf16.msra.mxu0 0
        %6522 = vmatprep.subr.bf16.mxu0 0
        %6523 = vmatpush1.bf16.msra.mxu0 0
        %6524 = vmatprep.subr.bf16.mxu0 0
        %6525 = vmatpush1.bf16.msra.mxu0 0
        %6526 = vmatprep.subr.bf16.mxu0 0
        %6527 = vmatpush1.bf16.msra.mxu0 0
        %6528 = vmatprep.subr.bf16.mxu0 0
        %6529 = vmatpush1.bf16.msra.mxu0 0
        %6530 = vmatprep.subr.bf16.mxu0 0
        %6531 = vmatpush1.bf16.msra.mxu0 0
        %6532 = vmatprep.subr.bf16.mxu0 0
        %6533 = vmatpush1.bf16.msra.mxu0 0
        %6534 = vmatprep.subr.bf16.mxu0 0
        %6535 = vmatpush1.bf16.msra.mxu0 0
        %6536 = vmatprep.subr.bf16.mxu0 0
        %6537 = vmatpush1.bf16.msra.mxu0 0
        %6538 = vmatprep.mubr.bf16.mxu0 0
        %6539 = vmatmul.mubr.bf16.gmra.mrb[0].mxu0 %v4659
        %v6540 = vpop.f32.mrb[0].mxu0
        %v6541 = vadd.f32 %v1180, %v6540
        %v6542 = vpop.f32.mrb[0].mxu0
        %v6543 = vadd.f32 %v1184, %v6542
        %v6544 = vpop.f32.mrb[0].mxu0
        %v6545 = vpop.f32.mrb[0].mxu0
        %6546 = vdwg.mxu0
        %6547 = vmatprep.subr.bf16.mxu0 %v3726
        %6548 = vmatpush1.bf16.msra.mxu0 %v3725
        %6549 = vmatprep.subr.bf16.mxu0 %v3982
        %6550 = vmatpush1.bf16.msra.mxu0 %v3981
        %6551 = vmatprep.subr.bf16.mxu0 0
        %6552 = vmatpush1.bf16.msra.mxu0 0
        %6553 = vmatprep.subr.bf16.mxu0 0
        %6554 = vmatpush1.bf16.msra.mxu0 0
        %6555 = vmatprep.subr.bf16.mxu0 0
        %6556 = vmatpush1.bf16.msra.mxu0 0
        %6557 = vmatprep.subr.bf16.mxu0 0
        %6558 = vmatpush1.bf16.msra.mxu0 0
        %6559 = vmatprep.subr.bf16.mxu0 0
        %6560 = vmatpush1.bf16.msra.mxu0 0
        %6561 = vmatprep.subr.bf16.mxu0 0
        %6562 = vmatpush1.bf16.msra.mxu0 0
        %6563 = vmatprep.subr.bf16.mxu0 0
        %6564 = vmatpush1.bf16.msra.mxu0 0
        %6565 = vmatprep.subr.bf16.mxu0 0
        %6566 = vmatpush1.bf16.msra.mxu0 0
        %6567 = vmatprep.subr.bf16.mxu0 0
        %6568 = vmatpush1.bf16.msra.mxu0 0
        %6569 = vmatprep.subr.bf16.mxu0 0
        %6570 = vmatpush1.bf16.msra.mxu0 0
        %6571 = vmatprep.subr.bf16.mxu0 0
        %6572 = vmatpush1.bf16.msra.mxu0 0
        %6573 = vmatprep.subr.bf16.mxu0 0
        %6574 = vmatpush1.bf16.msra.mxu0 0
        %6575 = vmatprep.subr.bf16.mxu0 0
        %6576 = vmatpush1.bf16.msra.mxu0 0
        %6577 = vmatprep.subr.bf16.mxu0 0
        %6578 = vmatpush1.bf16.msra.mxu0 0
        %6579 = vmatprep.mubr.bf16.mxu0 0
        %6580 = vmatmul.mubr.bf16.gmra.mrb[0].mxu0 %v4659
        %v6581 = vpop.f32.mrb[0].mxu0
        %v6582 = vadd.f32 %v1188, %v6581
        %v6583 = vpop.f32.mrb[0].mxu0
        %v6584 = vadd.f32 %v1192, %v6583
        %v6585 = vpop.f32.mrb[0].mxu0
        %v6586 = vpop.f32.mrb[0].mxu0
        %6587 = vdwg.mxu0
        %6588 = vmatprep.subr.bf16.mxu0 %v3728
        %6589 = vmatpush1.bf16.msra.mxu0 %v3727
        %6590 = vmatprep.subr.bf16.mxu0 %v3984
        %6591 = vmatpush1.bf16.msra.mxu0 %v3983
        %6592 = vmatprep.subr.bf16.mxu0 0
        %6593 = vmatpush1.bf16.msra.mxu0 0
        %6594 = vmatprep.subr.bf16.mxu0 0
        %6595 = vmatpush1.bf16.msra.mxu0 0
        %6596 = vmatprep.subr.bf16.mxu0 0
        %6597 = vmatpush1.bf16.msra.mxu0 0
        %6598 = vmatprep.subr.bf16.mxu0 0
        %6599 = vmatpush1.bf16.msra.mxu0 0
        %6600 = vmatprep.subr.bf16.mxu0 0
        %6601 = vmatpush1.bf16.msra.mxu0 0
        %6602 = vmatprep.subr.bf16.mxu0 0
        %6603 = vmatpush1.bf16.msra.mxu0 0
        %6604 = vmatprep.subr.bf16.mxu0 0
        %6605 = vmatpush1.bf16.msra.mxu0 0
        %6606 = vmatprep.subr.bf16.mxu0 0
        %6607 = vmatpush1.bf16.msra.mxu0 0
        %6608 = vmatprep.subr.bf16.mxu0 0
        %6609 = vmatpush1.bf16.msra.mxu0 0
        %6610 = vmatprep.subr.bf16.mxu0 0
        %6611 = vmatpush1.bf16.msra.mxu0 0
        %6612 = vmatprep.subr.bf16.mxu0 0
        %6613 = vmatpush1.bf16.msra.mxu0 0
        %6614 = vmatprep.subr.bf16.mxu0 0
        %6615 = vmatpush1.bf16.msra.mxu0 0
        %6616 = vmatprep.subr.bf16.mxu0 0
        %6617 = vmatpush1.bf16.msra.mxu0 0
        %6618 = vmatprep.subr.bf16.mxu0 0
        %6619 = vmatpush1.bf16.msra.mxu0 0
        %6620 = vmatprep.mubr.bf16.mxu0 0
        %6621 = vmatmul.mubr.bf16.gmra.mrb[0].mxu0 %v4659
        %v6622 = vpop.f32.mrb[0].mxu0
        %v6623 = vadd.f32 %v1196, %v6622
        %v6624 = vpop.f32.mrb[0].mxu0
        %v6625 = vadd.f32 %v1200, %v6624
        %v6626 = vpop.f32.mrb[0].mxu0
        %v6627 = vpop.f32.mrb[0].mxu0
        %6628 = vdwg.mxu0
        %6629 = vmatprep.subr.bf16.mxu0 %v3730
        %6630 = vmatpush1.bf16.msra.mxu0 %v3729
        %6631 = vmatprep.subr.bf16.mxu0 %v3986
        %6632 = vmatpush1.bf16.msra.mxu0 %v3985
        %6633 = vmatprep.subr.bf16.mxu0 0
        %6634 = vmatpush1.bf16.msra.mxu0 0
        %6635 = vmatprep.subr.bf16.mxu0 0
        %6636 = vmatpush1.bf16.msra.mxu0 0
        %6637 = vmatprep.subr.bf16.mxu0 0
        %6638 = vmatpush1.bf16.msra.mxu0 0
        %6639 = vmatprep.subr.bf16.mxu0 0
        %6640 = vmatpush1.bf16.msra.mxu0 0
        %6641 = vmatprep.subr.bf16.mxu0 0
        %6642 = vmatpush1.bf16.msra.mxu0 0
        %6643 = vmatprep.subr.bf16.mxu0 0
        %6644 = vmatpush1.bf16.msra.mxu0 0
        %6645 = vmatprep.subr.bf16.mxu0 0
        %6646 = vmatpush1.bf16.msra.mxu0 0
        %6647 = vmatprep.subr.bf16.mxu0 0
        %6648 = vmatpush1.bf16.msra.mxu0 0
        %6649 = vmatprep.subr.bf16.mxu0 0
        %6650 = vmatpush1.bf16.msra.mxu0 0
        %6651 = vmatprep.subr.bf16.mxu0 0
        %6652 = vmatpush1.bf16.msra.mxu0 0
        %6653 = vmatprep.subr.bf16.mxu0 0
        %6654 = vmatpush1.bf16.msra.mxu0 0
        %6655 = vmatprep.subr.bf16.mxu0 0
        %6656 = vmatpush1.bf16.msra.mxu0 0
        %6657 = vmatprep.subr.bf16.mxu0 0
        %6658 = vmatpush1.bf16.msra.mxu0 0
        %6659 = vmatprep.subr.bf16.mxu0 0
        %6660 = vmatpush1.bf16.msra.mxu0 0
        %6661 = vmatprep.mubr.bf16.mxu0 0
        %6662 = vmatmul.mubr.bf16.gmra.mrb[0].mxu0 %v4659
        %v6663 = vpop.f32.mrb[0].mxu0
        %v6664 = vadd.f32 %v1204, %v6663
        %v6665 = vpop.f32.mrb[0].mxu0
        %v6666 = vadd.f32 %v1208, %v6665
        %v6667 = vpop.f32.mrb[0].mxu0
        %v6668 = vpop.f32.mrb[0].mxu0
        %6669 = vdwg.mxu0
        %6670 = vmatprep.subr.bf16.mxu0 %v3732
        %6671 = vmatpush1.bf16.msra.mxu0 %v3731
        %6672 = vmatprep.subr.bf16.mxu0 %v3988
        %6673 = vmatpush1.bf16.msra.mxu0 %v3987
        %6674 = vmatprep.subr.bf16.mxu0 0
        %6675 = vmatpush1.bf16.msra.mxu0 0
        %6676 = vmatprep.subr.bf16.mxu0 0
        %6677 = vmatpush1.bf16.msra.mxu0 0
        %6678 = vmatprep.subr.bf16.mxu0 0
        %6679 = vmatpush1.bf16.msra.mxu0 0
        %6680 = vmatprep.subr.bf16.mxu0 0
        %6681 = vmatpush1.bf16.msra.mxu0 0
        %6682 = vmatprep.subr.bf16.mxu0 0
        %6683 = vmatpush1.bf16.msra.mxu0 0
        %6684 = vmatprep.subr.bf16.mxu0 0
        %6685 = vmatpush1.bf16.msra.mxu0 0
        %6686 = vmatprep.subr.bf16.mxu0 0
        %6687 = vmatpush1.bf16.msra.mxu0 0
        %6688 = vmatprep.subr.bf16.mxu0 0
        %6689 = vmatpush1.bf16.msra.mxu0 0
        %6690 = vmatprep.subr.bf16.mxu0 0
        %6691 = vmatpush1.bf16.msra.mxu0 0
        %6692 = vmatprep.subr.bf16.mxu0 0
        %6693 = vmatpush1.bf16.msra.mxu0 0
        %6694 = vmatprep.subr.bf16.mxu0 0
        %6695 = vmatpush1.bf16.msra.mxu0 0
        %6696 = vmatprep.subr.bf16.mxu0 0
        %6697 = vmatpush1.bf16.msra.mxu0 0
        %6698 = vmatprep.subr.bf16.mxu0 0
        %6699 = vmatpush1.bf16.msra.mxu0 0
        %6700 = vmatprep.subr.bf16.mxu0 0
        %6701 = vmatpush1.bf16.msra.mxu0 0
        %6702 = vmatprep.mubr.bf16.mxu0 0
        %6703 = vmatmul.mubr.bf16.gmra.mrb[0].mxu0 %v4659
        %v6704 = vpop.f32.mrb[0].mxu0
        %v6705 = vadd.f32 %v1212, %v6704
        %v6706 = vpop.f32.mrb[0].mxu0
        %v6707 = vadd.f32 %v1216, %v6706
        %v6708 = vpop.f32.mrb[0].mxu0
        %v6709 = vpop.f32.mrb[0].mxu0
        %6710 = vdwg.mxu0
        %6711 = vmatprep.subr.bf16.mxu0 %v3734
        %6712 = vmatpush1.bf16.msra.mxu0 %v3733
        %6713 = vmatprep.subr.bf16.mxu0 %v3990
        %6714 = vmatpush1.bf16.msra.mxu0 %v3989
        %6715 = vmatprep.subr.bf16.mxu0 0
        %6716 = vmatpush1.bf16.msra.mxu0 0
        %6717 = vmatprep.subr.bf16.mxu0 0
        %6718 = vmatpush1.bf16.msra.mxu0 0
        %6719 = vmatprep.subr.bf16.mxu0 0
        %6720 = vmatpush1.bf16.msra.mxu0 0
        %6721 = vmatprep.subr.bf16.mxu0 0
        %6722 = vmatpush1.bf16.msra.mxu0 0
        %6723 = vmatprep.subr.bf16.mxu0 0
        %6724 = vmatpush1.bf16.msra.mxu0 0
        %6725 = vmatprep.subr.bf16.mxu0 0
        %6726 = vmatpush1.bf16.msra.mxu0 0
        %6727 = vmatprep.subr.bf16.mxu0 0
        %6728 = vmatpush1.bf16.msra.mxu0 0
        %6729 = vmatprep.subr.bf16.mxu0 0
        %6730 = vmatpush1.bf16.msra.mxu0 0
        %6731 = vmatprep.subr.bf16.mxu0 0
        %6732 = vmatpush1.bf16.msra.mxu0 0
        %6733 = vmatprep.subr.bf16.mxu0 0
        %6734 = vmatpush1.bf16.msra.mxu0 0
        %6735 = vmatprep.subr.bf16.mxu0 0
        %6736 = vmatpush1.bf16.msra.mxu0 0
        %6737 = vmatprep.subr.bf16.mxu0 0
        %6738 = vmatpush1.bf16.msra.mxu0 0
        %6739 = vmatprep.subr.bf16.mxu0 0
        %6740 = vmatpush1.bf16.msra.mxu0 0
        %6741 = vmatprep.subr.bf16.mxu0 0
        %6742 = vmatpush1.bf16.msra.mxu0 0
        %6743 = vmatprep.mubr.bf16.mxu0 0
        %6744 = vmatmul.mubr.bf16.gmra.mrb[0].mxu0 %v4659
        %v6745 = vpop.f32.mrb[0].mxu0
        %v6746 = vadd.f32 %v1220, %v6745
        %v6747 = vpop.f32.mrb[0].mxu0
        %v6748 = vadd.f32 %v1224, %v6747
        %v6749 = vpop.f32.mrb[0].mxu0
        %v6750 = vpop.f32.mrb[0].mxu0
        %6751 = vdwg.mxu0
        %6752 = vmatprep.subr.bf16.mxu0 %v3736
        %6753 = vmatpush1.bf16.msra.mxu0 %v3735
        %6754 = vmatprep.subr.bf16.mxu0 %v3992
        %6755 = vmatpush1.bf16.msra.mxu0 %v3991
        %6756 = vmatprep.subr.bf16.mxu0 0
        %6757 = vmatpush1.bf16.msra.mxu0 0
        %6758 = vmatprep.subr.bf16.mxu0 0
        %6759 = vmatpush1.bf16.msra.mxu0 0
        %6760 = vmatprep.subr.bf16.mxu0 0
        %6761 = vmatpush1.bf16.msra.mxu0 0
        %6762 = vmatprep.subr.bf16.mxu0 0
        %6763 = vmatpush1.bf16.msra.mxu0 0
        %6764 = vmatprep.subr.bf16.mxu0 0
        %6765 = vmatpush1.bf16.msra.mxu0 0
        %6766 = vmatprep.subr.bf16.mxu0 0
        %6767 = vmatpush1.bf16.msra.mxu0 0
        %6768 = vmatprep.subr.bf16.mxu0 0
        %6769 = vmatpush1.bf16.msra.mxu0 0
        %6770 = vmatprep.subr.bf16.mxu0 0
        %6771 = vmatpush1.bf16.msra.mxu0 0
        %6772 = vmatprep.subr.bf16.mxu0 0
        %6773 = vmatpush1.bf16.msra.mxu0 0
        %6774 = vmatprep.subr.bf16.mxu0 0
        %6775 = vmatpush1.bf16.msra.mxu0 0
        %6776 = vmatprep.subr.bf16.mxu0 0
        %6777 = vmatpush1.bf16.msra.mxu0 0
        %6778 = vmatprep.subr.bf16.mxu0 0
        %6779 = vmatpush1.bf16.msra.mxu0 0
        %6780 = vmatprep.subr.bf16.mxu0 0
        %6781 = vmatpush1.bf16.msra.mxu0 0
        %6782 = vmatprep.subr.bf16.mxu0 0
        %6783 = vmatpush1.bf16.msra.mxu0 0
        %6784 = vmatprep.mubr.bf16.mxu0 0
        %6785 = vmatmul.mubr.bf16.gmra.mrb[0].mxu0 %v4659
        %v6786 = vpop.f32.mrb[0].mxu0
        %v6787 = vadd.f32 %v1228, %v6786
        %v6788 = vpop.f32.mrb[0].mxu0
        %v6789 = vadd.f32 %v1232, %v6788
        %v6790 = vpop.f32.mrb[0].mxu0
        %v6791 = vpop.f32.mrb[0].mxu0
        %6792 = vdwg.mxu0
        %6793 = vmatprep.subr.bf16.mxu0 %v3738
        %6794 = vmatpush1.bf16.msra.mxu0 %v3737
        %6795 = vmatprep.subr.bf16.mxu0 %v3994
        %6796 = vmatpush1.bf16.msra.mxu0 %v3993
        %6797 = vmatprep.subr.bf16.mxu0 0
        %6798 = vmatpush1.bf16.msra.mxu0 0
        %6799 = vmatprep.subr.bf16.mxu0 0
        %6800 = vmatpush1.bf16.msra.mxu0 0
        %6801 = vmatprep.subr.bf16.mxu0 0
        %6802 = vmatpush1.bf16.msra.mxu0 0
        %6803 = vmatprep.subr.bf16.mxu0 0
        %6804 = vmatpush1.bf16.msra.mxu0 0
        %6805 = vmatprep.subr.bf16.mxu0 0
        %6806 = vmatpush1.bf16.msra.mxu0 0
        %6807 = vmatprep.subr.bf16.mxu0 0
        %6808 = vmatpush1.bf16.msra.mxu0 0
        %6809 = vmatprep.subr.bf16.mxu0 0
        %6810 = vmatpush1.bf16.msra.mxu0 0
        %6811 = vmatprep.subr.bf16.mxu0 0
        %6812 = vmatpush1.bf16.msra.mxu0 0
        %6813 = vmatprep.subr.bf16.mxu0 0
        %6814 = vmatpush1.bf16.msra.mxu0 0
        %6815 = vmatprep.subr.bf16.mxu0 0
        %6816 = vmatpush1.bf16.msra.mxu0 0
        %6817 = vmatprep.subr.bf16.mxu0 0
        %6818 = vmatpush1.bf16.msra.mxu0 0
        %6819 = vmatprep.subr.bf16.mxu0 0
        %6820 = vmatpush1.bf16.msra.mxu0 0
        %6821 = vmatprep.subr.bf16.mxu0 0
        %6822 = vmatpush1.bf16.msra.mxu0 0
        %6823 = vmatprep.subr.bf16.mxu0 0
        %6824 = vmatpush1.bf16.msra.mxu0 0
        %6825 = vmatprep.mubr.bf16.mxu0 0
        %6826 = vmatmul.mubr.bf16.gmra.mrb[0].mxu0 %v4659
        %v6827 = vpop.f32.mrb[0].mxu0
        %v6828 = vadd.f32 %v1236, %v6827
        %v6829 = vpop.f32.mrb[0].mxu0
        %v6830 = vadd.f32 %v1240, %v6829
        %v6831 = vpop.f32.mrb[0].mxu0
        %v6832 = vpop.f32.mrb[0].mxu0
        %6833 = vdwg.mxu0
        %6834 = vmatprep.subr.bf16.mxu0 %v3740
        %6835 = vmatpush1.bf16.msra.mxu0 %v3739
        %6836 = vmatprep.subr.bf16.mxu0 %v3996
        %6837 = vmatpush1.bf16.msra.mxu0 %v3995
        %6838 = vmatprep.subr.bf16.mxu0 0
        %6839 = vmatpush1.bf16.msra.mxu0 0
        %6840 = vmatprep.subr.bf16.mxu0 0
        %6841 = vmatpush1.bf16.msra.mxu0 0
        %6842 = vmatprep.subr.bf16.mxu0 0
        %6843 = vmatpush1.bf16.msra.mxu0 0
        %6844 = vmatprep.subr.bf16.mxu0 0
        %6845 = vmatpush1.bf16.msra.mxu0 0
        %6846 = vmatprep.subr.bf16.mxu0 0
        %6847 = vmatpush1.bf16.msra.mxu0 0
        %6848 = vmatprep.subr.bf16.mxu0 0
        %6849 = vmatpush1.bf16.msra.mxu0 0
        %6850 = vmatprep.subr.bf16.mxu0 0
        %6851 = vmatpush1.bf16.msra.mxu0 0
        %6852 = vmatprep.subr.bf16.mxu0 0
        %6853 = vmatpush1.bf16.msra.mxu0 0
        %6854 = vmatprep.subr.bf16.mxu0 0
        %6855 = vmatpush1.bf16.msra.mxu0 0
        %6856 = vmatprep.subr.bf16.mxu0 0
        %6857 = vmatpush1.bf16.msra.mxu0 0
        %6858 = vmatprep.subr.bf16.mxu0 0
        %6859 = vmatpush1.bf16.msra.mxu0 0
        %6860 = vmatprep.subr.bf16.mxu0 0
        %6861 = vmatpush1.bf16.msra.mxu0 0
        %6862 = vmatprep.subr.bf16.mxu0 0
        %6863 = vmatpush1.bf16.msra.mxu0 0
        %6864 = vmatprep.subr.bf16.mxu0 0
        %6865 = vmatpush1.bf16.msra.mxu0 0
        %6866 = vmatprep.mubr.bf16.mxu0 0
        %6867 = vmatmul.mubr.bf16.gmra.mrb[0].mxu0 %v4659
        %v6868 = vpop.f32.mrb[0].mxu0
        %v6869 = vadd.f32 %v1244, %v6868
        %v6870 = vpop.f32.mrb[0].mxu0
        %v6871 = vadd.f32 %v1248, %v6870
        %v6872 = vpop.f32.mrb[0].mxu0
        %v6873 = vpop.f32.mrb[0].mxu0
        %6874 = vdwg.mxu0
        %6875 = vmatprep.subr.bf16.mxu0 %v3742
        %6876 = vmatpush1.bf16.msra.mxu0 %v3741
        %6877 = vmatprep.subr.bf16.mxu0 %v3998
        %6878 = vmatpush1.bf16.msra.mxu0 %v3997
        %6879 = vmatprep.subr.bf16.mxu0 0
        %6880 = vmatpush1.bf16.msra.mxu0 0
        %6881 = vmatprep.subr.bf16.mxu0 0
        %6882 = vmatpush1.bf16.msra.mxu0 0
        %6883 = vmatprep.subr.bf16.mxu0 0
        %6884 = vmatpush1.bf16.msra.mxu0 0
        %6885 = vmatprep.subr.bf16.mxu0 0
        %6886 = vmatpush1.bf16.msra.mxu0 0
        %6887 = vmatprep.subr.bf16.mxu0 0
        %6888 = vmatpush1.bf16.msra.mxu0 0
        %6889 = vmatprep.subr.bf16.mxu0 0
        %6890 = vmatpush1.bf16.msra.mxu0 0
        %6891 = vmatprep.subr.bf16.mxu0 0
        %6892 = vmatpush1.bf16.msra.mxu0 0
        %6893 = vmatprep.subr.bf16.mxu0 0
        %6894 = vmatpush1.bf16.msra.mxu0 0
        %6895 = vmatprep.subr.bf16.mxu0 0
        %6896 = vmatpush1.bf16.msra.mxu0 0
        %6897 = vmatprep.subr.bf16.mxu0 0
        %6898 = vmatpush1.bf16.msra.mxu0 0
        %6899 = vmatprep.subr.bf16.mxu0 0
        %6900 = vmatpush1.bf16.msra.mxu0 0
        %6901 = vmatprep.subr.bf16.mxu0 0
        %6902 = vmatpush1.bf16.msra.mxu0 0
        %6903 = vmatprep.subr.bf16.mxu0 0
        %6904 = vmatpush1.bf16.msra.mxu0 0
        %6905 = vmatprep.subr.bf16.mxu0 0
        %6906 = vmatpush1.bf16.msra.mxu0 0
        %6907 = vmatprep.mubr.bf16.mxu0 0
        %6908 = vmatmul.mubr.bf16.gmra.mrb[0].mxu0 %v4659
        %v6909 = vpop.f32.mrb[0].mxu0
        %v6910 = vadd.f32 %v1252, %v6909
        %v6911 = vpop.f32.mrb[0].mxu0
        %v6912 = vadd.f32 %v1256, %v6911
        %v6913 = vpop.f32.mrb[0].mxu0
        %v6914 = vpop.f32.mrb[0].mxu0
        %6915 = vdwg.mxu0
        %6916 = vmatprep.subr.bf16.mxu0 %v3744
        %6917 = vmatpush1.bf16.msra.mxu0 %v3743
        %6918 = vmatprep.subr.bf16.mxu0 %v4000
        %6919 = vmatpush1.bf16.msra.mxu0 %v3999
        %6920 = vmatprep.subr.bf16.mxu0 0
        %6921 = vmatpush1.bf16.msra.mxu0 0
        %6922 = vmatprep.subr.bf16.mxu0 0
        %6923 = vmatpush1.bf16.msra.mxu0 0
        %6924 = vmatprep.subr.bf16.mxu0 0
        %6925 = vmatpush1.bf16.msra.mxu0 0
        %6926 = vmatprep.subr.bf16.mxu0 0
        %6927 = vmatpush1.bf16.msra.mxu0 0
        %6928 = vmatprep.subr.bf16.mxu0 0
        %6929 = vmatpush1.bf16.msra.mxu0 0
        %6930 = vmatprep.subr.bf16.mxu0 0
        %6931 = vmatpush1.bf16.msra.mxu0 0
        %6932 = vmatprep.subr.bf16.mxu0 0
        %6933 = vmatpush1.bf16.msra.mxu0 0
        %6934 = vmatprep.subr.bf16.mxu0 0
        %6935 = vmatpush1.bf16.msra.mxu0 0
        %6936 = vmatprep.subr.bf16.mxu0 0
        %6937 = vmatpush1.bf16.msra.mxu0 0
        %6938 = vmatprep.subr.bf16.mxu0 0
        %6939 = vmatpush1.bf16.msra.mxu0 0
        %6940 = vmatprep.subr.bf16.mxu0 0
        %6941 = vmatpush1.bf16.msra.mxu0 0
        %6942 = vmatprep.subr.bf16.mxu0 0
        %6943 = vmatpush1.bf16.msra.mxu0 0
        %6944 = vmatprep.subr.bf16.mxu0 0
        %6945 = vmatpush1.bf16.msra.mxu0 0
        %6946 = vmatprep.subr.bf16.mxu0 0
        %6947 = vmatpush1.bf16.msra.mxu0 0
        %6948 = vmatprep.mubr.bf16.mxu0 0
        %6949 = vmatmul.mubr.bf16.gmra.mrb[0].mxu0 %v4659
        %v6950 = vpop.f32.mrb[0].mxu0
        %v6951 = vadd.f32 %v1260, %v6950
        %v6952 = vpop.f32.mrb[0].mxu0
        %v6953 = vadd.f32 %v1264, %v6952
        %v6954 = vpop.f32.mrb[0].mxu0
        %v6955 = vpop.f32.mrb[0].mxu0
        %6956 = vdwg.mxu0
        %6957 = vmatprep.subr.bf16.mxu0 %v3746
        %6958 = vmatpush1.bf16.msra.mxu0 %v3745
        %6959 = vmatprep.subr.bf16.mxu0 %v4002
        %6960 = vmatpush1.bf16.msra.mxu0 %v4001
        %6961 = vmatprep.subr.bf16.mxu0 0
        %6962 = vmatpush1.bf16.msra.mxu0 0
        %6963 = vmatprep.subr.bf16.mxu0 0
        %6964 = vmatpush1.bf16.msra.mxu0 0
        %6965 = vmatprep.subr.bf16.mxu0 0
        %6966 = vmatpush1.bf16.msra.mxu0 0
        %6967 = vmatprep.subr.bf16.mxu0 0
        %6968 = vmatpush1.bf16.msra.mxu0 0
        %6969 = vmatprep.subr.bf16.mxu0 0
        %6970 = vmatpush1.bf16.msra.mxu0 0
        %6971 = vmatprep.subr.bf16.mxu0 0
        %6972 = vmatpush1.bf16.msra.mxu0 0
        %6973 = vmatprep.subr.bf16.mxu0 0
        %6974 = vmatpush1.bf16.msra.mxu0 0
        %6975 = vmatprep.subr.bf16.mxu0 0
        %6976 = vmatpush1.bf16.msra.mxu0 0
        %6977 = vmatprep.subr.bf16.mxu0 0
        %6978 = vmatpush1.bf16.msra.mxu0 0
        %6979 = vmatprep.subr.bf16.mxu0 0
        %6980 = vmatpush1.bf16.msra.mxu0 0
        %6981 = vmatprep.subr.bf16.mxu0 0
        %6982 = vmatpush1.bf16.msra.mxu0 0
        %6983 = vmatprep.subr.bf16.mxu0 0
        %6984 = vmatpush1.bf16.msra.mxu0 0
        %6985 = vmatprep.subr.bf16.mxu0 0
        %6986 = vmatpush1.bf16.msra.mxu0 0
        %6987 = vmatprep.subr.bf16.mxu0 0
        %6988 = vmatpush1.bf16.msra.mxu0 0
        %6989 = vmatprep.mubr.bf16.mxu0 0
        %6990 = vmatmul.mubr.bf16.gmra.mrb[0].mxu0 %v4659
        %v6991 = vpop.f32.mrb[0].mxu0
        %v6992 = vadd.f32 %v1268, %v6991
        %v6993 = vpop.f32.mrb[0].mxu0
        %v6994 = vadd.f32 %v1272, %v6993
        %v6995 = vpop.f32.mrb[0].mxu0
        %v6996 = vpop.f32.mrb[0].mxu0
        %6997 = vdwg.mxu0
        %6998 = vmatprep.subr.bf16.mxu0 %v3748
        %6999 = vmatpush1.bf16.msra.mxu0 %v3747
        %7000 = vmatprep.subr.bf16.mxu0 %v4004
        %7001 = vmatpush1.bf16.msra.mxu0 %v4003
        %7002 = vmatprep.subr.bf16.mxu0 0
        %7003 = vmatpush1.bf16.msra.mxu0 0
        %7004 = vmatprep.subr.bf16.mxu0 0
        %7005 = vmatpush1.bf16.msra.mxu0 0
        %7006 = vmatprep.subr.bf16.mxu0 0
        %7007 = vmatpush1.bf16.msra.mxu0 0
        %7008 = vmatprep.subr.bf16.mxu0 0
        %7009 = vmatpush1.bf16.msra.mxu0 0
        %7010 = vmatprep.subr.bf16.mxu0 0
        %7011 = vmatpush1.bf16.msra.mxu0 0
        %7012 = vmatprep.subr.bf16.mxu0 0
        %7013 = vmatpush1.bf16.msra.mxu0 0
        %7014 = vmatprep.subr.bf16.mxu0 0
        %7015 = vmatpush1.bf16.msra.mxu0 0
        %7016 = vmatprep.subr.bf16.mxu0 0
        %7017 = vmatpush1.bf16.msra.mxu0 0
        %7018 = vmatprep.subr.bf16.mxu0 0
        %7019 = vmatpush1.bf16.msra.mxu0 0
        %7020 = vmatprep.subr.bf16.mxu0 0
        %7021 = vmatpush1.bf16.msra.mxu0 0
        %7022 = vmatprep.subr.bf16.mxu0 0
        %7023 = vmatpush1.bf16.msra.mxu0 0
        %7024 = vmatprep.subr.bf16.mxu0 0
        %7025 = vmatpush1.bf16.msra.mxu0 0
        %7026 = vmatprep.subr.bf16.mxu0 0
        %7027 = vmatpush1.bf16.msra.mxu0 0
        %7028 = vmatprep.subr.bf16.mxu0 0
        %7029 = vmatpush1.bf16.msra.mxu0 0
        %7030 = vmatprep.mubr.bf16.mxu0 0
        %7031 = vmatmul.mubr.bf16.gmra.mrb[0].mxu0 %v4659
        %v7032 = vpop.f32.mrb[0].mxu0
        %v7033 = vadd.f32 %v1276, %v7032
        %v7034 = vpop.f32.mrb[0].mxu0
        %v7035 = vadd.f32 %v1280, %v7034
        %v7036 = vpop.f32.mrb[0].mxu0
        %v7037 = vpop.f32.mrb[0].mxu0
        %7038 = vdwg.mxu0
        %7039 = vmatprep.subr.bf16.mxu0 %v3750
        %7040 = vmatpush1.bf16.msra.mxu0 %v3749
        %7041 = vmatprep.subr.bf16.mxu0 %v4006
        %7042 = vmatpush1.bf16.msra.mxu0 %v4005
        %7043 = vmatprep.subr.bf16.mxu0 0
        %7044 = vmatpush1.bf16.msra.mxu0 0
        %7045 = vmatprep.subr.bf16.mxu0 0
        %7046 = vmatpush1.bf16.msra.mxu0 0
        %7047 = vmatprep.subr.bf16.mxu0 0
        %7048 = vmatpush1.bf16.msra.mxu0 0
        %7049 = vmatprep.subr.bf16.mxu0 0
        %7050 = vmatpush1.bf16.msra.mxu0 0
        %7051 = vmatprep.subr.bf16.mxu0 0
        %7052 = vmatpush1.bf16.msra.mxu0 0
        %7053 = vmatprep.subr.bf16.mxu0 0
        %7054 = vmatpush1.bf16.msra.mxu0 0
        %7055 = vmatprep.subr.bf16.mxu0 0
        %7056 = vmatpush1.bf16.msra.mxu0 0
        %7057 = vmatprep.subr.bf16.mxu0 0
        %7058 = vmatpush1.bf16.msra.mxu0 0
        %7059 = vmatprep.subr.bf16.mxu0 0
        %7060 = vmatpush1.bf16.msra.mxu0 0
        %7061 = vmatprep.subr.bf16.mxu0 0
        %7062 = vmatpush1.bf16.msra.mxu0 0
        %7063 = vmatprep.subr.bf16.mxu0 0
        %7064 = vmatpush1.bf16.msra.mxu0 0
        %7065 = vmatprep.subr.bf16.mxu0 0
        %7066 = vmatpush1.bf16.msra.mxu0 0
        %7067 = vmatprep.subr.bf16.mxu0 0
        %7068 = vmatpush1.bf16.msra.mxu0 0
        %7069 = vmatprep.subr.bf16.mxu0 0
        %7070 = vmatpush1.bf16.msra.mxu0 0
        %7071 = vmatprep.mubr.bf16.mxu0 0
        %7072 = vmatmul.mubr.bf16.gmra.mrb[0].mxu0 %v4659
        %v7073 = vpop.f32.mrb[0].mxu0
        %v7074 = vadd.f32 %v1284, %v7073
        %v7075 = vpop.f32.mrb[0].mxu0
        %v7076 = vadd.f32 %v1288, %v7075
        %v7077 = vpop.f32.mrb[0].mxu0
        %v7078 = vpop.f32.mrb[0].mxu0
        %7079 = vdwg.mxu0
        %7080 = vmatprep.subr.bf16.mxu0 %v3752
        %7081 = vmatpush1.bf16.msra.mxu0 %v3751
        %7082 = vmatprep.subr.bf16.mxu0 %v4008
        %7083 = vmatpush1.bf16.msra.mxu0 %v4007
        %7084 = vmatprep.subr.bf16.mxu0 0
        %7085 = vmatpush1.bf16.msra.mxu0 0
        %7086 = vmatprep.subr.bf16.mxu0 0
        %7087 = vmatpush1.bf16.msra.mxu0 0
        %7088 = vmatprep.subr.bf16.mxu0 0
        %7089 = vmatpush1.bf16.msra.mxu0 0
        %7090 = vmatprep.subr.bf16.mxu0 0
        %7091 = vmatpush1.bf16.msra.mxu0 0
        %7092 = vmatprep.subr.bf16.mxu0 0
        %7093 = vmatpush1.bf16.msra.mxu0 0
        %7094 = vmatprep.subr.bf16.mxu0 0
        %7095 = vmatpush1.bf16.msra.mxu0 0
        %7096 = vmatprep.subr.bf16.mxu0 0
        %7097 = vmatpush1.bf16.msra.mxu0 0
        %7098 = vmatprep.subr.bf16.mxu0 0
        %7099 = vmatpush1.bf16.msra.mxu0 0
        %7100 = vmatprep.subr.bf16.mxu0 0
        %7101 = vmatpush1.bf16.msra.mxu0 0
        %7102 = vmatprep.subr.bf16.mxu0 0
        %7103 = vmatpush1.bf16.msra.mxu0 0
        %7104 = vmatprep.subr.bf16.mxu0 0
        %7105 = vmatpush1.bf16.msra.mxu0 0
        %7106 = vmatprep.subr.bf16.mxu0 0
        %7107 = vmatpush1.bf16.msra.mxu0 0
        %7108 = vmatprep.subr.bf16.mxu0 0
        %7109 = vmatpush1.bf16.msra.mxu0 0
        %7110 = vmatprep.subr.bf16.mxu0 0
        %7111 = vmatpush1.bf16.msra.mxu0 0
        %7112 = vmatprep.mubr.bf16.mxu0 0
        %7113 = vmatmul.mubr.bf16.gmra.mrb[0].mxu0 %v4659
        %v7114 = vpop.f32.mrb[0].mxu0
        %v7115 = vadd.f32 %v1292, %v7114
        %v7116 = vpop.f32.mrb[0].mxu0
        %v7117 = vadd.f32 %v1296, %v7116
        %v7118 = vpop.f32.mrb[0].mxu0
        %v7119 = vpop.f32.mrb[0].mxu0
        %7120 = vdwg.mxu0
        %7121 = vmatprep.subr.bf16.mxu0 %v3754
        %7122 = vmatpush1.bf16.msra.mxu0 %v3753
        %7123 = vmatprep.subr.bf16.mxu0 %v4010
        %7124 = vmatpush1.bf16.msra.mxu0 %v4009
        %7125 = vmatprep.subr.bf16.mxu0 0
        %7126 = vmatpush1.bf16.msra.mxu0 0
        %7127 = vmatprep.subr.bf16.mxu0 0
        %7128 = vmatpush1.bf16.msra.mxu0 0
        %7129 = vmatprep.subr.bf16.mxu0 0
        %7130 = vmatpush1.bf16.msra.mxu0 0
        %7131 = vmatprep.subr.bf16.mxu0 0
        %7132 = vmatpush1.bf16.msra.mxu0 0
        %7133 = vmatprep.subr.bf16.mxu0 0
        %7134 = vmatpush1.bf16.msra.mxu0 0
        %7135 = vmatprep.subr.bf16.mxu0 0
        %7136 = vmatpush1.bf16.msra.mxu0 0
        %7137 = vmatprep.subr.bf16.mxu0 0
        %7138 = vmatpush1.bf16.msra.mxu0 0
        %7139 = vmatprep.subr.bf16.mxu0 0
        %7140 = vmatpush1.bf16.msra.mxu0 0
        %7141 = vmatprep.subr.bf16.mxu0 0
        %7142 = vmatpush1.bf16.msra.mxu0 0
        %7143 = vmatprep.subr.bf16.mxu0 0
        %7144 = vmatpush1.bf16.msra.mxu0 0
        %7145 = vmatprep.subr.bf16.mxu0 0
        %7146 = vmatpush1.bf16.msra.mxu0 0
        %7147 = vmatprep.subr.bf16.mxu0 0
        %7148 = vmatpush1.bf16.msra.mxu0 0
        %7149 = vmatprep.subr.bf16.mxu0 0
        %7150 = vmatpush1.bf16.msra.mxu0 0
        %7151 = vmatprep.subr.bf16.mxu0 0
        %7152 = vmatpush1.bf16.msra.mxu0 0
        %7153 = vmatprep.mubr.bf16.mxu0 0
        %7154 = vmatmul.mubr.bf16.gmra.mrb[0].mxu0 %v4659
        %v7155 = vpop.f32.mrb[0].mxu0
        %v7156 = vadd.f32 %v1300, %v7155
        %v7157 = vpop.f32.mrb[0].mxu0
        %v7158 = vadd.f32 %v1304, %v7157
        %v7159 = vpop.f32.mrb[0].mxu0
        %v7160 = vpop.f32.mrb[0].mxu0
        %7161 = vdwg.mxu0
        %7162 = vmatprep.subr.bf16.mxu0 %v3756
        %7163 = vmatpush1.bf16.msra.mxu0 %v3755
        %7164 = vmatprep.subr.bf16.mxu0 %v4012
        %7165 = vmatpush1.bf16.msra.mxu0 %v4011
        %7166 = vmatprep.subr.bf16.mxu0 0
        %7167 = vmatpush1.bf16.msra.mxu0 0
        %7168 = vmatprep.subr.bf16.mxu0 0
        %7169 = vmatpush1.bf16.msra.mxu0 0
        %7170 = vmatprep.subr.bf16.mxu0 0
        %7171 = vmatpush1.bf16.msra.mxu0 0
        %7172 = vmatprep.subr.bf16.mxu0 0
        %7173 = vmatpush1.bf16.msra.mxu0 0
        %7174 = vmatprep.subr.bf16.mxu0 0
        %7175 = vmatpush1.bf16.msra.mxu0 0
        %7176 = vmatprep.subr.bf16.mxu0 0
        %7177 = vmatpush1.bf16.msra.mxu0 0
        %7178 = vmatprep.subr.bf16.mxu0 0
        %7179 = vmatpush1.bf16.msra.mxu0 0
        %7180 = vmatprep.subr.bf16.mxu0 0
        %7181 = vmatpush1.bf16.msra.mxu0 0
        %7182 = vmatprep.subr.bf16.mxu0 0
        %7183 = vmatpush1.bf16.msra.mxu0 0
        %7184 = vmatprep.subr.bf16.mxu0 0
        %7185 = vmatpush1.bf16.msra.mxu0 0
        %7186 = vmatprep.subr.bf16.mxu0 0
        %7187 = vmatpush1.bf16.msra.mxu0 0
        %7188 = vmatprep.subr.bf16.mxu0 0
        %7189 = vmatpush1.bf16.msra.mxu0 0
        %7190 = vmatprep.subr.bf16.mxu0 0
        %7191 = vmatpush1.bf16.msra.mxu0 0
        %7192 = vmatprep.subr.bf16.mxu0 0
        %7193 = vmatpush1.bf16.msra.mxu0 0
        %7194 = vmatprep.mubr.bf16.mxu0 0
        %7195 = vmatmul.mubr.bf16.gmra.mrb[0].mxu0 %v4659
        %v7196 = vpop.f32.mrb[0].mxu0
        %v7197 = vadd.f32 %v1308, %v7196
        %v7198 = vpop.f32.mrb[0].mxu0
        %v7199 = vadd.f32 %v1312, %v7198
        %v7200 = vpop.f32.mrb[0].mxu0
        %v7201 = vpop.f32.mrb[0].mxu0
        %7202 = vdwg.mxu0
        %7203 = vmatprep.subr.bf16.mxu0 %v3758
        %7204 = vmatpush1.bf16.msra.mxu0 %v3757
        %7205 = vmatprep.subr.bf16.mxu0 %v4014
        %7206 = vmatpush1.bf16.msra.mxu0 %v4013
        %7207 = vmatprep.subr.bf16.mxu0 0
        %7208 = vmatpush1.bf16.msra.mxu0 0
        %7209 = vmatprep.subr.bf16.mxu0 0
        %7210 = vmatpush1.bf16.msra.mxu0 0
        %7211 = vmatprep.subr.bf16.mxu0 0
        %7212 = vmatpush1.bf16.msra.mxu0 0
        %7213 = vmatprep.subr.bf16.mxu0 0
        %7214 = vmatpush1.bf16.msra.mxu0 0
        %7215 = vmatprep.subr.bf16.mxu0 0
        %7216 = vmatpush1.bf16.msra.mxu0 0
        %7217 = vmatprep.subr.bf16.mxu0 0
        %7218 = vmatpush1.bf16.msra.mxu0 0
        %7219 = vmatprep.subr.bf16.mxu0 0
        %7220 = vmatpush1.bf16.msra.mxu0 0
        %7221 = vmatprep.subr.bf16.mxu0 0
        %7222 = vmatpush1.bf16.msra.mxu0 0
        %7223 = vmatprep.subr.bf16.mxu0 0
        %7224 = vmatpush1.bf16.msra.mxu0 0
        %7225 = vmatprep.subr.bf16.mxu0 0
        %7226 = vmatpush1.bf16.msra.mxu0 0
        %7227 = vmatprep.subr.bf16.mxu0 0
        %7228 = vmatpush1.bf16.msra.mxu0 0
        %7229 = vmatprep.subr.bf16.mxu0 0
        %7230 = vmatpush1.bf16.msra.mxu0 0
        %7231 = vmatprep.subr.bf16.mxu0 0
        %7232 = vmatpush1.bf16.msra.mxu0 0
        %7233 = vmatprep.subr.bf16.mxu0 0
        %7234 = vmatpush1.bf16.msra.mxu0 0
        %7235 = vmatprep.mubr.bf16.mxu0 0
        %7236 = vmatmul.mubr.bf16.gmra.mrb[0].mxu0 %v4659
        %v7237 = vpop.f32.mrb[0].mxu0
        %v7238 = vadd.f32 %v1316, %v7237
        %v7239 = vpop.f32.mrb[0].mxu0
        %v7240 = vadd.f32 %v1320, %v7239
        %v7241 = vpop.f32.mrb[0].mxu0
        %v7242 = vpop.f32.mrb[0].mxu0
        %7243 = vdwg.mxu0
        %7244 = vmatprep.subr.bf16.mxu0 %v3760
        %7245 = vmatpush1.bf16.msra.mxu0 %v3759
        %7246 = vmatprep.subr.bf16.mxu0 %v4016
        %7247 = vmatpush1.bf16.msra.mxu0 %v4015
        %7248 = vmatprep.subr.bf16.mxu0 0
        %7249 = vmatpush1.bf16.msra.mxu0 0
        %7250 = vmatprep.subr.bf16.mxu0 0
        %7251 = vmatpush1.bf16.msra.mxu0 0
        %7252 = vmatprep.subr.bf16.mxu0 0
        %7253 = vmatpush1.bf16.msra.mxu0 0
        %7254 = vmatprep.subr.bf16.mxu0 0
        %7255 = vmatpush1.bf16.msra.mxu0 0
        %7256 = vmatprep.subr.bf16.mxu0 0
        %7257 = vmatpush1.bf16.msra.mxu0 0
        %7258 = vmatprep.subr.bf16.mxu0 0
        %7259 = vmatpush1.bf16.msra.mxu0 0
        %7260 = vmatprep.subr.bf16.mxu0 0
        %7261 = vmatpush1.bf16.msra.mxu0 0
        %7262 = vmatprep.subr.bf16.mxu0 0
        %7263 = vmatpush1.bf16.msra.mxu0 0
        %7264 = vmatprep.subr.bf16.mxu0 0
        %7265 = vmatpush1.bf16.msra.mxu0 0
        %7266 = vmatprep.subr.bf16.mxu0 0
        %7267 = vmatpush1.bf16.msra.mxu0 0
        %7268 = vmatprep.subr.bf16.mxu0 0
        %7269 = vmatpush1.bf16.msra.mxu0 0
        %7270 = vmatprep.subr.bf16.mxu0 0
        %7271 = vmatpush1.bf16.msra.mxu0 0
        %7272 = vmatprep.subr.bf16.mxu0 0
        %7273 = vmatpush1.bf16.msra.mxu0 0
        %7274 = vmatprep.subr.bf16.mxu0 0
        %7275 = vmatpush1.bf16.msra.mxu0 0
        %7276 = vmatprep.mubr.bf16.mxu0 0
        %7277 = vmatmul.mubr.bf16.gmra.mrb[0].mxu0 %v4659
        %v7278 = vpop.f32.mrb[0].mxu0
        %v7279 = vadd.f32 %v1324, %v7278
        %v7280 = vpop.f32.mrb[0].mxu0
        %v7281 = vadd.f32 %v1328, %v7280
        %v7282 = vpop.f32.mrb[0].mxu0
        %v7283 = vpop.f32.mrb[0].mxu0
        %7284 = vdwg.mxu0
        %7285 = vmatprep.subr.bf16.mxu0 %v3762
        %7286 = vmatpush1.bf16.msra.mxu0 %v3761
        %7287 = vmatprep.subr.bf16.mxu0 %v4018
        %7288 = vmatpush1.bf16.msra.mxu0 %v4017
        %7289 = vmatprep.subr.bf16.mxu0 0
        %7290 = vmatpush1.bf16.msra.mxu0 0
        %7291 = vmatprep.subr.bf16.mxu0 0
        %7292 = vmatpush1.bf16.msra.mxu0 0
        %7293 = vmatprep.subr.bf16.mxu0 0
        %7294 = vmatpush1.bf16.msra.mxu0 0
        %7295 = vmatprep.subr.bf16.mxu0 0
        %7296 = vmatpush1.bf16.msra.mxu0 0
        %7297 = vmatprep.subr.bf16.mxu0 0
        %7298 = vmatpush1.bf16.msra.mxu0 0
        %7299 = vmatprep.subr.bf16.mxu0 0
        %7300 = vmatpush1.bf16.msra.mxu0 0
        %7301 = vmatprep.subr.bf16.mxu0 0
        %7302 = vmatpush1.bf16.msra.mxu0 0
        %7303 = vmatprep.subr.bf16.mxu0 0
        %7304 = vmatpush1.bf16.msra.mxu0 0
        %7305 = vmatprep.subr.bf16.mxu0 0
        %7306 = vmatpush1.bf16.msra.mxu0 0
        %7307 = vmatprep.subr.bf16.mxu0 0
        %7308 = vmatpush1.bf16.msra.mxu0 0
        %7309 = vmatprep.subr.bf16.mxu0 0
        %7310 = vmatpush1.bf16.msra.mxu0 0
        %7311 = vmatprep.subr.bf16.mxu0 0
        %7312 = vmatpush1.bf16.msra.mxu0 0
        %7313 = vmatprep.subr.bf16.mxu0 0
        %7314 = vmatpush1.bf16.msra.mxu0 0
        %7315 = vmatprep.subr.bf16.mxu0 0
        %7316 = vmatpush1.bf16.msra.mxu0 0
        %7317 = vmatprep.mubr.bf16.mxu0 0
        %7318 = vmatmul.mubr.bf16.gmra.mrb[0].mxu0 %v4659
        %v7319 = vpop.f32.mrb[0].mxu0
        %v7320 = vadd.f32 %v1332, %v7319
        %v7321 = vpop.f32.mrb[0].mxu0
        %v7322 = vadd.f32 %v1336, %v7321
        %v7323 = vpop.f32.mrb[0].mxu0
        %v7324 = vpop.f32.mrb[0].mxu0
        %7325 = vdwg.mxu0
        %7326 = vmatprep.subr.bf16.mxu0 %v3764
        %7327 = vmatpush1.bf16.msra.mxu0 %v3763
        %7328 = vmatprep.subr.bf16.mxu0 %v4020
        %7329 = vmatpush1.bf16.msra.mxu0 %v4019
        %7330 = vmatprep.subr.bf16.mxu0 0
        %7331 = vmatpush1.bf16.msra.mxu0 0
        %7332 = vmatprep.subr.bf16.mxu0 0
        %7333 = vmatpush1.bf16.msra.mxu0 0
        %7334 = vmatprep.subr.bf16.mxu0 0
        %7335 = vmatpush1.bf16.msra.mxu0 0
        %7336 = vmatprep.subr.bf16.mxu0 0
        %7337 = vmatpush1.bf16.msra.mxu0 0
        %7338 = vmatprep.subr.bf16.mxu0 0
        %7339 = vmatpush1.bf16.msra.mxu0 0
        %7340 = vmatprep.subr.bf16.mxu0 0
        %7341 = vmatpush1.bf16.msra.mxu0 0
        %7342 = vmatprep.subr.bf16.mxu0 0
        %7343 = vmatpush1.bf16.msra.mxu0 0
        %7344 = vmatprep.subr.bf16.mxu0 0
        %7345 = vmatpush1.bf16.msra.mxu0 0
        %7346 = vmatprep.subr.bf16.mxu0 0
        %7347 = vmatpush1.bf16.msra.mxu0 0
        %7348 = vmatprep.subr.bf16.mxu0 0
        %7349 = vmatpush1.bf16.msra.mxu0 0
        %7350 = vmatprep.subr.bf16.mxu0 0
        %7351 = vmatpush1.bf16.msra.mxu0 0
        %7352 = vmatprep.subr.bf16.mxu0 0
        %7353 = vmatpush1.bf16.msra.mxu0 0
        %7354 = vmatprep.subr.bf16.mxu0 0
        %7355 = vmatpush1.bf16.msra.mxu0 0
        %7356 = vmatprep.subr.bf16.mxu0 0
        %7357 = vmatpush1.bf16.msra.mxu0 0
        %7358 = vmatprep.mubr.bf16.mxu0 0
        %7359 = vmatmul.mubr.bf16.gmra.mrb[0].mxu0 %v4659
        %v7360 = vpop.f32.mrb[0].mxu0
        %v7361 = vadd.f32 %v1340, %v7360
        %v7362 = vpop.f32.mrb[0].mxu0
        %v7363 = vadd.f32 %v1344, %v7362
        %v7364 = vpop.f32.mrb[0].mxu0
        %v7365 = vpop.f32.mrb[0].mxu0
        %7366 = vdwg.mxu0
        %7367 = vmatprep.subr.bf16.mxu0 %v3766
        %7368 = vmatpush1.bf16.msra.mxu0 %v3765
        %7369 = vmatprep.subr.bf16.mxu0 %v4022
        %7370 = vmatpush1.bf16.msra.mxu0 %v4021
        %7371 = vmatprep.subr.bf16.mxu0 0
        %7372 = vmatpush1.bf16.msra.mxu0 0
        %7373 = vmatprep.subr.bf16.mxu0 0
        %7374 = vmatpush1.bf16.msra.mxu0 0
        %7375 = vmatprep.subr.bf16.mxu0 0
        %7376 = vmatpush1.bf16.msra.mxu0 0
        %7377 = vmatprep.subr.bf16.mxu0 0
        %7378 = vmatpush1.bf16.msra.mxu0 0
        %7379 = vmatprep.subr.bf16.mxu0 0
        %7380 = vmatpush1.bf16.msra.mxu0 0
        %7381 = vmatprep.subr.bf16.mxu0 0
        %7382 = vmatpush1.bf16.msra.mxu0 0
        %7383 = vmatprep.subr.bf16.mxu0 0
        %7384 = vmatpush1.bf16.msra.mxu0 0
        %7385 = vmatprep.subr.bf16.mxu0 0
        %7386 = vmatpush1.bf16.msra.mxu0 0
        %7387 = vmatprep.subr.bf16.mxu0 0
        %7388 = vmatpush1.bf16.msra.mxu0 0
        %7389 = vmatprep.subr.bf16.mxu0 0
        %7390 = vmatpush1.bf16.msra.mxu0 0
        %7391 = vmatprep.subr.bf16.mxu0 0
        %7392 = vmatpush1.bf16.msra.mxu0 0
        %7393 = vmatprep.subr.bf16.mxu0 0
        %7394 = vmatpush1.bf16.msra.mxu0 0
        %7395 = vmatprep.subr.bf16.mxu0 0
        %7396 = vmatpush1.bf16.msra.mxu0 0
        %7397 = vmatprep.subr.bf16.mxu0 0
        %7398 = vmatpush1.bf16.msra.mxu0 0
        %7399 = vmatprep.mubr.bf16.mxu0 0
        %7400 = vmatmul.mubr.bf16.gmra.mrb[0].mxu0 %v4659
        %v7401 = vpop.f32.mrb[0].mxu0
        %v7402 = vadd.f32 %v1348, %v7401
        %v7403 = vpop.f32.mrb[0].mxu0
        %v7404 = vadd.f32 %v1352, %v7403
        %v7405 = vpop.f32.mrb[0].mxu0
        %v7406 = vpop.f32.mrb[0].mxu0
        %7407 = vdwg.mxu0
        %7408 = vmatprep.subr.bf16.mxu0 %v3768
        %7409 = vmatpush1.bf16.msra.mxu0 %v3767
        %7410 = vmatprep.subr.bf16.mxu0 %v4024
        %7411 = vmatpush1.bf16.msra.mxu0 %v4023
        %7412 = vmatprep.subr.bf16.mxu0 0
        %7413 = vmatpush1.bf16.msra.mxu0 0
        %7414 = vmatprep.subr.bf16.mxu0 0
        %7415 = vmatpush1.bf16.msra.mxu0 0
        %7416 = vmatprep.subr.bf16.mxu0 0
        %7417 = vmatpush1.bf16.msra.mxu0 0
        %7418 = vmatprep.subr.bf16.mxu0 0
        %7419 = vmatpush1.bf16.msra.mxu0 0
        %7420 = vmatprep.subr.bf16.mxu0 0
        %7421 = vmatpush1.bf16.msra.mxu0 0
        %7422 = vmatprep.subr.bf16.mxu0 0
        %7423 = vmatpush1.bf16.msra.mxu0 0
        %7424 = vmatprep.subr.bf16.mxu0 0
        %7425 = vmatpush1.bf16.msra.mxu0 0
        %7426 = vmatprep.subr.bf16.mxu0 0
        %7427 = vmatpush1.bf16.msra.mxu0 0
        %7428 = vmatprep.subr.bf16.mxu0 0
        %7429 = vmatpush1.bf16.msra.mxu0 0
        %7430 = vmatprep.subr.bf16.mxu0 0
        %7431 = vmatpush1.bf16.msra.mxu0 0
        %7432 = vmatprep.subr.bf16.mxu0 0
        %7433 = vmatpush1.bf16.msra.mxu0 0
        %7434 = vmatprep.subr.bf16.mxu0 0
        %7435 = vmatpush1.bf16.msra.mxu0 0
        %7436 = vmatprep.subr.bf16.mxu0 0
        %7437 = vmatpush1.bf16.msra.mxu0 0
        %7438 = vmatprep.subr.bf16.mxu0 0
        %7439 = vmatpush1.bf16.msra.mxu0 0
        %7440 = vmatprep.mubr.bf16.mxu0 0
        %7441 = vmatmul.mubr.bf16.gmra.mrb[0].mxu0 %v4659
        %v7442 = vpop.f32.mrb[0].mxu0
        %v7443 = vadd.f32 %v1356, %v7442
        %v7444 = vpop.f32.mrb[0].mxu0
        %v7445 = vadd.f32 %v1360, %v7444
        %v7446 = vpop.f32.mrb[0].mxu0
        %v7447 = vpop.f32.mrb[0].mxu0
        %7448 = vdwg.mxu0
        %7449 = vmatprep.subr.bf16.mxu0 %v3770
        %7450 = vmatpush1.bf16.msra.mxu0 %v3769
        %7451 = vmatprep.subr.bf16.mxu0 %v4026
        %7452 = vmatpush1.bf16.msra.mxu0 %v4025
        %7453 = vmatprep.subr.bf16.mxu0 0
        %7454 = vmatpush1.bf16.msra.mxu0 0
        %7455 = vmatprep.subr.bf16.mxu0 0
        %7456 = vmatpush1.bf16.msra.mxu0 0
        %7457 = vmatprep.subr.bf16.mxu0 0
        %7458 = vmatpush1.bf16.msra.mxu0 0
        %7459 = vmatprep.subr.bf16.mxu0 0
        %7460 = vmatpush1.bf16.msra.mxu0 0
        %7461 = vmatprep.subr.bf16.mxu0 0
        %7462 = vmatpush1.bf16.msra.mxu0 0
        %7463 = vmatprep.subr.bf16.mxu0 0
        %7464 = vmatpush1.bf16.msra.mxu0 0
        %7465 = vmatprep.subr.bf16.mxu0 0
        %7466 = vmatpush1.bf16.msra.mxu0 0
        %7467 = vmatprep.subr.bf16.mxu0 0
        %7468 = vmatpush1.bf16.msra.mxu0 0
        %7469 = vmatprep.subr.bf16.mxu0 0
        %7470 = vmatpush1.bf16.msra.mxu0 0
        %7471 = vmatprep.subr.bf16.mxu0 0
        %7472 = vmatpush1.bf16.msra.mxu0 0
        %7473 = vmatprep.subr.bf16.mxu0 0
        %7474 = vmatpush1.bf16.msra.mxu0 0
        %7475 = vmatprep.subr.bf16.mxu0 0
        %7476 = vmatpush1.bf16.msra.mxu0 0
        %7477 = vmatprep.subr.bf16.mxu0 0
        %7478 = vmatpush1.bf16.msra.mxu0 0
        %7479 = vmatprep.subr.bf16.mxu0 0
        %7480 = vmatpush1.bf16.msra.mxu0 0
        %7481 = vmatprep.mubr.bf16.mxu0 0
        %7482 = vmatmul.mubr.bf16.gmra.mrb[0].mxu0 %v4659
        %v7483 = vpop.f32.mrb[0].mxu0
        %v7484 = vadd.f32 %v1364, %v7483
        %v7485 = vpop.f32.mrb[0].mxu0
        %v7486 = vadd.f32 %v1368, %v7485
        %v7487 = vpop.f32.mrb[0].mxu0
        %v7488 = vpop.f32.mrb[0].mxu0
        %7489 = vdwg.mxu0
        %7490 = vmatprep.subr.bf16.mxu0 %v3772
        %7491 = vmatpush1.bf16.msra.mxu0 %v3771
        %7492 = vmatprep.subr.bf16.mxu0 %v4028
        %7493 = vmatpush1.bf16.msra.mxu0 %v4027
        %7494 = vmatprep.subr.bf16.mxu0 0
        %7495 = vmatpush1.bf16.msra.mxu0 0
        %7496 = vmatprep.subr.bf16.mxu0 0
        %7497 = vmatpush1.bf16.msra.mxu0 0
        %7498 = vmatprep.subr.bf16.mxu0 0
        %7499 = vmatpush1.bf16.msra.mxu0 0
        %7500 = vmatprep.subr.bf16.mxu0 0
        %7501 = vmatpush1.bf16.msra.mxu0 0
        %7502 = vmatprep.subr.bf16.mxu0 0
        %7503 = vmatpush1.bf16.msra.mxu0 0
        %7504 = vmatprep.subr.bf16.mxu0 0
        %7505 = vmatpush1.bf16.msra.mxu0 0
        %7506 = vmatprep.subr.bf16.mxu0 0
        %7507 = vmatpush1.bf16.msra.mxu0 0
        %7508 = vmatprep.subr.bf16.mxu0 0
        %7509 = vmatpush1.bf16.msra.mxu0 0
        %7510 = vmatprep.subr.bf16.mxu0 0
        %7511 = vmatpush1.bf16.msra.mxu0 0
        %7512 = vmatprep.subr.bf16.mxu0 0
        %7513 = vmatpush1.bf16.msra.mxu0 0
        %7514 = vmatprep.subr.bf16.mxu0 0
        %7515 = vmatpush1.bf16.msra.mxu0 0
        %7516 = vmatprep.subr.bf16.mxu0 0
        %7517 = vmatpush1.bf16.msra.mxu0 0
        %7518 = vmatprep.subr.bf16.mxu0 0
        %7519 = vmatpush1.bf16.msra.mxu0 0
        %7520 = vmatprep.subr.bf16.mxu0 0
        %7521 = vmatpush1.bf16.msra.mxu0 0
        %7522 = vmatprep.mubr.bf16.mxu0 0
        %7523 = vmatmul.mubr.bf16.gmra.mrb[0].mxu0 %v4659
        %v7524 = vpop.f32.mrb[0].mxu0
        %v7525 = vadd.f32 %v1372, %v7524
        %v7526 = vpop.f32.mrb[0].mxu0
        %v7527 = vadd.f32 %v1376, %v7526
        %v7528 = vpop.f32.mrb[0].mxu0
        %v7529 = vpop.f32.mrb[0].mxu0
        %7530 = vdwg.mxu0
        %7531 = vmatprep.subr.bf16.mxu0 %v3774
        %7532 = vmatpush1.bf16.msra.mxu0 %v3773
        %7533 = vmatprep.subr.bf16.mxu0 %v4030
        %7534 = vmatpush1.bf16.msra.mxu0 %v4029
        %7535 = vmatprep.subr.bf16.mxu0 0
        %7536 = vmatpush1.bf16.msra.mxu0 0
        %7537 = vmatprep.subr.bf16.mxu0 0
        %7538 = vmatpush1.bf16.msra.mxu0 0
        %7539 = vmatprep.subr.bf16.mxu0 0
        %7540 = vmatpush1.bf16.msra.mxu0 0
        %7541 = vmatprep.subr.bf16.mxu0 0
        %7542 = vmatpush1.bf16.msra.mxu0 0
        %7543 = vmatprep.subr.bf16.mxu0 0
        %7544 = vmatpush1.bf16.msra.mxu0 0
        %7545 = vmatprep.subr.bf16.mxu0 0
        %7546 = vmatpush1.bf16.msra.mxu0 0
        %7547 = vmatprep.subr.bf16.mxu0 0
        %7548 = vmatpush1.bf16.msra.mxu0 0
        %7549 = vmatprep.subr.bf16.mxu0 0
        %7550 = vmatpush1.bf16.msra.mxu0 0
        %7551 = vmatprep.subr.bf16.mxu0 0
        %7552 = vmatpush1.bf16.msra.mxu0 0
        %7553 = vmatprep.subr.bf16.mxu0 0
        %7554 = vmatpush1.bf16.msra.mxu0 0
        %7555 = vmatprep.subr.bf16.mxu0 0
        %7556 = vmatpush1.bf16.msra.mxu0 0
        %7557 = vmatprep.subr.bf16.mxu0 0
        %7558 = vmatpush1.bf16.msra.mxu0 0
        %7559 = vmatprep.subr.bf16.mxu0 0
        %7560 = vmatpush1.bf16.msra.mxu0 0
        %7561 = vmatprep.subr.bf16.mxu0 0
        %7562 = vmatpush1.bf16.msra.mxu0 0
        %7563 = vmatprep.mubr.bf16.mxu0 0
        %7564 = vmatmul.mubr.bf16.gmra.mrb[0].mxu0 %v4659
        %v7565 = vpop.f32.mrb[0].mxu0
        %v7566 = vadd.f32 %v1380, %v7565
        %v7567 = vpop.f32.mrb[0].mxu0
        %v7568 = vadd.f32 %v1384, %v7567
        %v7569 = vpop.f32.mrb[0].mxu0
        %v7570 = vpop.f32.mrb[0].mxu0
        %7571 = vdwg.mxu0
        %7572 = vmatprep.subr.bf16.mxu0 %v3776
        %7573 = vmatpush1.bf16.msra.mxu0 %v3775
        %7574 = vmatprep.subr.bf16.mxu0 %v4032
        %7575 = vmatpush1.bf16.msra.mxu0 %v4031
        %7576 = vmatprep.subr.bf16.mxu0 0
        %7577 = vmatpush1.bf16.msra.mxu0 0
        %7578 = vmatprep.subr.bf16.mxu0 0
        %7579 = vmatpush1.bf16.msra.mxu0 0
        %7580 = vmatprep.subr.bf16.mxu0 0
        %7581 = vmatpush1.bf16.msra.mxu0 0
        %7582 = vmatprep.subr.bf16.mxu0 0
        %7583 = vmatpush1.bf16.msra.mxu0 0
        %7584 = vmatprep.subr.bf16.mxu0 0
        %7585 = vmatpush1.bf16.msra.mxu0 0
        %7586 = vmatprep.subr.bf16.mxu0 0
        %7587 = vmatpush1.bf16.msra.mxu0 0
        %7588 = vmatprep.subr.bf16.mxu0 0
        %7589 = vmatpush1.bf16.msra.mxu0 0
        %7590 = vmatprep.subr.bf16.mxu0 0
        %7591 = vmatpush1.bf16.msra.mxu0 0
        %7592 = vmatprep.subr.bf16.mxu0 0
        %7593 = vmatpush1.bf16.msra.mxu0 0
        %7594 = vmatprep.subr.bf16.mxu0 0
        %7595 = vmatpush1.bf16.msra.mxu0 0
        %7596 = vmatprep.subr.bf16.mxu0 0
        %7597 = vmatpush1.bf16.msra.mxu0 0
        %7598 = vmatprep.subr.bf16.mxu0 0
        %7599 = vmatpush1.bf16.msra.mxu0 0
        %7600 = vmatprep.subr.bf16.mxu0 0
        %7601 = vmatpush1.bf16.msra.mxu0 0
        %7602 = vmatprep.subr.bf16.mxu0 0
        %7603 = vmatpush1.bf16.msra.mxu0 0
        %7604 = vmatprep.mubr.bf16.mxu0 0
        %7605 = vmatmul.mubr.bf16.gmra.mrb[0].mxu0 %v4659
        %v7606 = vpop.f32.mrb[0].mxu0
        %v7607 = vadd.f32 %v1388, %v7606
        %v7608 = vpop.f32.mrb[0].mxu0
        %v7609 = vadd.f32 %v1392, %v7608
        %v7610 = vpop.f32.mrb[0].mxu0
        %v7611 = vpop.f32.mrb[0].mxu0
        %7612 = vdwg.mxu0
        %7613 = vmatprep.subr.bf16.mxu0 %v3778
        %7614 = vmatpush1.bf16.msra.mxu0 %v3777
        %7615 = vmatprep.subr.bf16.mxu0 %v4034
        %7616 = vmatpush1.bf16.msra.mxu0 %v4033
        %7617 = vmatprep.subr.bf16.mxu0 0
        %7618 = vmatpush1.bf16.msra.mxu0 0
        %7619 = vmatprep.subr.bf16.mxu0 0
        %7620 = vmatpush1.bf16.msra.mxu0 0
        %7621 = vmatprep.subr.bf16.mxu0 0
        %7622 = vmatpush1.bf16.msra.mxu0 0
        %7623 = vmatprep.subr.bf16.mxu0 0
        %7624 = vmatpush1.bf16.msra.mxu0 0
        %7625 = vmatprep.subr.bf16.mxu0 0
        %7626 = vmatpush1.bf16.msra.mxu0 0
        %7627 = vmatprep.subr.bf16.mxu0 0
        %7628 = vmatpush1.bf16.msra.mxu0 0
        %7629 = vmatprep.subr.bf16.mxu0 0
        %7630 = vmatpush1.bf16.msra.mxu0 0
        %7631 = vmatprep.subr.bf16.mxu0 0
        %7632 = vmatpush1.bf16.msra.mxu0 0
        %7633 = vmatprep.subr.bf16.mxu0 0
        %7634 = vmatpush1.bf16.msra.mxu0 0
        %7635 = vmatprep.subr.bf16.mxu0 0
        %7636 = vmatpush1.bf16.msra.mxu0 0
        %7637 = vmatprep.subr.bf16.mxu0 0
        %7638 = vmatpush1.bf16.msra.mxu0 0
        %7639 = vmatprep.subr.bf16.mxu0 0
        %7640 = vmatpush1.bf16.msra.mxu0 0
        %7641 = vmatprep.subr.bf16.mxu0 0
        %7642 = vmatpush1.bf16.msra.mxu0 0
        %7643 = vmatprep.subr.bf16.mxu0 0
        %7644 = vmatpush1.bf16.msra.mxu0 0
        %7645 = vmatprep.mubr.bf16.mxu0 0
        %7646 = vmatmul.mubr.bf16.gmra.mrb[0].mxu0 %v4659
        %v7647 = vpop.f32.mrb[0].mxu0
        %v7648 = vadd.f32 %v1396, %v7647
        %v7649 = vpop.f32.mrb[0].mxu0
        %v7650 = vadd.f32 %v1400, %v7649
        %v7651 = vpop.f32.mrb[0].mxu0
        %v7652 = vpop.f32.mrb[0].mxu0
        %7653 = vdwg.mxu0
        %7654 = vmatprep.subr.bf16.mxu0 %v3780
        %7655 = vmatpush1.bf16.msra.mxu0 %v3779
        %7656 = vmatprep.subr.bf16.mxu0 %v4036
        %7657 = vmatpush1.bf16.msra.mxu0 %v4035
        %7658 = vmatprep.subr.bf16.mxu0 0
        %7659 = vmatpush1.bf16.msra.mxu0 0
        %7660 = vmatprep.subr.bf16.mxu0 0
        %7661 = vmatpush1.bf16.msra.mxu0 0
        %7662 = vmatprep.subr.bf16.mxu0 0
        %7663 = vmatpush1.bf16.msra.mxu0 0
        %7664 = vmatprep.subr.bf16.mxu0 0
        %7665 = vmatpush1.bf16.msra.mxu0 0
        %7666 = vmatprep.subr.bf16.mxu0 0
        %7667 = vmatpush1.bf16.msra.mxu0 0
        %7668 = vmatprep.subr.bf16.mxu0 0
        %7669 = vmatpush1.bf16.msra.mxu0 0
        %7670 = vmatprep.subr.bf16.mxu0 0
        %7671 = vmatpush1.bf16.msra.mxu0 0
        %7672 = vmatprep.subr.bf16.mxu0 0
        %7673 = vmatpush1.bf16.msra.mxu0 0
        %7674 = vmatprep.subr.bf16.mxu0 0
        %7675 = vmatpush1.bf16.msra.mxu0 0
        %7676 = vmatprep.subr.bf16.mxu0 0
        %7677 = vmatpush1.bf16.msra.mxu0 0
        %7678 = vmatprep.subr.bf16.mxu0 0
        %7679 = vmatpush1.bf16.msra.mxu0 0
        %7680 = vmatprep.subr.bf16.mxu0 0
        %7681 = vmatpush1.bf16.msra.mxu0 0
        %7682 = vmatprep.subr.bf16.mxu0 0
        %7683 = vmatpush1.bf16.msra.mxu0 0
        %7684 = vmatprep.subr.bf16.mxu0 0
        %7685 = vmatpush1.bf16.msra.mxu0 0
        %7686 = vmatprep.mubr.bf16.mxu0 0
        %7687 = vmatmul.mubr.bf16.gmra.mrb[0].mxu0 %v4659
        %v7688 = vpop.f32.mrb[0].mxu0
        %v7689 = vadd.f32 %v1404, %v7688
        %v7690 = vpop.f32.mrb[0].mxu0
        %v7691 = vadd.f32 %v1408, %v7690
        %v7692 = vpop.f32.mrb[0].mxu0
        %v7693 = vpop.f32.mrb[0].mxu0
        %7694 = vdwg.mxu0
        %7695 = vmatprep.subr.bf16.mxu0 %v3782
        %7696 = vmatpush1.bf16.msra.mxu0 %v3781
        %7697 = vmatprep.subr.bf16.mxu0 %v4038
        %7698 = vmatpush1.bf16.msra.mxu0 %v4037
        %7699 = vmatprep.subr.bf16.mxu0 0
        %7700 = vmatpush1.bf16.msra.mxu0 0
        %7701 = vmatprep.subr.bf16.mxu0 0
        %7702 = vmatpush1.bf16.msra.mxu0 0
        %7703 = vmatprep.subr.bf16.mxu0 0
        %7704 = vmatpush1.bf16.msra.mxu0 0
        %7705 = vmatprep.subr.bf16.mxu0 0
        %7706 = vmatpush1.bf16.msra.mxu0 0
        %7707 = vmatprep.subr.bf16.mxu0 0
        %7708 = vmatpush1.bf16.msra.mxu0 0
        %7709 = vmatprep.subr.bf16.mxu0 0
        %7710 = vmatpush1.bf16.msra.mxu0 0
        %7711 = vmatprep.subr.bf16.mxu0 0
        %7712 = vmatpush1.bf16.msra.mxu0 0
        %7713 = vmatprep.subr.bf16.mxu0 0
        %7714 = vmatpush1.bf16.msra.mxu0 0
        %7715 = vmatprep.subr.bf16.mxu0 0
        %7716 = vmatpush1.bf16.msra.mxu0 0
        %7717 = vmatprep.subr.bf16.mxu0 0
        %7718 = vmatpush1.bf16.msra.mxu0 0
        %7719 = vmatprep.subr.bf16.mxu0 0
        %7720 = vmatpush1.bf16.msra.mxu0 0
        %7721 = vmatprep.subr.bf16.mxu0 0
        %7722 = vmatpush1.bf16.msra.mxu0 0
        %7723 = vmatprep.subr.bf16.mxu0 0
        %7724 = vmatpush1.bf16.msra.mxu0 0
        %7725 = vmatprep.subr.bf16.mxu0 0
        %7726 = vmatpush1.bf16.msra.mxu0 0
        %7727 = vmatprep.mubr.bf16.mxu0 0
        %7728 = vmatmul.mubr.bf16.gmra.mrb[0].mxu0 %v4659
        %v7729 = vpop.f32.mrb[0].mxu0
        %v7730 = vadd.f32 %v1412, %v7729
        %v7731 = vpop.f32.mrb[0].mxu0
        %v7732 = vadd.f32 %v1416, %v7731
        %v7733 = vpop.f32.mrb[0].mxu0
        %v7734 = vpop.f32.mrb[0].mxu0
        %7735 = vdwg.mxu0
        %7736 = vmatprep.subr.bf16.mxu0 %v3784
        %7737 = vmatpush1.bf16.msra.mxu0 %v3783
        %7738 = vmatprep.subr.bf16.mxu0 %v4040
        %7739 = vmatpush1.bf16.msra.mxu0 %v4039
        %7740 = vmatprep.subr.bf16.mxu0 0
        %7741 = vmatpush1.bf16.msra.mxu0 0
        %7742 = vmatprep.subr.bf16.mxu0 0
        %7743 = vmatpush1.bf16.msra.mxu0 0
        %7744 = vmatprep.subr.bf16.mxu0 0
        %7745 = vmatpush1.bf16.msra.mxu0 0
        %7746 = vmatprep.subr.bf16.mxu0 0
        %7747 = vmatpush1.bf16.msra.mxu0 0
        %7748 = vmatprep.subr.bf16.mxu0 0
        %7749 = vmatpush1.bf16.msra.mxu0 0
        %7750 = vmatprep.subr.bf16.mxu0 0
        %7751 = vmatpush1.bf16.msra.mxu0 0
        %7752 = vmatprep.subr.bf16.mxu0 0
        %7753 = vmatpush1.bf16.msra.mxu0 0
        %7754 = vmatprep.subr.bf16.mxu0 0
        %7755 = vmatpush1.bf16.msra.mxu0 0
        %7756 = vmatprep.subr.bf16.mxu0 0
        %7757 = vmatpush1.bf16.msra.mxu0 0
        %7758 = vmatprep.subr.bf16.mxu0 0
        %7759 = vmatpush1.bf16.msra.mxu0 0
        %7760 = vmatprep.subr.bf16.mxu0 0
        %7761 = vmatpush1.bf16.msra.mxu0 0
        %7762 = vmatprep.subr.bf16.mxu0 0
        %7763 = vmatpush1.bf16.msra.mxu0 0
        %7764 = vmatprep.subr.bf16.mxu0 0
        %7765 = vmatpush1.bf16.msra.mxu0 0
        %7766 = vmatprep.subr.bf16.mxu0 0
        %7767 = vmatpush1.bf16.msra.mxu0 0
        %7768 = vmatprep.mubr.bf16.mxu0 0
        %7769 = vmatmul.mubr.bf16.gmra.mrb[0].mxu0 %v4659
        %v7770 = vpop.f32.mrb[0].mxu0
        %v7771 = vadd.f32 %v1420, %v7770
        %v7772 = vpop.f32.mrb[0].mxu0
        %v7773 = vadd.f32 %v1424, %v7772
        %v7774 = vpop.f32.mrb[0].mxu0
        %v7775 = vpop.f32.mrb[0].mxu0
        %7776 = vdwg.mxu0
        %7777 = vmatprep.subr.bf16.mxu0 %v3786
        %7778 = vmatpush1.bf16.msra.mxu0 %v3785
        %7779 = vmatprep.subr.bf16.mxu0 %v4042
        %7780 = vmatpush1.bf16.msra.mxu0 %v4041
        %7781 = vmatprep.subr.bf16.mxu0 0
        %7782 = vmatpush1.bf16.msra.mxu0 0
        %7783 = vmatprep.subr.bf16.mxu0 0
        %7784 = vmatpush1.bf16.msra.mxu0 0
        %7785 = vmatprep.subr.bf16.mxu0 0
        %7786 = vmatpush1.bf16.msra.mxu0 0
        %7787 = vmatprep.subr.bf16.mxu0 0
        %7788 = vmatpush1.bf16.msra.mxu0 0
        %7789 = vmatprep.subr.bf16.mxu0 0
        %7790 = vmatpush1.bf16.msra.mxu0 0
        %7791 = vmatprep.subr.bf16.mxu0 0
        %7792 = vmatpush1.bf16.msra.mxu0 0
        %7793 = vmatprep.subr.bf16.mxu0 0
        %7794 = vmatpush1.bf16.msra.mxu0 0
        %7795 = vmatprep.subr.bf16.mxu0 0
        %7796 = vmatpush1.bf16.msra.mxu0 0
        %7797 = vmatprep.subr.bf16.mxu0 0
        %7798 = vmatpush1.bf16.msra.mxu0 0
        %7799 = vmatprep.subr.bf16.mxu0 0
        %7800 = vmatpush1.bf16.msra.mxu0 0
        %7801 = vmatprep.subr.bf16.mxu0 0
        %7802 = vmatpush1.bf16.msra.mxu0 0
        %7803 = vmatprep.subr.bf16.mxu0 0
        %7804 = vmatpush1.bf16.msra.mxu0 0
        %7805 = vmatprep.subr.bf16.mxu0 0
        %7806 = vmatpush1.bf16.msra.mxu0 0
        %7807 = vmatprep.subr.bf16.mxu0 0
        %7808 = vmatpush1.bf16.msra.mxu0 0
        %7809 = vmatprep.mubr.bf16.mxu0 0
        %7810 = vmatmul.mubr.bf16.gmra.mrb[0].mxu0 %v4659
        %v7811 = vpop.f32.mrb[0].mxu0
        %v7812 = vadd.f32 %v1428, %v7811
        %v7813 = vpop.f32.mrb[0].mxu0
        %v7814 = vadd.f32 %v1432, %v7813
        %v7815 = vpop.f32.mrb[0].mxu0
        %v7816 = vpop.f32.mrb[0].mxu0
        %7817 = vdwg.mxu0
        %7818 = vmatprep.subr.bf16.mxu0 %v3788
        %7819 = vmatpush1.bf16.msra.mxu0 %v3787
        %7820 = vmatprep.subr.bf16.mxu0 %v4044
        %7821 = vmatpush1.bf16.msra.mxu0 %v4043
        %7822 = vmatprep.subr.bf16.mxu0 0
        %7823 = vmatpush1.bf16.msra.mxu0 0
        %7824 = vmatprep.subr.bf16.mxu0 0
        %7825 = vmatpush1.bf16.msra.mxu0 0
        %7826 = vmatprep.subr.bf16.mxu0 0
        %7827 = vmatpush1.bf16.msra.mxu0 0
        %7828 = vmatprep.subr.bf16.mxu0 0
        %7829 = vmatpush1.bf16.msra.mxu0 0
        %7830 = vmatprep.subr.bf16.mxu0 0
        %7831 = vmatpush1.bf16.msra.mxu0 0
        %7832 = vmatprep.subr.bf16.mxu0 0
        %7833 = vmatpush1.bf16.msra.mxu0 0
        %7834 = vmatprep.subr.bf16.mxu0 0
        %7835 = vmatpush1.bf16.msra.mxu0 0
        %7836 = vmatprep.subr.bf16.mxu0 0
        %7837 = vmatpush1.bf16.msra.mxu0 0
        %7838 = vmatprep.subr.bf16.mxu0 0
        %7839 = vmatpush1.bf16.msra.mxu0 0
        %7840 = vmatprep.subr.bf16.mxu0 0
        %7841 = vmatpush1.bf16.msra.mxu0 0
        %7842 = vmatprep.subr.bf16.mxu0 0
        %7843 = vmatpush1.bf16.msra.mxu0 0
        %7844 = vmatprep.subr.bf16.mxu0 0
        %7845 = vmatpush1.bf16.msra.mxu0 0
        %7846 = vmatprep.subr.bf16.mxu0 0
        %7847 = vmatpush1.bf16.msra.mxu0 0
        %7848 = vmatprep.subr.bf16.mxu0 0
        %7849 = vmatpush1.bf16.msra.mxu0 0
        %7850 = vmatprep.mubr.bf16.mxu0 0
        %7851 = vmatmul.mubr.bf16.gmra.mrb[0].mxu0 %v4659
        %v7852 = vpop.f32.mrb[0].mxu0
        %v7853 = vadd.f32 %v1436, %v7852
        %v7854 = vpop.f32.mrb[0].mxu0
        %v7855 = vadd.f32 %v1440, %v7854
        %v7856 = vpop.f32.mrb[0].mxu0
        %v7857 = vpop.f32.mrb[0].mxu0
        %7858 = vdwg.mxu0
        %7859 = vmatprep.subr.bf16.mxu0 %v3790
        %7860 = vmatpush1.bf16.msra.mxu0 %v3789
        %7861 = vmatprep.subr.bf16.mxu0 %v4046
        %7862 = vmatpush1.bf16.msra.mxu0 %v4045
        %7863 = vmatprep.subr.bf16.mxu0 0
        %7864 = vmatpush1.bf16.msra.mxu0 0
        %7865 = vmatprep.subr.bf16.mxu0 0
        %7866 = vmatpush1.bf16.msra.mxu0 0
        %7867 = vmatprep.subr.bf16.mxu0 0
        %7868 = vmatpush1.bf16.msra.mxu0 0
        %7869 = vmatprep.subr.bf16.mxu0 0
        %7870 = vmatpush1.bf16.msra.mxu0 0
        %7871 = vmatprep.subr.bf16.mxu0 0
        %7872 = vmatpush1.bf16.msra.mxu0 0
        %7873 = vmatprep.subr.bf16.mxu0 0
        %7874 = vmatpush1.bf16.msra.mxu0 0
        %7875 = vmatprep.subr.bf16.mxu0 0
        %7876 = vmatpush1.bf16.msra.mxu0 0
        %7877 = vmatprep.subr.bf16.mxu0 0
        %7878 = vmatpush1.bf16.msra.mxu0 0
        %7879 = vmatprep.subr.bf16.mxu0 0
        %7880 = vmatpush1.bf16.msra.mxu0 0
        %7881 = vmatprep.subr.bf16.mxu0 0
        %7882 = vmatpush1.bf16.msra.mxu0 0
        %7883 = vmatprep.subr.bf16.mxu0 0
        %7884 = vmatpush1.bf16.msra.mxu0 0
        %7885 = vmatprep.subr.bf16.mxu0 0
        %7886 = vmatpush1.bf16.msra.mxu0 0
        %7887 = vmatprep.subr.bf16.mxu0 0
        %7888 = vmatpush1.bf16.msra.mxu0 0
        %7889 = vmatprep.subr.bf16.mxu0 0
        %7890 = vmatpush1.bf16.msra.mxu0 0
        %7891 = vmatprep.mubr.bf16.mxu0 0
        %7892 = vmatmul.mubr.bf16.gmra.mrb[0].mxu0 %v4659
        %v7893 = vpop.f32.mrb[0].mxu0
        %v7894 = vadd.f32 %v1444, %v7893
        %v7895 = vpop.f32.mrb[0].mxu0
        %v7896 = vadd.f32 %v1448, %v7895
        %v7897 = vpop.f32.mrb[0].mxu0
        %v7898 = vpop.f32.mrb[0].mxu0
        %7899 = vdwg.mxu0
        %7900 = vmatprep.subr.bf16.mxu0 %v3792
        %7901 = vmatpush1.bf16.msra.mxu0 %v3791
        %7902 = vmatprep.subr.bf16.mxu0 %v4048
        %7903 = vmatpush1.bf16.msra.mxu0 %v4047
        %7904 = vmatprep.subr.bf16.mxu0 0
        %7905 = vmatpush1.bf16.msra.mxu0 0
        %7906 = vmatprep.subr.bf16.mxu0 0
        %7907 = vmatpush1.bf16.msra.mxu0 0
        %7908 = vmatprep.subr.bf16.mxu0 0
        %7909 = vmatpush1.bf16.msra.mxu0 0
        %7910 = vmatprep.subr.bf16.mxu0 0
        %7911 = vmatpush1.bf16.msra.mxu0 0
        %7912 = vmatprep.subr.bf16.mxu0 0
        %7913 = vmatpush1.bf16.msra.mxu0 0
        %7914 = vmatprep.subr.bf16.mxu0 0
        %7915 = vmatpush1.bf16.msra.mxu0 0
        %7916 = vmatprep.subr.bf16.mxu0 0
        %7917 = vmatpush1.bf16.msra.mxu0 0
        %7918 = vmatprep.subr.bf16.mxu0 0
        %7919 = vmatpush1.bf16.msra.mxu0 0
        %7920 = vmatprep.subr.bf16.mxu0 0
        %7921 = vmatpush1.bf16.msra.mxu0 0
        %7922 = vmatprep.subr.bf16.mxu0 0
        %7923 = vmatpush1.bf16.msra.mxu0 0
        %7924 = vmatprep.subr.bf16.mxu0 0
        %7925 = vmatpush1.bf16.msra.mxu0 0
        %7926 = vmatprep.subr.bf16.mxu0 0
        %7927 = vmatpush1.bf16.msra.mxu0 0
        %7928 = vmatprep.subr.bf16.mxu0 0
        %7929 = vmatpush1.bf16.msra.mxu0 0
        %7930 = vmatprep.subr.bf16.mxu0 0
        %7931 = vmatpush1.bf16.msra.mxu0 0
        %7932 = vmatprep.mubr.bf16.mxu0 0
        %7933 = vmatmul.mubr.bf16.gmra.mrb[0].mxu0 %v4659
        %v7934 = vpop.f32.mrb[0].mxu0
        %v7935 = vadd.f32 %v1452, %v7934
        %v7936 = vpop.f32.mrb[0].mxu0
        %v7937 = vadd.f32 %v1456, %v7936
        %v7938 = vpop.f32.mrb[0].mxu0
        %v7939 = vpop.f32.mrb[0].mxu0
        %7940 = vdwg.mxu0
        %7941 = vmatprep.subr.bf16.mxu0 %v3794
        %7942 = vmatpush1.bf16.msra.mxu0 %v3793
        %7943 = vmatprep.subr.bf16.mxu0 %v4050
        %7944 = vmatpush1.bf16.msra.mxu0 %v4049
        %7945 = vmatprep.subr.bf16.mxu0 0
        %7946 = vmatpush1.bf16.msra.mxu0 0
        %7947 = vmatprep.subr.bf16.mxu0 0
        %7948 = vmatpush1.bf16.msra.mxu0 0
        %7949 = vmatprep.subr.bf16.mxu0 0
        %7950 = vmatpush1.bf16.msra.mxu0 0
        %7951 = vmatprep.subr.bf16.mxu0 0
        %7952 = vmatpush1.bf16.msra.mxu0 0
        %7953 = vmatprep.subr.bf16.mxu0 0
        %7954 = vmatpush1.bf16.msra.mxu0 0
        %7955 = vmatprep.subr.bf16.mxu0 0
        %7956 = vmatpush1.bf16.msra.mxu0 0
        %7957 = vmatprep.subr.bf16.mxu0 0
        %7958 = vmatpush1.bf16.msra.mxu0 0
        %7959 = vmatprep.subr.bf16.mxu0 0
        %7960 = vmatpush1.bf16.msra.mxu0 0
        %7961 = vmatprep.subr.bf16.mxu0 0
        %7962 = vmatpush1.bf16.msra.mxu0 0
        %7963 = vmatprep.subr.bf16.mxu0 0
        %7964 = vmatpush1.bf16.msra.mxu0 0
        %7965 = vmatprep.subr.bf16.mxu0 0
        %7966 = vmatpush1.bf16.msra.mxu0 0
        %7967 = vmatprep.subr.bf16.mxu0 0
        %7968 = vmatpush1.bf16.msra.mxu0 0
        %7969 = vmatprep.subr.bf16.mxu0 0
        %7970 = vmatpush1.bf16.msra.mxu0 0
        %7971 = vmatprep.subr.bf16.mxu0 0
        %7972 = vmatpush1.bf16.msra.mxu0 0
        %7973 = vmatprep.mubr.bf16.mxu0 0
        %7974 = vmatmul.mubr.bf16.gmra.mrb[0].mxu0 %v4659
        %v7975 = vpop.f32.mrb[0].mxu0
        %v7976 = vadd.f32 %v1460, %v7975
        %v7977 = vpop.f32.mrb[0].mxu0
        %v7978 = vadd.f32 %v1464, %v7977
        %v7979 = vpop.f32.mrb[0].mxu0
        %v7980 = vpop.f32.mrb[0].mxu0
        %7981 = vdwg.mxu0
        %7982 = vmatprep.subr.bf16.mxu0 %v3796
        %7983 = vmatpush1.bf16.msra.mxu0 %v3795
        %7984 = vmatprep.subr.bf16.mxu0 %v4052
        %7985 = vmatpush1.bf16.msra.mxu0 %v4051
        %7986 = vmatprep.subr.bf16.mxu0 0
        %7987 = vmatpush1.bf16.msra.mxu0 0
        %7988 = vmatprep.subr.bf16.mxu0 0
        %7989 = vmatpush1.bf16.msra.mxu0 0
        %7990 = vmatprep.subr.bf16.mxu0 0
        %7991 = vmatpush1.bf16.msra.mxu0 0
        %7992 = vmatprep.subr.bf16.mxu0 0
        %7993 = vmatpush1.bf16.msra.mxu0 0
        %7994 = vmatprep.subr.bf16.mxu0 0
        %7995 = vmatpush1.bf16.msra.mxu0 0
        %7996 = vmatprep.subr.bf16.mxu0 0
        %7997 = vmatpush1.bf16.msra.mxu0 0
        %7998 = vmatprep.subr.bf16.mxu0 0
        %7999 = vmatpush1.bf16.msra.mxu0 0
        %8000 = vmatprep.subr.bf16.mxu0 0
        %8001 = vmatpush1.bf16.msra.mxu0 0
        %8002 = vmatprep.subr.bf16.mxu0 0
        %8003 = vmatpush1.bf16.msra.mxu0 0
        %8004 = vmatprep.subr.bf16.mxu0 0
        %8005 = vmatpush1.bf16.msra.mxu0 0
        %8006 = vmatprep.subr.bf16.mxu0 0
        %8007 = vmatpush1.bf16.msra.mxu0 0
        %8008 = vmatprep.subr.bf16.mxu0 0
        %8009 = vmatpush1.bf16.msra.mxu0 0
        %8010 = vmatprep.subr.bf16.mxu0 0
        %8011 = vmatpush1.bf16.msra.mxu0 0
        %8012 = vmatprep.subr.bf16.mxu0 0
        %8013 = vmatpush1.bf16.msra.mxu0 0
        %8014 = vmatprep.mubr.bf16.mxu0 0
        %8015 = vmatmul.mubr.bf16.gmra.mrb[0].mxu0 %v4659
        %v8016 = vpop.f32.mrb[0].mxu0
        %v8017 = vadd.f32 %v1468, %v8016
        %v8018 = vpop.f32.mrb[0].mxu0
        %v8019 = vadd.f32 %v1472, %v8018
        %v8020 = vpop.f32.mrb[0].mxu0
        %v8021 = vpop.f32.mrb[0].mxu0
        %8022 = vdwg.mxu0
        %8023 = vmatprep.subr.bf16.mxu0 %v3798
        %8024 = vmatpush1.bf16.msra.mxu0 %v3797
        %8025 = vmatprep.subr.bf16.mxu0 %v4054
        %8026 = vmatpush1.bf16.msra.mxu0 %v4053
        %8027 = vmatprep.subr.bf16.mxu0 0
        %8028 = vmatpush1.bf16.msra.mxu0 0
        %8029 = vmatprep.subr.bf16.mxu0 0
        %8030 = vmatpush1.bf16.msra.mxu0 0
        %8031 = vmatprep.subr.bf16.mxu0 0
        %8032 = vmatpush1.bf16.msra.mxu0 0
        %8033 = vmatprep.subr.bf16.mxu0 0
        %8034 = vmatpush1.bf16.msra.mxu0 0
        %8035 = vmatprep.subr.bf16.mxu0 0
        %8036 = vmatpush1.bf16.msra.mxu0 0
        %8037 = vmatprep.subr.bf16.mxu0 0
        %8038 = vmatpush1.bf16.msra.mxu0 0
        %8039 = vmatprep.subr.bf16.mxu0 0
        %8040 = vmatpush1.bf16.msra.mxu0 0
        %8041 = vmatprep.subr.bf16.mxu0 0
        %8042 = vmatpush1.bf16.msra.mxu0 0
        %8043 = vmatprep.subr.bf16.mxu0 0
        %8044 = vmatpush1.bf16.msra.mxu0 0
        %8045 = vmatprep.subr.bf16.mxu0 0
        %8046 = vmatpush1.bf16.msra.mxu0 0
        %8047 = vmatprep.subr.bf16.mxu0 0
        %8048 = vmatpush1.bf16.msra.mxu0 0
        %8049 = vmatprep.subr.bf16.mxu0 0
        %8050 = vmatpush1.bf16.msra.mxu0 0
        %8051 = vmatprep.subr.bf16.mxu0 0
        %8052 = vmatpush1.bf16.msra.mxu0 0
        %8053 = vmatprep.subr.bf16.mxu0 0
        %8054 = vmatpush1.bf16.msra.mxu0 0
        %8055 = vmatprep.mubr.bf16.mxu0 0
        %8056 = vmatmul.mubr.bf16.gmra.mrb[0].mxu0 %v4659
        %v8057 = vpop.f32.mrb[0].mxu0
        %v8058 = vadd.f32 %v1476, %v8057
        %v8059 = vpop.f32.mrb[0].mxu0
        %v8060 = vadd.f32 %v1480, %v8059
        %v8061 = vpop.f32.mrb[0].mxu0
        %v8062 = vpop.f32.mrb[0].mxu0
        %8063 = vdwg.mxu0
        %8064 = vmatprep.subr.bf16.mxu0 %v3800
        %8065 = vmatpush1.bf16.msra.mxu0 %v3799
        %8066 = vmatprep.subr.bf16.mxu0 %v4056
        %8067 = vmatpush1.bf16.msra.mxu0 %v4055
        %8068 = vmatprep.subr.bf16.mxu0 0
        %8069 = vmatpush1.bf16.msra.mxu0 0
        %8070 = vmatprep.subr.bf16.mxu0 0
        %8071 = vmatpush1.bf16.msra.mxu0 0
        %8072 = vmatprep.subr.bf16.mxu0 0
        %8073 = vmatpush1.bf16.msra.mxu0 0
        %8074 = vmatprep.subr.bf16.mxu0 0
        %8075 = vmatpush1.bf16.msra.mxu0 0
        %8076 = vmatprep.subr.bf16.mxu0 0
        %8077 = vmatpush1.bf16.msra.mxu0 0
        %8078 = vmatprep.subr.bf16.mxu0 0
        %8079 = vmatpush1.bf16.msra.mxu0 0
        %8080 = vmatprep.subr.bf16.mxu0 0
        %8081 = vmatpush1.bf16.msra.mxu0 0
        %8082 = vmatprep.subr.bf16.mxu0 0
        %8083 = vmatpush1.bf16.msra.mxu0 0
        %8084 = vmatprep.subr.bf16.mxu0 0
        %8085 = vmatpush1.bf16.msra.mxu0 0
        %8086 = vmatprep.subr.bf16.mxu0 0
        %8087 = vmatpush1.bf16.msra.mxu0 0
        %8088 = vmatprep.subr.bf16.mxu0 0
        %8089 = vmatpush1.bf16.msra.mxu0 0
        %8090 = vmatprep.subr.bf16.mxu0 0
        %8091 = vmatpush1.bf16.msra.mxu0 0
        %8092 = vmatprep.subr.bf16.mxu0 0
        %8093 = vmatpush1.bf16.msra.mxu0 0
        %8094 = vmatprep.subr.bf16.mxu0 0
        %8095 = vmatpush1.bf16.msra.mxu0 0
        %8096 = vmatprep.mubr.bf16.mxu0 0
        %8097 = vmatmul.mubr.bf16.gmra.mrb[0].mxu0 %v4659
        %v8098 = vpop.f32.mrb[0].mxu0
        %v8099 = vadd.f32 %v1484, %v8098
        %v8100 = vpop.f32.mrb[0].mxu0
        %v8101 = vadd.f32 %v1488, %v8100
        %v8102 = vpop.f32.mrb[0].mxu0
        %v8103 = vpop.f32.mrb[0].mxu0
        %8104 = vdwg.mxu0
        %8105 = vmatprep.subr.bf16.mxu0 %v3802
        %8106 = vmatpush1.bf16.msra.mxu0 %v3801
        %8107 = vmatprep.subr.bf16.mxu0 %v4058
        %8108 = vmatpush1.bf16.msra.mxu0 %v4057
        %8109 = vmatprep.subr.bf16.mxu0 0
        %8110 = vmatpush1.bf16.msra.mxu0 0
        %8111 = vmatprep.subr.bf16.mxu0 0
        %8112 = vmatpush1.bf16.msra.mxu0 0
        %8113 = vmatprep.subr.bf16.mxu0 0
        %8114 = vmatpush1.bf16.msra.mxu0 0
        %8115 = vmatprep.subr.bf16.mxu0 0
        %8116 = vmatpush1.bf16.msra.mxu0 0
        %8117 = vmatprep.subr.bf16.mxu0 0
        %8118 = vmatpush1.bf16.msra.mxu0 0
        %8119 = vmatprep.subr.bf16.mxu0 0
        %8120 = vmatpush1.bf16.msra.mxu0 0
        %8121 = vmatprep.subr.bf16.mxu0 0
        %8122 = vmatpush1.bf16.msra.mxu0 0
        %8123 = vmatprep.subr.bf16.mxu0 0
        %8124 = vmatpush1.bf16.msra.mxu0 0
        %8125 = vmatprep.subr.bf16.mxu0 0
        %8126 = vmatpush1.bf16.msra.mxu0 0
        %8127 = vmatprep.subr.bf16.mxu0 0
        %8128 = vmatpush1.bf16.msra.mxu0 0
        %8129 = vmatprep.subr.bf16.mxu0 0
        %8130 = vmatpush1.bf16.msra.mxu0 0
        %8131 = vmatprep.subr.bf16.mxu0 0
        %8132 = vmatpush1.bf16.msra.mxu0 0
        %8133 = vmatprep.subr.bf16.mxu0 0
        %8134 = vmatpush1.bf16.msra.mxu0 0
        %8135 = vmatprep.subr.bf16.mxu0 0
        %8136 = vmatpush1.bf16.msra.mxu0 0
        %8137 = vmatprep.mubr.bf16.mxu0 0
        %8138 = vmatmul.mubr.bf16.gmra.mrb[0].mxu0 %v4659
        %v8139 = vpop.f32.mrb[0].mxu0
        %v8140 = vadd.f32 %v1492, %v8139
        %v8141 = vpop.f32.mrb[0].mxu0
        %v8142 = vadd.f32 %v1496, %v8141
        %v8143 = vpop.f32.mrb[0].mxu0
        %v8144 = vpop.f32.mrb[0].mxu0
        %8145 = vdwg.mxu0
        %8146 = vmatprep.subr.bf16.mxu0 %v3804
        %8147 = vmatpush1.bf16.msra.mxu0 %v3803
        %8148 = vmatprep.subr.bf16.mxu0 %v4060
        %8149 = vmatpush1.bf16.msra.mxu0 %v4059
        %8150 = vmatprep.subr.bf16.mxu0 0
        %8151 = vmatpush1.bf16.msra.mxu0 0
        %8152 = vmatprep.subr.bf16.mxu0 0
        %8153 = vmatpush1.bf16.msra.mxu0 0
        %8154 = vmatprep.subr.bf16.mxu0 0
        %8155 = vmatpush1.bf16.msra.mxu0 0
        %8156 = vmatprep.subr.bf16.mxu0 0
        %8157 = vmatpush1.bf16.msra.mxu0 0
        %8158 = vmatprep.subr.bf16.mxu0 0
        %8159 = vmatpush1.bf16.msra.mxu0 0
        %8160 = vmatprep.subr.bf16.mxu0 0
        %8161 = vmatpush1.bf16.msra.mxu0 0
        %8162 = vmatprep.subr.bf16.mxu0 0
        %8163 = vmatpush1.bf16.msra.mxu0 0
        %8164 = vmatprep.subr.bf16.mxu0 0
        %8165 = vmatpush1.bf16.msra.mxu0 0
        %8166 = vmatprep.subr.bf16.mxu0 0
        %8167 = vmatpush1.bf16.msra.mxu0 0
        %8168 = vmatprep.subr.bf16.mxu0 0
        %8169 = vmatpush1.bf16.msra.mxu0 0
        %8170 = vmatprep.subr.bf16.mxu0 0
        %8171 = vmatpush1.bf16.msra.mxu0 0
        %8172 = vmatprep.subr.bf16.mxu0 0
        %8173 = vmatpush1.bf16.msra.mxu0 0
        %8174 = vmatprep.subr.bf16.mxu0 0
        %8175 = vmatpush1.bf16.msra.mxu0 0
        %8176 = vmatprep.subr.bf16.mxu0 0
        %8177 = vmatpush1.bf16.msra.mxu0 0
        %8178 = vmatprep.mubr.bf16.mxu0 0
        %8179 = vmatmul.mubr.bf16.gmra.mrb[0].mxu0 %v4659
        %v8180 = vpop.f32.mrb[0].mxu0
        %v8181 = vadd.f32 %v1500, %v8180
        %v8182 = vpop.f32.mrb[0].mxu0
        %v8183 = vadd.f32 %v1504, %v8182
        %v8184 = vpop.f32.mrb[0].mxu0
        %v8185 = vpop.f32.mrb[0].mxu0
        %8186 = vdwg.mxu0
        %8187 = vmatprep.subr.bf16.mxu0 %v3806
        %8188 = vmatpush1.bf16.msra.mxu0 %v3805
        %8189 = vmatprep.subr.bf16.mxu0 %v4062
        %8190 = vmatpush1.bf16.msra.mxu0 %v4061
        %8191 = vmatprep.subr.bf16.mxu0 0
        %8192 = vmatpush1.bf16.msra.mxu0 0
        %8193 = vmatprep.subr.bf16.mxu0 0
        %8194 = vmatpush1.bf16.msra.mxu0 0
        %8195 = vmatprep.subr.bf16.mxu0 0
        %8196 = vmatpush1.bf16.msra.mxu0 0
        %8197 = vmatprep.subr.bf16.mxu0 0
        %8198 = vmatpush1.bf16.msra.mxu0 0
        %8199 = vmatprep.subr.bf16.mxu0 0
        %8200 = vmatpush1.bf16.msra.mxu0 0
        %8201 = vmatprep.subr.bf16.mxu0 0
        %8202 = vmatpush1.bf16.msra.mxu0 0
        %8203 = vmatprep.subr.bf16.mxu0 0
        %8204 = vmatpush1.bf16.msra.mxu0 0
        %8205 = vmatprep.subr.bf16.mxu0 0
        %8206 = vmatpush1.bf16.msra.mxu0 0
        %8207 = vmatprep.subr.bf16.mxu0 0
        %8208 = vmatpush1.bf16.msra.mxu0 0
        %8209 = vmatprep.subr.bf16.mxu0 0
        %8210 = vmatpush1.bf16.msra.mxu0 0
        %8211 = vmatprep.subr.bf16.mxu0 0
        %8212 = vmatpush1.bf16.msra.mxu0 0
        %8213 = vmatprep.subr.bf16.mxu0 0
        %8214 = vmatpush1.bf16.msra.mxu0 0
        %8215 = vmatprep.subr.bf16.mxu0 0
        %8216 = vmatpush1.bf16.msra.mxu0 0
        %8217 = vmatprep.subr.bf16.mxu0 0
        %8218 = vmatpush1.bf16.msra.mxu0 0
        %8219 = vmatprep.mubr.bf16.mxu0 0
        %8220 = vmatmul.mubr.bf16.gmra.mrb[0].mxu0 %v4659
        %v8221 = vpop.f32.mrb[0].mxu0
        %v8222 = vadd.f32 %v1508, %v8221
        %v8223 = vpop.f32.mrb[0].mxu0
        %v8224 = vadd.f32 %v1512, %v8223
        %v8225 = vpop.f32.mrb[0].mxu0
        %v8226 = vpop.f32.mrb[0].mxu0
        %8227 = vdwg.mxu0
        %8228 = vmatprep.subr.bf16.mxu0 %v3808
        %8229 = vmatpush1.bf16.msra.mxu0 %v3807
        %8230 = vmatprep.subr.bf16.mxu0 %v4064
        %8231 = vmatpush1.bf16.msra.mxu0 %v4063
        %8232 = vmatprep.subr.bf16.mxu0 0
        %8233 = vmatpush1.bf16.msra.mxu0 0
        %8234 = vmatprep.subr.bf16.mxu0 0
        %8235 = vmatpush1.bf16.msra.mxu0 0
        %8236 = vmatprep.subr.bf16.mxu0 0
        %8237 = vmatpush1.bf16.msra.mxu0 0
        %8238 = vmatprep.subr.bf16.mxu0 0
        %8239 = vmatpush1.bf16.msra.mxu0 0
        %8240 = vmatprep.subr.bf16.mxu0 0
        %8241 = vmatpush1.bf16.msra.mxu0 0
        %8242 = vmatprep.subr.bf16.mxu0 0
        %8243 = vmatpush1.bf16.msra.mxu0 0
        %8244 = vmatprep.subr.bf16.mxu0 0
        %8245 = vmatpush1.bf16.msra.mxu0 0
        %8246 = vmatprep.subr.bf16.mxu0 0
        %8247 = vmatpush1.bf16.msra.mxu0 0
        %8248 = vmatprep.subr.bf16.mxu0 0
        %8249 = vmatpush1.bf16.msra.mxu0 0
        %8250 = vmatprep.subr.bf16.mxu0 0
        %8251 = vmatpush1.bf16.msra.mxu0 0
        %8252 = vmatprep.subr.bf16.mxu0 0
        %8253 = vmatpush1.bf16.msra.mxu0 0
        %8254 = vmatprep.subr.bf16.mxu0 0
        %8255 = vmatpush1.bf16.msra.mxu0 0
        %8256 = vmatprep.subr.bf16.mxu0 0
        %8257 = vmatpush1.bf16.msra.mxu0 0
        %8258 = vmatprep.subr.bf16.mxu0 0
        %8259 = vmatpush1.bf16.msra.mxu0 0
        %8260 = vmatprep.mubr.bf16.mxu0 0
        %8261 = vmatmul.mubr.bf16.gmra.mrb[0].mxu0 %v4659
        %v8262 = vpop.f32.mrb[0].mxu0
        %v8263 = vadd.f32 %v1516, %v8262
        %v8264 = vpop.f32.mrb[0].mxu0
        %v8265 = vadd.f32 %v1520, %v8264
        %v8266 = vpop.f32.mrb[0].mxu0
        %v8267 = vpop.f32.mrb[0].mxu0
        %8268 = vdwg.mxu0
        %8269 = vmatprep.subr.bf16.mxu0 %v3810
        %8270 = vmatpush1.bf16.msra.mxu0 %v3809
        %8271 = vmatprep.subr.bf16.mxu0 %v4066
        %8272 = vmatpush1.bf16.msra.mxu0 %v4065
        %8273 = vmatprep.subr.bf16.mxu0 0
        %8274 = vmatpush1.bf16.msra.mxu0 0
        %8275 = vmatprep.subr.bf16.mxu0 0
        %8276 = vmatpush1.bf16.msra.mxu0 0
        %8277 = vmatprep.subr.bf16.mxu0 0
        %8278 = vmatpush1.bf16.msra.mxu0 0
        %8279 = vmatprep.subr.bf16.mxu0 0
        %8280 = vmatpush1.bf16.msra.mxu0 0
        %8281 = vmatprep.subr.bf16.mxu0 0
        %8282 = vmatpush1.bf16.msra.mxu0 0
        %8283 = vmatprep.subr.bf16.mxu0 0
        %8284 = vmatpush1.bf16.msra.mxu0 0
        %8285 = vmatprep.subr.bf16.mxu0 0
        %8286 = vmatpush1.bf16.msra.mxu0 0
        %8287 = vmatprep.subr.bf16.mxu0 0
        %8288 = vmatpush1.bf16.msra.mxu0 0
        %8289 = vmatprep.subr.bf16.mxu0 0
        %8290 = vmatpush1.bf16.msra.mxu0 0
        %8291 = vmatprep.subr.bf16.mxu0 0
        %8292 = vmatpush1.bf16.msra.mxu0 0
        %8293 = vmatprep.subr.bf16.mxu0 0
        %8294 = vmatpush1.bf16.msra.mxu0 0
        %8295 = vmatprep.subr.bf16.mxu0 0
        %8296 = vmatpush1.bf16.msra.mxu0 0
        %8297 = vmatprep.subr.bf16.mxu0 0
        %8298 = vmatpush1.bf16.msra.mxu0 0
        %8299 = vmatprep.subr.bf16.mxu0 0
        %8300 = vmatpush1.bf16.msra.mxu0 0
        %8301 = vmatprep.mubr.bf16.mxu0 0
        %8302 = vmatmul.mubr.bf16.gmra.mrb[0].mxu0 %v4659
        %v8303 = vpop.f32.mrb[0].mxu0
        %v8304 = vadd.f32 %v1524, %v8303
        %v8305 = vpop.f32.mrb[0].mxu0
        %v8306 = vadd.f32 %v1528, %v8305
        %v8307 = vpop.f32.mrb[0].mxu0
        %v8308 = vpop.f32.mrb[0].mxu0
        %8309 = vdwg.mxu0
        %8310 = vmatprep.subr.bf16.mxu0 %v3812
        %8311 = vmatpush1.bf16.msra.mxu0 %v3811
        %8312 = vmatprep.subr.bf16.mxu0 %v4068
        %8313 = vmatpush1.bf16.msra.mxu0 %v4067
        %8314 = vmatprep.subr.bf16.mxu0 0
        %8315 = vmatpush1.bf16.msra.mxu0 0
        %8316 = vmatprep.subr.bf16.mxu0 0
        %8317 = vmatpush1.bf16.msra.mxu0 0
        %8318 = vmatprep.subr.bf16.mxu0 0
        %8319 = vmatpush1.bf16.msra.mxu0 0
        %8320 = vmatprep.subr.bf16.mxu0 0
        %8321 = vmatpush1.bf16.msra.mxu0 0
        %8322 = vmatprep.subr.bf16.mxu0 0
        %8323 = vmatpush1.bf16.msra.mxu0 0
        %8324 = vmatprep.subr.bf16.mxu0 0
        %8325 = vmatpush1.bf16.msra.mxu0 0
        %8326 = vmatprep.subr.bf16.mxu0 0
        %8327 = vmatpush1.bf16.msra.mxu0 0
        %8328 = vmatprep.subr.bf16.mxu0 0
        %8329 = vmatpush1.bf16.msra.mxu0 0
        %8330 = vmatprep.subr.bf16.mxu0 0
        %8331 = vmatpush1.bf16.msra.mxu0 0
        %8332 = vmatprep.subr.bf16.mxu0 0
        %8333 = vmatpush1.bf16.msra.mxu0 0
        %8334 = vmatprep.subr.bf16.mxu0 0
        %8335 = vmatpush1.bf16.msra.mxu0 0
        %8336 = vmatprep.subr.bf16.mxu0 0
        %8337 = vmatpush1.bf16.msra.mxu0 0
        %8338 = vmatprep.subr.bf16.mxu0 0
        %8339 = vmatpush1.bf16.msra.mxu0 0
        %8340 = vmatprep.subr.bf16.mxu0 0
        %8341 = vmatpush1.bf16.msra.mxu0 0
        %8342 = vmatprep.mubr.bf16.mxu0 0
        %8343 = vmatmul.mubr.bf16.gmra.mrb[0].mxu0 %v4659
        %v8344 = vpop.f32.mrb[0].mxu0
        %v8345 = vadd.f32 %v1532, %v8344
        %v8346 = vpop.f32.mrb[0].mxu0
        %v8347 = vadd.f32 %v1536, %v8346
        %v8348 = vpop.f32.mrb[0].mxu0
        %v8349 = vpop.f32.mrb[0].mxu0
        %8350 = vdwg.mxu0
        %8351 = vmatprep.subr.bf16.mxu0 %v3814
        %8352 = vmatpush1.bf16.msra.mxu0 %v3813
        %8353 = vmatprep.subr.bf16.mxu0 %v4070
        %8354 = vmatpush1.bf16.msra.mxu0 %v4069
        %8355 = vmatprep.subr.bf16.mxu0 0
        %8356 = vmatpush1.bf16.msra.mxu0 0
        %8357 = vmatprep.subr.bf16.mxu0 0
        %8358 = vmatpush1.bf16.msra.mxu0 0
        %8359 = vmatprep.subr.bf16.mxu0 0
        %8360 = vmatpush1.bf16.msra.mxu0 0
        %8361 = vmatprep.subr.bf16.mxu0 0
        %8362 = vmatpush1.bf16.msra.mxu0 0
        %8363 = vmatprep.subr.bf16.mxu0 0
        %8364 = vmatpush1.bf16.msra.mxu0 0
        %8365 = vmatprep.subr.bf16.mxu0 0
        %8366 = vmatpush1.bf16.msra.mxu0 0
        %8367 = vmatprep.subr.bf16.mxu0 0
        %8368 = vmatpush1.bf16.msra.mxu0 0
        %8369 = vmatprep.subr.bf16.mxu0 0
        %8370 = vmatpush1.bf16.msra.mxu0 0
        %8371 = vmatprep.subr.bf16.mxu0 0
        %8372 = vmatpush1.bf16.msra.mxu0 0
        %8373 = vmatprep.subr.bf16.mxu0 0
        %8374 = vmatpush1.bf16.msra.mxu0 0
        %8375 = vmatprep.subr.bf16.mxu0 0
        %8376 = vmatpush1.bf16.msra.mxu0 0
        %8377 = vmatprep.subr.bf16.mxu0 0
        %8378 = vmatpush1.bf16.msra.mxu0 0
        %8379 = vmatprep.subr.bf16.mxu0 0
        %8380 = vmatpush1.bf16.msra.mxu0 0
        %8381 = vmatprep.subr.bf16.mxu0 0
        %8382 = vmatpush1.bf16.msra.mxu0 0
        %8383 = vmatprep.mubr.bf16.mxu0 0
        %8384 = vmatmul.mubr.bf16.gmra.mrb[0].mxu0 %v4659
        %v8385 = vpop.f32.mrb[0].mxu0
        %v8386 = vadd.f32 %v1540, %v8385
        %v8387 = vpop.f32.mrb[0].mxu0
        %v8388 = vadd.f32 %v1544, %v8387
        %v8389 = vpop.f32.mrb[0].mxu0
        %v8390 = vpop.f32.mrb[0].mxu0
        %8391 = vdwg.mxu0
        %8392 = vmatprep.subr.bf16.mxu0 %v3816
        %8393 = vmatpush1.bf16.msra.mxu0 %v3815
        %8394 = vmatprep.subr.bf16.mxu0 %v4072
        %8395 = vmatpush1.bf16.msra.mxu0 %v4071
        %8396 = vmatprep.subr.bf16.mxu0 0
        %8397 = vmatpush1.bf16.msra.mxu0 0
        %8398 = vmatprep.subr.bf16.mxu0 0
        %8399 = vmatpush1.bf16.msra.mxu0 0
        %8400 = vmatprep.subr.bf16.mxu0 0
        %8401 = vmatpush1.bf16.msra.mxu0 0
        %8402 = vmatprep.subr.bf16.mxu0 0
        %8403 = vmatpush1.bf16.msra.mxu0 0
        %8404 = vmatprep.subr.bf16.mxu0 0
        %8405 = vmatpush1.bf16.msra.mxu0 0
        %8406 = vmatprep.subr.bf16.mxu0 0
        %8407 = vmatpush1.bf16.msra.mxu0 0
        %8408 = vmatprep.subr.bf16.mxu0 0
        %8409 = vmatpush1.bf16.msra.mxu0 0
        %8410 = vmatprep.subr.bf16.mxu0 0
        %8411 = vmatpush1.bf16.msra.mxu0 0
        %8412 = vmatprep.subr.bf16.mxu0 0
        %8413 = vmatpush1.bf16.msra.mxu0 0
        %8414 = vmatprep.subr.bf16.mxu0 0
        %8415 = vmatpush1.bf16.msra.mxu0 0
        %8416 = vmatprep.subr.bf16.mxu0 0
        %8417 = vmatpush1.bf16.msra.mxu0 0
        %8418 = vmatprep.subr.bf16.mxu0 0
        %8419 = vmatpush1.bf16.msra.mxu0 0
        %8420 = vmatprep.subr.bf16.mxu0 0
        %8421 = vmatpush1.bf16.msra.mxu0 0
        %8422 = vmatprep.subr.bf16.mxu0 0
        %8423 = vmatpush1.bf16.msra.mxu0 0
        %8424 = vmatprep.mubr.bf16.mxu0 0
        %8425 = vmatmul.mubr.bf16.gmra.mrb[0].mxu0 %v4659
        %v8426 = vpop.f32.mrb[0].mxu0
        %v8427 = vadd.f32 %v1548, %v8426
        %v8428 = vpop.f32.mrb[0].mxu0
        %v8429 = vadd.f32 %v1552, %v8428
        %v8430 = vpop.f32.mrb[0].mxu0
        %v8431 = vpop.f32.mrb[0].mxu0
        %8432 = vdwg.mxu0
        %8433 = vmatprep.subr.bf16.mxu0 %v3818
        %8434 = vmatpush1.bf16.msra.mxu0 %v3817
        %8435 = vmatprep.subr.bf16.mxu0 %v4074
        %8436 = vmatpush1.bf16.msra.mxu0 %v4073
        %8437 = vmatprep.subr.bf16.mxu0 0
        %8438 = vmatpush1.bf16.msra.mxu0 0
        %8439 = vmatprep.subr.bf16.mxu0 0
        %8440 = vmatpush1.bf16.msra.mxu0 0
        %8441 = vmatprep.subr.bf16.mxu0 0
        %8442 = vmatpush1.bf16.msra.mxu0 0
        %8443 = vmatprep.subr.bf16.mxu0 0
        %8444 = vmatpush1.bf16.msra.mxu0 0
        %8445 = vmatprep.subr.bf16.mxu0 0
        %8446 = vmatpush1.bf16.msra.mxu0 0
        %8447 = vmatprep.subr.bf16.mxu0 0
        %8448 = vmatpush1.bf16.msra.mxu0 0
        %8449 = vmatprep.subr.bf16.mxu0 0
        %8450 = vmatpush1.bf16.msra.mxu0 0
        %8451 = vmatprep.subr.bf16.mxu0 0
        %8452 = vmatpush1.bf16.msra.mxu0 0
        %8453 = vmatprep.subr.bf16.mxu0 0
        %8454 = vmatpush1.bf16.msra.mxu0 0
        %8455 = vmatprep.subr.bf16.mxu0 0
        %8456 = vmatpush1.bf16.msra.mxu0 0
        %8457 = vmatprep.subr.bf16.mxu0 0
        %8458 = vmatpush1.bf16.msra.mxu0 0
        %8459 = vmatprep.subr.bf16.mxu0 0
        %8460 = vmatpush1.bf16.msra.mxu0 0
        %8461 = vmatprep.subr.bf16.mxu0 0
        %8462 = vmatpush1.bf16.msra.mxu0 0
        %8463 = vmatprep.subr.bf16.mxu0 0
        %8464 = vmatpush1.bf16.msra.mxu0 0
        %8465 = vmatprep.mubr.bf16.mxu0 0
        %8466 = vmatmul.mubr.bf16.gmra.mrb[0].mxu0 %v4659
        %v8467 = vpop.f32.mrb[0].mxu0
        %v8468 = vadd.f32 %v1556, %v8467
        %v8469 = vpop.f32.mrb[0].mxu0
        %v8470 = vadd.f32 %v1560, %v8469
        %v8471 = vpop.f32.mrb[0].mxu0
        %v8472 = vpop.f32.mrb[0].mxu0
        %8473 = vdwg.mxu0
        %8474 = vmatprep.subr.bf16.mxu0 %v3820
        %8475 = vmatpush1.bf16.msra.mxu0 %v3819
        %8476 = vmatprep.subr.bf16.mxu0 %v4076
        %8477 = vmatpush1.bf16.msra.mxu0 %v4075
        %8478 = vmatprep.subr.bf16.mxu0 0
        %8479 = vmatpush1.bf16.msra.mxu0 0
        %8480 = vmatprep.subr.bf16.mxu0 0
        %8481 = vmatpush1.bf16.msra.mxu0 0
        %8482 = vmatprep.subr.bf16.mxu0 0
        %8483 = vmatpush1.bf16.msra.mxu0 0
        %8484 = vmatprep.subr.bf16.mxu0 0
        %8485 = vmatpush1.bf16.msra.mxu0 0
        %8486 = vmatprep.subr.bf16.mxu0 0
        %8487 = vmatpush1.bf16.msra.mxu0 0
        %8488 = vmatprep.subr.bf16.mxu0 0
        %8489 = vmatpush1.bf16.msra.mxu0 0
        %8490 = vmatprep.subr.bf16.mxu0 0
        %8491 = vmatpush1.bf16.msra.mxu0 0
        %8492 = vmatprep.subr.bf16.mxu0 0
        %8493 = vmatpush1.bf16.msra.mxu0 0
        %8494 = vmatprep.subr.bf16.mxu0 0
        %8495 = vmatpush1.bf16.msra.mxu0 0
        %8496 = vmatprep.subr.bf16.mxu0 0
        %8497 = vmatpush1.bf16.msra.mxu0 0
        %8498 = vmatprep.subr.bf16.mxu0 0
        %8499 = vmatpush1.bf16.msra.mxu0 0
        %8500 = vmatprep.subr.bf16.mxu0 0
        %8501 = vmatpush1.bf16.msra.mxu0 0
        %8502 = vmatprep.subr.bf16.mxu0 0
        %8503 = vmatpush1.bf16.msra.mxu0 0
        %8504 = vmatprep.subr.bf16.mxu0 0
        %8505 = vmatpush1.bf16.msra.mxu0 0
        %8506 = vmatprep.mubr.bf16.mxu0 0
        %8507 = vmatmul.mubr.bf16.gmra.mrb[0].mxu0 %v4659
        %v8508 = vpop.f32.mrb[0].mxu0
        %v8509 = vadd.f32 %v1564, %v8508
        %v8510 = vpop.f32.mrb[0].mxu0
        %v8511 = vadd.f32 %v1568, %v8510
        %v8512 = vpop.f32.mrb[0].mxu0
        %v8513 = vpop.f32.mrb[0].mxu0
        %8514 = vdwg.mxu0
        %8515 = vmatprep.subr.bf16.mxu0 %v3822
        %8516 = vmatpush1.bf16.msra.mxu0 %v3821
        %8517 = vmatprep.subr.bf16.mxu0 %v4078
        %8518 = vmatpush1.bf16.msra.mxu0 %v4077
        %8519 = vmatprep.subr.bf16.mxu0 0
        %8520 = vmatpush1.bf16.msra.mxu0 0
        %8521 = vmatprep.subr.bf16.mxu0 0
        %8522 = vmatpush1.bf16.msra.mxu0 0
        %8523 = vmatprep.subr.bf16.mxu0 0
        %8524 = vmatpush1.bf16.msra.mxu0 0
        %8525 = vmatprep.subr.bf16.mxu0 0
        %8526 = vmatpush1.bf16.msra.mxu0 0
        %8527 = vmatprep.subr.bf16.mxu0 0
        %8528 = vmatpush1.bf16.msra.mxu0 0
        %8529 = vmatprep.subr.bf16.mxu0 0
        %8530 = vmatpush1.bf16.msra.mxu0 0
        %8531 = vmatprep.subr.bf16.mxu0 0
        %8532 = vmatpush1.bf16.msra.mxu0 0
        %8533 = vmatprep.subr.bf16.mxu0 0
        %8534 = vmatpush1.bf16.msra.mxu0 0
        %8535 = vmatprep.subr.bf16.mxu0 0
        %8536 = vmatpush1.bf16.msra.mxu0 0
        %8537 = vmatprep.subr.bf16.mxu0 0
        %8538 = vmatpush1.bf16.msra.mxu0 0
        %8539 = vmatprep.subr.bf16.mxu0 0
        %8540 = vmatpush1.bf16.msra.mxu0 0
        %8541 = vmatprep.subr.bf16.mxu0 0
        %8542 = vmatpush1.bf16.msra.mxu0 0
        %8543 = vmatprep.subr.bf16.mxu0 0
        %8544 = vmatpush1.bf16.msra.mxu0 0
        %8545 = vmatprep.subr.bf16.mxu0 0
        %8546 = vmatpush1.bf16.msra.mxu0 0
        %8547 = vmatprep.mubr.bf16.mxu0 0
        %8548 = vmatmul.mubr.bf16.gmra.mrb[0].mxu0 %v4659
        %v8549 = vpop.f32.mrb[0].mxu0
        %v8550 = vadd.f32 %v1572, %v8549
        %v8551 = vpop.f32.mrb[0].mxu0
        %v8552 = vadd.f32 %v1576, %v8551
        %v8553 = vpop.f32.mrb[0].mxu0
        %v8554 = vpop.f32.mrb[0].mxu0
        %8555 = vdwg.mxu0
        %8556 = vmatprep.subr.bf16.mxu0 %v3824
        %8557 = vmatpush1.bf16.msra.mxu0 %v3823
        %8558 = vmatprep.subr.bf16.mxu0 %v4080
        %8559 = vmatpush1.bf16.msra.mxu0 %v4079
        %8560 = vmatprep.subr.bf16.mxu0 0
        %8561 = vmatpush1.bf16.msra.mxu0 0
        %8562 = vmatprep.subr.bf16.mxu0 0
        %8563 = vmatpush1.bf16.msra.mxu0 0
        %8564 = vmatprep.subr.bf16.mxu0 0
        %8565 = vmatpush1.bf16.msra.mxu0 0
        %8566 = vmatprep.subr.bf16.mxu0 0
        %8567 = vmatpush1.bf16.msra.mxu0 0
        %8568 = vmatprep.subr.bf16.mxu0 0
        %8569 = vmatpush1.bf16.msra.mxu0 0
        %8570 = vmatprep.subr.bf16.mxu0 0
        %8571 = vmatpush1.bf16.msra.mxu0 0
        %8572 = vmatprep.subr.bf16.mxu0 0
        %8573 = vmatpush1.bf16.msra.mxu0 0
        %8574 = vmatprep.subr.bf16.mxu0 0
        %8575 = vmatpush1.bf16.msra.mxu0 0
        %8576 = vmatprep.subr.bf16.mxu0 0
        %8577 = vmatpush1.bf16.msra.mxu0 0
        %8578 = vmatprep.subr.bf16.mxu0 0
        %8579 = vmatpush1.bf16.msra.mxu0 0
        %8580 = vmatprep.subr.bf16.mxu0 0
        %8581 = vmatpush1.bf16.msra.mxu0 0
        %8582 = vmatprep.subr.bf16.mxu0 0
        %8583 = vmatpush1.bf16.msra.mxu0 0
        %8584 = vmatprep.subr.bf16.mxu0 0
        %8585 = vmatpush1.bf16.msra.mxu0 0
        %8586 = vmatprep.subr.bf16.mxu0 0
        %8587 = vmatpush1.bf16.msra.mxu0 0
        %8588 = vmatprep.mubr.bf16.mxu0 0
        %8589 = vmatmul.mubr.bf16.gmra.mrb[0].mxu0 %v4659
        %v8590 = vpop.f32.mrb[0].mxu0
        %v8591 = vadd.f32 %v1580, %v8590
        %v8592 = vpop.f32.mrb[0].mxu0
        %v8593 = vadd.f32 %v1584, %v8592
        %v8594 = vpop.f32.mrb[0].mxu0
        %v8595 = vpop.f32.mrb[0].mxu0
        %8596 = vdwg.mxu0
        %8597 = vmatprep.subr.bf16.mxu0 %v3826
        %8598 = vmatpush1.bf16.msra.mxu0 %v3825
        %8599 = vmatprep.subr.bf16.mxu0 %v4082
        %8600 = vmatpush1.bf16.msra.mxu0 %v4081
        %8601 = vmatprep.subr.bf16.mxu0 0
        %8602 = vmatpush1.bf16.msra.mxu0 0
        %8603 = vmatprep.subr.bf16.mxu0 0
        %8604 = vmatpush1.bf16.msra.mxu0 0
        %8605 = vmatprep.subr.bf16.mxu0 0
        %8606 = vmatpush1.bf16.msra.mxu0 0
        %8607 = vmatprep.subr.bf16.mxu0 0
        %8608 = vmatpush1.bf16.msra.mxu0 0
        %8609 = vmatprep.subr.bf16.mxu0 0
        %8610 = vmatpush1.bf16.msra.mxu0 0
        %8611 = vmatprep.subr.bf16.mxu0 0
        %8612 = vmatpush1.bf16.msra.mxu0 0
        %8613 = vmatprep.subr.bf16.mxu0 0
        %8614 = vmatpush1.bf16.msra.mxu0 0
        %8615 = vmatprep.subr.bf16.mxu0 0
        %8616 = vmatpush1.bf16.msra.mxu0 0
        %8617 = vmatprep.subr.bf16.mxu0 0
        %8618 = vmatpush1.bf16.msra.mxu0 0
        %8619 = vmatprep.subr.bf16.mxu0 0
        %8620 = vmatpush1.bf16.msra.mxu0 0
        %8621 = vmatprep.subr.bf16.mxu0 0
        %8622 = vmatpush1.bf16.msra.mxu0 0
        %8623 = vmatprep.subr.bf16.mxu0 0
        %8624 = vmatpush1.bf16.msra.mxu0 0
        %8625 = vmatprep.subr.bf16.mxu0 0
        %8626 = vmatpush1.bf16.msra.mxu0 0
        %8627 = vmatprep.subr.bf16.mxu0 0
        %8628 = vmatpush1.bf16.msra.mxu0 0
        %8629 = vmatprep.mubr.bf16.mxu0 0
        %8630 = vmatmul.mubr.bf16.gmra.mrb[0].mxu0 %v4659
        %v8631 = vpop.f32.mrb[0].mxu0
        %v8632 = vadd.f32 %v1588, %v8631
        %v8633 = vpop.f32.mrb[0].mxu0
        %v8634 = vadd.f32 %v1592, %v8633
        %v8635 = vpop.f32.mrb[0].mxu0
        %v8636 = vpop.f32.mrb[0].mxu0
        %8637 = vdwg.mxu0
        %8638 = vmatprep.subr.bf16.mxu0 %v3828
        %8639 = vmatpush1.bf16.msra.mxu0 %v3827
        %8640 = vmatprep.subr.bf16.mxu0 %v4084
        %8641 = vmatpush1.bf16.msra.mxu0 %v4083
        %8642 = vmatprep.subr.bf16.mxu0 0
        %8643 = vmatpush1.bf16.msra.mxu0 0
        %8644 = vmatprep.subr.bf16.mxu0 0
        %8645 = vmatpush1.bf16.msra.mxu0 0
        %8646 = vmatprep.subr.bf16.mxu0 0
        %8647 = vmatpush1.bf16.msra.mxu0 0
        %8648 = vmatprep.subr.bf16.mxu0 0
        %8649 = vmatpush1.bf16.msra.mxu0 0
        %8650 = vmatprep.subr.bf16.mxu0 0
        %8651 = vmatpush1.bf16.msra.mxu0 0
        %8652 = vmatprep.subr.bf16.mxu0 0
        %8653 = vmatpush1.bf16.msra.mxu0 0
        %8654 = vmatprep.subr.bf16.mxu0 0
        %8655 = vmatpush1.bf16.msra.mxu0 0
        %8656 = vmatprep.subr.bf16.mxu0 0
        %8657 = vmatpush1.bf16.msra.mxu0 0
        %8658 = vmatprep.subr.bf16.mxu0 0
        %8659 = vmatpush1.bf16.msra.mxu0 0
        %8660 = vmatprep.subr.bf16.mxu0 0
        %8661 = vmatpush1.bf16.msra.mxu0 0
        %8662 = vmatprep.subr.bf16.mxu0 0
        %8663 = vmatpush1.bf16.msra.mxu0 0
        %8664 = vmatprep.subr.bf16.mxu0 0
        %8665 = vmatpush1.bf16.msra.mxu0 0
        %8666 = vmatprep.subr.bf16.mxu0 0
        %8667 = vmatpush1.bf16.msra.mxu0 0
        %8668 = vmatprep.subr.bf16.mxu0 0
        %8669 = vmatpush1.bf16.msra.mxu0 0
        %8670 = vmatprep.mubr.bf16.mxu0 0
        %8671 = vmatmul.mubr.bf16.gmra.mrb[0].mxu0 %v4659
        %v8672 = vpop.f32.mrb[0].mxu0
        %v8673 = vadd.f32 %v1596, %v8672
        %v8674 = vpop.f32.mrb[0].mxu0
        %v8675 = vadd.f32 %v1600, %v8674
        %v8676 = vpop.f32.mrb[0].mxu0
        %v8677 = vpop.f32.mrb[0].mxu0
        %8678 = vdwg.mxu0
        %8679 = vmatprep.subr.bf16.mxu0 %v3830
        %8680 = vmatpush1.bf16.msra.mxu0 %v3829
        %8681 = vmatprep.subr.bf16.mxu0 %v4086
        %8682 = vmatpush1.bf16.msra.mxu0 %v4085
        %8683 = vmatprep.subr.bf16.mxu0 0
        %8684 = vmatpush1.bf16.msra.mxu0 0
        %8685 = vmatprep.subr.bf16.mxu0 0
        %8686 = vmatpush1.bf16.msra.mxu0 0
        %8687 = vmatprep.subr.bf16.mxu0 0
        %8688 = vmatpush1.bf16.msra.mxu0 0
        %8689 = vmatprep.subr.bf16.mxu0 0
        %8690 = vmatpush1.bf16.msra.mxu0 0
        %8691 = vmatprep.subr.bf16.mxu0 0
        %8692 = vmatpush1.bf16.msra.mxu0 0
        %8693 = vmatprep.subr.bf16.mxu0 0
        %8694 = vmatpush1.bf16.msra.mxu0 0
        %8695 = vmatprep.subr.bf16.mxu0 0
        %8696 = vmatpush1.bf16.msra.mxu0 0
        %8697 = vmatprep.subr.bf16.mxu0 0
        %8698 = vmatpush1.bf16.msra.mxu0 0
        %8699 = vmatprep.subr.bf16.mxu0 0
        %8700 = vmatpush1.bf16.msra.mxu0 0
        %8701 = vmatprep.subr.bf16.mxu0 0
        %8702 = vmatpush1.bf16.msra.mxu0 0
        %8703 = vmatprep.subr.bf16.mxu0 0
        %8704 = vmatpush1.bf16.msra.mxu0 0
        %8705 = vmatprep.subr.bf16.mxu0 0
        %8706 = vmatpush1.bf16.msra.mxu0 0
        %8707 = vmatprep.subr.bf16.mxu0 0
        %8708 = vmatpush1.bf16.msra.mxu0 0
        %8709 = vmatprep.subr.bf16.mxu0 0
        %8710 = vmatpush1.bf16.msra.mxu0 0
        %8711 = vmatprep.mubr.bf16.mxu0 0
        %8712 = vmatmul.mubr.bf16.gmra.mrb[0].mxu0 %v4659
        %v8713 = vpop.f32.mrb[0].mxu0
        %v8714 = vadd.f32 %v1604, %v8713
        %v8715 = vpop.f32.mrb[0].mxu0
        %v8716 = vadd.f32 %v1608, %v8715
        %v8717 = vpop.f32.mrb[0].mxu0
        %v8718 = vpop.f32.mrb[0].mxu0
        %8719 = vdwg.mxu0
        %8720 = vmatprep.subr.bf16.mxu0 %v3832
        %8721 = vmatpush1.bf16.msra.mxu0 %v3831
        %8722 = vmatprep.subr.bf16.mxu0 %v4088
        %8723 = vmatpush1.bf16.msra.mxu0 %v4087
        %8724 = vmatprep.subr.bf16.mxu0 0
        %8725 = vmatpush1.bf16.msra.mxu0 0
        %8726 = vmatprep.subr.bf16.mxu0 0
        %8727 = vmatpush1.bf16.msra.mxu0 0
        %8728 = vmatprep.subr.bf16.mxu0 0
        %8729 = vmatpush1.bf16.msra.mxu0 0
        %8730 = vmatprep.subr.bf16.mxu0 0
        %8731 = vmatpush1.bf16.msra.mxu0 0
        %8732 = vmatprep.subr.bf16.mxu0 0
        %8733 = vmatpush1.bf16.msra.mxu0 0
        %8734 = vmatprep.subr.bf16.mxu0 0
        %8735 = vmatpush1.bf16.msra.mxu0 0
        %8736 = vmatprep.subr.bf16.mxu0 0
        %8737 = vmatpush1.bf16.msra.mxu0 0
        %8738 = vmatprep.subr.bf16.mxu0 0
        %8739 = vmatpush1.bf16.msra.mxu0 0
        %8740 = vmatprep.subr.bf16.mxu0 0
        %8741 = vmatpush1.bf16.msra.mxu0 0
        %8742 = vmatprep.subr.bf16.mxu0 0
        %8743 = vmatpush1.bf16.msra.mxu0 0
        %8744 = vmatprep.subr.bf16.mxu0 0
        %8745 = vmatpush1.bf16.msra.mxu0 0
        %8746 = vmatprep.subr.bf16.mxu0 0
        %8747 = vmatpush1.bf16.msra.mxu0 0
        %8748 = vmatprep.subr.bf16.mxu0 0
        %8749 = vmatpush1.bf16.msra.mxu0 0
        %8750 = vmatprep.subr.bf16.mxu0 0
        %8751 = vmatpush1.bf16.msra.mxu0 0
        %8752 = vmatprep.mubr.bf16.mxu0 0
        %8753 = vmatmul.mubr.bf16.gmra.mrb[0].mxu0 %v4659
        %v8754 = vpop.f32.mrb[0].mxu0
        %v8755 = vadd.f32 %v1612, %v8754
        %v8756 = vpop.f32.mrb[0].mxu0
        %v8757 = vadd.f32 %v1616, %v8756
        %v8758 = vpop.f32.mrb[0].mxu0
        %v8759 = vpop.f32.mrb[0].mxu0
        %8760 = vdwg.mxu0
        %8761 = vmatprep.subr.bf16.mxu0 %v3834
        %8762 = vmatpush1.bf16.msra.mxu0 %v3833
        %8763 = vmatprep.subr.bf16.mxu0 %v4090
        %8764 = vmatpush1.bf16.msra.mxu0 %v4089
        %8765 = vmatprep.subr.bf16.mxu0 0
        %8766 = vmatpush1.bf16.msra.mxu0 0
        %8767 = vmatprep.subr.bf16.mxu0 0
        %8768 = vmatpush1.bf16.msra.mxu0 0
        %8769 = vmatprep.subr.bf16.mxu0 0
        %8770 = vmatpush1.bf16.msra.mxu0 0
        %8771 = vmatprep.subr.bf16.mxu0 0
        %8772 = vmatpush1.bf16.msra.mxu0 0
        %8773 = vmatprep.subr.bf16.mxu0 0
        %8774 = vmatpush1.bf16.msra.mxu0 0
        %8775 = vmatprep.subr.bf16.mxu0 0
        %8776 = vmatpush1.bf16.msra.mxu0 0
        %8777 = vmatprep.subr.bf16.mxu0 0
        %8778 = vmatpush1.bf16.msra.mxu0 0
        %8779 = vmatprep.subr.bf16.mxu0 0
        %8780 = vmatpush1.bf16.msra.mxu0 0
        %8781 = vmatprep.subr.bf16.mxu0 0
        %8782 = vmatpush1.bf16.msra.mxu0 0
        %8783 = vmatprep.subr.bf16.mxu0 0
        %8784 = vmatpush1.bf16.msra.mxu0 0
        %8785 = vmatprep.subr.bf16.mxu0 0
        %8786 = vmatpush1.bf16.msra.mxu0 0
        %8787 = vmatprep.subr.bf16.mxu0 0
        %8788 = vmatpush1.bf16.msra.mxu0 0
        %8789 = vmatprep.subr.bf16.mxu0 0
        %8790 = vmatpush1.bf16.msra.mxu0 0
        %8791 = vmatprep.subr.bf16.mxu0 0
        %8792 = vmatpush1.bf16.msra.mxu0 0
        %8793 = vmatprep.mubr.bf16.mxu0 0
        %8794 = vmatmul.mubr.bf16.gmra.mrb[0].mxu0 %v4659
        %v8795 = vpop.f32.mrb[0].mxu0
        %v8796 = vadd.f32 %v1620, %v8795
        %v8797 = vpop.f32.mrb[0].mxu0
        %v8798 = vadd.f32 %v1624, %v8797
        %v8799 = vpop.f32.mrb[0].mxu0
        %v8800 = vpop.f32.mrb[0].mxu0
        %8801 = vdwg.mxu0
        %8802 = vmatprep.subr.bf16.mxu0 %v3836
        %8803 = vmatpush1.bf16.msra.mxu0 %v3835
        %8804 = vmatprep.subr.bf16.mxu0 %v4092
        %8805 = vmatpush1.bf16.msra.mxu0 %v4091
        %8806 = vmatprep.subr.bf16.mxu0 0
        %8807 = vmatpush1.bf16.msra.mxu0 0
        %8808 = vmatprep.subr.bf16.mxu0 0
        %8809 = vmatpush1.bf16.msra.mxu0 0
        %8810 = vmatprep.subr.bf16.mxu0 0
        %8811 = vmatpush1.bf16.msra.mxu0 0
        %8812 = vmatprep.subr.bf16.mxu0 0
        %8813 = vmatpush1.bf16.msra.mxu0 0
        %8814 = vmatprep.subr.bf16.mxu0 0
        %8815 = vmatpush1.bf16.msra.mxu0 0
        %8816 = vmatprep.subr.bf16.mxu0 0
        %8817 = vmatpush1.bf16.msra.mxu0 0
        %8818 = vmatprep.subr.bf16.mxu0 0
        %8819 = vmatpush1.bf16.msra.mxu0 0
        %8820 = vmatprep.subr.bf16.mxu0 0
        %8821 = vmatpush1.bf16.msra.mxu0 0
        %8822 = vmatprep.subr.bf16.mxu0 0
        %8823 = vmatpush1.bf16.msra.mxu0 0
        %8824 = vmatprep.subr.bf16.mxu0 0
        %8825 = vmatpush1.bf16.msra.mxu0 0
        %8826 = vmatprep.subr.bf16.mxu0 0
        %8827 = vmatpush1.bf16.msra.mxu0 0
        %8828 = vmatprep.subr.bf16.mxu0 0
        %8829 = vmatpush1.bf16.msra.mxu0 0
        %8830 = vmatprep.subr.bf16.mxu0 0
        %8831 = vmatpush1.bf16.msra.mxu0 0
        %8832 = vmatprep.subr.bf16.mxu0 0
        %8833 = vmatpush1.bf16.msra.mxu0 0
        %8834 = vmatprep.mubr.bf16.mxu0 0
        %8835 = vmatmul.mubr.bf16.gmra.mrb[0].mxu0 %v4659
        %v8836 = vpop.f32.mrb[0].mxu0
        %v8837 = vadd.f32 %v1628, %v8836
        %v8838 = vpop.f32.mrb[0].mxu0
        %v8839 = vadd.f32 %v1632, %v8838
        %v8840 = vpop.f32.mrb[0].mxu0
        %v8841 = vpop.f32.mrb[0].mxu0
        %8842 = vdwg.mxu0
        %8843 = vmatprep.subr.bf16.mxu0 %v3838
        %8844 = vmatpush1.bf16.msra.mxu0 %v3837
        %8845 = vmatprep.subr.bf16.mxu0 %v4094
        %8846 = vmatpush1.bf16.msra.mxu0 %v4093
        %8847 = vmatprep.subr.bf16.mxu0 0
        %8848 = vmatpush1.bf16.msra.mxu0 0
        %8849 = vmatprep.subr.bf16.mxu0 0
        %8850 = vmatpush1.bf16.msra.mxu0 0
        %8851 = vmatprep.subr.bf16.mxu0 0
        %8852 = vmatpush1.bf16.msra.mxu0 0
        %8853 = vmatprep.subr.bf16.mxu0 0
        %8854 = vmatpush1.bf16.msra.mxu0 0
        %8855 = vmatprep.subr.bf16.mxu0 0
        %8856 = vmatpush1.bf16.msra.mxu0 0
        %8857 = vmatprep.subr.bf16.mxu0 0
        %8858 = vmatpush1.bf16.msra.mxu0 0
        %8859 = vmatprep.subr.bf16.mxu0 0
        %8860 = vmatpush1.bf16.msra.mxu0 0
        %8861 = vmatprep.subr.bf16.mxu0 0
        %8862 = vmatpush1.bf16.msra.mxu0 0
        %8863 = vmatprep.subr.bf16.mxu0 0
        %8864 = vmatpush1.bf16.msra.mxu0 0
        %8865 = vmatprep.subr.bf16.mxu0 0
        %8866 = vmatpush1.bf16.msra.mxu0 0
        %8867 = vmatprep.subr.bf16.mxu0 0
        %8868 = vmatpush1.bf16.msra.mxu0 0
        %8869 = vmatprep.subr.bf16.mxu0 0
        %8870 = vmatpush1.bf16.msra.mxu0 0
        %8871 = vmatprep.subr.bf16.mxu0 0
        %8872 = vmatpush1.bf16.msra.mxu0 0
        %8873 = vmatprep.subr.bf16.mxu0 0
        %8874 = vmatpush1.bf16.msra.mxu0 0
        %8875 = vmatprep.mubr.bf16.mxu0 0
        %8876 = vmatmul.mubr.bf16.gmra.mrb[0].mxu0 %v4659
        %v8877 = vpop.f32.mrb[0].mxu0
        %v8878 = vadd.f32 %v1636, %v8877
        %v8879 = vpop.f32.mrb[0].mxu0
        %v8880 = vadd.f32 %v1640, %v8879
        %v8881 = vpop.f32.mrb[0].mxu0
        %v8882 = vpop.f32.mrb[0].mxu0
        %8883 = vdwg.mxu0
        %8884 = vmatprep.subr.bf16.mxu0 %v3840
        %8885 = vmatpush1.bf16.msra.mxu0 %v3839
        %8886 = vmatprep.subr.bf16.mxu0 %v4096
        %8887 = vmatpush1.bf16.msra.mxu0 %v4095
        %8888 = vmatprep.subr.bf16.mxu0 0
        %8889 = vmatpush1.bf16.msra.mxu0 0
        %8890 = vmatprep.subr.bf16.mxu0 0
        %8891 = vmatpush1.bf16.msra.mxu0 0
        %8892 = vmatprep.subr.bf16.mxu0 0
        %8893 = vmatpush1.bf16.msra.mxu0 0
        %8894 = vmatprep.subr.bf16.mxu0 0
        %8895 = vmatpush1.bf16.msra.mxu0 0
        %8896 = vmatprep.subr.bf16.mxu0 0
        %8897 = vmatpush1.bf16.msra.mxu0 0
        %8898 = vmatprep.subr.bf16.mxu0 0
        %8899 = vmatpush1.bf16.msra.mxu0 0
        %8900 = vmatprep.subr.bf16.mxu0 0
        %8901 = vmatpush1.bf16.msra.mxu0 0
        %8902 = vmatprep.subr.bf16.mxu0 0
        %8903 = vmatpush1.bf16.msra.mxu0 0
        %8904 = vmatprep.subr.bf16.mxu0 0
        %8905 = vmatpush1.bf16.msra.mxu0 0
        %8906 = vmatprep.subr.bf16.mxu0 0
        %8907 = vmatpush1.bf16.msra.mxu0 0
        %8908 = vmatprep.subr.bf16.mxu0 0
        %8909 = vmatpush1.bf16.msra.mxu0 0
        %8910 = vmatprep.subr.bf16.mxu0 0
        %8911 = vmatpush1.bf16.msra.mxu0 0
        %8912 = vmatprep.subr.bf16.mxu0 0
        %8913 = vmatpush1.bf16.msra.mxu0 0
        %8914 = vmatprep.subr.bf16.mxu0 0
        %8915 = vmatpush1.bf16.msra.mxu0 0
        %8916 = vmatprep.mubr.bf16.mxu0 0
        %8917 = vmatmul.mubr.bf16.gmra.mrb[0].mxu0 %v4659
        %v8918 = vpop.f32.mrb[0].mxu0
        %v8919 = vadd.f32 %v1644, %v8918
        %v8920 = vpop.f32.mrb[0].mxu0
        %v8921 = vadd.f32 %v1648, %v8920
        %v8922 = vpop.f32.mrb[0].mxu0
        %v8923 = vpop.f32.mrb[0].mxu0
        %8924 = vdwg.mxu0
        %8925 = vmatprep.subr.bf16.mxu0 %v3842
        %8926 = vmatpush1.bf16.msra.mxu0 %v3841
        %8927 = vmatprep.subr.bf16.mxu0 %v4098
        %8928 = vmatpush1.bf16.msra.mxu0 %v4097
        %8929 = vmatprep.subr.bf16.mxu0 0
        %8930 = vmatpush1.bf16.msra.mxu0 0
        %8931 = vmatprep.subr.bf16.mxu0 0
        %8932 = vmatpush1.bf16.msra.mxu0 0
        %8933 = vmatprep.subr.bf16.mxu0 0
        %8934 = vmatpush1.bf16.msra.mxu0 0
        %8935 = vmatprep.subr.bf16.mxu0 0
        %8936 = vmatpush1.bf16.msra.mxu0 0
        %8937 = vmatprep.subr.bf16.mxu0 0
        %8938 = vmatpush1.bf16.msra.mxu0 0
        %8939 = vmatprep.subr.bf16.mxu0 0
        %8940 = vmatpush1.bf16.msra.mxu0 0
        %8941 = vmatprep.subr.bf16.mxu0 0
        %8942 = vmatpush1.bf16.msra.mxu0 0
        %8943 = vmatprep.subr.bf16.mxu0 0
        %8944 = vmatpush1.bf16.msra.mxu0 0
        %8945 = vmatprep.subr.bf16.mxu0 0
        %8946 = vmatpush1.bf16.msra.mxu0 0
        %8947 = vmatprep.subr.bf16.mxu0 0
        %8948 = vmatpush1.bf16.msra.mxu0 0
        %8949 = vmatprep.subr.bf16.mxu0 0
        %8950 = vmatpush1.bf16.msra.mxu0 0
        %8951 = vmatprep.subr.bf16.mxu0 0
        %8952 = vmatpush1.bf16.msra.mxu0 0
        %8953 = vmatprep.subr.bf16.mxu0 0
        %8954 = vmatpush1.bf16.msra.mxu0 0
        %8955 = vmatprep.subr.bf16.mxu0 0
        %8956 = vmatpush1.bf16.msra.mxu0 0
        %8957 = vmatprep.mubr.bf16.mxu0 0
        %8958 = vmatmul.mubr.bf16.gmra.mrb[0].mxu0 %v4659
        %v8959 = vpop.f32.mrb[0].mxu0
        %v8960 = vadd.f32 %v1652, %v8959
        %v8961 = vpop.f32.mrb[0].mxu0
        %v8962 = vadd.f32 %v1656, %v8961
        %v8963 = vpop.f32.mrb[0].mxu0
        %v8964 = vpop.f32.mrb[0].mxu0
        %8965 = vdwg.mxu0
        %8966 = vmatprep.subr.bf16.mxu0 %v3844
        %8967 = vmatpush1.bf16.msra.mxu0 %v3843
        %8968 = vmatprep.subr.bf16.mxu0 %v4100
        %8969 = vmatpush1.bf16.msra.mxu0 %v4099
        %8970 = vmatprep.subr.bf16.mxu0 0
        %8971 = vmatpush1.bf16.msra.mxu0 0
        %8972 = vmatprep.subr.bf16.mxu0 0
        %8973 = vmatpush1.bf16.msra.mxu0 0
        %8974 = vmatprep.subr.bf16.mxu0 0
        %8975 = vmatpush1.bf16.msra.mxu0 0
        %8976 = vmatprep.subr.bf16.mxu0 0
        %8977 = vmatpush1.bf16.msra.mxu0 0
        %8978 = vmatprep.subr.bf16.mxu0 0
        %8979 = vmatpush1.bf16.msra.mxu0 0
        %8980 = vmatprep.subr.bf16.mxu0 0
        %8981 = vmatpush1.bf16.msra.mxu0 0
        %8982 = vmatprep.subr.bf16.mxu0 0
        %8983 = vmatpush1.bf16.msra.mxu0 0
        %8984 = vmatprep.subr.bf16.mxu0 0
        %8985 = vmatpush1.bf16.msra.mxu0 0
        %8986 = vmatprep.subr.bf16.mxu0 0
        %8987 = vmatpush1.bf16.msra.mxu0 0
        %8988 = vmatprep.subr.bf16.mxu0 0
        %8989 = vmatpush1.bf16.msra.mxu0 0
        %8990 = vmatprep.subr.bf16.mxu0 0
        %8991 = vmatpush1.bf16.msra.mxu0 0
        %8992 = vmatprep.subr.bf16.mxu0 0
        %8993 = vmatpush1.bf16.msra.mxu0 0
        %8994 = vmatprep.subr.bf16.mxu0 0
        %8995 = vmatpush1.bf16.msra.mxu0 0
        %8996 = vmatprep.subr.bf16.mxu0 0
        %8997 = vmatpush1.bf16.msra.mxu0 0
        %8998 = vmatprep.mubr.bf16.mxu0 0
        %8999 = vmatmul.mubr.bf16.gmra.mrb[0].mxu0 %v4659
        %v9000 = vpop.f32.mrb[0].mxu0
        %v9001 = vadd.f32 %v1660, %v9000
        %v9002 = vpop.f32.mrb[0].mxu0
        %v9003 = vadd.f32 %v1664, %v9002
        %v9004 = vpop.f32.mrb[0].mxu0
        %v9005 = vpop.f32.mrb[0].mxu0
        %9006 = vdwg.mxu0
        %9007 = vmatprep.subr.bf16.mxu0 %v3846
        %9008 = vmatpush1.bf16.msra.mxu0 %v3845
        %9009 = vmatprep.subr.bf16.mxu0 %v4102
        %9010 = vmatpush1.bf16.msra.mxu0 %v4101
        %9011 = vmatprep.subr.bf16.mxu0 0
        %9012 = vmatpush1.bf16.msra.mxu0 0
        %9013 = vmatprep.subr.bf16.mxu0 0
        %9014 = vmatpush1.bf16.msra.mxu0 0
        %9015 = vmatprep.subr.bf16.mxu0 0
        %9016 = vmatpush1.bf16.msra.mxu0 0
        %9017 = vmatprep.subr.bf16.mxu0 0
        %9018 = vmatpush1.bf16.msra.mxu0 0
        %9019 = vmatprep.subr.bf16.mxu0 0
        %9020 = vmatpush1.bf16.msra.mxu0 0
        %9021 = vmatprep.subr.bf16.mxu0 0
        %9022 = vmatpush1.bf16.msra.mxu0 0
        %9023 = vmatprep.subr.bf16.mxu0 0
        %9024 = vmatpush1.bf16.msra.mxu0 0
        %9025 = vmatprep.subr.bf16.mxu0 0
        %9026 = vmatpush1.bf16.msra.mxu0 0
        %9027 = vmatprep.subr.bf16.mxu0 0
        %9028 = vmatpush1.bf16.msra.mxu0 0
        %9029 = vmatprep.subr.bf16.mxu0 0
        %9030 = vmatpush1.bf16.msra.mxu0 0
        %9031 = vmatprep.subr.bf16.mxu0 0
        %9032 = vmatpush1.bf16.msra.mxu0 0
        %9033 = vmatprep.subr.bf16.mxu0 0
        %9034 = vmatpush1.bf16.msra.mxu0 0
        %9035 = vmatprep.subr.bf16.mxu0 0
        %9036 = vmatpush1.bf16.msra.mxu0 0
        %9037 = vmatprep.subr.bf16.mxu0 0
        %9038 = vmatpush1.bf16.msra.mxu0 0
        %9039 = vmatprep.mubr.bf16.mxu0 0
        %9040 = vmatmul.mubr.bf16.gmra.mrb[0].mxu0 %v4659
        %v9041 = vpop.f32.mrb[0].mxu0
        %v9042 = vadd.f32 %v1668, %v9041
        %v9043 = vpop.f32.mrb[0].mxu0
        %v9044 = vadd.f32 %v1672, %v9043
        %v9045 = vpop.f32.mrb[0].mxu0
        %v9046 = vpop.f32.mrb[0].mxu0
        %9047 = vdwg.mxu0
        %9048 = vmatprep.subr.bf16.mxu0 %v3848
        %9049 = vmatpush1.bf16.msra.mxu0 %v3847
        %9050 = vmatprep.subr.bf16.mxu0 %v4104
        %9051 = vmatpush1.bf16.msra.mxu0 %v4103
        %9052 = vmatprep.subr.bf16.mxu0 0
        %9053 = vmatpush1.bf16.msra.mxu0 0
        %9054 = vmatprep.subr.bf16.mxu0 0
        %9055 = vmatpush1.bf16.msra.mxu0 0
        %9056 = vmatprep.subr.bf16.mxu0 0
        %9057 = vmatpush1.bf16.msra.mxu0 0
        %9058 = vmatprep.subr.bf16.mxu0 0
        %9059 = vmatpush1.bf16.msra.mxu0 0
        %9060 = vmatprep.subr.bf16.mxu0 0
        %9061 = vmatpush1.bf16.msra.mxu0 0
        %9062 = vmatprep.subr.bf16.mxu0 0
        %9063 = vmatpush1.bf16.msra.mxu0 0
        %9064 = vmatprep.subr.bf16.mxu0 0
        %9065 = vmatpush1.bf16.msra.mxu0 0
        %9066 = vmatprep.subr.bf16.mxu0 0
        %9067 = vmatpush1.bf16.msra.mxu0 0
        %9068 = vmatprep.subr.bf16.mxu0 0
        %9069 = vmatpush1.bf16.msra.mxu0 0
        %9070 = vmatprep.subr.bf16.mxu0 0
        %9071 = vmatpush1.bf16.msra.mxu0 0
        %9072 = vmatprep.subr.bf16.mxu0 0
        %9073 = vmatpush1.bf16.msra.mxu0 0
        %9074 = vmatprep.subr.bf16.mxu0 0
        %9075 = vmatpush1.bf16.msra.mxu0 0
        %9076 = vmatprep.subr.bf16.mxu0 0
        %9077 = vmatpush1.bf16.msra.mxu0 0
        %9078 = vmatprep.subr.bf16.mxu0 0
        %9079 = vmatpush1.bf16.msra.mxu0 0
        %9080 = vmatprep.mubr.bf16.mxu0 0
        %9081 = vmatmul.mubr.bf16.gmra.mrb[0].mxu0 %v4659
        %v9082 = vpop.f32.mrb[0].mxu0
        %v9083 = vadd.f32 %v1676, %v9082
        %v9084 = vpop.f32.mrb[0].mxu0
        %v9085 = vadd.f32 %v1680, %v9084
        %v9086 = vpop.f32.mrb[0].mxu0
        %v9087 = vpop.f32.mrb[0].mxu0
        %9088 = vdwg.mxu0
        %9089 = vmatprep.subr.bf16.mxu0 %v3850
        %9090 = vmatpush1.bf16.msra.mxu0 %v3849
        %9091 = vmatprep.subr.bf16.mxu0 %v4106
        %9092 = vmatpush1.bf16.msra.mxu0 %v4105
        %9093 = vmatprep.subr.bf16.mxu0 0
        %9094 = vmatpush1.bf16.msra.mxu0 0
        %9095 = vmatprep.subr.bf16.mxu0 0
        %9096 = vmatpush1.bf16.msra.mxu0 0
        %9097 = vmatprep.subr.bf16.mxu0 0
        %9098 = vmatpush1.bf16.msra.mxu0 0
        %9099 = vmatprep.subr.bf16.mxu0 0
        %9100 = vmatpush1.bf16.msra.mxu0 0
        %9101 = vmatprep.subr.bf16.mxu0 0
        %9102 = vmatpush1.bf16.msra.mxu0 0
        %9103 = vmatprep.subr.bf16.mxu0 0
        %9104 = vmatpush1.bf16.msra.mxu0 0
        %9105 = vmatprep.subr.bf16.mxu0 0
        %9106 = vmatpush1.bf16.msra.mxu0 0
        %9107 = vmatprep.subr.bf16.mxu0 0
        %9108 = vmatpush1.bf16.msra.mxu0 0
        %9109 = vmatprep.subr.bf16.mxu0 0
        %9110 = vmatpush1.bf16.msra.mxu0 0
        %9111 = vmatprep.subr.bf16.mxu0 0
        %9112 = vmatpush1.bf16.msra.mxu0 0
        %9113 = vmatprep.subr.bf16.mxu0 0
        %9114 = vmatpush1.bf16.msra.mxu0 0
        %9115 = vmatprep.subr.bf16.mxu0 0
        %9116 = vmatpush1.bf16.msra.mxu0 0
        %9117 = vmatprep.subr.bf16.mxu0 0
        %9118 = vmatpush1.bf16.msra.mxu0 0
        %9119 = vmatprep.subr.bf16.mxu0 0
        %9120 = vmatpush1.bf16.msra.mxu0 0
        %9121 = vmatprep.mubr.bf16.mxu0 0
        %9122 = vmatmul.mubr.bf16.gmra.mrb[0].mxu0 %v4659
        %v9123 = vpop.f32.mrb[0].mxu0
        %v9124 = vadd.f32 %v1684, %v9123
        %v9125 = vpop.f32.mrb[0].mxu0
        %v9126 = vadd.f32 %v1688, %v9125
        %v9127 = vpop.f32.mrb[0].mxu0
        %v9128 = vpop.f32.mrb[0].mxu0
        %9129 = vdwg.mxu0
        %9130 = vmatprep.subr.bf16.mxu0 %v3852
        %9131 = vmatpush1.bf16.msra.mxu0 %v3851
        %9132 = vmatprep.subr.bf16.mxu0 %v4108
        %9133 = vmatpush1.bf16.msra.mxu0 %v4107
        %9134 = vmatprep.subr.bf16.mxu0 0
        %9135 = vmatpush1.bf16.msra.mxu0 0
        %9136 = vmatprep.subr.bf16.mxu0 0
        %9137 = vmatpush1.bf16.msra.mxu0 0
        %9138 = vmatprep.subr.bf16.mxu0 0
        %9139 = vmatpush1.bf16.msra.mxu0 0
        %9140 = vmatprep.subr.bf16.mxu0 0
        %9141 = vmatpush1.bf16.msra.mxu0 0
        %9142 = vmatprep.subr.bf16.mxu0 0
        %9143 = vmatpush1.bf16.msra.mxu0 0
        %9144 = vmatprep.subr.bf16.mxu0 0
        %9145 = vmatpush1.bf16.msra.mxu0 0
        %9146 = vmatprep.subr.bf16.mxu0 0
        %9147 = vmatpush1.bf16.msra.mxu0 0
        %9148 = vmatprep.subr.bf16.mxu0 0
        %9149 = vmatpush1.bf16.msra.mxu0 0
        %9150 = vmatprep.subr.bf16.mxu0 0
        %9151 = vmatpush1.bf16.msra.mxu0 0
        %9152 = vmatprep.subr.bf16.mxu0 0
        %9153 = vmatpush1.bf16.msra.mxu0 0
        %9154 = vmatprep.subr.bf16.mxu0 0
        %9155 = vmatpush1.bf16.msra.mxu0 0
        %9156 = vmatprep.subr.bf16.mxu0 0
        %9157 = vmatpush1.bf16.msra.mxu0 0
        %9158 = vmatprep.subr.bf16.mxu0 0
        %9159 = vmatpush1.bf16.msra.mxu0 0
        %9160 = vmatprep.subr.bf16.mxu0 0
        %9161 = vmatpush1.bf16.msra.mxu0 0
        %9162 = vmatprep.mubr.bf16.mxu0 0
        %9163 = vmatmul.mubr.bf16.gmra.mrb[0].mxu0 %v4659
        %v9164 = vpop.f32.mrb[0].mxu0
        %v9165 = vadd.f32 %v1692, %v9164
        %v9166 = vpop.f32.mrb[0].mxu0
        %v9167 = vadd.f32 %v1696, %v9166
        %v9168 = vpop.f32.mrb[0].mxu0
        %v9169 = vpop.f32.mrb[0].mxu0
        %9170 = vdwg.mxu0
        %9171 = vmatprep.subr.bf16.mxu0 %v3854
        %9172 = vmatpush1.bf16.msra.mxu0 %v3853
        %9173 = vmatprep.subr.bf16.mxu0 %v4110
        %9174 = vmatpush1.bf16.msra.mxu0 %v4109
        %9175 = vmatprep.subr.bf16.mxu0 0
        %9176 = vmatpush1.bf16.msra.mxu0 0
        %9177 = vmatprep.subr.bf16.mxu0 0
        %9178 = vmatpush1.bf16.msra.mxu0 0
        %9179 = vmatprep.subr.bf16.mxu0 0
        %9180 = vmatpush1.bf16.msra.mxu0 0
        %9181 = vmatprep.subr.bf16.mxu0 0
        %9182 = vmatpush1.bf16.msra.mxu0 0
        %9183 = vmatprep.subr.bf16.mxu0 0
        %9184 = vmatpush1.bf16.msra.mxu0 0
        %9185 = vmatprep.subr.bf16.mxu0 0
        %9186 = vmatpush1.bf16.msra.mxu0 0
        %9187 = vmatprep.subr.bf16.mxu0 0
        %9188 = vmatpush1.bf16.msra.mxu0 0
        %9189 = vmatprep.subr.bf16.mxu0 0
        %9190 = vmatpush1.bf16.msra.mxu0 0
        %9191 = vmatprep.subr.bf16.mxu0 0
        %9192 = vmatpush1.bf16.msra.mxu0 0
        %9193 = vmatprep.subr.bf16.mxu0 0
        %9194 = vmatpush1.bf16.msra.mxu0 0
        %9195 = vmatprep.subr.bf16.mxu0 0
        %9196 = vmatpush1.bf16.msra.mxu0 0
        %9197 = vmatprep.subr.bf16.mxu0 0
        %9198 = vmatpush1.bf16.msra.mxu0 0
        %9199 = vmatprep.subr.bf16.mxu0 0
        %9200 = vmatpush1.bf16.msra.mxu0 0
        %9201 = vmatprep.subr.bf16.mxu0 0
        %9202 = vmatpush1.bf16.msra.mxu0 0
        %9203 = vmatprep.mubr.bf16.mxu0 0
        %9204 = vmatmul.mubr.bf16.gmra.mrb[0].mxu0 %v4659
        %v9205 = vpop.f32.mrb[0].mxu0
        %v9206 = vadd.f32 %v1700, %v9205
        %v9207 = vpop.f32.mrb[0].mxu0
        %v9208 = vadd.f32 %v1704, %v9207
        %v9209 = vpop.f32.mrb[0].mxu0
        %v9210 = vpop.f32.mrb[0].mxu0
        %9211 = vdwg.mxu0
        %9212 = vmatprep.subr.bf16.mxu0 %v3856
        %9213 = vmatpush1.bf16.msra.mxu0 %v3855
        %9214 = vmatprep.subr.bf16.mxu0 %v4112
        %9215 = vmatpush1.bf16.msra.mxu0 %v4111
        %9216 = vmatprep.subr.bf16.mxu0 0
        %9217 = vmatpush1.bf16.msra.mxu0 0
        %9218 = vmatprep.subr.bf16.mxu0 0
        %9219 = vmatpush1.bf16.msra.mxu0 0
        %9220 = vmatprep.subr.bf16.mxu0 0
        %9221 = vmatpush1.bf16.msra.mxu0 0
        %9222 = vmatprep.subr.bf16.mxu0 0
        %9223 = vmatpush1.bf16.msra.mxu0 0
        %9224 = vmatprep.subr.bf16.mxu0 0
        %9225 = vmatpush1.bf16.msra.mxu0 0
        %9226 = vmatprep.subr.bf16.mxu0 0
        %9227 = vmatpush1.bf16.msra.mxu0 0
        %9228 = vmatprep.subr.bf16.mxu0 0
        %9229 = vmatpush1.bf16.msra.mxu0 0
        %9230 = vmatprep.subr.bf16.mxu0 0
        %9231 = vmatpush1.bf16.msra.mxu0 0
        %9232 = vmatprep.subr.bf16.mxu0 0
        %9233 = vmatpush1.bf16.msra.mxu0 0
        %9234 = vmatprep.subr.bf16.mxu0 0
        %9235 = vmatpush1.bf16.msra.mxu0 0
        %9236 = vmatprep.subr.bf16.mxu0 0
        %9237 = vmatpush1.bf16.msra.mxu0 0
        %9238 = vmatprep.subr.bf16.mxu0 0
        %9239 = vmatpush1.bf16.msra.mxu0 0
        %9240 = vmatprep.subr.bf16.mxu0 0
        %9241 = vmatpush1.bf16.msra.mxu0 0
        %9242 = vmatprep.subr.bf16.mxu0 0
        %9243 = vmatpush1.bf16.msra.mxu0 0
        %9244 = vmatprep.mubr.bf16.mxu0 0
        %9245 = vmatmul.mubr.bf16.gmra.mrb[0].mxu0 %v4659
        %v9246 = vpop.f32.mrb[0].mxu0
        %v9247 = vadd.f32 %v1708, %v9246
        %v9248 = vpop.f32.mrb[0].mxu0
        %v9249 = vadd.f32 %v1712, %v9248
        %v9250 = vpop.f32.mrb[0].mxu0
        %v9251 = vpop.f32.mrb[0].mxu0
        %9252 = vdwg.mxu0
        %9253 = vmatprep.subr.bf16.mxu0 %v3858
        %9254 = vmatpush1.bf16.msra.mxu0 %v3857
        %9255 = vmatprep.subr.bf16.mxu0 %v4114
        %9256 = vmatpush1.bf16.msra.mxu0 %v4113
        %9257 = vmatprep.subr.bf16.mxu0 0
        %9258 = vmatpush1.bf16.msra.mxu0 0
        %9259 = vmatprep.subr.bf16.mxu0 0
        %9260 = vmatpush1.bf16.msra.mxu0 0
        %9261 = vmatprep.subr.bf16.mxu0 0
        %9262 = vmatpush1.bf16.msra.mxu0 0
        %9263 = vmatprep.subr.bf16.mxu0 0
        %9264 = vmatpush1.bf16.msra.mxu0 0
        %9265 = vmatprep.subr.bf16.mxu0 0
        %9266 = vmatpush1.bf16.msra.mxu0 0
        %9267 = vmatprep.subr.bf16.mxu0 0
        %9268 = vmatpush1.bf16.msra.mxu0 0
        %9269 = vmatprep.subr.bf16.mxu0 0
        %9270 = vmatpush1.bf16.msra.mxu0 0
        %9271 = vmatprep.subr.bf16.mxu0 0
        %9272 = vmatpush1.bf16.msra.mxu0 0
        %9273 = vmatprep.subr.bf16.mxu0 0
        %9274 = vmatpush1.bf16.msra.mxu0 0
        %9275 = vmatprep.subr.bf16.mxu0 0
        %9276 = vmatpush1.bf16.msra.mxu0 0
        %9277 = vmatprep.subr.bf16.mxu0 0
        %9278 = vmatpush1.bf16.msra.mxu0 0
        %9279 = vmatprep.subr.bf16.mxu0 0
        %9280 = vmatpush1.bf16.msra.mxu0 0
        %9281 = vmatprep.subr.bf16.mxu0 0
        %9282 = vmatpush1.bf16.msra.mxu0 0
        %9283 = vmatprep.subr.bf16.mxu0 0
        %9284 = vmatpush1.bf16.msra.mxu0 0
        %9285 = vmatprep.mubr.bf16.mxu0 0
        %9286 = vmatmul.mubr.bf16.gmra.mrb[0].mxu0 %v4659
        %v9287 = vpop.f32.mrb[0].mxu0
        %v9288 = vadd.f32 %v1716, %v9287
        %v9289 = vpop.f32.mrb[0].mxu0
        %v9290 = vadd.f32 %v1720, %v9289
        %v9291 = vpop.f32.mrb[0].mxu0
        %v9292 = vpop.f32.mrb[0].mxu0
        %9293 = vdwg.mxu0
        %9294 = vmatprep.subr.bf16.mxu0 %v3860
        %9295 = vmatpush1.bf16.msra.mxu0 %v3859
        %9296 = vmatprep.subr.bf16.mxu0 %v4116
        %9297 = vmatpush1.bf16.msra.mxu0 %v4115
        %9298 = vmatprep.subr.bf16.mxu0 0
        %9299 = vmatpush1.bf16.msra.mxu0 0
        %9300 = vmatprep.subr.bf16.mxu0 0
        %9301 = vmatpush1.bf16.msra.mxu0 0
        %9302 = vmatprep.subr.bf16.mxu0 0
        %9303 = vmatpush1.bf16.msra.mxu0 0
        %9304 = vmatprep.subr.bf16.mxu0 0
        %9305 = vmatpush1.bf16.msra.mxu0 0
        %9306 = vmatprep.subr.bf16.mxu0 0
        %9307 = vmatpush1.bf16.msra.mxu0 0
        %9308 = vmatprep.subr.bf16.mxu0 0
        %9309 = vmatpush1.bf16.msra.mxu0 0
        %9310 = vmatprep.subr.bf16.mxu0 0
        %9311 = vmatpush1.bf16.msra.mxu0 0
        %9312 = vmatprep.subr.bf16.mxu0 0
        %9313 = vmatpush1.bf16.msra.mxu0 0
        %9314 = vmatprep.subr.bf16.mxu0 0
        %9315 = vmatpush1.bf16.msra.mxu0 0
        %9316 = vmatprep.subr.bf16.mxu0 0
        %9317 = vmatpush1.bf16.msra.mxu0 0
        %9318 = vmatprep.subr.bf16.mxu0 0
        %9319 = vmatpush1.bf16.msra.mxu0 0
        %9320 = vmatprep.subr.bf16.mxu0 0
        %9321 = vmatpush1.bf16.msra.mxu0 0
        %9322 = vmatprep.subr.bf16.mxu0 0
        %9323 = vmatpush1.bf16.msra.mxu0 0
        %9324 = vmatprep.subr.bf16.mxu0 0
        %9325 = vmatpush1.bf16.msra.mxu0 0
        %9326 = vmatprep.mubr.bf16.mxu0 0
        %9327 = vmatmul.mubr.bf16.gmra.mrb[0].mxu0 %v4659
        %v9328 = vpop.f32.mrb[0].mxu0
        %v9329 = vadd.f32 %v1724, %v9328
        %v9330 = vpop.f32.mrb[0].mxu0
        %v9331 = vadd.f32 %v1728, %v9330
        %v9332 = vpop.f32.mrb[0].mxu0
        %v9333 = vpop.f32.mrb[0].mxu0
        %9334 = vdwg.mxu0
        %9335 = vmatprep.subr.bf16.mxu0 %v3862
        %9336 = vmatpush1.bf16.msra.mxu0 %v3861
        %9337 = vmatprep.subr.bf16.mxu0 %v4118
        %9338 = vmatpush1.bf16.msra.mxu0 %v4117
        %9339 = vmatprep.subr.bf16.mxu0 0
        %9340 = vmatpush1.bf16.msra.mxu0 0
        %9341 = vmatprep.subr.bf16.mxu0 0
        %9342 = vmatpush1.bf16.msra.mxu0 0
        %9343 = vmatprep.subr.bf16.mxu0 0
        %9344 = vmatpush1.bf16.msra.mxu0 0
        %9345 = vmatprep.subr.bf16.mxu0 0
        %9346 = vmatpush1.bf16.msra.mxu0 0
        %9347 = vmatprep.subr.bf16.mxu0 0
        %9348 = vmatpush1.bf16.msra.mxu0 0
        %9349 = vmatprep.subr.bf16.mxu0 0
        %9350 = vmatpush1.bf16.msra.mxu0 0
        %9351 = vmatprep.subr.bf16.mxu0 0
        %9352 = vmatpush1.bf16.msra.mxu0 0
        %9353 = vmatprep.subr.bf16.mxu0 0
        %9354 = vmatpush1.bf16.msra.mxu0 0
        %9355 = vmatprep.subr.bf16.mxu0 0
        %9356 = vmatpush1.bf16.msra.mxu0 0
        %9357 = vmatprep.subr.bf16.mxu0 0
        %9358 = vmatpush1.bf16.msra.mxu0 0
        %9359 = vmatprep.subr.bf16.mxu0 0
        %9360 = vmatpush1.bf16.msra.mxu0 0
        %9361 = vmatprep.subr.bf16.mxu0 0
        %9362 = vmatpush1.bf16.msra.mxu0 0
        %9363 = vmatprep.subr.bf16.mxu0 0
        %9364 = vmatpush1.bf16.msra.mxu0 0
        %9365 = vmatprep.subr.bf16.mxu0 0
        %9366 = vmatpush1.bf16.msra.mxu0 0
        %9367 = vmatprep.mubr.bf16.mxu0 0
        %9368 = vmatmul.mubr.bf16.gmra.mrb[0].mxu0 %v4659
        %v9369 = vpop.f32.mrb[0].mxu0
        %v9370 = vadd.f32 %v1732, %v9369
        %v9371 = vpop.f32.mrb[0].mxu0
        %v9372 = vadd.f32 %v1736, %v9371
        %v9373 = vpop.f32.mrb[0].mxu0
        %v9374 = vpop.f32.mrb[0].mxu0
        %9375 = vdwg.mxu0
        %9376 = vmatprep.subr.bf16.mxu0 %v3864
        %9377 = vmatpush1.bf16.msra.mxu0 %v3863
        %9378 = vmatprep.subr.bf16.mxu0 %v4120
        %9379 = vmatpush1.bf16.msra.mxu0 %v4119
        %9380 = vmatprep.subr.bf16.mxu0 0
        %9381 = vmatpush1.bf16.msra.mxu0 0
        %9382 = vmatprep.subr.bf16.mxu0 0
        %9383 = vmatpush1.bf16.msra.mxu0 0
        %9384 = vmatprep.subr.bf16.mxu0 0
        %9385 = vmatpush1.bf16.msra.mxu0 0
        %9386 = vmatprep.subr.bf16.mxu0 0
        %9387 = vmatpush1.bf16.msra.mxu0 0
        %9388 = vmatprep.subr.bf16.mxu0 0
        %9389 = vmatpush1.bf16.msra.mxu0 0
        %9390 = vmatprep.subr.bf16.mxu0 0
        %9391 = vmatpush1.bf16.msra.mxu0 0
        %9392 = vmatprep.subr.bf16.mxu0 0
        %9393 = vmatpush1.bf16.msra.mxu0 0
        %9394 = vmatprep.subr.bf16.mxu0 0
        %9395 = vmatpush1.bf16.msra.mxu0 0
        %9396 = vmatprep.subr.bf16.mxu0 0
        %9397 = vmatpush1.bf16.msra.mxu0 0
        %9398 = vmatprep.subr.bf16.mxu0 0
        %9399 = vmatpush1.bf16.msra.mxu0 0
        %9400 = vmatprep.subr.bf16.mxu0 0
        %9401 = vmatpush1.bf16.msra.mxu0 0
        %9402 = vmatprep.subr.bf16.mxu0 0
        %9403 = vmatpush1.bf16.msra.mxu0 0
        %9404 = vmatprep.subr.bf16.mxu0 0
        %9405 = vmatpush1.bf16.msra.mxu0 0
        %9406 = vmatprep.subr.bf16.mxu0 0
        %9407 = vmatpush1.bf16.msra.mxu0 0
        %9408 = vmatprep.mubr.bf16.mxu0 0
        %9409 = vmatmul.mubr.bf16.gmra.mrb[0].mxu0 %v4659
        %v9410 = vpop.f32.mrb[0].mxu0
        %v9411 = vadd.f32 %v1740, %v9410
        %v9412 = vpop.f32.mrb[0].mxu0
        %v9413 = vadd.f32 %v1744, %v9412
        %v9414 = vpop.f32.mrb[0].mxu0
        %v9415 = vpop.f32.mrb[0].mxu0
        %9416 = vdwg.mxu0
        %9417 = vmatprep.subr.bf16.mxu0 %v3866
        %9418 = vmatpush1.bf16.msra.mxu0 %v3865
        %9419 = vmatprep.subr.bf16.mxu0 %v4122
        %9420 = vmatpush1.bf16.msra.mxu0 %v4121
        %9421 = vmatprep.subr.bf16.mxu0 0
        %9422 = vmatpush1.bf16.msra.mxu0 0
        %9423 = vmatprep.subr.bf16.mxu0 0
        %9424 = vmatpush1.bf16.msra.mxu0 0
        %9425 = vmatprep.subr.bf16.mxu0 0
        %9426 = vmatpush1.bf16.msra.mxu0 0
        %9427 = vmatprep.subr.bf16.mxu0 0
        %9428 = vmatpush1.bf16.msra.mxu0 0
        %9429 = vmatprep.subr.bf16.mxu0 0
        %9430 = vmatpush1.bf16.msra.mxu0 0
        %9431 = vmatprep.subr.bf16.mxu0 0
        %9432 = vmatpush1.bf16.msra.mxu0 0
        %9433 = vmatprep.subr.bf16.mxu0 0
        %9434 = vmatpush1.bf16.msra.mxu0 0
        %9435 = vmatprep.subr.bf16.mxu0 0
        %9436 = vmatpush1.bf16.msra.mxu0 0
        %9437 = vmatprep.subr.bf16.mxu0 0
        %9438 = vmatpush1.bf16.msra.mxu0 0
        %9439 = vmatprep.subr.bf16.mxu0 0
        %9440 = vmatpush1.bf16.msra.mxu0 0
        %9441 = vmatprep.subr.bf16.mxu0 0
        %9442 = vmatpush1.bf16.msra.mxu0 0
        %9443 = vmatprep.subr.bf16.mxu0 0
        %9444 = vmatpush1.bf16.msra.mxu0 0
        %9445 = vmatprep.subr.bf16.mxu0 0
        %9446 = vmatpush1.bf16.msra.mxu0 0
        %9447 = vmatprep.subr.bf16.mxu0 0
        %9448 = vmatpush1.bf16.msra.mxu0 0
        %9449 = vmatprep.mubr.bf16.mxu0 0
        %9450 = vmatmul.mubr.bf16.gmra.mrb[0].mxu0 %v4659
        %v9451 = vpop.f32.mrb[0].mxu0
        %v9452 = vadd.f32 %v1748, %v9451
        %v9453 = vpop.f32.mrb[0].mxu0
        %v9454 = vadd.f32 %v1752, %v9453
        %v9455 = vpop.f32.mrb[0].mxu0
        %v9456 = vpop.f32.mrb[0].mxu0
        %9457 = vdwg.mxu0
        %9458 = vmatprep.subr.bf16.mxu0 %v3868
        %9459 = vmatpush1.bf16.msra.mxu0 %v3867
        %9460 = vmatprep.subr.bf16.mxu0 %v4124
        %9461 = vmatpush1.bf16.msra.mxu0 %v4123
        %9462 = vmatprep.subr.bf16.mxu0 0
        %9463 = vmatpush1.bf16.msra.mxu0 0
        %9464 = vmatprep.subr.bf16.mxu0 0
        %9465 = vmatpush1.bf16.msra.mxu0 0
        %9466 = vmatprep.subr.bf16.mxu0 0
        %9467 = vmatpush1.bf16.msra.mxu0 0
        %9468 = vmatprep.subr.bf16.mxu0 0
        %9469 = vmatpush1.bf16.msra.mxu0 0
        %9470 = vmatprep.subr.bf16.mxu0 0
        %9471 = vmatpush1.bf16.msra.mxu0 0
        %9472 = vmatprep.subr.bf16.mxu0 0
        %9473 = vmatpush1.bf16.msra.mxu0 0
        %9474 = vmatprep.subr.bf16.mxu0 0
        %9475 = vmatpush1.bf16.msra.mxu0 0
        %9476 = vmatprep.subr.bf16.mxu0 0
        %9477 = vmatpush1.bf16.msra.mxu0 0
        %9478 = vmatprep.subr.bf16.mxu0 0
        %9479 = vmatpush1.bf16.msra.mxu0 0
        %9480 = vmatprep.subr.bf16.mxu0 0
        %9481 = vmatpush1.bf16.msra.mxu0 0
        %9482 = vmatprep.subr.bf16.mxu0 0
        %9483 = vmatpush1.bf16.msra.mxu0 0
        %9484 = vmatprep.subr.bf16.mxu0 0
        %9485 = vmatpush1.bf16.msra.mxu0 0
        %9486 = vmatprep.subr.bf16.mxu0 0
        %9487 = vmatpush1.bf16.msra.mxu0 0
        %9488 = vmatprep.subr.bf16.mxu0 0
        %9489 = vmatpush1.bf16.msra.mxu0 0
        %9490 = vmatprep.mubr.bf16.mxu0 0
        %9491 = vmatmul.mubr.bf16.gmra.mrb[0].mxu0 %v4659
        %v9492 = vpop.f32.mrb[0].mxu0
        %v9493 = vadd.f32 %v1756, %v9492
        %v9494 = vpop.f32.mrb[0].mxu0
        %v9495 = vadd.f32 %v1760, %v9494
        %v9496 = vpop.f32.mrb[0].mxu0
        %v9497 = vpop.f32.mrb[0].mxu0
        %9498 = vdwg.mxu0
        %9499 = vmatprep.subr.bf16.mxu0 %v3870
        %9500 = vmatpush1.bf16.msra.mxu0 %v3869
        %9501 = vmatprep.subr.bf16.mxu0 %v4126
        %9502 = vmatpush1.bf16.msra.mxu0 %v4125
        %9503 = vmatprep.subr.bf16.mxu0 0
        %9504 = vmatpush1.bf16.msra.mxu0 0
        %9505 = vmatprep.subr.bf16.mxu0 0
        %9506 = vmatpush1.bf16.msra.mxu0 0
        %9507 = vmatprep.subr.bf16.mxu0 0
        %9508 = vmatpush1.bf16.msra.mxu0 0
        %9509 = vmatprep.subr.bf16.mxu0 0
        %9510 = vmatpush1.bf16.msra.mxu0 0
        %9511 = vmatprep.subr.bf16.mxu0 0
        %9512 = vmatpush1.bf16.msra.mxu0 0
        %9513 = vmatprep.subr.bf16.mxu0 0
        %9514 = vmatpush1.bf16.msra.mxu0 0
        %9515 = vmatprep.subr.bf16.mxu0 0
        %9516 = vmatpush1.bf16.msra.mxu0 0
        %9517 = vmatprep.subr.bf16.mxu0 0
        %9518 = vmatpush1.bf16.msra.mxu0 0
        %9519 = vmatprep.subr.bf16.mxu0 0
        %9520 = vmatpush1.bf16.msra.mxu0 0
        %9521 = vmatprep.subr.bf16.mxu0 0
        %9522 = vmatpush1.bf16.msra.mxu0 0
        %9523 = vmatprep.subr.bf16.mxu0 0
        %9524 = vmatpush1.bf16.msra.mxu0 0
        %9525 = vmatprep.subr.bf16.mxu0 0
        %9526 = vmatpush1.bf16.msra.mxu0 0
        %9527 = vmatprep.subr.bf16.mxu0 0
        %9528 = vmatpush1.bf16.msra.mxu0 0
        %9529 = vmatprep.subr.bf16.mxu0 0
        %9530 = vmatpush1.bf16.msra.mxu0 0
        %9531 = vmatprep.mubr.bf16.mxu0 0
        %9532 = vmatmul.mubr.bf16.gmra.mrb[0].mxu0 %v4659
        %v9533 = vpop.f32.mrb[0].mxu0
        %v9534 = vadd.f32 %v1764, %v9533
        %v9535 = vpop.f32.mrb[0].mxu0
        %v9536 = vadd.f32 %v1768, %v9535
        %v9537 = vpop.f32.mrb[0].mxu0
        %v9538 = vpop.f32.mrb[0].mxu0
        %9539 = vdwg.mxu0
        %9540 = vmatprep.subr.bf16.mxu0 %v3872
        %9541 = vmatpush1.bf16.msra.mxu0 %v3871
        %9542 = vmatprep.subr.bf16.mxu0 %v4128
        %9543 = vmatpush1.bf16.msra.mxu0 %v4127
        %9544 = vmatprep.subr.bf16.mxu0 0
        %9545 = vmatpush1.bf16.msra.mxu0 0
        %9546 = vmatprep.subr.bf16.mxu0 0
        %9547 = vmatpush1.bf16.msra.mxu0 0
        %9548 = vmatprep.subr.bf16.mxu0 0
        %9549 = vmatpush1.bf16.msra.mxu0 0
        %9550 = vmatprep.subr.bf16.mxu0 0
        %9551 = vmatpush1.bf16.msra.mxu0 0
        %9552 = vmatprep.subr.bf16.mxu0 0
        %9553 = vmatpush1.bf16.msra.mxu0 0
        %9554 = vmatprep.subr.bf16.mxu0 0
        %9555 = vmatpush1.bf16.msra.mxu0 0
        %9556 = vmatprep.subr.bf16.mxu0 0
        %9557 = vmatpush1.bf16.msra.mxu0 0
        %9558 = vmatprep.subr.bf16.mxu0 0
        %9559 = vmatpush1.bf16.msra.mxu0 0
        %9560 = vmatprep.subr.bf16.mxu0 0
        %9561 = vmatpush1.bf16.msra.mxu0 0
        %9562 = vmatprep.subr.bf16.mxu0 0
        %9563 = vmatpush1.bf16.msra.mxu0 0
        %9564 = vmatprep.subr.bf16.mxu0 0
        %9565 = vmatpush1.bf16.msra.mxu0 0
        %9566 = vmatprep.subr.bf16.mxu0 0
        %9567 = vmatpush1.bf16.msra.mxu0 0
        %9568 = vmatprep.subr.bf16.mxu0 0
        %9569 = vmatpush1.bf16.msra.mxu0 0
        %9570 = vmatprep.subr.bf16.mxu0 0
        %9571 = vmatpush1.bf16.msra.mxu0 0
        %9572 = vmatprep.mubr.bf16.mxu0 0
        %9573 = vmatmul.mubr.bf16.gmra.mrb[0].mxu0 %v4659
        %v9574 = vpop.f32.mrb[0].mxu0
        %v9575 = vadd.f32 %v1772, %v9574
        %v9576 = vpop.f32.mrb[0].mxu0
        %v9577 = vadd.f32 %v1776, %v9576
        %v9578 = vpop.f32.mrb[0].mxu0
        %v9579 = vpop.f32.mrb[0].mxu0
        %9580 = vdwg.mxu0
        %9581 = vmatprep.subr.bf16.mxu0 %v3874
        %9582 = vmatpush1.bf16.msra.mxu0 %v3873
        %9583 = vmatprep.subr.bf16.mxu0 %v4130
        %9584 = vmatpush1.bf16.msra.mxu0 %v4129
        %9585 = vmatprep.subr.bf16.mxu0 0
        %9586 = vmatpush1.bf16.msra.mxu0 0
        %9587 = vmatprep.subr.bf16.mxu0 0
        %9588 = vmatpush1.bf16.msra.mxu0 0
        %9589 = vmatprep.subr.bf16.mxu0 0
        %9590 = vmatpush1.bf16.msra.mxu0 0
        %9591 = vmatprep.subr.bf16.mxu0 0
        %9592 = vmatpush1.bf16.msra.mxu0 0
        %9593 = vmatprep.subr.bf16.mxu0 0
        %9594 = vmatpush1.bf16.msra.mxu0 0
        %9595 = vmatprep.subr.bf16.mxu0 0
        %9596 = vmatpush1.bf16.msra.mxu0 0
        %9597 = vmatprep.subr.bf16.mxu0 0
        %9598 = vmatpush1.bf16.msra.mxu0 0
        %9599 = vmatprep.subr.bf16.mxu0 0
        %9600 = vmatpush1.bf16.msra.mxu0 0
        %9601 = vmatprep.subr.bf16.mxu0 0
        %9602 = vmatpush1.bf16.msra.mxu0 0
        %9603 = vmatprep.subr.bf16.mxu0 0
        %9604 = vmatpush1.bf16.msra.mxu0 0
        %9605 = vmatprep.subr.bf16.mxu0 0
        %9606 = vmatpush1.bf16.msra.mxu0 0
        %9607 = vmatprep.subr.bf16.mxu0 0
        %9608 = vmatpush1.bf16.msra.mxu0 0
        %9609 = vmatprep.subr.bf16.mxu0 0
        %9610 = vmatpush1.bf16.msra.mxu0 0
        %9611 = vmatprep.subr.bf16.mxu0 0
        %9612 = vmatpush1.bf16.msra.mxu0 0
        %9613 = vmatprep.mubr.bf16.mxu0 0
        %9614 = vmatmul.mubr.bf16.gmra.mrb[0].mxu0 %v4659
        %v9615 = vpop.f32.mrb[0].mxu0
        %v9616 = vadd.f32 %v1780, %v9615
        %v9617 = vpop.f32.mrb[0].mxu0
        %v9618 = vadd.f32 %v1784, %v9617
        %v9619 = vpop.f32.mrb[0].mxu0
        %v9620 = vpop.f32.mrb[0].mxu0
        %9621 = vdwg.mxu0
        %9622 = vmatprep.subr.bf16.mxu0 %v3876
        %9623 = vmatpush1.bf16.msra.mxu0 %v3875
        %9624 = vmatprep.subr.bf16.mxu0 %v4132
        %9625 = vmatpush1.bf16.msra.mxu0 %v4131
        %9626 = vmatprep.subr.bf16.mxu0 0
        %9627 = vmatpush1.bf16.msra.mxu0 0
        %9628 = vmatprep.subr.bf16.mxu0 0
        %9629 = vmatpush1.bf16.msra.mxu0 0
        %9630 = vmatprep.subr.bf16.mxu0 0
        %9631 = vmatpush1.bf16.msra.mxu0 0
        %9632 = vmatprep.subr.bf16.mxu0 0
        %9633 = vmatpush1.bf16.msra.mxu0 0
        %9634 = vmatprep.subr.bf16.mxu0 0
        %9635 = vmatpush1.bf16.msra.mxu0 0
        %9636 = vmatprep.subr.bf16.mxu0 0
        %9637 = vmatpush1.bf16.msra.mxu0 0
        %9638 = vmatprep.subr.bf16.mxu0 0
        %9639 = vmatpush1.bf16.msra.mxu0 0
        %9640 = vmatprep.subr.bf16.mxu0 0
        %9641 = vmatpush1.bf16.msra.mxu0 0
        %9642 = vmatprep.subr.bf16.mxu0 0
        %9643 = vmatpush1.bf16.msra.mxu0 0
        %9644 = vmatprep.subr.bf16.mxu0 0
        %9645 = vmatpush1.bf16.msra.mxu0 0
        %9646 = vmatprep.subr.bf16.mxu0 0
        %9647 = vmatpush1.bf16.msra.mxu0 0
        %9648 = vmatprep.subr.bf16.mxu0 0
        %9649 = vmatpush1.bf16.msra.mxu0 0
        %9650 = vmatprep.subr.bf16.mxu0 0
        %9651 = vmatpush1.bf16.msra.mxu0 0
        %9652 = vmatprep.subr.bf16.mxu0 0
        %9653 = vmatpush1.bf16.msra.mxu0 0
        %9654 = vmatprep.mubr.bf16.mxu0 0
        %9655 = vmatmul.mubr.bf16.gmra.mrb[0].mxu0 %v4659
        %v9656 = vpop.f32.mrb[0].mxu0
        %v9657 = vadd.f32 %v1788, %v9656
        %v9658 = vpop.f32.mrb[0].mxu0
        %v9659 = vadd.f32 %v1792, %v9658
        %v9660 = vpop.f32.mrb[0].mxu0
        %v9661 = vpop.f32.mrb[0].mxu0
        %9662 = vdwg.mxu0
        %9663 = vmatprep.subr.bf16.mxu0 %v3878
        %9664 = vmatpush1.bf16.msra.mxu0 %v3877
        %9665 = vmatprep.subr.bf16.mxu0 %v4134
        %9666 = vmatpush1.bf16.msra.mxu0 %v4133
        %9667 = vmatprep.subr.bf16.mxu0 0
        %9668 = vmatpush1.bf16.msra.mxu0 0
        %9669 = vmatprep.subr.bf16.mxu0 0
        %9670 = vmatpush1.bf16.msra.mxu0 0
        %9671 = vmatprep.subr.bf16.mxu0 0
        %9672 = vmatpush1.bf16.msra.mxu0 0
        %9673 = vmatprep.subr.bf16.mxu0 0
        %9674 = vmatpush1.bf16.msra.mxu0 0
        %9675 = vmatprep.subr.bf16.mxu0 0
        %9676 = vmatpush1.bf16.msra.mxu0 0
        %9677 = vmatprep.subr.bf16.mxu0 0
        %9678 = vmatpush1.bf16.msra.mxu0 0
        %9679 = vmatprep.subr.bf16.mxu0 0
        %9680 = vmatpush1.bf16.msra.mxu0 0
        %9681 = vmatprep.subr.bf16.mxu0 0
        %9682 = vmatpush1.bf16.msra.mxu0 0
        %9683 = vmatprep.subr.bf16.mxu0 0
        %9684 = vmatpush1.bf16.msra.mxu0 0
        %9685 = vmatprep.subr.bf16.mxu0 0
        %9686 = vmatpush1.bf16.msra.mxu0 0
        %9687 = vmatprep.subr.bf16.mxu0 0
        %9688 = vmatpush1.bf16.msra.mxu0 0
        %9689 = vmatprep.subr.bf16.mxu0 0
        %9690 = vmatpush1.bf16.msra.mxu0 0
        %9691 = vmatprep.subr.bf16.mxu0 0
        %9692 = vmatpush1.bf16.msra.mxu0 0
        %9693 = vmatprep.subr.bf16.mxu0 0
        %9694 = vmatpush1.bf16.msra.mxu0 0
        %9695 = vmatprep.mubr.bf16.mxu0 0
        %9696 = vmatmul.mubr.bf16.gmra.mrb[0].mxu0 %v4659
        %v9697 = vpop.f32.mrb[0].mxu0
        %v9698 = vadd.f32 %v1796, %v9697
        %v9699 = vpop.f32.mrb[0].mxu0
        %v9700 = vadd.f32 %v1800, %v9699
        %v9701 = vpop.f32.mrb[0].mxu0
        %v9702 = vpop.f32.mrb[0].mxu0
        %9703 = vdwg.mxu0
        %9704 = vmatprep.subr.bf16.mxu0 %v3880
        %9705 = vmatpush1.bf16.msra.mxu0 %v3879
        %9706 = vmatprep.subr.bf16.mxu0 %v4136
        %9707 = vmatpush1.bf16.msra.mxu0 %v4135
        %9708 = vmatprep.subr.bf16.mxu0 0
        %9709 = vmatpush1.bf16.msra.mxu0 0
        %9710 = vmatprep.subr.bf16.mxu0 0
        %9711 = vmatpush1.bf16.msra.mxu0 0
        %9712 = vmatprep.subr.bf16.mxu0 0
        %9713 = vmatpush1.bf16.msra.mxu0 0
        %9714 = vmatprep.subr.bf16.mxu0 0
        %9715 = vmatpush1.bf16.msra.mxu0 0
        %9716 = vmatprep.subr.bf16.mxu0 0
        %9717 = vmatpush1.bf16.msra.mxu0 0
        %9718 = vmatprep.subr.bf16.mxu0 0
        %9719 = vmatpush1.bf16.msra.mxu0 0
        %9720 = vmatprep.subr.bf16.mxu0 0
        %9721 = vmatpush1.bf16.msra.mxu0 0
        %9722 = vmatprep.subr.bf16.mxu0 0
        %9723 = vmatpush1.bf16.msra.mxu0 0
        %9724 = vmatprep.subr.bf16.mxu0 0
        %9725 = vmatpush1.bf16.msra.mxu0 0
        %9726 = vmatprep.subr.bf16.mxu0 0
        %9727 = vmatpush1.bf16.msra.mxu0 0
        %9728 = vmatprep.subr.bf16.mxu0 0
        %9729 = vmatpush1.bf16.msra.mxu0 0
        %9730 = vmatprep.subr.bf16.mxu0 0
        %9731 = vmatpush1.bf16.msra.mxu0 0
        %9732 = vmatprep.subr.bf16.mxu0 0
        %9733 = vmatpush1.bf16.msra.mxu0 0
        %9734 = vmatprep.subr.bf16.mxu0 0
        %9735 = vmatpush1.bf16.msra.mxu0 0
        %9736 = vmatprep.mubr.bf16.mxu0 0
        %9737 = vmatmul.mubr.bf16.gmra.mrb[0].mxu0 %v4659
        %v9738 = vpop.f32.mrb[0].mxu0
        %v9739 = vadd.f32 %v1804, %v9738
        %v9740 = vpop.f32.mrb[0].mxu0
        %v9741 = vadd.f32 %v1808, %v9740
        %v9742 = vpop.f32.mrb[0].mxu0
        %v9743 = vpop.f32.mrb[0].mxu0
        %9744 = vdwg.mxu0
        %9745 = vmatprep.subr.bf16.mxu0 %v3882
        %9746 = vmatpush1.bf16.msra.mxu0 %v3881
        %9747 = vmatprep.subr.bf16.mxu0 %v4138
        %9748 = vmatpush1.bf16.msra.mxu0 %v4137
        %9749 = vmatprep.subr.bf16.mxu0 0
        %9750 = vmatpush1.bf16.msra.mxu0 0
        %9751 = vmatprep.subr.bf16.mxu0 0
        %9752 = vmatpush1.bf16.msra.mxu0 0
        %9753 = vmatprep.subr.bf16.mxu0 0
        %9754 = vmatpush1.bf16.msra.mxu0 0
        %9755 = vmatprep.subr.bf16.mxu0 0
        %9756 = vmatpush1.bf16.msra.mxu0 0
        %9757 = vmatprep.subr.bf16.mxu0 0
        %9758 = vmatpush1.bf16.msra.mxu0 0
        %9759 = vmatprep.subr.bf16.mxu0 0
        %9760 = vmatpush1.bf16.msra.mxu0 0
        %9761 = vmatprep.subr.bf16.mxu0 0
        %9762 = vmatpush1.bf16.msra.mxu0 0
        %9763 = vmatprep.subr.bf16.mxu0 0
        %9764 = vmatpush1.bf16.msra.mxu0 0
        %9765 = vmatprep.subr.bf16.mxu0 0
        %9766 = vmatpush1.bf16.msra.mxu0 0
        %9767 = vmatprep.subr.bf16.mxu0 0
        %9768 = vmatpush1.bf16.msra.mxu0 0
        %9769 = vmatprep.subr.bf16.mxu0 0
        %9770 = vmatpush1.bf16.msra.mxu0 0
        %9771 = vmatprep.subr.bf16.mxu0 0
        %9772 = vmatpush1.bf16.msra.mxu0 0
        %9773 = vmatprep.subr.bf16.mxu0 0
        %9774 = vmatpush1.bf16.msra.mxu0 0
        %9775 = vmatprep.subr.bf16.mxu0 0
        %9776 = vmatpush1.bf16.msra.mxu0 0
        %9777 = vmatprep.mubr.bf16.mxu0 0
        %9778 = vmatmul.mubr.bf16.gmra.mrb[0].mxu0 %v4659
        %v9779 = vpop.f32.mrb[0].mxu0
        %v9780 = vadd.f32 %v1812, %v9779
        %v9781 = vpop.f32.mrb[0].mxu0
        %v9782 = vadd.f32 %v1816, %v9781
        %v9783 = vpop.f32.mrb[0].mxu0
        %v9784 = vpop.f32.mrb[0].mxu0
        %9785 = vdwg.mxu0
        %9786 = vmatprep.subr.bf16.mxu0 %v3884
        %9787 = vmatpush1.bf16.msra.mxu0 %v3883
        %9788 = vmatprep.subr.bf16.mxu0 %v4140
        %9789 = vmatpush1.bf16.msra.mxu0 %v4139
        %9790 = vmatprep.subr.bf16.mxu0 0
        %9791 = vmatpush1.bf16.msra.mxu0 0
        %9792 = vmatprep.subr.bf16.mxu0 0
        %9793 = vmatpush1.bf16.msra.mxu0 0
        %9794 = vmatprep.subr.bf16.mxu0 0
        %9795 = vmatpush1.bf16.msra.mxu0 0
        %9796 = vmatprep.subr.bf16.mxu0 0
        %9797 = vmatpush1.bf16.msra.mxu0 0
        %9798 = vmatprep.subr.bf16.mxu0 0
        %9799 = vmatpush1.bf16.msra.mxu0 0
        %9800 = vmatprep.subr.bf16.mxu0 0
        %9801 = vmatpush1.bf16.msra.mxu0 0
        %9802 = vmatprep.subr.bf16.mxu0 0
        %9803 = vmatpush1.bf16.msra.mxu0 0
        %9804 = vmatprep.subr.bf16.mxu0 0
        %9805 = vmatpush1.bf16.msra.mxu0 0
        %9806 = vmatprep.subr.bf16.mxu0 0
        %9807 = vmatpush1.bf16.msra.mxu0 0
        %9808 = vmatprep.subr.bf16.mxu0 0
        %9809 = vmatpush1.bf16.msra.mxu0 0
        %9810 = vmatprep.subr.bf16.mxu0 0
        %9811 = vmatpush1.bf16.msra.mxu0 0
        %9812 = vmatprep.subr.bf16.mxu0 0
        %9813 = vmatpush1.bf16.msra.mxu0 0
        %9814 = vmatprep.subr.bf16.mxu0 0
        %9815 = vmatpush1.bf16.msra.mxu0 0
        %9816 = vmatprep.subr.bf16.mxu0 0
        %9817 = vmatpush1.bf16.msra.mxu0 0
        %9818 = vmatprep.mubr.bf16.mxu0 0
        %9819 = vmatmul.mubr.bf16.gmra.mrb[0].mxu0 %v4659
        %v9820 = vpop.f32.mrb[0].mxu0
        %v9821 = vadd.f32 %v1820, %v9820
        %v9822 = vpop.f32.mrb[0].mxu0
        %v9823 = vadd.f32 %v1824, %v9822
        %v9824 = vpop.f32.mrb[0].mxu0
        %v9825 = vpop.f32.mrb[0].mxu0
        %9826 = vdwg.mxu0
        %9827 = vmatprep.subr.bf16.mxu0 %v3886
        %9828 = vmatpush1.bf16.msra.mxu0 %v3885
        %9829 = vmatprep.subr.bf16.mxu0 %v4142
        %9830 = vmatpush1.bf16.msra.mxu0 %v4141
        %9831 = vmatprep.subr.bf16.mxu0 0
        %9832 = vmatpush1.bf16.msra.mxu0 0
        %9833 = vmatprep.subr.bf16.mxu0 0
        %9834 = vmatpush1.bf16.msra.mxu0 0
        %9835 = vmatprep.subr.bf16.mxu0 0
        %9836 = vmatpush1.bf16.msra.mxu0 0
        %9837 = vmatprep.subr.bf16.mxu0 0
        %9838 = vmatpush1.bf16.msra.mxu0 0
        %9839 = vmatprep.subr.bf16.mxu0 0
        %9840 = vmatpush1.bf16.msra.mxu0 0
        %9841 = vmatprep.subr.bf16.mxu0 0
        %9842 = vmatpush1.bf16.msra.mxu0 0
        %9843 = vmatprep.subr.bf16.mxu0 0
        %9844 = vmatpush1.bf16.msra.mxu0 0
        %9845 = vmatprep.subr.bf16.mxu0 0
        %9846 = vmatpush1.bf16.msra.mxu0 0
        %9847 = vmatprep.subr.bf16.mxu0 0
        %9848 = vmatpush1.bf16.msra.mxu0 0
        %9849 = vmatprep.subr.bf16.mxu0 0
        %9850 = vmatpush1.bf16.msra.mxu0 0
        %9851 = vmatprep.subr.bf16.mxu0 0
        %9852 = vmatpush1.bf16.msra.mxu0 0
        %9853 = vmatprep.subr.bf16.mxu0 0
        %9854 = vmatpush1.bf16.msra.mxu0 0
        %9855 = vmatprep.subr.bf16.mxu0 0
        %9856 = vmatpush1.bf16.msra.mxu0 0
        %9857 = vmatprep.subr.bf16.mxu0 0
        %9858 = vmatpush1.bf16.msra.mxu0 0
        %9859 = vmatprep.mubr.bf16.mxu0 0
        %9860 = vmatmul.mubr.bf16.gmra.mrb[0].mxu0 %v4659
        %v9861 = vpop.f32.mrb[0].mxu0
        %v9862 = vadd.f32 %v1828, %v9861
        %v9863 = vpop.f32.mrb[0].mxu0
        %v9864 = vadd.f32 %v1832, %v9863
        %v9865 = vpop.f32.mrb[0].mxu0
        %v9866 = vpop.f32.mrb[0].mxu0
        %9867 = vdwg.mxu0
        %9868 = vmatprep.subr.bf16.mxu0 %v3888
        %9869 = vmatpush1.bf16.msra.mxu0 %v3887
        %9870 = vmatprep.subr.bf16.mxu0 %v4144
        %9871 = vmatpush1.bf16.msra.mxu0 %v4143
        %9872 = vmatprep.subr.bf16.mxu0 0
        %9873 = vmatpush1.bf16.msra.mxu0 0
        %9874 = vmatprep.subr.bf16.mxu0 0
        %9875 = vmatpush1.bf16.msra.mxu0 0
        %9876 = vmatprep.subr.bf16.mxu0 0
        %9877 = vmatpush1.bf16.msra.mxu0 0
        %9878 = vmatprep.subr.bf16.mxu0 0
        %9879 = vmatpush1.bf16.msra.mxu0 0
        %9880 = vmatprep.subr.bf16.mxu0 0
        %9881 = vmatpush1.bf16.msra.mxu0 0
        %9882 = vmatprep.subr.bf16.mxu0 0
        %9883 = vmatpush1.bf16.msra.mxu0 0
        %9884 = vmatprep.subr.bf16.mxu0 0
        %9885 = vmatpush1.bf16.msra.mxu0 0
        %9886 = vmatprep.subr.bf16.mxu0 0
        %9887 = vmatpush1.bf16.msra.mxu0 0
        %9888 = vmatprep.subr.bf16.mxu0 0
        %9889 = vmatpush1.bf16.msra.mxu0 0
        %9890 = vmatprep.subr.bf16.mxu0 0
        %9891 = vmatpush1.bf16.msra.mxu0 0
        %9892 = vmatprep.subr.bf16.mxu0 0
        %9893 = vmatpush1.bf16.msra.mxu0 0
        %9894 = vmatprep.subr.bf16.mxu0 0
        %9895 = vmatpush1.bf16.msra.mxu0 0
        %9896 = vmatprep.subr.bf16.mxu0 0
        %9897 = vmatpush1.bf16.msra.mxu0 0
        %9898 = vmatprep.subr.bf16.mxu0 0
        %9899 = vmatpush1.bf16.msra.mxu0 0
        %9900 = vmatprep.mubr.bf16.mxu0 0
        %9901 = vmatmul.mubr.bf16.gmra.mrb[0].mxu0 %v4659
        %v9902 = vpop.f32.mrb[0].mxu0
        %v9903 = vadd.f32 %v1836, %v9902
        %v9904 = vpop.f32.mrb[0].mxu0
        %v9905 = vadd.f32 %v1840, %v9904
        %v9906 = vpop.f32.mrb[0].mxu0
        %v9907 = vpop.f32.mrb[0].mxu0
        %9908 = vdwg.mxu0
        %v10165 = vcombine.low %v4696, %v4698
        %v10166 = vcombine.low %v4737, %v4739
        %v10168 = vunpack.c.l.s4 1983009808
        %v10169 = vunpack.c.0.s8 %v10168
        %v10170 = vlaneseq
        %v10171 = vshrl.u32 %v10170, 7
        %v10172 = vsub.s32 %v10169, %v10171
        %v10173 = vrot.slane %v10165, %v10172
        %v10175 = vunpack.c.l.s4 1983009808
        %v10176 = vunpack.c.0.s8 %v10175
        %v10177 = vlaneseq
        %v10178 = vshrl.u32 %v10177, 7
        %v10179 = vsub.s32 %v10176, %v10178
        %v10180 = vrot.slane %v10166, %v10179
        %v10181 = vcombine.low %v10173, %v10180
        %v10182 = vcombine.low %v4778, %v4780
        %v10183 = vcombine.low %v4819, %v4821
        %v10185 = vunpack.c.l.s4 1983009808
        %v10186 = vunpack.c.0.s8 %v10185
        %v10187 = vlaneseq
        %v10188 = vshrl.u32 %v10187, 7
        %v10189 = vsub.s32 %v10186, %v10188
        %v10190 = vrot.slane %v10182, %v10189
        %v10192 = vunpack.c.l.s4 1983009808
        %v10193 = vunpack.c.0.s8 %v10192
        %v10194 = vlaneseq
        %v10195 = vshrl.u32 %v10194, 7
        %v10196 = vsub.s32 %v10193, %v10195
        %v10197 = vrot.slane %v10183, %v10196
        %v10198 = vcombine.low %v10190, %v10197
        %v10199 = vcombine.low %v4860, %v4862
        %v10200 = vcombine.low %v4901, %v4903
        %v10202 = vunpack.c.l.s4 1983009808
        %v10203 = vunpack.c.0.s8 %v10202
        %v10204 = vlaneseq
        %v10205 = vshrl.u32 %v10204, 7
        %v10206 = vsub.s32 %v10203, %v10205
        %v10207 = vrot.slane %v10199, %v10206
        %v10209 = vunpack.c.l.s4 1983009808
        %v10210 = vunpack.c.0.s8 %v10209
        %v10211 = vlaneseq
        %v10212 = vshrl.u32 %v10211, 7
        %v10213 = vsub.s32 %v10210, %v10212
        %v10214 = vrot.slane %v10200, %v10213
        %v10215 = vcombine.low %v10207, %v10214
        %v10216 = vcombine.low %v4942, %v4944
        %v10217 = vcombine.low %v4983, %v4985
        %v10219 = vunpack.c.l.s4 1983009808
        %v10220 = vunpack.c.0.s8 %v10219
        %v10221 = vlaneseq
        %v10222 = vshrl.u32 %v10221, 7
        %v10223 = vsub.s32 %v10220, %v10222
        %v10224 = vrot.slane %v10216, %v10223
        %v10226 = vunpack.c.l.s4 1983009808
        %v10227 = vunpack.c.0.s8 %v10226
        %v10228 = vlaneseq
        %v10229 = vshrl.u32 %v10228, 7
        %v10230 = vsub.s32 %v10227, %v10229
        %v10231 = vrot.slane %v10217, %v10230
        %v10232 = vcombine.low %v10224, %v10231
        %v10233 = vcombine.low %v5024, %v5026
        %v10234 = vcombine.low %v5065, %v5067
        %v10236 = vunpack.c.l.s4 1983009808
        %v10237 = vunpack.c.0.s8 %v10236
        %v10238 = vlaneseq
        %v10239 = vshrl.u32 %v10238, 7
        %v10240 = vsub.s32 %v10237, %v10239
        %v10241 = vrot.slane %v10233, %v10240
        %v10243 = vunpack.c.l.s4 1983009808
        %v10244 = vunpack.c.0.s8 %v10243
        %v10245 = vlaneseq
        %v10246 = vshrl.u32 %v10245, 7
        %v10247 = vsub.s32 %v10244, %v10246
        %v10248 = vrot.slane %v10234, %v10247
        %v10249 = vcombine.low %v10241, %v10248
        %v10250 = vcombine.low %v5106, %v5108
        %v10251 = vcombine.low %v5147, %v5149
        %v10253 = vunpack.c.l.s4 1983009808
        %v10254 = vunpack.c.0.s8 %v10253
        %v10255 = vlaneseq
        %v10256 = vshrl.u32 %v10255, 7
        %v10257 = vsub.s32 %v10254, %v10256
        %v10258 = vrot.slane %v10250, %v10257
        %v10260 = vunpack.c.l.s4 1983009808
        %v10261 = vunpack.c.0.s8 %v10260
        %v10262 = vlaneseq
        %v10263 = vshrl.u32 %v10262, 7
        %v10264 = vsub.s32 %v10261, %v10263
        %v10265 = vrot.slane %v10251, %v10264
        %v10266 = vcombine.low %v10258, %v10265
        %v10267 = vcombine.low %v5188, %v5190
        %v10268 = vcombine.low %v5229, %v5231
        %v10270 = vunpack.c.l.s4 1983009808
        %v10271 = vunpack.c.0.s8 %v10270
        %v10272 = vlaneseq
        %v10273 = vshrl.u32 %v10272, 7
        %v10274 = vsub.s32 %v10271, %v10273
        %v10275 = vrot.slane %v10267, %v10274
        %v10277 = vunpack.c.l.s4 1983009808
        %v10278 = vunpack.c.0.s8 %v10277
        %v10279 = vlaneseq
        %v10280 = vshrl.u32 %v10279, 7
        %v10281 = vsub.s32 %v10278, %v10280
        %v10282 = vrot.slane %v10268, %v10281
        %v10283 = vcombine.low %v10275, %v10282
        %v10284 = vcombine.low %v5270, %v5272
        %v10285 = vcombine.low %v5311, %v5313
        %v10287 = vunpack.c.l.s4 1983009808
        %v10288 = vunpack.c.0.s8 %v10287
        %v10289 = vlaneseq
        %v10290 = vshrl.u32 %v10289, 7
        %v10291 = vsub.s32 %v10288, %v10290
        %v10292 = vrot.slane %v10284, %v10291
        %v10294 = vunpack.c.l.s4 1983009808
        %v10295 = vunpack.c.0.s8 %v10294
        %v10296 = vlaneseq
        %v10297 = vshrl.u32 %v10296, 7
        %v10298 = vsub.s32 %v10295, %v10297
        %v10299 = vrot.slane %v10285, %v10298
        %v10300 = vcombine.low %v10292, %v10299
        %v10301 = vcombine.low %v5352, %v5354
        %v10302 = vcombine.low %v5393, %v5395
        %v10304 = vunpack.c.l.s4 1983009808
        %v10305 = vunpack.c.0.s8 %v10304
        %v10306 = vlaneseq
        %v10307 = vshrl.u32 %v10306, 7
        %v10308 = vsub.s32 %v10305, %v10307
        %v10309 = vrot.slane %v10301, %v10308
        %v10311 = vunpack.c.l.s4 1983009808
        %v10312 = vunpack.c.0.s8 %v10311
        %v10313 = vlaneseq
        %v10314 = vshrl.u32 %v10313, 7
        %v10315 = vsub.s32 %v10312, %v10314
        %v10316 = vrot.slane %v10302, %v10315
        %v10317 = vcombine.low %v10309, %v10316
        %v10318 = vcombine.low %v5434, %v5436
        %v10319 = vcombine.low %v5475, %v5477
        %v10321 = vunpack.c.l.s4 1983009808
        %v10322 = vunpack.c.0.s8 %v10321
        %v10323 = vlaneseq
        %v10324 = vshrl.u32 %v10323, 7
        %v10325 = vsub.s32 %v10322, %v10324
        %v10326 = vrot.slane %v10318, %v10325
        %v10328 = vunpack.c.l.s4 1983009808
        %v10329 = vunpack.c.0.s8 %v10328
        %v10330 = vlaneseq
        %v10331 = vshrl.u32 %v10330, 7
        %v10332 = vsub.s32 %v10329, %v10331
        %v10333 = vrot.slane %v10319, %v10332
        %v10334 = vcombine.low %v10326, %v10333
        %v10335 = vcombine.low %v5516, %v5518
        %v10336 = vcombine.low %v5557, %v5559
        %v10338 = vunpack.c.l.s4 1983009808
        %v10339 = vunpack.c.0.s8 %v10338
        %v10340 = vlaneseq
        %v10341 = vshrl.u32 %v10340, 7
        %v10342 = vsub.s32 %v10339, %v10341
        %v10343 = vrot.slane %v10335, %v10342
        %v10345 = vunpack.c.l.s4 1983009808
        %v10346 = vunpack.c.0.s8 %v10345
        %v10347 = vlaneseq
        %v10348 = vshrl.u32 %v10347, 7
        %v10349 = vsub.s32 %v10346, %v10348
        %v10350 = vrot.slane %v10336, %v10349
        %v10351 = vcombine.low %v10343, %v10350
        %v10352 = vcombine.low %v5598, %v5600
        %v10353 = vcombine.low %v5639, %v5641
        %v10355 = vunpack.c.l.s4 1983009808
        %v10356 = vunpack.c.0.s8 %v10355
        %v10357 = vlaneseq
        %v10358 = vshrl.u32 %v10357, 7
        %v10359 = vsub.s32 %v10356, %v10358
        %v10360 = vrot.slane %v10352, %v10359
        %v10362 = vunpack.c.l.s4 1983009808
        %v10363 = vunpack.c.0.s8 %v10362
        %v10364 = vlaneseq
        %v10365 = vshrl.u32 %v10364, 7
        %v10366 = vsub.s32 %v10363, %v10365
        %v10367 = vrot.slane %v10353, %v10366
        %v10368 = vcombine.low %v10360, %v10367
        %v10369 = vcombine.low %v5680, %v5682
        %v10370 = vcombine.low %v5721, %v5723
        %v10372 = vunpack.c.l.s4 1983009808
        %v10373 = vunpack.c.0.s8 %v10372
        %v10374 = vlaneseq
        %v10375 = vshrl.u32 %v10374, 7
        %v10376 = vsub.s32 %v10373, %v10375
        %v10377 = vrot.slane %v10369, %v10376
        %v10379 = vunpack.c.l.s4 1983009808
        %v10380 = vunpack.c.0.s8 %v10379
        %v10381 = vlaneseq
        %v10382 = vshrl.u32 %v10381, 7
        %v10383 = vsub.s32 %v10380, %v10382
        %v10384 = vrot.slane %v10370, %v10383
        %v10385 = vcombine.low %v10377, %v10384
        %v10386 = vcombine.low %v5762, %v5764
        %v10387 = vcombine.low %v5803, %v5805
        %v10389 = vunpack.c.l.s4 1983009808
        %v10390 = vunpack.c.0.s8 %v10389
        %v10391 = vlaneseq
        %v10392 = vshrl.u32 %v10391, 7
        %v10393 = vsub.s32 %v10390, %v10392
        %v10394 = vrot.slane %v10386, %v10393
        %v10396 = vunpack.c.l.s4 1983009808
        %v10397 = vunpack.c.0.s8 %v10396
        %v10398 = vlaneseq
        %v10399 = vshrl.u32 %v10398, 7
        %v10400 = vsub.s32 %v10397, %v10399
        %v10401 = vrot.slane %v10387, %v10400
        %v10402 = vcombine.low %v10394, %v10401
        %v10403 = vcombine.low %v5844, %v5846
        %v10404 = vcombine.low %v5885, %v5887
        %v10406 = vunpack.c.l.s4 1983009808
        %v10407 = vunpack.c.0.s8 %v10406
        %v10408 = vlaneseq
        %v10409 = vshrl.u32 %v10408, 7
        %v10410 = vsub.s32 %v10407, %v10409
        %v10411 = vrot.slane %v10403, %v10410
        %v10413 = vunpack.c.l.s4 1983009808
        %v10414 = vunpack.c.0.s8 %v10413
        %v10415 = vlaneseq
        %v10416 = vshrl.u32 %v10415, 7
        %v10417 = vsub.s32 %v10414, %v10416
        %v10418 = vrot.slane %v10404, %v10417
        %v10419 = vcombine.low %v10411, %v10418
        %v10420 = vcombine.low %v5926, %v5928
        %v10421 = vcombine.low %v5967, %v5969
        %v10423 = vunpack.c.l.s4 1983009808
        %v10424 = vunpack.c.0.s8 %v10423
        %v10425 = vlaneseq
        %v10426 = vshrl.u32 %v10425, 7
        %v10427 = vsub.s32 %v10424, %v10426
        %v10428 = vrot.slane %v10420, %v10427
        %v10430 = vunpack.c.l.s4 1983009808
        %v10431 = vunpack.c.0.s8 %v10430
        %v10432 = vlaneseq
        %v10433 = vshrl.u32 %v10432, 7
        %v10434 = vsub.s32 %v10431, %v10433
        %v10435 = vrot.slane %v10421, %v10434
        %v10436 = vcombine.low %v10428, %v10435
        %v10437 = vcombine.low %v6008, %v6010
        %v10438 = vcombine.low %v6049, %v6051
        %v10440 = vunpack.c.l.s4 1983009808
        %v10441 = vunpack.c.0.s8 %v10440
        %v10442 = vlaneseq
        %v10443 = vshrl.u32 %v10442, 7
        %v10444 = vsub.s32 %v10441, %v10443
        %v10445 = vrot.slane %v10437, %v10444
        %v10447 = vunpack.c.l.s4 1983009808
        %v10448 = vunpack.c.0.s8 %v10447
        %v10449 = vlaneseq
        %v10450 = vshrl.u32 %v10449, 7
        %v10451 = vsub.s32 %v10448, %v10450
        %v10452 = vrot.slane %v10438, %v10451
        %v10453 = vcombine.low %v10445, %v10452
        %v10454 = vcombine.low %v6090, %v6092
        %v10455 = vcombine.low %v6131, %v6133
        %v10457 = vunpack.c.l.s4 1983009808
        %v10458 = vunpack.c.0.s8 %v10457
        %v10459 = vlaneseq
        %v10460 = vshrl.u32 %v10459, 7
        %v10461 = vsub.s32 %v10458, %v10460
        %v10462 = vrot.slane %v10454, %v10461
        %v10464 = vunpack.c.l.s4 1983009808
        %v10465 = vunpack.c.0.s8 %v10464
        %v10466 = vlaneseq
        %v10467 = vshrl.u32 %v10466, 7
        %v10468 = vsub.s32 %v10465, %v10467
        %v10469 = vrot.slane %v10455, %v10468
        %v10470 = vcombine.low %v10462, %v10469
        %v10471 = vcombine.low %v6172, %v6174
        %v10472 = vcombine.low %v6213, %v6215
        %v10474 = vunpack.c.l.s4 1983009808
        %v10475 = vunpack.c.0.s8 %v10474
        %v10476 = vlaneseq
        %v10477 = vshrl.u32 %v10476, 7
        %v10478 = vsub.s32 %v10475, %v10477
        %v10479 = vrot.slane %v10471, %v10478
        %v10481 = vunpack.c.l.s4 1983009808
        %v10482 = vunpack.c.0.s8 %v10481
        %v10483 = vlaneseq
        %v10484 = vshrl.u32 %v10483, 7
        %v10485 = vsub.s32 %v10482, %v10484
        %v10486 = vrot.slane %v10472, %v10485
        %v10487 = vcombine.low %v10479, %v10486
        %v10488 = vcombine.low %v6254, %v6256
        %v10489 = vcombine.low %v6295, %v6297
        %v10491 = vunpack.c.l.s4 1983009808
        %v10492 = vunpack.c.0.s8 %v10491
        %v10493 = vlaneseq
        %v10494 = vshrl.u32 %v10493, 7
        %v10495 = vsub.s32 %v10492, %v10494
        %v10496 = vrot.slane %v10488, %v10495
        %v10498 = vunpack.c.l.s4 1983009808
        %v10499 = vunpack.c.0.s8 %v10498
        %v10500 = vlaneseq
        %v10501 = vshrl.u32 %v10500, 7
        %v10502 = vsub.s32 %v10499, %v10501
        %v10503 = vrot.slane %v10489, %v10502
        %v10504 = vcombine.low %v10496, %v10503
        %v10505 = vcombine.low %v6336, %v6338
        %v10506 = vcombine.low %v6377, %v6379
        %v10508 = vunpack.c.l.s4 1983009808
        %v10509 = vunpack.c.0.s8 %v10508
        %v10510 = vlaneseq
        %v10511 = vshrl.u32 %v10510, 7
        %v10512 = vsub.s32 %v10509, %v10511
        %v10513 = vrot.slane %v10505, %v10512
        %v10515 = vunpack.c.l.s4 1983009808
        %v10516 = vunpack.c.0.s8 %v10515
        %v10517 = vlaneseq
        %v10518 = vshrl.u32 %v10517, 7
        %v10519 = vsub.s32 %v10516, %v10518
        %v10520 = vrot.slane %v10506, %v10519
        %v10521 = vcombine.low %v10513, %v10520
        %v10522 = vcombine.low %v6418, %v6420
        %v10523 = vcombine.low %v6459, %v6461
        %v10525 = vunpack.c.l.s4 1983009808
        %v10526 = vunpack.c.0.s8 %v10525
        %v10527 = vlaneseq
        %v10528 = vshrl.u32 %v10527, 7
        %v10529 = vsub.s32 %v10526, %v10528
        %v10530 = vrot.slane %v10522, %v10529
        %v10532 = vunpack.c.l.s4 1983009808
        %v10533 = vunpack.c.0.s8 %v10532
        %v10534 = vlaneseq
        %v10535 = vshrl.u32 %v10534, 7
        %v10536 = vsub.s32 %v10533, %v10535
        %v10537 = vrot.slane %v10523, %v10536
        %v10538 = vcombine.low %v10530, %v10537
        %v10539 = vcombine.low %v6500, %v6502
        %v10540 = vcombine.low %v6541, %v6543
        %v10542 = vunpack.c.l.s4 1983009808
        %v10543 = vunpack.c.0.s8 %v10542
        %v10544 = vlaneseq
        %v10545 = vshrl.u32 %v10544, 7
        %v10546 = vsub.s32 %v10543, %v10545
        %v10547 = vrot.slane %v10539, %v10546
        %v10549 = vunpack.c.l.s4 1983009808
        %v10550 = vunpack.c.0.s8 %v10549
        %v10551 = vlaneseq
        %v10552 = vshrl.u32 %v10551, 7
        %v10553 = vsub.s32 %v10550, %v10552
        %v10554 = vrot.slane %v10540, %v10553
        %v10555 = vcombine.low %v10547, %v10554
        %v10556 = vcombine.low %v6582, %v6584
        %v10557 = vcombine.low %v6623, %v6625
        %v10559 = vunpack.c.l.s4 1983009808
        %v10560 = vunpack.c.0.s8 %v10559
        %v10561 = vlaneseq
        %v10562 = vshrl.u32 %v10561, 7
        %v10563 = vsub.s32 %v10560, %v10562
        %v10564 = vrot.slane %v10556, %v10563
        %v10566 = vunpack.c.l.s4 1983009808
        %v10567 = vunpack.c.0.s8 %v10566
        %v10568 = vlaneseq
        %v10569 = vshrl.u32 %v10568, 7
        %v10570 = vsub.s32 %v10567, %v10569
        %v10571 = vrot.slane %v10557, %v10570
        %v10572 = vcombine.low %v10564, %v10571
        %v10573 = vcombine.low %v6664, %v6666
        %v10574 = vcombine.low %v6705, %v6707
        %v10576 = vunpack.c.l.s4 1983009808
        %v10577 = vunpack.c.0.s8 %v10576
        %v10578 = vlaneseq
        %v10579 = vshrl.u32 %v10578, 7
        %v10580 = vsub.s32 %v10577, %v10579
        %v10581 = vrot.slane %v10573, %v10580
        %v10583 = vunpack.c.l.s4 1983009808
        %v10584 = vunpack.c.0.s8 %v10583
        %v10585 = vlaneseq
        %v10586 = vshrl.u32 %v10585, 7
        %v10587 = vsub.s32 %v10584, %v10586
        %v10588 = vrot.slane %v10574, %v10587
        %v10589 = vcombine.low %v10581, %v10588
        %v10590 = vcombine.low %v6746, %v6748
        %v10591 = vcombine.low %v6787, %v6789
        %v10593 = vunpack.c.l.s4 1983009808
        %v10594 = vunpack.c.0.s8 %v10593
        %v10595 = vlaneseq
        %v10596 = vshrl.u32 %v10595, 7
        %v10597 = vsub.s32 %v10594, %v10596
        %v10598 = vrot.slane %v10590, %v10597
        %v10600 = vunpack.c.l.s4 1983009808
        %v10601 = vunpack.c.0.s8 %v10600
        %v10602 = vlaneseq
        %v10603 = vshrl.u32 %v10602, 7
        %v10604 = vsub.s32 %v10601, %v10603
        %v10605 = vrot.slane %v10591, %v10604
        %v10606 = vcombine.low %v10598, %v10605
        %v10607 = vcombine.low %v6828, %v6830
        %v10608 = vcombine.low %v6869, %v6871
        %v10610 = vunpack.c.l.s4 1983009808
        %v10611 = vunpack.c.0.s8 %v10610
        %v10612 = vlaneseq
        %v10613 = vshrl.u32 %v10612, 7
        %v10614 = vsub.s32 %v10611, %v10613
        %v10615 = vrot.slane %v10607, %v10614
        %v10617 = vunpack.c.l.s4 1983009808
        %v10618 = vunpack.c.0.s8 %v10617
        %v10619 = vlaneseq
        %v10620 = vshrl.u32 %v10619, 7
        %v10621 = vsub.s32 %v10618, %v10620
        %v10622 = vrot.slane %v10608, %v10621
        %v10623 = vcombine.low %v10615, %v10622
        %v10624 = vcombine.low %v6910, %v6912
        %v10625 = vcombine.low %v6951, %v6953
        %v10627 = vunpack.c.l.s4 1983009808
        %v10628 = vunpack.c.0.s8 %v10627
        %v10629 = vlaneseq
        %v10630 = vshrl.u32 %v10629, 7
        %v10631 = vsub.s32 %v10628, %v10630
        %v10632 = vrot.slane %v10624, %v10631
        %v10634 = vunpack.c.l.s4 1983009808
        %v10635 = vunpack.c.0.s8 %v10634
        %v10636 = vlaneseq
        %v10637 = vshrl.u32 %v10636, 7
        %v10638 = vsub.s32 %v10635, %v10637
        %v10639 = vrot.slane %v10625, %v10638
        %v10640 = vcombine.low %v10632, %v10639
        %v10641 = vcombine.low %v6992, %v6994
        %v10642 = vcombine.low %v7033, %v7035
        %v10644 = vunpack.c.l.s4 1983009808
        %v10645 = vunpack.c.0.s8 %v10644
        %v10646 = vlaneseq
        %v10647 = vshrl.u32 %v10646, 7
        %v10648 = vsub.s32 %v10645, %v10647
        %v10649 = vrot.slane %v10641, %v10648
        %v10651 = vunpack.c.l.s4 1983009808
        %v10652 = vunpack.c.0.s8 %v10651
        %v10653 = vlaneseq
        %v10654 = vshrl.u32 %v10653, 7
        %v10655 = vsub.s32 %v10652, %v10654
        %v10656 = vrot.slane %v10642, %v10655
        %v10657 = vcombine.low %v10649, %v10656
        %v10658 = vcombine.low %v7074, %v7076
        %v10659 = vcombine.low %v7115, %v7117
        %v10661 = vunpack.c.l.s4 1983009808
        %v10662 = vunpack.c.0.s8 %v10661
        %v10663 = vlaneseq
        %v10664 = vshrl.u32 %v10663, 7
        %v10665 = vsub.s32 %v10662, %v10664
        %v10666 = vrot.slane %v10658, %v10665
        %v10668 = vunpack.c.l.s4 1983009808
        %v10669 = vunpack.c.0.s8 %v10668
        %v10670 = vlaneseq
        %v10671 = vshrl.u32 %v10670, 7
        %v10672 = vsub.s32 %v10669, %v10671
        %v10673 = vrot.slane %v10659, %v10672
        %v10674 = vcombine.low %v10666, %v10673
        %v10675 = vcombine.low %v7156, %v7158
        %v10676 = vcombine.low %v7197, %v7199
        %v10678 = vunpack.c.l.s4 1983009808
        %v10679 = vunpack.c.0.s8 %v10678
        %v10680 = vlaneseq
        %v10681 = vshrl.u32 %v10680, 7
        %v10682 = vsub.s32 %v10679, %v10681
        %v10683 = vrot.slane %v10675, %v10682
        %v10685 = vunpack.c.l.s4 1983009808
        %v10686 = vunpack.c.0.s8 %v10685
        %v10687 = vlaneseq
        %v10688 = vshrl.u32 %v10687, 7
        %v10689 = vsub.s32 %v10686, %v10688
        %v10690 = vrot.slane %v10676, %v10689
        %v10691 = vcombine.low %v10683, %v10690
        %v10692 = vcombine.low %v7238, %v7240
        %v10693 = vcombine.low %v7279, %v7281
        %v10695 = vunpack.c.l.s4 1983009808
        %v10696 = vunpack.c.0.s8 %v10695
        %v10697 = vlaneseq
        %v10698 = vshrl.u32 %v10697, 7
        %v10699 = vsub.s32 %v10696, %v10698
        %v10700 = vrot.slane %v10692, %v10699
        %v10702 = vunpack.c.l.s4 1983009808
        %v10703 = vunpack.c.0.s8 %v10702
        %v10704 = vlaneseq
        %v10705 = vshrl.u32 %v10704, 7
        %v10706 = vsub.s32 %v10703, %v10705
        %v10707 = vrot.slane %v10693, %v10706
        %v10708 = vcombine.low %v10700, %v10707
        %v10709 = vcombine.low %v7320, %v7322
        %v10710 = vcombine.low %v7361, %v7363
        %v10712 = vunpack.c.l.s4 1983009808
        %v10713 = vunpack.c.0.s8 %v10712
        %v10714 = vlaneseq
        %v10715 = vshrl.u32 %v10714, 7
        %v10716 = vsub.s32 %v10713, %v10715
        %v10717 = vrot.slane %v10709, %v10716
        %v10719 = vunpack.c.l.s4 1983009808
        %v10720 = vunpack.c.0.s8 %v10719
        %v10721 = vlaneseq
        %v10722 = vshrl.u32 %v10721, 7
        %v10723 = vsub.s32 %v10720, %v10722
        %v10724 = vrot.slane %v10710, %v10723
        %v10725 = vcombine.low %v10717, %v10724
        %v10726 = vcombine.low %v7402, %v7404
        %v10727 = vcombine.low %v7443, %v7445
        %v10729 = vunpack.c.l.s4 1983009808
        %v10730 = vunpack.c.0.s8 %v10729
        %v10731 = vlaneseq
        %v10732 = vshrl.u32 %v10731, 7
        %v10733 = vsub.s32 %v10730, %v10732
        %v10734 = vrot.slane %v10726, %v10733
        %v10736 = vunpack.c.l.s4 1983009808
        %v10737 = vunpack.c.0.s8 %v10736
        %v10738 = vlaneseq
        %v10739 = vshrl.u32 %v10738, 7
        %v10740 = vsub.s32 %v10737, %v10739
        %v10741 = vrot.slane %v10727, %v10740
        %v10742 = vcombine.low %v10734, %v10741
        %v10743 = vcombine.low %v7484, %v7486
        %v10744 = vcombine.low %v7525, %v7527
        %v10746 = vunpack.c.l.s4 1983009808
        %v10747 = vunpack.c.0.s8 %v10746
        %v10748 = vlaneseq
        %v10749 = vshrl.u32 %v10748, 7
        %v10750 = vsub.s32 %v10747, %v10749
        %v10751 = vrot.slane %v10743, %v10750
        %v10753 = vunpack.c.l.s4 1983009808
        %v10754 = vunpack.c.0.s8 %v10753
        %v10755 = vlaneseq
        %v10756 = vshrl.u32 %v10755, 7
        %v10757 = vsub.s32 %v10754, %v10756
        %v10758 = vrot.slane %v10744, %v10757
        %v10759 = vcombine.low %v10751, %v10758
        %v10760 = vcombine.low %v7566, %v7568
        %v10761 = vcombine.low %v7607, %v7609
        %v10763 = vunpack.c.l.s4 1983009808
        %v10764 = vunpack.c.0.s8 %v10763
        %v10765 = vlaneseq
        %v10766 = vshrl.u32 %v10765, 7
        %v10767 = vsub.s32 %v10764, %v10766
        %v10768 = vrot.slane %v10760, %v10767
        %v10770 = vunpack.c.l.s4 1983009808
        %v10771 = vunpack.c.0.s8 %v10770
        %v10772 = vlaneseq
        %v10773 = vshrl.u32 %v10772, 7
        %v10774 = vsub.s32 %v10771, %v10773
        %v10775 = vrot.slane %v10761, %v10774
        %v10776 = vcombine.low %v10768, %v10775
        %v10777 = vcombine.low %v7648, %v7650
        %v10778 = vcombine.low %v7689, %v7691
        %v10780 = vunpack.c.l.s4 1983009808
        %v10781 = vunpack.c.0.s8 %v10780
        %v10782 = vlaneseq
        %v10783 = vshrl.u32 %v10782, 7
        %v10784 = vsub.s32 %v10781, %v10783
        %v10785 = vrot.slane %v10777, %v10784
        %v10787 = vunpack.c.l.s4 1983009808
        %v10788 = vunpack.c.0.s8 %v10787
        %v10789 = vlaneseq
        %v10790 = vshrl.u32 %v10789, 7
        %v10791 = vsub.s32 %v10788, %v10790
        %v10792 = vrot.slane %v10778, %v10791
        %v10793 = vcombine.low %v10785, %v10792
        %v10794 = vcombine.low %v7730, %v7732
        %v10795 = vcombine.low %v7771, %v7773
        %v10797 = vunpack.c.l.s4 1983009808
        %v10798 = vunpack.c.0.s8 %v10797
        %v10799 = vlaneseq
        %v10800 = vshrl.u32 %v10799, 7
        %v10801 = vsub.s32 %v10798, %v10800
        %v10802 = vrot.slane %v10794, %v10801
        %v10804 = vunpack.c.l.s4 1983009808
        %v10805 = vunpack.c.0.s8 %v10804
        %v10806 = vlaneseq
        %v10807 = vshrl.u32 %v10806, 7
        %v10808 = vsub.s32 %v10805, %v10807
        %v10809 = vrot.slane %v10795, %v10808
        %v10810 = vcombine.low %v10802, %v10809
        %v10811 = vcombine.low %v7812, %v7814
        %v10812 = vcombine.low %v7853, %v7855
        %v10814 = vunpack.c.l.s4 1983009808
        %v10815 = vunpack.c.0.s8 %v10814
        %v10816 = vlaneseq
        %v10817 = vshrl.u32 %v10816, 7
        %v10818 = vsub.s32 %v10815, %v10817
        %v10819 = vrot.slane %v10811, %v10818
        %v10821 = vunpack.c.l.s4 1983009808
        %v10822 = vunpack.c.0.s8 %v10821
        %v10823 = vlaneseq
        %v10824 = vshrl.u32 %v10823, 7
        %v10825 = vsub.s32 %v10822, %v10824
        %v10826 = vrot.slane %v10812, %v10825
        %v10827 = vcombine.low %v10819, %v10826
        %v10828 = vcombine.low %v7894, %v7896
        %v10829 = vcombine.low %v7935, %v7937
        %v10831 = vunpack.c.l.s4 1983009808
        %v10832 = vunpack.c.0.s8 %v10831
        %v10833 = vlaneseq
        %v10834 = vshrl.u32 %v10833, 7
        %v10835 = vsub.s32 %v10832, %v10834
        %v10836 = vrot.slane %v10828, %v10835
        %v10838 = vunpack.c.l.s4 1983009808
        %v10839 = vunpack.c.0.s8 %v10838
        %v10840 = vlaneseq
        %v10841 = vshrl.u32 %v10840, 7
        %v10842 = vsub.s32 %v10839, %v10841
        %v10843 = vrot.slane %v10829, %v10842
        %v10844 = vcombine.low %v10836, %v10843
        %v10845 = vcombine.low %v7976, %v7978
        %v10846 = vcombine.low %v8017, %v8019
        %v10848 = vunpack.c.l.s4 1983009808
        %v10849 = vunpack.c.0.s8 %v10848
        %v10850 = vlaneseq
        %v10851 = vshrl.u32 %v10850, 7
        %v10852 = vsub.s32 %v10849, %v10851
        %v10853 = vrot.slane %v10845, %v10852
        %v10855 = vunpack.c.l.s4 1983009808
        %v10856 = vunpack.c.0.s8 %v10855
        %v10857 = vlaneseq
        %v10858 = vshrl.u32 %v10857, 7
        %v10859 = vsub.s32 %v10856, %v10858
        %v10860 = vrot.slane %v10846, %v10859
        %v10861 = vcombine.low %v10853, %v10860
        %v10862 = vcombine.low %v8058, %v8060
        %v10863 = vcombine.low %v8099, %v8101
        %v10865 = vunpack.c.l.s4 1983009808
        %v10866 = vunpack.c.0.s8 %v10865
        %v10867 = vlaneseq
        %v10868 = vshrl.u32 %v10867, 7
        %v10869 = vsub.s32 %v10866, %v10868
        %v10870 = vrot.slane %v10862, %v10869
        %v10872 = vunpack.c.l.s4 1983009808
        %v10873 = vunpack.c.0.s8 %v10872
        %v10874 = vlaneseq
        %v10875 = vshrl.u32 %v10874, 7
        %v10876 = vsub.s32 %v10873, %v10875
        %v10877 = vrot.slane %v10863, %v10876
        %v10878 = vcombine.low %v10870, %v10877
        %v10879 = vcombine.low %v8140, %v8142
        %v10880 = vcombine.low %v8181, %v8183
        %v10882 = vunpack.c.l.s4 1983009808
        %v10883 = vunpack.c.0.s8 %v10882
        %v10884 = vlaneseq
        %v10885 = vshrl.u32 %v10884, 7
        %v10886 = vsub.s32 %v10883, %v10885
        %v10887 = vrot.slane %v10879, %v10886
        %v10889 = vunpack.c.l.s4 1983009808
        %v10890 = vunpack.c.0.s8 %v10889
        %v10891 = vlaneseq
        %v10892 = vshrl.u32 %v10891, 7
        %v10893 = vsub.s32 %v10890, %v10892
        %v10894 = vrot.slane %v10880, %v10893
        %v10895 = vcombine.low %v10887, %v10894
        %v10896 = vcombine.low %v8222, %v8224
        %v10897 = vcombine.low %v8263, %v8265
        %v10899 = vunpack.c.l.s4 1983009808
        %v10900 = vunpack.c.0.s8 %v10899
        %v10901 = vlaneseq
        %v10902 = vshrl.u32 %v10901, 7
        %v10903 = vsub.s32 %v10900, %v10902
        %v10904 = vrot.slane %v10896, %v10903
        %v10906 = vunpack.c.l.s4 1983009808
        %v10907 = vunpack.c.0.s8 %v10906
        %v10908 = vlaneseq
        %v10909 = vshrl.u32 %v10908, 7
        %v10910 = vsub.s32 %v10907, %v10909
        %v10911 = vrot.slane %v10897, %v10910
        %v10912 = vcombine.low %v10904, %v10911
        %v10913 = vcombine.low %v8304, %v8306
        %v10914 = vcombine.low %v8345, %v8347
        %v10916 = vunpack.c.l.s4 1983009808
        %v10917 = vunpack.c.0.s8 %v10916
        %v10918 = vlaneseq
        %v10919 = vshrl.u32 %v10918, 7
        %v10920 = vsub.s32 %v10917, %v10919
        %v10921 = vrot.slane %v10913, %v10920
        %v10923 = vunpack.c.l.s4 1983009808
        %v10924 = vunpack.c.0.s8 %v10923
        %v10925 = vlaneseq
        %v10926 = vshrl.u32 %v10925, 7
        %v10927 = vsub.s32 %v10924, %v10926
        %v10928 = vrot.slane %v10914, %v10927
        %v10929 = vcombine.low %v10921, %v10928
        %v10930 = vcombine.low %v8386, %v8388
        %v10931 = vcombine.low %v8427, %v8429
        %v10933 = vunpack.c.l.s4 1983009808
        %v10934 = vunpack.c.0.s8 %v10933
        %v10935 = vlaneseq
        %v10936 = vshrl.u32 %v10935, 7
        %v10937 = vsub.s32 %v10934, %v10936
        %v10938 = vrot.slane %v10930, %v10937
        %v10940 = vunpack.c.l.s4 1983009808
        %v10941 = vunpack.c.0.s8 %v10940
        %v10942 = vlaneseq
        %v10943 = vshrl.u32 %v10942, 7
        %v10944 = vsub.s32 %v10941, %v10943
        %v10945 = vrot.slane %v10931, %v10944
        %v10946 = vcombine.low %v10938, %v10945
        %v10947 = vcombine.low %v8468, %v8470
        %v10948 = vcombine.low %v8509, %v8511
        %v10950 = vunpack.c.l.s4 1983009808
        %v10951 = vunpack.c.0.s8 %v10950
        %v10952 = vlaneseq
        %v10953 = vshrl.u32 %v10952, 7
        %v10954 = vsub.s32 %v10951, %v10953
        %v10955 = vrot.slane %v10947, %v10954
        %v10957 = vunpack.c.l.s4 1983009808
        %v10958 = vunpack.c.0.s8 %v10957
        %v10959 = vlaneseq
        %v10960 = vshrl.u32 %v10959, 7
        %v10961 = vsub.s32 %v10958, %v10960
        %v10962 = vrot.slane %v10948, %v10961
        %v10963 = vcombine.low %v10955, %v10962
        %v10964 = vcombine.low %v8550, %v8552
        %v10965 = vcombine.low %v8591, %v8593
        %v10967 = vunpack.c.l.s4 1983009808
        %v10968 = vunpack.c.0.s8 %v10967
        %v10969 = vlaneseq
        %v10970 = vshrl.u32 %v10969, 7
        %v10971 = vsub.s32 %v10968, %v10970
        %v10972 = vrot.slane %v10964, %v10971
        %v10974 = vunpack.c.l.s4 1983009808
        %v10975 = vunpack.c.0.s8 %v10974
        %v10976 = vlaneseq
        %v10977 = vshrl.u32 %v10976, 7
        %v10978 = vsub.s32 %v10975, %v10977
        %v10979 = vrot.slane %v10965, %v10978
        %v10980 = vcombine.low %v10972, %v10979
        %v10981 = vcombine.low %v8632, %v8634
        %v10982 = vcombine.low %v8673, %v8675
        %v10984 = vunpack.c.l.s4 1983009808
        %v10985 = vunpack.c.0.s8 %v10984
        %v10986 = vlaneseq
        %v10987 = vshrl.u32 %v10986, 7
        %v10988 = vsub.s32 %v10985, %v10987
        %v10989 = vrot.slane %v10981, %v10988
        %v10991 = vunpack.c.l.s4 1983009808
        %v10992 = vunpack.c.0.s8 %v10991
        %v10993 = vlaneseq
        %v10994 = vshrl.u32 %v10993, 7
        %v10995 = vsub.s32 %v10992, %v10994
        %v10996 = vrot.slane %v10982, %v10995
        %v10997 = vcombine.low %v10989, %v10996
        %v10998 = vcombine.low %v8714, %v8716
        %v10999 = vcombine.low %v8755, %v8757
        %v11001 = vunpack.c.l.s4 1983009808
        %v11002 = vunpack.c.0.s8 %v11001
        %v11003 = vlaneseq
        %v11004 = vshrl.u32 %v11003, 7
        %v11005 = vsub.s32 %v11002, %v11004
        %v11006 = vrot.slane %v10998, %v11005
        %v11008 = vunpack.c.l.s4 1983009808
        %v11009 = vunpack.c.0.s8 %v11008
        %v11010 = vlaneseq
        %v11011 = vshrl.u32 %v11010, 7
        %v11012 = vsub.s32 %v11009, %v11011
        %v11013 = vrot.slane %v10999, %v11012
        %v11014 = vcombine.low %v11006, %v11013
        %v11015 = vcombine.low %v8796, %v8798
        %v11016 = vcombine.low %v8837, %v8839
        %v11018 = vunpack.c.l.s4 1983009808
        %v11019 = vunpack.c.0.s8 %v11018
        %v11020 = vlaneseq
        %v11021 = vshrl.u32 %v11020, 7
        %v11022 = vsub.s32 %v11019, %v11021
        %v11023 = vrot.slane %v11015, %v11022
        %v11025 = vunpack.c.l.s4 1983009808
        %v11026 = vunpack.c.0.s8 %v11025
        %v11027 = vlaneseq
        %v11028 = vshrl.u32 %v11027, 7
        %v11029 = vsub.s32 %v11026, %v11028
        %v11030 = vrot.slane %v11016, %v11029
        %v11031 = vcombine.low %v11023, %v11030
        %v11032 = vcombine.low %v8878, %v8880
        %v11033 = vcombine.low %v8919, %v8921
        %v11035 = vunpack.c.l.s4 1983009808
        %v11036 = vunpack.c.0.s8 %v11035
        %v11037 = vlaneseq
        %v11038 = vshrl.u32 %v11037, 7
        %v11039 = vsub.s32 %v11036, %v11038
        %v11040 = vrot.slane %v11032, %v11039
        %v11042 = vunpack.c.l.s4 1983009808
        %v11043 = vunpack.c.0.s8 %v11042
        %v11044 = vlaneseq
        %v11045 = vshrl.u32 %v11044, 7
        %v11046 = vsub.s32 %v11043, %v11045
        %v11047 = vrot.slane %v11033, %v11046
        %v11048 = vcombine.low %v11040, %v11047
        %v11049 = vcombine.low %v8960, %v8962
        %v11050 = vcombine.low %v9001, %v9003
        %v11052 = vunpack.c.l.s4 1983009808
        %v11053 = vunpack.c.0.s8 %v11052
        %v11054 = vlaneseq
        %v11055 = vshrl.u32 %v11054, 7
        %v11056 = vsub.s32 %v11053, %v11055
        %v11057 = vrot.slane %v11049, %v11056
        %v11059 = vunpack.c.l.s4 1983009808
        %v11060 = vunpack.c.0.s8 %v11059
        %v11061 = vlaneseq
        %v11062 = vshrl.u32 %v11061, 7
        %v11063 = vsub.s32 %v11060, %v11062
        %v11064 = vrot.slane %v11050, %v11063
        %v11065 = vcombine.low %v11057, %v11064
        %v11066 = vcombine.low %v9042, %v9044
        %v11067 = vcombine.low %v9083, %v9085
        %v11069 = vunpack.c.l.s4 1983009808
        %v11070 = vunpack.c.0.s8 %v11069
        %v11071 = vlaneseq
        %v11072 = vshrl.u32 %v11071, 7
        %v11073 = vsub.s32 %v11070, %v11072
        %v11074 = vrot.slane %v11066, %v11073
        %v11076 = vunpack.c.l.s4 1983009808
        %v11077 = vunpack.c.0.s8 %v11076
        %v11078 = vlaneseq
        %v11079 = vshrl.u32 %v11078, 7
        %v11080 = vsub.s32 %v11077, %v11079
        %v11081 = vrot.slane %v11067, %v11080
        %v11082 = vcombine.low %v11074, %v11081
        %v11083 = vcombine.low %v9124, %v9126
        %v11084 = vcombine.low %v9165, %v9167
        %v11086 = vunpack.c.l.s4 1983009808
        %v11087 = vunpack.c.0.s8 %v11086
        %v11088 = vlaneseq
        %v11089 = vshrl.u32 %v11088, 7
        %v11090 = vsub.s32 %v11087, %v11089
        %v11091 = vrot.slane %v11083, %v11090
        %v11093 = vunpack.c.l.s4 1983009808
        %v11094 = vunpack.c.0.s8 %v11093
        %v11095 = vlaneseq
        %v11096 = vshrl.u32 %v11095, 7
        %v11097 = vsub.s32 %v11094, %v11096
        %v11098 = vrot.slane %v11084, %v11097
        %v11099 = vcombine.low %v11091, %v11098
        %v11100 = vcombine.low %v9206, %v9208
        %v11101 = vcombine.low %v9247, %v9249
        %v11103 = vunpack.c.l.s4 1983009808
        %v11104 = vunpack.c.0.s8 %v11103
        %v11105 = vlaneseq
        %v11106 = vshrl.u32 %v11105, 7
        %v11107 = vsub.s32 %v11104, %v11106
        %v11108 = vrot.slane %v11100, %v11107
        %v11110 = vunpack.c.l.s4 1983009808
        %v11111 = vunpack.c.0.s8 %v11110
        %v11112 = vlaneseq
        %v11113 = vshrl.u32 %v11112, 7
        %v11114 = vsub.s32 %v11111, %v11113
        %v11115 = vrot.slane %v11101, %v11114
        %v11116 = vcombine.low %v11108, %v11115
        %v11117 = vcombine.low %v9288, %v9290
        %v11118 = vcombine.low %v9329, %v9331
        %v11120 = vunpack.c.l.s4 1983009808
        %v11121 = vunpack.c.0.s8 %v11120
        %v11122 = vlaneseq
        %v11123 = vshrl.u32 %v11122, 7
        %v11124 = vsub.s32 %v11121, %v11123
        %v11125 = vrot.slane %v11117, %v11124
        %v11127 = vunpack.c.l.s4 1983009808
        %v11128 = vunpack.c.0.s8 %v11127
        %v11129 = vlaneseq
        %v11130 = vshrl.u32 %v11129, 7
        %v11131 = vsub.s32 %v11128, %v11130
        %v11132 = vrot.slane %v11118, %v11131
        %v11133 = vcombine.low %v11125, %v11132
        %v11134 = vcombine.low %v9370, %v9372
        %v11135 = vcombine.low %v9411, %v9413
        %v11137 = vunpack.c.l.s4 1983009808
        %v11138 = vunpack.c.0.s8 %v11137
        %v11139 = vlaneseq
        %v11140 = vshrl.u32 %v11139, 7
        %v11141 = vsub.s32 %v11138, %v11140
        %v11142 = vrot.slane %v11134, %v11141
        %v11144 = vunpack.c.l.s4 1983009808
        %v11145 = vunpack.c.0.s8 %v11144
        %v11146 = vlaneseq
        %v11147 = vshrl.u32 %v11146, 7
        %v11148 = vsub.s32 %v11145, %v11147
        %v11149 = vrot.slane %v11135, %v11148
        %v11150 = vcombine.low %v11142, %v11149
        %v11151 = vcombine.low %v9452, %v9454
        %v11152 = vcombine.low %v9493, %v9495
        %v11154 = vunpack.c.l.s4 1983009808
        %v11155 = vunpack.c.0.s8 %v11154
        %v11156 = vlaneseq
        %v11157 = vshrl.u32 %v11156, 7
        %v11158 = vsub.s32 %v11155, %v11157
        %v11159 = vrot.slane %v11151, %v11158
        %v11161 = vunpack.c.l.s4 1983009808
        %v11162 = vunpack.c.0.s8 %v11161
        %v11163 = vlaneseq
        %v11164 = vshrl.u32 %v11163, 7
        %v11165 = vsub.s32 %v11162, %v11164
        %v11166 = vrot.slane %v11152, %v11165
        %v11167 = vcombine.low %v11159, %v11166
        %v11168 = vcombine.low %v9534, %v9536
        %v11169 = vcombine.low %v9575, %v9577
        %v11171 = vunpack.c.l.s4 1983009808
        %v11172 = vunpack.c.0.s8 %v11171
        %v11173 = vlaneseq
        %v11174 = vshrl.u32 %v11173, 7
        %v11175 = vsub.s32 %v11172, %v11174
        %v11176 = vrot.slane %v11168, %v11175
        %v11178 = vunpack.c.l.s4 1983009808
        %v11179 = vunpack.c.0.s8 %v11178
        %v11180 = vlaneseq
        %v11181 = vshrl.u32 %v11180, 7
        %v11182 = vsub.s32 %v11179, %v11181
        %v11183 = vrot.slane %v11169, %v11182
        %v11184 = vcombine.low %v11176, %v11183
        %v11185 = vcombine.low %v9616, %v9618
        %v11186 = vcombine.low %v9657, %v9659
        %v11188 = vunpack.c.l.s4 1983009808
        %v11189 = vunpack.c.0.s8 %v11188
        %v11190 = vlaneseq
        %v11191 = vshrl.u32 %v11190, 7
        %v11192 = vsub.s32 %v11189, %v11191
        %v11193 = vrot.slane %v11185, %v11192
        %v11195 = vunpack.c.l.s4 1983009808
        %v11196 = vunpack.c.0.s8 %v11195
        %v11197 = vlaneseq
        %v11198 = vshrl.u32 %v11197, 7
        %v11199 = vsub.s32 %v11196, %v11198
        %v11200 = vrot.slane %v11186, %v11199
        %v11201 = vcombine.low %v11193, %v11200
        %v11202 = vcombine.low %v9698, %v9700
        %v11203 = vcombine.low %v9739, %v9741
        %v11205 = vunpack.c.l.s4 1983009808
        %v11206 = vunpack.c.0.s8 %v11205
        %v11207 = vlaneseq
        %v11208 = vshrl.u32 %v11207, 7
        %v11209 = vsub.s32 %v11206, %v11208
        %v11210 = vrot.slane %v11202, %v11209
        %v11212 = vunpack.c.l.s4 1983009808
        %v11213 = vunpack.c.0.s8 %v11212
        %v11214 = vlaneseq
        %v11215 = vshrl.u32 %v11214, 7
        %v11216 = vsub.s32 %v11213, %v11215
        %v11217 = vrot.slane %v11203, %v11216
        %v11218 = vcombine.low %v11210, %v11217
        %v11219 = vcombine.low %v9780, %v9782
        %v11220 = vcombine.low %v9821, %v9823
        %v11222 = vunpack.c.l.s4 1983009808
        %v11223 = vunpack.c.0.s8 %v11222
        %v11224 = vlaneseq
        %v11225 = vshrl.u32 %v11224, 7
        %v11226 = vsub.s32 %v11223, %v11225
        %v11227 = vrot.slane %v11219, %v11226
        %v11229 = vunpack.c.l.s4 1983009808
        %v11230 = vunpack.c.0.s8 %v11229
        %v11231 = vlaneseq
        %v11232 = vshrl.u32 %v11231, 7
        %v11233 = vsub.s32 %v11230, %v11232
        %v11234 = vrot.slane %v11220, %v11233
        %v11235 = vcombine.low %v11227, %v11234
        %v11236 = vcombine.low %v9862, %v9864
        %v11237 = vcombine.low %v9903, %v9905
        %v11239 = vunpack.c.l.s4 1983009808
        %v11240 = vunpack.c.0.s8 %v11239
        %v11241 = vlaneseq
        %v11242 = vshrl.u32 %v11241, 7
        %v11243 = vsub.s32 %v11240, %v11242
        %v11244 = vrot.slane %v11236, %v11243
        %v11246 = vunpack.c.l.s4 1983009808
        %v11247 = vunpack.c.0.s8 %v11246
        %v11248 = vlaneseq
        %v11249 = vshrl.u32 %v11248, 7
        %v11250 = vsub.s32 %v11247, %v11249
        %v11251 = vrot.slane %v11237, %v11250
        %v11252 = vcombine.low %v11244, %v11251
        %11317 = vst [vmem:[%s236] sm:$0xff] %v10181
        %11318 = vst [vmem:[%s236 + $0x8] sm:$0xff] %v10198
        %11319 = vst [vmem:[%s236 + $0x10] sm:$0xff] %v10215
        %11320 = vst [vmem:[%s236 + $0x18] sm:$0xff] %v10232
        %11321 = vst [vmem:[%s236 + $0x20] sm:$0xff] %v10249
        %11322 = vst [vmem:[%s236 + $0x28] sm:$0xff] %v10266
        %11323 = vst [vmem:[%s236 + $0x30] sm:$0xff] %v10283
        %11324 = vst [vmem:[%s236 + $0x38] sm:$0xff] %v10300
        %11325 = vst [vmem:[%s236 + $0x40] sm:$0xff] %v10317
        %11326 = vst [vmem:[%s236 + $0x48] sm:$0xff] %v10334
        %11327 = vst [vmem:[%s236 + $0x50] sm:$0xff] %v10351
        %11328 = vst [vmem:[%s236 + $0x58] sm:$0xff] %v10368
        %11329 = vst [vmem:[%s236 + $0x60] sm:$0xff] %v10385
        %11330 = vst [vmem:[%s236 + $0x68] sm:$0xff] %v10402
        %11331 = vst [vmem:[%s236 + $0x70] sm:$0xff] %v10419
        %11332 = vst [vmem:[%s236 + $0x78] sm:$0xff] %v10436
        %11333 = vst [vmem:[%s236 + $0x80] sm:$0xff] %v10453
        %11334 = vst [vmem:[%s236 + $0x88] sm:$0xff] %v10470
        %11335 = vst [vmem:[%s236 + $0x90] sm:$0xff] %v10487
        %11336 = vst [vmem:[%s236 + $0x98] sm:$0xff] %v10504
        %11337 = vst [vmem:[%s236 + $0xa0] sm:$0xff] %v10521
        %11338 = vst [vmem:[%s236 + $0xa8] sm:$0xff] %v10538
        %11339 = vst [vmem:[%s236 + $0xb0] sm:$0xff] %v10555
        %11340 = vst [vmem:[%s236 + $0xb8] sm:$0xff] %v10572
        %11341 = vst [vmem:[%s236 + $0xc0] sm:$0xff] %v10589
        %11342 = vst [vmem:[%s236 + $0xc8] sm:$0xff] %v10606
        %11343 = vst [vmem:[%s236 + $0xd0] sm:$0xff] %v10623
        %11344 = vst [vmem:[%s236 + $0xd8] sm:$0xff] %v10640
        %11345 = vst [vmem:[%s236 + $0xe0] sm:$0xff] %v10657
        %11346 = vst [vmem:[%s236 + $0xe8] sm:$0xff] %v10674
        %11347 = vst [vmem:[%s236 + $0xf0] sm:$0xff] %v10691
        %11348 = vst [vmem:[%s236 + $0xf8] sm:$0xff] %v10708
        %11349 = vst [vmem:[%s236 + $0x100] sm:$0xff] %v10725
        %11350 = vst [vmem:[%s236 + $0x108] sm:$0xff] %v10742
        %11351 = vst [vmem:[%s236 + $0x110] sm:$0xff] %v10759
        %11352 = vst [vmem:[%s236 + $0x118] sm:$0xff] %v10776
        %11353 = vst [vmem:[%s236 + $0x120] sm:$0xff] %v10793
        %11354 = vst [vmem:[%s236 + $0x128] sm:$0xff] %v10810
        %11355 = vst [vmem:[%s236 + $0x130] sm:$0xff] %v10827
        %11356 = vst [vmem:[%s236 + $0x138] sm:$0xff] %v10844
        %11357 = vst [vmem:[%s236 + $0x140] sm:$0xff] %v10861
        %11358 = vst [vmem:[%s236 + $0x148] sm:$0xff] %v10878
        %11359 = vst [vmem:[%s236 + $0x150] sm:$0xff] %v10895
        %11360 = vst [vmem:[%s236 + $0x158] sm:$0xff] %v10912
        %11361 = vst [vmem:[%s236 + $0x160] sm:$0xff] %v10929
        %11362 = vst [vmem:[%s236 + $0x168] sm:$0xff] %v10946
        %11363 = vst [vmem:[%s236 + $0x170] sm:$0xff] %v10963
        %11364 = vst [vmem:[%s236 + $0x178] sm:$0xff] %v10980
        %11365 = vst [vmem:[%s236 + $0x180] sm:$0xff] %v10997
        %11366 = vst [vmem:[%s236 + $0x188] sm:$0xff] %v11014
        %11367 = vst [vmem:[%s236 + $0x190] sm:$0xff] %v11031
        %11368 = vst [vmem:[%s236 + $0x198] sm:$0xff] %v11048
        %11369 = vst [vmem:[%s236 + $0x1a0] sm:$0xff] %v11065
        %11370 = vst [vmem:[%s236 + $0x1a8] sm:$0xff] %v11082
        %11371 = vst [vmem:[%s236 + $0x1b0] sm:$0xff] %v11099
        %11372 = vst [vmem:[%s236 + $0x1b8] sm:$0xff] %v11116
        %11373 = vst [vmem:[%s236 + $0x1c0] sm:$0xff] %v11133
        %11374 = vst [vmem:[%s236 + $0x1c8] sm:$0xff] %v11150
        %11375 = vst [vmem:[%s236 + $0x1d0] sm:$0xff] %v11167
        %11376 = vst [vmem:[%s236 + $0x1d8] sm:$0xff] %v11184
        %11377 = vst [vmem:[%s236 + $0x1e0] sm:$0xff] %v11201
        %11378 = vst [vmem:[%s236 + $0x1e8] sm:$0xff] %v11218
        %11379 = vst [vmem:[%s236 + $0x1f0] sm:$0xff] %v11235
        %11380 = vst [vmem:[%s236 + $0x1f8] sm:$0xff] %v11252
        %s11381 = sand.u32 %s102, 1
        %s11382 = scalar_lea.sflag [#allocation4], %s11381
        %s11383 = sand.u32 %s102, 1
        %s11384 = smul.addr %s11383, 512
        %s11385 = scalar_lea.vmem [#allocation8], %s11384
        // Predicated region
        $region45: #{tpu_custom_call.1} parent=31 // pred_check
          %p11386 = pneg %p112
        $region46: #{tpu_custom_call.1} parent=31 // pred_check_branch
          %11388 = sbr.rel (%p11386) target = $region48
        $region47: #{tpu_custom_call.1} parent=31 // pred_region
          %s11389 = smul.u32 256, %s21
          %s11391 = ssub.s32 8192, 8192
          %11392 = vsyncadd %s11382, %s11391
          %s11393 = smul.addr %s11389, 32
          %s11394 = scalar_lea.hbm %s3, %s11393
          %s11396 = sshll.u32 %s11385, 4
          %s11397 = int_to_ptr.vmem [resolvable:$true] %s11396
          %11399 = dma.vmem_to_hbm [thread:$0]  %s11397, 8192, %s11394, %s11382
        $region48: #{tpu_custom_call.1} parent=31 // pred_fallthru
          _
      $region32: #{tpu_custom_call.1} parent=5 // pred_fallthru
        _
      %p11400 = scmp.le.s32.totalorder 2, %s16
      // Predicated region
      $region49: #{tpu_custom_call.1} parent=5 // pred_check
        %p11401 = pneg %p11400
      $region50: #{tpu_custom_call.1} parent=5 // pred_check_branch
        %11403 = sbr.rel (%p11401) target = $region52
      $region51: #{tpu_custom_call.1} parent=5 // pred_region
        %s11404 = ssub.s32 %s16, 2
        // Predicated region
        $region53: #{tpu_custom_call.1} parent=51 // pred_check
          %p11405 = pneg %p118
        $region54: #{tpu_custom_call.1} parent=51 // pred_check_branch
          %11407 = sbr.rel (%p11405) target = $region56
        $region55: #{tpu_custom_call.1} parent=51 // pred_region
          %s11408 = sand.u32 %s103, 1
          %s11409 = scalar_lea.sflag [#allocation4], %s11408
          %s11410 = sand.u32 %s103, 1
          %s11411 = smul.addr %s11410, 512
          %s11412 = scalar_lea.vmem [#allocation8], %s11411
          %11413 = dma.done %s11409, 8192
        $region56: #{tpu_custom_call.1} parent=51 // pred_fallthru
          _
      $region52: #{tpu_custom_call.1} parent=5 // pred_fallthru
        _
    $region6: #{tpu_custom_call.1} parent=1 // loop_footer
      %s20 = sadd.s32 1, %s16
    $region7: #{tpu_custom_call.1} parent=1 // loop_footer_branch
      %15 = sbr.rel target = $region3
    $region8: #{tpu_custom_call.1} parent=1 // loop_exit
      _
    %11414 = vsyncpa [#allocation3], 1
    %s11415 = scalar_lea.sflag [#allocation3], 1
    %11416 = vsyncpa %s11415, 1
    %11417 = vsyncpa [#allocation6], 1
    %s11418 = scalar_lea.sflag [#allocation6], 1
    %11419 = vsyncpa %s11418, 1
    %11420 = vsyncpa [#allocation4], 1
    %s11421 = scalar_lea.sflag [#allocation4], 1
    %11422 = vsyncpa %s11421, 1

</llo_original>
